<compile_context>
chip_gen: v6e
topology: v6e:2x2x1
jax: 0.10.0
libtpu: 0.0.40
codegen_flags: <defaults>
</compile_context>

<pallas_src>
import jax
import jax.numpy as jnp
from jax.experimental import pallas as pl
from jax.experimental.pallas import tpu as pltpu

EPS = 1e-5


def basic_block_kernel(xp_ref, x_ref, w1_ref, g1_ref, b1_ref,
                       w2_ref, g2_ref, b2_ref,
                       out_ref, col_ref, mid_ref):
    # xp_ref : (N, H+2, W+2, Cin)   zero-padded input, f32 (NHWC)
    # x_ref  : (N, H, W, Cin)       unpadded input, f32 (residual identity)
    # w1_ref : (9*Cin, planes)      conv1 weights, rows ordered (kh, kw, cin), bf16
    # w2_ref : (9*planes, planes)   conv2 weights, bf16
    # g*/b*  : (1, planes)          BN affine params, f32
    # out_ref: (N, H, W, planes)    f32
    # col_ref: (N*H*W, 9*Cin)       f32 VMEM scratch, im2col buffer (reused)
    # mid_ref: (N, H+2, W+2, planes) f32 VMEM scratch, padded relu(bn1(conv1))
    N, Hp, Wp, Cin = xp_ref.shape
    H, W = Hp - 2, Wp - 2
    planes = g1_ref.shape[-1]
    M = N * H * W
    inv_m = 1.0 / float(M)

    # ---------------- conv1: im2col once, then a single (M, 9*Cin) matmul ----
    for dh in range(3):
        for dw in range(3):
            tap = dh * 3 + dw
            col_ref[:, tap * Cin:(tap + 1) * Cin] = (
                xp_ref[:, dh:dh + H, dw:dw + W, :].reshape(M, Cin))

    acc = jnp.dot(col_ref[...].astype(jnp.bfloat16), w1_ref[...],
                  preferred_element_type=jnp.float32)          # (M, planes) f32

    # ---------------- bn1: single-pass stats, folded scale/shift, relu -------
    # NOTE: E[x^2] - mean^2 form; fine in f32 for conv-scale activations.
    s1 = jnp.sum(acc, axis=0, keepdims=True)
    q1 = jnp.sum(acc * acc, axis=0, keepdims=True)
    mu1 = s1 * inv_m
    var1 = jnp.maximum(q1 * inv_m - mu1 * mu1, 0.0)
    scale1 = g1_ref[...] * jax.lax.rsqrt(var1 + EPS)
    shift1 = b1_ref[...] - mu1 * scale1
    y = jnp.maximum(acc * scale1 + shift1, 0.0)                # (M, planes) f32

    # ---------------- stage padded mid: zero halo only, write interior -------
    zrow = jnp.zeros((N, 1, Wp, planes), mid_ref.dtype)
    mid_ref[:, 0:1, :, :] = zrow
    mid_ref[:, H + 1:H + 2, :, :] = zrow
    zcol = jnp.zeros((N, Hp, 1, planes), mid_ref.dtype)
    mid_ref[:, :, 0:1, :] = zcol
    mid_ref[:, :, W + 1:W + 2, :] = zcol
    mid_ref[:, 1:H + 1, 1:W + 1, :] = y.reshape(N, H, W, planes)

    # ---------------- conv2: reuse the same im2col scratch (Cin == planes) ---
    for dh in range(3):
        for dw in range(3):
            tap = dh * 3 + dw
            col_ref[:, tap * planes:(tap + 1) * planes] = (
                mid_ref[:, dh:dh + H, dw:dw + W, :].reshape(M, planes))

    acc2 = jnp.dot(col_ref[...].astype(jnp.bfloat16), w2_ref[...],
                   preferred_element_type=jnp.float32)         # (M, planes) f32

    # ---------------- bn2 (folded) + residual add (4D) + relu ----------------
    s2 = jnp.sum(acc2, axis=0, keepdims=True)
    q2 = jnp.sum(acc2 * acc2, axis=0, keepdims=True)
    mu2 = s2 * inv_m
    var2 = jnp.maximum(q2 * inv_m - mu2 * mu2, 0.0)
    scale2 = g2_ref[...] * jax.lax.rsqrt(var2 + EPS)
    shift2 = b2_ref[...] - mu2 * scale2
    y2 = acc2 * scale2 + shift2                                # (M, planes) f32

    out_ref[...] = jnp.maximum(y2.reshape(N, H, W, planes) + x_ref[...], 0.0)


def basic_block(x_nchw, w1_hwio, g1, b1, w2_hwio, g2, b2):
    """x_nchw: (N, C, H, W) float32. Returns (N, planes, H, W).

    w*_hwio: (3, 3, Cin, Cout) conv weights (HWIO); BN params (1, planes) f32.
    """
    N, C, H, W = x_nchw.shape
    planes = w1_hwio.shape[-1]
    assert C == planes, "residual add requires inplanes == planes (downsample=None)"

    x_nhwc = jnp.transpose(x_nchw, (0, 2, 3, 1)).astype(jnp.float32)
    xp = jnp.pad(x_nhwc, ((0, 0), (1, 1), (1, 1), (0, 0)))

    # Weights flattened to (9*Cin, Cout) with rows in (kh, kw, cin) order, cast
    # to bf16 once on the host side (halves weight DMA, native MXU bf16 path).
    w1b = w1_hwio.reshape(9 * C, planes).astype(jnp.bfloat16)
    w2b = w2_hwio.reshape(9 * planes, planes).astype(jnp.bfloat16)

    vmem = pltpu.MemorySpace.VMEM
    out_nhwc = pl.pallas_call(
        basic_block_kernel,
        out_shape=jax.ShapeDtypeStruct((N, H, W, planes), jnp.float32),
        in_specs=[pl.BlockSpec(memory_space=vmem) for _ in range(8)],
        out_specs=pl.BlockSpec(memory_space=vmem),
        scratch_shapes=[
            pltpu.VMEM((N * H * W, 9 * C), jnp.float32),          # im2col buffer
            pltpu.VMEM((N, H + 2, W + 2, planes), jnp.float32),   # padded mid
        ],
        compiler_params=pltpu.CompilerParams(
            vmem_limit_bytes=32 * 1024 * 1024),
    )(xp, x_nhwc, w1b, g1, b1, w2b, g2, b2)

    return jnp.transpose(out_nhwc, (0, 3, 1, 2))


if __name__ == "__main__":
    key = jax.random.PRNGKey(0)
    N, C, H, W = 2, 8, 16, 16        # batch=2, inplanes=planes=8, spatial=16
    planes = C

    k0, k1, k2 = jax.random.split(key, 3)
    x = jax.random.normal(k0, (N, C, H, W), jnp.float32)

    # Conv weights generated directly in HWIO order (3, 3, Cin, Cout).
    # (PyTorch layout (Cout, Cin, 3, 3) would be transposed to this.)
    w1 = jax.random.normal(k1, (3, 3, C, planes), jnp.float32) * 0.1
    w2 = jax.random.normal(k2, (3, 3, planes, planes), jnp.float32) * 0.1

    # BatchNorm affine params at PyTorch defaults: gamma=1, beta=0.
    g1 = jnp.ones((1, planes), jnp.float32)
    b1 = jnp.zeros((1, planes), jnp.float32)
    g2 = jnp.ones((1, planes), jnp.float32)
    b2 = jnp.zeros((1, planes), jnp.float32)

    y = basic_block(x, w1, g1, b1, w2, g2, b2)
    jax.block_until_ready(y)
    assert y.shape == (N, planes, H, W)
    assert bool(jnp.all(jnp.isfinite(y)))
    assert bool(jnp.all(y >= 0.0))   # final ReLU
    print("KERNEL_OK")
</pallas_src>

<mosaic_0001>
module attributes {stable_mosaic.version = 11 : i64} {
  func.func @basic_block_kernel(%arg0: memref<2x18x18x8xf32, #tpu.memory_space<vmem>>, %arg1: memref<2x16x16x8xf32, #tpu.memory_space<vmem>>, %arg2: memref<72x8xbf16, #tpu.memory_space<vmem>>, %arg3: memref<1x8xf32, #tpu.memory_space<vmem>>, %arg4: memref<1x8xf32, #tpu.memory_space<vmem>>, %arg5: memref<72x8xbf16, #tpu.memory_space<vmem>>, %arg6: memref<1x8xf32, #tpu.memory_space<vmem>>, %arg7: memref<1x8xf32, #tpu.memory_space<vmem>>, %arg8: memref<2x16x16x8xf32, #tpu.memory_space<vmem>>, %arg9: memref<512x72xf32, #tpu.memory_space<vmem>>, %arg10: memref<2x18x18x8xf32, #tpu.memory_space<vmem>>) attributes {dimension_semantics = [], scalar_prefetch = 0 : i64, scratch_operands = 2 : i64, tpu.core_type = #tpu.core_type<tc>} {
    %c0 = arith.constant 0 : index
    %c0_0 = arith.constant 0 : index
    %c0_1 = arith.constant 0 : index
    %c0_2 = arith.constant 0 : index
    %0 = vector.load %arg0[%c0, %c0_0, %c0_1, %c0_2] : memref<2x18x18x8xf32, #tpu.memory_space<vmem>>, vector<2x16x16x8xf32>
    %1 = vector.shape_cast %0 : vector<2x16x16x8xf32> to vector<512x8xf32>
    %c0_3 = arith.constant 0 : index
    %c0_4 = arith.constant 0 : index
    %2 = vector.load %arg9[%c0_3, %c0_4] : memref<512x72xf32, #tpu.memory_space<vmem>>, vector<512x8xf32>
    tpu.vector_store %arg9[%c0_3, %c0_4], %1 {strides = array<i32>} : memref<512x72xf32, #tpu.memory_space<vmem>>, vector<512x8xf32>,
    %c0_5 = arith.constant 0 : index
    %c0_6 = arith.constant 0 : index
    %c1 = arith.constant 1 : index
    %c0_7 = arith.constant 0 : index
    %3 = vector.load %arg0[%c0_5, %c0_6, %c1, %c0_7] : memref<2x18x18x8xf32, #tpu.memory_space<vmem>>, vector<2x16x16x8xf32>
    %4 = vector.shape_cast %3 : vector<2x16x16x8xf32> to vector<512x8xf32>
    %c0_8 = arith.constant 0 : index
    %c8 = arith.constant 8 : index
    %5 = vector.load %arg9[%c0_8, %c8] : memref<512x72xf32, #tpu.memory_space<vmem>>, vector<512x8xf32>
    tpu.vector_store %arg9[%c0_8, %c8], %4 {strides = array<i32>} : memref<512x72xf32, #tpu.memory_space<vmem>>, vector<512x8xf32>,
    %c0_9 = arith.constant 0 : index
    %c0_10 = arith.constant 0 : index
    %c2 = arith.constant 2 : index
    %c0_11 = arith.constant 0 : index
    %6 = vector.load %arg0[%c0_9, %c0_10, %c2, %c0_11] : memref<2x18x18x8xf32, #tpu.memory_space<vmem>>, vector<2x16x16x8xf32>
    %7 = vector.shape_cast %6 : vector<2x16x16x8xf32> to vector<512x8xf32>
    %c0_12 = arith.constant 0 : index
    %c16 = arith.constant 16 : index
    %8 = vector.load %arg9[%c0_12, %c16] : memref<512x72xf32, #tpu.memory_space<vmem>>, vector<512x8xf32>
    tpu.vector_store %arg9[%c0_12, %c16], %7 {strides = array<i32>} : memref<512x72xf32, #tpu.memory_space<vmem>>, vector<512x8xf32>,
    %c0_13 = arith.constant 0 : index
    %c1_14 = arith.constant 1 : index
    %c0_15 = arith.constant 0 : index
    %c0_16 = arith.constant 0 : index
    %9 = vector.load %arg0[%c0_13, %c1_14, %c0_15, %c0_16] : memref<2x18x18x8xf32, #tpu.memory_space<vmem>>, vector<2x16x16x8xf32>
    %10 = vector.shape_cast %9 : vector<2x16x16x8xf32> to vector<512x8xf32>
    %c0_17 = arith.constant 0 : index
    %c24 = arith.constant 24 : index
    %11 = vector.load %arg9[%c0_17, %c24] : memref<512x72xf32, #tpu.memory_space<vmem>>, vector<512x8xf32>
    tpu.vector_store %arg9[%c0_17, %c24], %10 {strides = array<i32>} : memref<512x72xf32, #tpu.memory_space<vmem>>, vector<512x8xf32>,
    %c0_18 = arith.constant 0 : index
    %c1_19 = arith.constant 1 : index
    %c1_20 = arith.constant 1 : index
    %c0_21 = arith.constant 0 : index
    %12 = vector.load %arg0[%c0_18, %c1_19, %c1_20, %c0_21] : memref<2x18x18x8xf32, #tpu.memory_space<vmem>>, vector<2x16x16x8xf32>
    %13 = vector.shape_cast %12 : vector<2x16x16x8xf32> to vector<512x8xf32>
    %c0_22 = arith.constant 0 : index
    %c32 = arith.constant 32 : index
    %14 = vector.load %arg9[%c0_22, %c32] : memref<512x72xf32, #tpu.memory_space<vmem>>, vector<512x8xf32>
    tpu.vector_store %arg9[%c0_22, %c32], %13 {strides = array<i32>} : memref<512x72xf32, #tpu.memory_space<vmem>>, vector<512x8xf32>,
    %c0_23 = arith.constant 0 : index
    %c1_24 = arith.constant 1 : index
    %c2_25 = arith.constant 2 : index
    %c0_26 = arith.constant 0 : index
    %15 = vector.load %arg0[%c0_23, %c1_24, %c2_25, %c0_26] : memref<2x18x18x8xf32, #tpu.memory_space<vmem>>, vector<2x16x16x8xf32>
    %16 = vector.shape_cast %15 : vector<2x16x16x8xf32> to vector<512x8xf32>
    %c0_27 = arith.constant 0 : index
    %c40 = arith.constant 40 : index
    %17 = vector.load %arg9[%c0_27, %c40] : memref<512x72xf32, #tpu.memory_space<vmem>>, vector<512x8xf32>
    tpu.vector_store %arg9[%c0_27, %c40], %16 {strides = array<i32>} : memref<512x72xf32, #tpu.memory_space<vmem>>, vector<512x8xf32>,
    %c0_28 = arith.constant 0 : index
    %c2_29 = arith.constant 2 : index
    %c0_30 = arith.constant 0 : index
    %c0_31 = arith.constant 0 : index
    %18 = vector.load %arg0[%c0_28, %c2_29, %c0_30, %c0_31] : memref<2x18x18x8xf32, #tpu.memory_space<vmem>>, vector<2x16x16x8xf32>
    %19 = vector.shape_cast %18 : vector<2x16x16x8xf32> to vector<512x8xf32>
    %c0_32 = arith.constant 0 : index
    %c48 = arith.constant 48 : index
    %20 = vector.load %arg9[%c0_32, %c48] : memref<512x72xf32, #tpu.memory_space<vmem>>, vector<512x8xf32>
    tpu.vector_store %arg9[%c0_32, %c48], %19 {strides = array<i32>} : memref<512x72xf32, #tpu.memory_space<vmem>>, vector<512x8xf32>,
    %c0_33 = arith.constant 0 : index
    %c2_34 = arith.constant 2 : index
    %c1_35 = arith.constant 1 : index
    %c0_36 = arith.constant 0 : index
    %21 = vector.load %arg0[%c0_33, %c2_34, %c1_35, %c0_36] : memref<2x18x18x8xf32, #tpu.memory_space<vmem>>, vector<2x16x16x8xf32>
    %22 = vector.shape_cast %21 : vector<2x16x16x8xf32> to vector<512x8xf32>
    %c0_37 = arith.constant 0 : index
    %c56 = arith.constant 56 : index
    %23 = vector.load %arg9[%c0_37, %c56] : memref<512x72xf32, #tpu.memory_space<vmem>>, vector<512x8xf32>
    tpu.vector_store %arg9[%c0_37, %c56], %22 {strides = array<i32>} : memref<512x72xf32, #tpu.memory_space<vmem>>, vector<512x8xf32>,
    %c0_38 = arith.constant 0 : index
    %c2_39 = arith.constant 2 : index
    %c2_40 = arith.constant 2 : index
    %c0_41 = arith.constant 0 : index
    %24 = vector.load %arg0[%c0_38, %c2_39, %c2_40, %c0_41] : memref<2x18x18x8xf32, #tpu.memory_space<vmem>>, vector<2x16x16x8xf32>
    %25 = vector.shape_cast %24 : vector<2x16x16x8xf32> to vector<512x8xf32>
    %c0_42 = arith.constant 0 : index
    %c64 = arith.constant 64 : index
    %26 = vector.load %arg9[%c0_42, %c64] : memref<512x72xf32, #tpu.memory_space<vmem>>, vector<512x8xf32>
    tpu.vector_store %arg9[%c0_42, %c64], %25 {strides = array<i32>} : memref<512x72xf32, #tpu.memory_space<vmem>>, vector<512x8xf32>,
    %c0_43 = arith.constant 0 : index
    %c0_44 = arith.constant 0 : index
    %27 = vector.load %arg9[%c0_43, %c0_44] : memref<512x72xf32, #tpu.memory_space<vmem>>, vector<512x72xf32>
    %28 = arith.truncf %27 : vector<512x72xf32> to vector<512x72xbf16>
    %c0_45 = arith.constant 0 : index
    %c0_46 = arith.constant 0 : index
    %29 = vector.load %arg2[%c0_45, %c0_46] : memref<72x8xbf16, #tpu.memory_space<vmem>>, vector<72x8xbf16>
    %cst = arith.constant dense<0.000000e+00> : vector<512x8xf32>
    %30 = tpu.matmul %28, %29, %cst {dimension_numbers = #tpu.dot_dimension_numbers<[1], [0], [0], [1], [0, 0, 1, 1], [], []>} : vector<512x72xbf16>, vector<72x8xbf16>, vector<512x8xf32> -> vector<512x8xf32>
    %cst_47 = arith.constant dense<0.000000e+00> : vector<8xf32>
    %31 = vector.multi_reduction <add>, %30, %cst_47 [0] : vector<512x8xf32> to vector<8xf32>
    %32 = vector.shape_cast %31 : vector<8xf32> to vector<1x8xf32>
    %33 = arith.mulf %30, %30 : vector<512x8xf32>
    %cst_48 = arith.constant dense<0.000000e+00> : vector<8xf32>
    %34 = vector.multi_reduction <add>, %33, %cst_48 [0] : vector<512x8xf32> to vector<8xf32>
    %35 = vector.shape_cast %34 : vector<8xf32> to vector<1x8xf32>
    %cst_49 = arith.constant 0.001953125 : f32
    %36 = vector.broadcast %cst_49 : f32 to vector<1x8xf32>
    %37 = arith.mulf %32, %36 : vector<1x8xf32>
    %cst_50 = arith.constant 0.001953125 : f32
    %38 = vector.broadcast %cst_50 : f32 to vector<1x8xf32>
    %39 = arith.mulf %35, %38 : vector<1x8xf32>
    %40 = arith.mulf %37, %37 : vector<1x8xf32>
    %41 = arith.subf %39, %40 : vector<1x8xf32>
    %cst_51 = arith.constant 0.000000e+00 : f32
    %42 = vector.broadcast %cst_51 : f32 to vector<1x8xf32>
    %43 = arith.maximumf %41, %42 : vector<1x8xf32>
    %c0_52 = arith.constant 0 : index
    %c0_53 = arith.constant 0 : index
    %44 = vector.load %arg3[%c0_52, %c0_53] : memref<1x8xf32, #tpu.memory_space<vmem>>, vector<1x8xf32>
    %cst_54 = arith.constant 9.99999974E-6 : f32
    %45 = vector.broadcast %cst_54 : f32 to vector<1x8xf32>
    %46 = arith.addf %43, %45 : vector<1x8xf32>
    %47 = math.rsqrt %46 : vector<1x8xf32>
    %48 = arith.mulf %44, %47 : vector<1x8xf32>
    %c0_55 = arith.constant 0 : index
    %c0_56 = arith.constant 0 : index
    %49 = vector.load %arg4[%c0_55, %c0_56] : memref<1x8xf32, #tpu.memory_space<vmem>>, vector<1x8xf32>
    %50 = arith.mulf %37, %48 : vector<1x8xf32>
    %51 = arith.subf %49, %50 : vector<1x8xf32>
    %52 = vector.broadcast %48 : vector<1x8xf32> to vector<512x8xf32>
    %53 = arith.mulf %30, %52 : vector<512x8xf32>
    %54 = vector.broadcast %51 : vector<1x8xf32> to vector<512x8xf32>
    %55 = arith.addf %53, %54 : vector<512x8xf32>
    %cst_57 = arith.constant 0.000000e+00 : f32
    %56 = vector.broadcast %cst_57 : f32 to vector<512x8xf32>
    %57 = arith.maximumf %55, %56 : vector<512x8xf32>
    %cst_58 = arith.constant 0.000000e+00 : f32
    %58 = vector.broadcast %cst_58 : f32 to vector<2x1x18x8xf32>
    %c0_59 = arith.constant 0 : index
    %c0_60 = arith.constant 0 : index
    %c0_61 = arith.constant 0 : index
    %c0_62 = arith.constant 0 : index
    %59 = vector.load %arg10[%c0_59, %c0_60, %c0_61, %c0_62] : memref<2x18x18x8xf32, #tpu.memory_space<vmem>>, vector<2x1x18x8xf32>
    tpu.vector_store %arg10[%c0_59, %c0_60, %c0_61, %c0_62], %58 {strides = array<i32>} : memref<2x18x18x8xf32, #tpu.memory_space<vmem>>, vector<2x1x18x8xf32>,
    %c0_63 = arith.constant 0 : index
    %c17 = arith.constant 17 : index
    %c0_64 = arith.constant 0 : index
    %c0_65 = arith.constant 0 : index
    %60 = vector.load %arg10[%c0_63, %c17, %c0_64, %c0_65] : memref<2x18x18x8xf32, #tpu.memory_space<vmem>>, vector<2x1x18x8xf32>
    tpu.vector_store %arg10[%c0_63, %c17, %c0_64, %c0_65], %58 {strides = array<i32>} : memref<2x18x18x8xf32, #tpu.memory_space<vmem>>, vector<2x1x18x8xf32>,
    %cst_66 = arith.constant 0.000000e+00 : f32
    %61 = vector.broadcast %cst_66 : f32 to vector<2x18x1x8xf32>
    %c0_67 = arith.constant 0 : index
    %c0_68 = arith.constant 0 : index
    %c0_69 = arith.constant 0 : index
    %c0_70 = arith.constant 0 : index
    %62 = vector.load %arg10[%c0_67, %c0_68, %c0_69, %c0_70] : memref<2x18x18x8xf32, #tpu.memory_space<vmem>>, vector<2x18x1x8xf32>
    tpu.vector_store %arg10[%c0_67, %c0_68, %c0_69, %c0_70], %61 {strides = array<i32>} : memref<2x18x18x8xf32, #tpu.memory_space<vmem>>, vector<2x18x1x8xf32>,
    %c0_71 = arith.constant 0 : index
    %c0_72 = arith.constant 0 : index
    %c17_73 = arith.constant 17 : index
    %c0_74 = arith.constant 0 : index
    %63 = vector.load %arg10[%c0_71, %c0_72, %c17_73, %c0_74] : memref<2x18x18x8xf32, #tpu.memory_space<vmem>>, vector<2x18x1x8xf32>
    tpu.vector_store %arg10[%c0_71, %c0_72, %c17_73, %c0_74], %61 {strides = array<i32>} : memref<2x18x18x8xf32, #tpu.memory_space<vmem>>, vector<2x18x1x8xf32>,
    %64 = vector.shape_cast %57 : vector<512x8xf32> to vector<2x16x16x8xf32>
    %c0_75 = arith.constant 0 : index
    %c1_76 = arith.constant 1 : index
    %c1_77 = arith.constant 1 : index
    %c0_78 = arith.constant 0 : index
    %65 = vector.load %arg10[%c0_75, %c1_76, %c1_77, %c0_78] : memref<2x18x18x8xf32, #tpu.memory_space<vmem>>, vector<2x16x16x8xf32>
    tpu.vector_store %arg10[%c0_75, %c1_76, %c1_77, %c0_78], %64 {strides = array<i32>} : memref<2x18x18x8xf32, #tpu.memory_space<vmem>>, vector<2x16x16x8xf32>,
    %c0_79 = arith.constant 0 : index
    %c0_80 = arith.constant 0 : index
    %c0_81 = arith.constant 0 : index
    %c0_82 = arith.constant 0 : index
    %66 = vector.load %arg10[%c0_79, %c0_80, %c0_81, %c0_82] : memref<2x18x18x8xf32, #tpu.memory_space<vmem>>, vector<2x16x16x8xf32>
    %67 = vector.shape_cast %66 : vector<2x16x16x8xf32> to vector<512x8xf32>
    %c0_83 = arith.constant 0 : index
    %c0_84 = arith.constant 0 : index
    %68 = vector.load %arg9[%c0_83, %c0_84] : memref<512x72xf32, #tpu.memory_space<vmem>>, vector<512x8xf32>
    tpu.vector_store %arg9[%c0_83, %c0_84], %67 {strides = array<i32>} : memref<512x72xf32, #tpu.memory_space<vmem>>, vector<512x8xf32>,
    %c0_85 = arith.constant 0 : index
    %c0_86 = arith.constant 0 : index
    %c1_87 = arith.constant 1 : index
    %c0_88 = arith.constant 0 : index
    %69 = vector.load %arg10[%c0_85, %c0_86, %c1_87, %c0_88] : memref<2x18x18x8xf32, #tpu.memory_space<vmem>>, vector<2x16x16x8xf32>
    %70 = vector.shape_cast %69 : vector<2x16x16x8xf32> to vector<512x8xf32>
    %c0_89 = arith.constant 0 : index
    %c8_90 = arith.constant 8 : index
    %71 = vector.load %arg9[%c0_89, %c8_90] : memref<512x72xf32, #tpu.memory_space<vmem>>, vector<512x8xf32>
    tpu.vector_store %arg9[%c0_89, %c8_90], %70 {strides = array<i32>} : memref<512x72xf32, #tpu.memory_space<vmem>>, vector<512x8xf32>,
    %c0_91 = arith.constant 0 : index
    %c0_92 = arith.constant 0 : index
    %c2_93 = arith.constant 2 : index
    %c0_94 = arith.constant 0 : index
    %72 = vector.load %arg10[%c0_91, %c0_92, %c2_93, %c0_94] : memref<2x18x18x8xf32, #tpu.memory_space<vmem>>, vector<2x16x16x8xf32>
    %73 = vector.shape_cast %72 : vector<2x16x16x8xf32> to vector<512x8xf32>
    %c0_95 = arith.constant 0 : index
    %c16_96 = arith.constant 16 : index
    %74 = vector.load %arg9[%c0_95, %c16_96] : memref<512x72xf32, #tpu.memory_space<vmem>>, vector<512x8xf32>
    tpu.vector_store %arg9[%c0_95, %c16_96], %73 {strides = array<i32>} : memref<512x72xf32, #tpu.memory_space<vmem>>, vector<512x8xf32>,
    %c0_97 = arith.constant 0 : index
    %c1_98 = arith.constant 1 : index
    %c0_99 = arith.constant 0 : index
    %c0_100 = arith.constant 0 : index
    %75 = vector.load %arg10[%c0_97, %c1_98, %c0_99, %c0_100] : memref<2x18x18x8xf32, #tpu.memory_space<vmem>>, vector<2x16x16x8xf32>
    %76 = vector.shape_cast %75 : vector<2x16x16x8xf32> to vector<512x8xf32>
    %c0_101 = arith.constant 0 : index
    %c24_102 = arith.constant 24 : index
    %77 = vector.load %arg9[%c0_101, %c24_102] : memref<512x72xf32, #tpu.memory_space<vmem>>, vector<512x8xf32>
    tpu.vector_store %arg9[%c0_101, %c24_102], %76 {strides = array<i32>} : memref<512x72xf32, #tpu.memory_space<vmem>>, vector<512x8xf32>,
    %c0_103 = arith.constant 0 : index
    %c1_104 = arith.constant 1 : index
    %c1_105 = arith.constant 1 : index
    %c0_106 = arith.constant 0 : index
    %78 = vector.load %arg10[%c0_103, %c1_104, %c1_105, %c0_106] : memref<2x18x18x8xf32, #tpu.memory_space<vmem>>, vector<2x16x16x8xf32>
    %79 = vector.shape_cast %78 : vector<2x16x16x8xf32> to vector<512x8xf32>
    %c0_107 = arith.constant 0 : index
    %c32_108 = arith.constant 32 : index
    %80 = vector.load %arg9[%c0_107, %c32_108] : memref<512x72xf32, #tpu.memory_space<vmem>>, vector<512x8xf32>
    tpu.vector_store %arg9[%c0_107, %c32_108], %79 {strides = array<i32>} : memref<512x72xf32, #tpu.memory_space<vmem>>, vector<512x8xf32>,
    %c0_109 = arith.constant 0 : index
    %c1_110 = arith.constant 1 : index
    %c2_111 = arith.constant 2 : index
    %c0_112 = arith.constant 0 : index
    %81 = vector.load %arg10[%c0_109, %c1_110, %c2_111, %c0_112] : memref<2x18x18x8xf32, #tpu.memory_space<vmem>>, vector<2x16x16x8xf32>
    %82 = vector.shape_cast %81 : vector<2x16x16x8xf32> to vector<512x8xf32>
    %c0_113 = arith.constant 0 : index
    %c40_114 = arith.constant 40 : index
    %83 = vector.load %arg9[%c0_113, %c40_114] : memref<512x72xf32, #tpu.memory_space<vmem>>, vector<512x8xf32>
    tpu.vector_store %arg9[%c0_113, %c40_114], %82 {strides = array<i32>} : memref<512x72xf32, #tpu.memory_space<vmem>>, vector<512x8xf32>,
    %c0_115 = arith.constant 0 : index
    %c2_116 = arith.constant 2 : index
    %c0_117 = arith.constant 0 : index
    %c0_118 = arith.constant 0 : index
    %84 = vector.load %arg10[%c0_115, %c2_116, %c0_117, %c0_118] : memref<2x18x18x8xf32, #tpu.memory_space<vmem>>, vector<2x16x16x8xf32>
    %85 = vector.shape_cast %84 : vector<2x16x16x8xf32> to vector<512x8xf32>
    %c0_119 = arith.constant 0 : index
    %c48_120 = arith.constant 48 : index
    %86 = vector.load %arg9[%c0_119, %c48_120] : memref<512x72xf32, #tpu.memory_space<vmem>>, vector<512x8xf32>
    tpu.vector_store %arg9[%c0_119, %c48_120], %85 {strides = array<i32>} : memref<512x72xf32, #tpu.memory_space<vmem>>, vector<512x8xf32>,
    %c0_121 = arith.constant 0 : index
    %c2_122 = arith.constant 2 : index
    %c1_123 = arith.constant 1 : index
    %c0_124 = arith.constant 0 : index
    %87 = vector.load %arg10[%c0_121, %c2_122, %c1_123, %c0_124] : memref<2x18x18x8xf32, #tpu.memory_space<vmem>>, vector<2x16x16x8xf32>
    %88 = vector.shape_cast %87 : vector<2x16x16x8xf32> to vector<512x8xf32>
    %c0_125 = arith.constant 0 : index
    %c56_126 = arith.constant 56 : index
    %89 = vector.load %arg9[%c0_125, %c56_126] : memref<512x72xf32, #tpu.memory_space<vmem>>, vector<512x8xf32>
    tpu.vector_store %arg9[%c0_125, %c56_126], %88 {strides = array<i32>} : memref<512x72xf32, #tpu.memory_space<vmem>>, vector<512x8xf32>,
    %c0_127 = arith.constant 0 : index
    %c2_128 = arith.constant 2 : index
    %c2_129 = arith.constant 2 : index
    %c0_130 = arith.constant 0 : index
    %90 = vector.load %arg10[%c0_127, %c2_128, %c2_129, %c0_130] : memref<2x18x18x8xf32, #tpu.memory_space<vmem>>, vector<2x16x16x8xf32>
    %91 = vector.shape_cast %90 : vector<2x16x16x8xf32> to vector<512x8xf32>
    %c0_131 = arith.constant 0 : index
    %c64_132 = arith.constant 64 : index
    %92 = vector.load %arg9[%c0_131, %c64_132] : memref<512x72xf32, #tpu.memory_space<vmem>>, vector<512x8xf32>
    tpu.vector_store %arg9[%c0_131, %c64_132], %91 {strides = array<i32>} : memref<512x72xf32, #tpu.memory_space<vmem>>, vector<512x8xf32>,
    %c0_133 = arith.constant 0 : index
    %c0_134 = arith.constant 0 : index
    %93 = vector.load %arg9[%c0_133, %c0_134] : memref<512x72xf32, #tpu.memory_space<vmem>>, vector<512x72xf32>
    %94 = arith.truncf %93 : vector<512x72xf32> to vector<512x72xbf16>
    %c0_135 = arith.constant 0 : index
    %c0_136 = arith.constant 0 : index
    %95 = vector.load %arg5[%c0_135, %c0_136] : memref<72x8xbf16, #tpu.memory_space<vmem>>, vector<72x8xbf16>
    %cst_137 = arith.constant dense<0.000000e+00> : vector<512x8xf32>
    %96 = tpu.matmul %94, %95, %cst_137 {dimension_numbers = #tpu.dot_dimension_numbers<[1], [0], [0], [1], [0, 0, 1, 1], [], []>} : vector<512x72xbf16>, vector<72x8xbf16>, vector<512x8xf32> -> vector<512x8xf32>
    %cst_138 = arith.constant dense<0.000000e+00> : vector<8xf32>
    %97 = vector.multi_reduction <add>, %96, %cst_138 [0] : vector<512x8xf32> to vector<8xf32>
    %98 = vector.shape_cast %97 : vector<8xf32> to vector<1x8xf32>
    %99 = arith.mulf %96, %96 : vector<512x8xf32>
    %cst_139 = arith.constant dense<0.000000e+00> : vector<8xf32>
    %100 = vector.multi_reduction <add>, %99, %cst_139 [0] : vector<512x8xf32> to vector<8xf32>
    %101 = vector.shape_cast %100 : vector<8xf32> to vector<1x8xf32>
    %cst_140 = arith.constant 0.001953125 : f32
    %102 = vector.broadcast %cst_140 : f32 to vector<1x8xf32>
    %103 = arith.mulf %98, %102 : vector<1x8xf32>
    %cst_141 = arith.constant 0.001953125 : f32
    %104 = vector.broadcast %cst_141 : f32 to vector<1x8xf32>
    %105 = arith.mulf %101, %104 : vector<1x8xf32>
    %106 = arith.mulf %103, %103 : vector<1x8xf32>
    %107 = arith.subf %105, %106 : vector<1x8xf32>
    %cst_142 = arith.constant 0.000000e+00 : f32
    %108 = vector.broadcast %cst_142 : f32 to vector<1x8xf32>
    %109 = arith.maximumf %107, %108 : vector<1x8xf32>
    %c0_143 = arith.constant 0 : index
    %c0_144 = arith.constant 0 : index
    %110 = vector.load %arg6[%c0_143, %c0_144] : memref<1x8xf32, #tpu.memory_space<vmem>>, vector<1x8xf32>
    %cst_145 = arith.constant 9.99999974E-6 : f32
    %111 = vector.broadcast %cst_145 : f32 to vector<1x8xf32>
    %112 = arith.addf %109, %111 : vector<1x8xf32>
    %113 = math.rsqrt %112 : vector<1x8xf32>
    %114 = arith.mulf %110, %113 : vector<1x8xf32>
    %c0_146 = arith.constant 0 : index
    %c0_147 = arith.constant 0 : index
    %115 = vector.load %arg7[%c0_146, %c0_147] : memref<1x8xf32, #tpu.memory_space<vmem>>, vector<1x8xf32>
    %116 = arith.mulf %103, %114 : vector<1x8xf32>
    %117 = arith.subf %115, %116 : vector<1x8xf32>
    %118 = vector.broadcast %114 : vector<1x8xf32> to vector<512x8xf32>
    %119 = arith.mulf %96, %118 : vector<512x8xf32>
    %120 = vector.broadcast %117 : vector<1x8xf32> to vector<512x8xf32>
    %121 = arith.addf %119, %120 : vector<512x8xf32>
    %122 = vector.shape_cast %121 : vector<512x8xf32> to vector<2x16x16x8xf32>
    %c0_148 = arith.constant 0 : index
    %c0_149 = arith.constant 0 : index
    %c0_150 = arith.constant 0 : index
    %c0_151 = arith.constant 0 : index
    %123 = vector.load %arg1[%c0_148, %c0_149, %c0_150, %c0_151] : memref<2x16x16x8xf32, #tpu.memory_space<vmem>>, vector<2x16x16x8xf32>
    %124 = arith.addf %122, %123 : vector<2x16x16x8xf32>
    %cst_152 = arith.constant 0.000000e+00 : f32
    %125 = vector.broadcast %cst_152 : f32 to vector<2x16x16x8xf32>
    %126 = arith.maximumf %124, %125 : vector<2x16x16x8xf32>
    %c0_153 = arith.constant 0 : index
    %c0_154 = arith.constant 0 : index
    %c0_155 = arith.constant 0 : index
    %c0_156 = arith.constant 0 : index
    %127 = vector.load %arg8[%c0_153, %c0_154, %c0_155, %c0_156] : memref<2x16x16x8xf32, #tpu.memory_space<vmem>>, vector<2x16x16x8xf32>
    tpu.vector_store %arg8[%c0_153, %c0_154, %c0_155, %c0_156], %126 {strides = array<i32>} : memref<2x16x16x8xf32, #tpu.memory_space<vmem>>, vector<2x16x16x8xf32>,
    return
  }
}

</mosaic_0001>

<llo_original>
// kernel: tpu_custom_call.1
$region0: #{tpu_custom_call.1}
  #allocation0 [shape = 'u32[]', space=smem, size = 0x4, offset = 0x4, fixed_abs, tag = 'smem constant byte address 0x4 - core index']
  #allocation1 [shape = 'u32[144,128]{1,0:T(1,128)}', space=vmem, size = 0x12000, scoped, tag = 'internal scratch']
  #allocation2 [shape = 'f32[512,72]{1,0:T(8,128)}', space=vmem, size = 0x40000, scoped, tag = 'scratch operand']
  #allocation3 [shape = 'f32[2,18,18,8]{3,2,1,0:T(8,128)}', space=vmem, size = 0x6c000, scoped, tag = 'scratch operand']
  %s0 = inlined_call_operand.vmem [shape: f32[2,18,18,8], index: 0, kind: input, shape index: {}]
  %s1 = inlined_call_operand.vmem [shape: f32[2,16,16,8], index: 1, kind: input, shape index: {}]
  %s2 = inlined_call_operand.vmem [shape: bf16[72,8], index: 2, kind: input, shape index: {}]
  %s3 = inlined_call_operand.vmem [shape: f32[1,8], index: 3, kind: input, shape index: {}]
  %s4 = inlined_call_operand.vmem [shape: f32[1,8], index: 4, kind: input, shape index: {}]
  %s5 = inlined_call_operand.vmem [shape: bf16[72,8], index: 5, kind: input, shape index: {}]
  %s6 = inlined_call_operand.vmem [shape: f32[1,8], index: 6, kind: input, shape index: {}]
  %s7 = inlined_call_operand.vmem [shape: f32[1,8], index: 7, kind: input, shape index: {}]
  %s8 = inlined_call_operand.vmem [shape: f32[2,16,16,8], index: 8, kind: output, shape index: {}]
  %s9 = sld [smem:[#allocation0]]
  $region42: #{tpu_custom_call.1} parent=0
    _
  %s11 = ssub.s32 1, %s9
  %s12 = scalar_select 0, %s11, %s9
  // Predicated region
  $region2: #{tpu_custom_call.1} parent=0 // pred_check
    _
  $region3: #{tpu_custom_call.1} parent=0 // pred_check_branch
    %14 = sbr.rel (0) target = $region5
  $region4: #{tpu_custom_call.1} parent=0 // pred_region
    _
  $region5: #{tpu_custom_call.1} parent=0 // pred_fallthru
    _
  // Predicated region
  $region6: #{tpu_custom_call.1} parent=0 // pred_check
    _
  $region7: #{tpu_custom_call.1} parent=0 // pred_check_branch
    %16 = sbr.rel (0) target = $region9
  $region8: #{tpu_custom_call.1} parent=0 // pred_region
    _
  $region9: #{tpu_custom_call.1} parent=0 // pred_fallthru
    _
  // Predicated region
  $region10: #{tpu_custom_call.1} parent=0 // pred_check
    _
  $region11: #{tpu_custom_call.1} parent=0 // pred_check_branch
    %18 = sbr.rel (0) target = $region13
  $region12: #{tpu_custom_call.1} parent=0 // pred_region
    _
  $region13: #{tpu_custom_call.1} parent=0 // pred_fallthru
    _
  // Predicated region
  $region14: #{tpu_custom_call.1} parent=0 // pred_check
    _
  $region15: #{tpu_custom_call.1} parent=0 // pred_check_branch
    %20 = sbr.rel (0) target = $region17
  $region16: #{tpu_custom_call.1} parent=0 // pred_region
    _
  $region17: #{tpu_custom_call.1} parent=0 // pred_fallthru
    _
  // Predicated region
  $region18: #{tpu_custom_call.1} parent=0 // pred_check
    _
  $region19: #{tpu_custom_call.1} parent=0 // pred_check_branch
    %22 = sbr.rel (0) target = $region21
  $region20: #{tpu_custom_call.1} parent=0 // pred_region
    _
  $region21: #{tpu_custom_call.1} parent=0 // pred_fallthru
    _
  // Predicated region
  $region22: #{tpu_custom_call.1} parent=0 // pred_check
    _
  $region23: #{tpu_custom_call.1} parent=0 // pred_check_branch
    %24 = sbr.rel (0) target = $region25
  $region24: #{tpu_custom_call.1} parent=0 // pred_region
    _
  $region25: #{tpu_custom_call.1} parent=0 // pred_fallthru
    _
  // Predicated region
  $region26: #{tpu_custom_call.1} parent=0 // pred_check
    _
  $region27: #{tpu_custom_call.1} parent=0 // pred_check_branch
    %26 = sbr.rel (0) target = $region29
  $region28: #{tpu_custom_call.1} parent=0 // pred_region
    _
  $region29: #{tpu_custom_call.1} parent=0 // pred_fallthru
    _
  // Predicated region
  $region30: #{tpu_custom_call.1} parent=0 // pred_check
    _
  $region31: #{tpu_custom_call.1} parent=0 // pred_check_branch
    %28 = sbr.rel (0) target = $region33
  $region32: #{tpu_custom_call.1} parent=0 // pred_region
    _
  $region33: #{tpu_custom_call.1} parent=0 // pred_fallthru
    _
  %v30 = vld [vmem:[%s0] sm:$0xff]
  %v31 = vld [vmem:[%s0 + $0x8] sm:$0xff]
  %v32 = vld [vmem:[%s0 + $0x18] sm:$0xff]
  %v33 = vld [vmem:[%s0 + $0x20] sm:$0xff]
  %v34 = vld [vmem:[%s0 + $0x30] sm:$0xff]
  %v35 = vld [vmem:[%s0 + $0x38] sm:$0xff]
  %v36 = vld [vmem:[%s0 + $0x48] sm:$0xff]
  %v37 = vld [vmem:[%s0 + $0x50] sm:$0xff]
  %v38 = vld [vmem:[%s0 + $0x60] sm:$0xff]
  %v39 = vld [vmem:[%s0 + $0x68] sm:$0xff]
  %v40 = vld [vmem:[%s0 + $0x78] sm:$0xff]
  %v41 = vld [vmem:[%s0 + $0x80] sm:$0xff]
  %v42 = vld [vmem:[%s0 + $0x90] sm:$0xff]
  %v43 = vld [vmem:[%s0 + $0x98] sm:$0xff]
  %v44 = vld [vmem:[%s0 + $0xa8] sm:$0xff]
  %v45 = vld [vmem:[%s0 + $0xb0] sm:$0xff]
  %v46 = vld [vmem:[%s0 + $0xc0] sm:$0xff]
  %v47 = vld [vmem:[%s0 + $0xc8] sm:$0xff]
  %v48 = vld [vmem:[%s0 + $0xd8] sm:$0xff]
  %v49 = vld [vmem:[%s0 + $0xe0] sm:$0xff]
  %v50 = vld [vmem:[%s0 + $0xf0] sm:$0xff]
  %v51 = vld [vmem:[%s0 + $0xf8] sm:$0xff]
  %v52 = vld [vmem:[%s0 + $0x108] sm:$0xff]
  %v53 = vld [vmem:[%s0 + $0x110] sm:$0xff]
  %v54 = vld [vmem:[%s0 + $0x120] sm:$0xff]
  %v55 = vld [vmem:[%s0 + $0x128] sm:$0xff]
  %v56 = vld [vmem:[%s0 + $0x138] sm:$0xff]
  %v57 = vld [vmem:[%s0 + $0x140] sm:$0xff]
  %v58 = vld [vmem:[%s0 + $0x150] sm:$0xff]
  %v59 = vld [vmem:[%s0 + $0x158] sm:$0xff]
  %v60 = vld [vmem:[%s0 + $0x168] sm:$0xff]
  %v61 = vld [vmem:[%s0 + $0x170] sm:$0xff]
  %v62 = vld [vmem:[%s0 + $0x1b0] sm:$0xff]
  %v63 = vld [vmem:[%s0 + $0x1b8] sm:$0xff]
  %v64 = vld [vmem:[%s0 + $0x1c8] sm:$0xff]
  %v65 = vld [vmem:[%s0 + $0x1d0] sm:$0xff]
  %v66 = vld [vmem:[%s0 + $0x1e0] sm:$0xff]
  %v67 = vld [vmem:[%s0 + $0x1e8] sm:$0xff]
  %v68 = vld [vmem:[%s0 + $0x1f8] sm:$0xff]
  %v69 = vld [vmem:[%s0 + $0x200] sm:$0xff]
  %v70 = vld [vmem:[%s0 + $0x210] sm:$0xff]
  %v71 = vld [vmem:[%s0 + $0x218] sm:$0xff]
  %v72 = vld [vmem:[%s0 + $0x228] sm:$0xff]
  %v73 = vld [vmem:[%s0 + $0x230] sm:$0xff]
  %v74 = vld [vmem:[%s0 + $0x240] sm:$0xff]
  %v75 = vld [vmem:[%s0 + $0x248] sm:$0xff]
  %v76 = vld [vmem:[%s0 + $0x258] sm:$0xff]
  %v77 = vld [vmem:[%s0 + $0x260] sm:$0xff]
  %v78 = vld [vmem:[%s0 + $0x270] sm:$0xff]
  %v79 = vld [vmem:[%s0 + $0x278] sm:$0xff]
  %v80 = vld [vmem:[%s0 + $0x288] sm:$0xff]
  %v81 = vld [vmem:[%s0 + $0x290] sm:$0xff]
  %v82 = vld [vmem:[%s0 + $0x2a0] sm:$0xff]
  %v83 = vld [vmem:[%s0 + $0x2a8] sm:$0xff]
  %v84 = vld [vmem:[%s0 + $0x2b8] sm:$0xff]
  %v85 = vld [vmem:[%s0 + $0x2c0] sm:$0xff]
  %v86 = vld [vmem:[%s0 + $0x2d0] sm:$0xff]
  %v87 = vld [vmem:[%s0 + $0x2d8] sm:$0xff]
  %v88 = vld [vmem:[%s0 + $0x2e8] sm:$0xff]
  %v89 = vld [vmem:[%s0 + $0x2f0] sm:$0xff]
  %v90 = vld [vmem:[%s0 + $0x300] sm:$0xff]
  %v91 = vld [vmem:[%s0 + $0x308] sm:$0xff]
  %v92 = vld [vmem:[%s0 + $0x318] sm:$0xff]
  %v93 = vld [vmem:[%s0 + $0x320] sm:$0xff]
  %vm94 = vcmask 64512
  %95 = vst.msk [vmem:[#allocation2] sm:$0xff] %vm94, %v30
  %96 = vst.msk [vmem:[#allocation2 + $0x8] sm:$0xff] %vm94, %v31
  %97 = vst.msk [vmem:[#allocation2 + $0x10] sm:$0xff] %vm94, %v32
  %98 = vst.msk [vmem:[#allocation2 + $0x18] sm:$0xff] %vm94, %v33
  %99 = vst.msk [vmem:[#allocation2 + $0x20] sm:$0xff] %vm94, %v34
  %100 = vst.msk [vmem:[#allocation2 + $0x28] sm:$0xff] %vm94, %v35
  %101 = vst.msk [vmem:[#allocation2 + $0x30] sm:$0xff] %vm94, %v36
  %102 = vst.msk [vmem:[#allocation2 + $0x38] sm:$0xff] %vm94, %v37
  %103 = vst.msk [vmem:[#allocation2 + $0x40] sm:$0xff] %vm94, %v38
  %104 = vst.msk [vmem:[#allocation2 + $0x48] sm:$0xff] %vm94, %v39
  %105 = vst.msk [vmem:[#allocation2 + $0x50] sm:$0xff] %vm94, %v40
  %106 = vst.msk [vmem:[#allocation2 + $0x58] sm:$0xff] %vm94, %v41
  %107 = vst.msk [vmem:[#allocation2 + $0x60] sm:$0xff] %vm94, %v42
  %108 = vst.msk [vmem:[#allocation2 + $0x68] sm:$0xff] %vm94, %v43
  %109 = vst.msk [vmem:[#allocation2 + $0x70] sm:$0xff] %vm94, %v44
  %110 = vst.msk [vmem:[#allocation2 + $0x78] sm:$0xff] %vm94, %v45
  %111 = vst.msk [vmem:[#allocation2 + $0x80] sm:$0xff] %vm94, %v46
  %112 = vst.msk [vmem:[#allocation2 + $0x88] sm:$0xff] %vm94, %v47
  %113 = vst.msk [vmem:[#allocation2 + $0x90] sm:$0xff] %vm94, %v48
  %114 = vst.msk [vmem:[#allocation2 + $0x98] sm:$0xff] %vm94, %v49
  %115 = vst.msk [vmem:[#allocation2 + $0xa0] sm:$0xff] %vm94, %v50
  %116 = vst.msk [vmem:[#allocation2 + $0xa8] sm:$0xff] %vm94, %v51
  %117 = vst.msk [vmem:[#allocation2 + $0xb0] sm:$0xff] %vm94, %v52
  %118 = vst.msk [vmem:[#allocation2 + $0xb8] sm:$0xff] %vm94, %v53
  %119 = vst.msk [vmem:[#allocation2 + $0xc0] sm:$0xff] %vm94, %v54
  %120 = vst.msk [vmem:[#allocation2 + $0xc8] sm:$0xff] %vm94, %v55
  %121 = vst.msk [vmem:[#allocation2 + $0xd0] sm:$0xff] %vm94, %v56
  %122 = vst.msk [vmem:[#allocation2 + $0xd8] sm:$0xff] %vm94, %v57
  %123 = vst.msk [vmem:[#allocation2 + $0xe0] sm:$0xff] %vm94, %v58
  %124 = vst.msk [vmem:[#allocation2 + $0xe8] sm:$0xff] %vm94, %v59
  %125 = vst.msk [vmem:[#allocation2 + $0xf0] sm:$0xff] %vm94, %v60
  %126 = vst.msk [vmem:[#allocation2 + $0xf8] sm:$0xff] %vm94, %v61
  %127 = vst.msk [vmem:[#allocation2 + $0x100] sm:$0xff] %vm94, %v62
  %128 = vst.msk [vmem:[#allocation2 + $0x108] sm:$0xff] %vm94, %v63
  %129 = vst.msk [vmem:[#allocation2 + $0x110] sm:$0xff] %vm94, %v64
  %130 = vst.msk [vmem:[#allocation2 + $0x118] sm:$0xff] %vm94, %v65
  %131 = vst.msk [vmem:[#allocation2 + $0x120] sm:$0xff] %vm94, %v66
  %132 = vst.msk [vmem:[#allocation2 + $0x128] sm:$0xff] %vm94, %v67
  %133 = vst.msk [vmem:[#allocation2 + $0x130] sm:$0xff] %vm94, %v68
  %134 = vst.msk [vmem:[#allocation2 + $0x138] sm:$0xff] %vm94, %v69
  %135 = vst.msk [vmem:[#allocation2 + $0x140] sm:$0xff] %vm94, %v70
  %136 = vst.msk [vmem:[#allocation2 + $0x148] sm:$0xff] %vm94, %v71
  %137 = vst.msk [vmem:[#allocation2 + $0x150] sm:$0xff] %vm94, %v72
  %138 = vst.msk [vmem:[#allocation2 + $0x158] sm:$0xff] %vm94, %v73
  %139 = vst.msk [vmem:[#allocation2 + $0x160] sm:$0xff] %vm94, %v74
  %140 = vst.msk [vmem:[#allocation2 + $0x168] sm:$0xff] %vm94, %v75
  %141 = vst.msk [vmem:[#allocation2 + $0x170] sm:$0xff] %vm94, %v76
  %142 = vst.msk [vmem:[#allocation2 + $0x178] sm:$0xff] %vm94, %v77
  %143 = vst.msk [vmem:[#allocation2 + $0x180] sm:$0xff] %vm94, %v78
  %144 = vst.msk [vmem:[#allocation2 + $0x188] sm:$0xff] %vm94, %v79
  %145 = vst.msk [vmem:[#allocation2 + $0x190] sm:$0xff] %vm94, %v80
  %146 = vst.msk [vmem:[#allocation2 + $0x198] sm:$0xff] %vm94, %v81
  %147 = vst.msk [vmem:[#allocation2 + $0x1a0] sm:$0xff] %vm94, %v82
  %148 = vst.msk [vmem:[#allocation2 + $0x1a8] sm:$0xff] %vm94, %v83
  %149 = vst.msk [vmem:[#allocation2 + $0x1b0] sm:$0xff] %vm94, %v84
  %150 = vst.msk [vmem:[#allocation2 + $0x1b8] sm:$0xff] %vm94, %v85
  %151 = vst.msk [vmem:[#allocation2 + $0x1c0] sm:$0xff] %vm94, %v86
  %152 = vst.msk [vmem:[#allocation2 + $0x1c8] sm:$0xff] %vm94, %v87
  %153 = vst.msk [vmem:[#allocation2 + $0x1d0] sm:$0xff] %vm94, %v88
  %154 = vst.msk [vmem:[#allocation2 + $0x1d8] sm:$0xff] %vm94, %v89
  %155 = vst.msk [vmem:[#allocation2 + $0x1e0] sm:$0xff] %vm94, %v90
  %156 = vst.msk [vmem:[#allocation2 + $0x1e8] sm:$0xff] %vm94, %v91
  %157 = vst.msk [vmem:[#allocation2 + $0x1f0] sm:$0xff] %vm94, %v92
  %158 = vst.msk [vmem:[#allocation2 + $0x1f8] sm:$0xff] %vm94, %v93
  %v159 = vld [vmem:[%s0 + $0x1] sm:$0xff]
  %v160 = vld [vmem:[%s0 + $0x9] sm:$0xff]
  %v161 = vld [vmem:[%s0 + $0x19] sm:$0xff]
  %v162 = vld [vmem:[%s0 + $0x21] sm:$0xff]
  %v163 = vld [vmem:[%s0 + $0x31] sm:$0xff]
  %v164 = vld [vmem:[%s0 + $0x39] sm:$0xff]
  %v165 = vld [vmem:[%s0 + $0x49] sm:$0xff]
  %v166 = vld [vmem:[%s0 + $0x51] sm:$0xff]
  %v167 = vld [vmem:[%s0 + $0x61] sm:$0xff]
  %v168 = vld [vmem:[%s0 + $0x69] sm:$0xff]
  %v169 = vld [vmem:[%s0 + $0x79] sm:$0xff]
  %v170 = vld [vmem:[%s0 + $0x81] sm:$0xff]
  %v171 = vld [vmem:[%s0 + $0x91] sm:$0xff]
  %v172 = vld [vmem:[%s0 + $0x99] sm:$0xff]
  %v173 = vld [vmem:[%s0 + $0xa9] sm:$0xff]
  %v174 = vld [vmem:[%s0 + $0xb1] sm:$0xff]
  %v175 = vld [vmem:[%s0 + $0xc1] sm:$0xff]
  %v176 = vld [vmem:[%s0 + $0xc9] sm:$0xff]
  %v177 = vld [vmem:[%s0 + $0xd9] sm:$0xff]
  %v178 = vld [vmem:[%s0 + $0xe1] sm:$0xff]
  %v179 = vld [vmem:[%s0 + $0xf1] sm:$0xff]
  %v180 = vld [vmem:[%s0 + $0xf9] sm:$0xff]
  %v181 = vld [vmem:[%s0 + $0x109] sm:$0xff]
  %v182 = vld [vmem:[%s0 + $0x111] sm:$0xff]
  %v183 = vld [vmem:[%s0 + $0x121] sm:$0xff]
  %v184 = vld [vmem:[%s0 + $0x129] sm:$0xff]
  %v185 = vld [vmem:[%s0 + $0x139] sm:$0xff]
  %v186 = vld [vmem:[%s0 + $0x141] sm:$0xff]
  %v187 = vld [vmem:[%s0 + $0x151] sm:$0xff]
  %v188 = vld [vmem:[%s0 + $0x159] sm:$0xff]
  %v189 = vld [vmem:[%s0 + $0x169] sm:$0xff]
  %v190 = vld [vmem:[%s0 + $0x171] sm:$0xff]
  %v191 = vld [vmem:[%s0 + $0x1b1] sm:$0xff]
  %v192 = vld [vmem:[%s0 + $0x1b9] sm:$0xff]
  %v193 = vld [vmem:[%s0 + $0x1c9] sm:$0xff]
  %v194 = vld [vmem:[%s0 + $0x1d1] sm:$0xff]
  %v195 = vld [vmem:[%s0 + $0x1e1] sm:$0xff]
  %v196 = vld [vmem:[%s0 + $0x1e9] sm:$0xff]
  %v197 = vld [vmem:[%s0 + $0x1f9] sm:$0xff]
  %v198 = vld [vmem:[%s0 + $0x201] sm:$0xff]
  %v199 = vld [vmem:[%s0 + $0x211] sm:$0xff]
  %v200 = vld [vmem:[%s0 + $0x219] sm:$0xff]
  %v201 = vld [vmem:[%s0 + $0x229] sm:$0xff]
  %v202 = vld [vmem:[%s0 + $0x231] sm:$0xff]
  %v203 = vld [vmem:[%s0 + $0x241] sm:$0xff]
  %v204 = vld [vmem:[%s0 + $0x249] sm:$0xff]
  %v205 = vld [vmem:[%s0 + $0x259] sm:$0xff]
  %v206 = vld [vmem:[%s0 + $0x261] sm:$0xff]
  %v207 = vld [vmem:[%s0 + $0x271] sm:$0xff]
  %v208 = vld [vmem:[%s0 + $0x279] sm:$0xff]
  %v209 = vld [vmem:[%s0 + $0x289] sm:$0xff]
  %v210 = vld [vmem:[%s0 + $0x291] sm:$0xff]
  %v211 = vld [vmem:[%s0 + $0x2a1] sm:$0xff]
  %v212 = vld [vmem:[%s0 + $0x2a9] sm:$0xff]
  %v213 = vld [vmem:[%s0 + $0x2b9] sm:$0xff]
  %v214 = vld [vmem:[%s0 + $0x2c1] sm:$0xff]
  %v215 = vld [vmem:[%s0 + $0x2d1] sm:$0xff]
  %v216 = vld [vmem:[%s0 + $0x2d9] sm:$0xff]
  %v217 = vld [vmem:[%s0 + $0x2e9] sm:$0xff]
  %v218 = vld [vmem:[%s0 + $0x2f1] sm:$0xff]
  %v219 = vld [vmem:[%s0 + $0x301] sm:$0xff]
  %v220 = vld [vmem:[%s0 + $0x309] sm:$0xff]
  %v221 = vld [vmem:[%s0 + $0x319] sm:$0xff]
  %v222 = vld [vmem:[%s0 + $0x321] sm:$0xff]
  %287 = vrot.lane.b32.xlu0 %v159, 8
  %v288 = vpop.permute.xlu0 %287
  %289 = vrot.lane.b32.xlu0 %v160, 8
  %v290 = vpop.permute.xlu0 %289
  %291 = vrot.lane.b32.xlu0 %v161, 8
  %v292 = vpop.permute.xlu0 %291
  %293 = vrot.lane.b32.xlu0 %v162, 8
  %v294 = vpop.permute.xlu0 %293
  %295 = vrot.lane.b32.xlu0 %v163, 8
  %v296 = vpop.permute.xlu0 %295
  %297 = vrot.lane.b32.xlu0 %v164, 8
  %v298 = vpop.permute.xlu0 %297
  %299 = vrot.lane.b32.xlu0 %v165, 8
  %v300 = vpop.permute.xlu0 %299
  %301 = vrot.lane.b32.xlu0 %v166, 8
  %v302 = vpop.permute.xlu0 %301
  %303 = vrot.lane.b32.xlu0 %v167, 8
  %v304 = vpop.permute.xlu0 %303
  %305 = vrot.lane.b32.xlu0 %v168, 8
  %v306 = vpop.permute.xlu0 %305
  %307 = vrot.lane.b32.xlu0 %v169, 8
  %v308 = vpop.permute.xlu0 %307
  %309 = vrot.lane.b32.xlu0 %v170, 8
  %v310 = vpop.permute.xlu0 %309
  %311 = vrot.lane.b32.xlu0 %v171, 8
  %v312 = vpop.permute.xlu0 %311
  %313 = vrot.lane.b32.xlu0 %v172, 8
  %v314 = vpop.permute.xlu0 %313
  %315 = vrot.lane.b32.xlu0 %v173, 8
  %v316 = vpop.permute.xlu0 %315
  %317 = vrot.lane.b32.xlu0 %v174, 8
  %v318 = vpop.permute.xlu0 %317
  %319 = vrot.lane.b32.xlu0 %v175, 8
  %v320 = vpop.permute.xlu0 %319
  %321 = vrot.lane.b32.xlu0 %v176, 8
  %v322 = vpop.permute.xlu0 %321
  %323 = vrot.lane.b32.xlu0 %v177, 8
  %v324 = vpop.permute.xlu0 %323
  %325 = vrot.lane.b32.xlu0 %v178, 8
  %v326 = vpop.permute.xlu0 %325
  %327 = vrot.lane.b32.xlu0 %v179, 8
  %v328 = vpop.permute.xlu0 %327
  %329 = vrot.lane.b32.xlu0 %v180, 8
  %v330 = vpop.permute.xlu0 %329
  %331 = vrot.lane.b32.xlu0 %v181, 8
  %v332 = vpop.permute.xlu0 %331
  %333 = vrot.lane.b32.xlu0 %v182, 8
  %v334 = vpop.permute.xlu0 %333
  %335 = vrot.lane.b32.xlu0 %v183, 8
  %v336 = vpop.permute.xlu0 %335
  %337 = vrot.lane.b32.xlu0 %v184, 8
  %v338 = vpop.permute.xlu0 %337
  %339 = vrot.lane.b32.xlu0 %v185, 8
  %v340 = vpop.permute.xlu0 %339
  %341 = vrot.lane.b32.xlu0 %v186, 8
  %v342 = vpop.permute.xlu0 %341
  %343 = vrot.lane.b32.xlu0 %v187, 8
  %v344 = vpop.permute.xlu0 %343
  %345 = vrot.lane.b32.xlu0 %v188, 8
  %v346 = vpop.permute.xlu0 %345
  %347 = vrot.lane.b32.xlu0 %v189, 8
  %v348 = vpop.permute.xlu0 %347
  %349 = vrot.lane.b32.xlu0 %v190, 8
  %v350 = vpop.permute.xlu0 %349
  %351 = vrot.lane.b32.xlu0 %v191, 8
  %v352 = vpop.permute.xlu0 %351
  %353 = vrot.lane.b32.xlu0 %v192, 8
  %v354 = vpop.permute.xlu0 %353
  %355 = vrot.lane.b32.xlu0 %v193, 8
  %v356 = vpop.permute.xlu0 %355
  %357 = vrot.lane.b32.xlu0 %v194, 8
  %v358 = vpop.permute.xlu0 %357
  %359 = vrot.lane.b32.xlu0 %v195, 8
  %v360 = vpop.permute.xlu0 %359
  %361 = vrot.lane.b32.xlu0 %v196, 8
  %v362 = vpop.permute.xlu0 %361
  %363 = vrot.lane.b32.xlu0 %v197, 8
  %v364 = vpop.permute.xlu0 %363
  %365 = vrot.lane.b32.xlu0 %v198, 8
  %v366 = vpop.permute.xlu0 %365
  %367 = vrot.lane.b32.xlu0 %v199, 8
  %v368 = vpop.permute.xlu0 %367
  %369 = vrot.lane.b32.xlu0 %v200, 8
  %v370 = vpop.permute.xlu0 %369
  %371 = vrot.lane.b32.xlu0 %v201, 8
  %v372 = vpop.permute.xlu0 %371
  %373 = vrot.lane.b32.xlu0 %v202, 8
  %v374 = vpop.permute.xlu0 %373
  %375 = vrot.lane.b32.xlu0 %v203, 8
  %v376 = vpop.permute.xlu0 %375
  %377 = vrot.lane.b32.xlu0 %v204, 8
  %v378 = vpop.permute.xlu0 %377
  %379 = vrot.lane.b32.xlu0 %v205, 8
  %v380 = vpop.permute.xlu0 %379
  %381 = vrot.lane.b32.xlu0 %v206, 8
  %v382 = vpop.permute.xlu0 %381
  %383 = vrot.lane.b32.xlu0 %v207, 8
  %v384 = vpop.permute.xlu0 %383
  %385 = vrot.lane.b32.xlu0 %v208, 8
  %v386 = vpop.permute.xlu0 %385
  %387 = vrot.lane.b32.xlu0 %v209, 8
  %v388 = vpop.permute.xlu0 %387
  %389 = vrot.lane.b32.xlu0 %v210, 8
  %v390 = vpop.permute.xlu0 %389
  %391 = vrot.lane.b32.xlu0 %v211, 8
  %v392 = vpop.permute.xlu0 %391
  %393 = vrot.lane.b32.xlu0 %v212, 8
  %v394 = vpop.permute.xlu0 %393
  %395 = vrot.lane.b32.xlu0 %v213, 8
  %v396 = vpop.permute.xlu0 %395
  %397 = vrot.lane.b32.xlu0 %v214, 8
  %v398 = vpop.permute.xlu0 %397
  %399 = vrot.lane.b32.xlu0 %v215, 8
  %v400 = vpop.permute.xlu0 %399
  %401 = vrot.lane.b32.xlu0 %v216, 8
  %v402 = vpop.permute.xlu0 %401
  %403 = vrot.lane.b32.xlu0 %v217, 8
  %v404 = vpop.permute.xlu0 %403
  %405 = vrot.lane.b32.xlu0 %v218, 8
  %v406 = vpop.permute.xlu0 %405
  %407 = vrot.lane.b32.xlu0 %v219, 8
  %v408 = vpop.permute.xlu0 %407
  %409 = vrot.lane.b32.xlu0 %v220, 8
  %v410 = vpop.permute.xlu0 %409
  %411 = vrot.lane.b32.xlu0 %v221, 8
  %v412 = vpop.permute.xlu0 %411
  %413 = vrot.lane.b32.xlu0 %v222, 8
  %v414 = vpop.permute.xlu0 %413
  %vm479 = vcmask 130112
  %480 = vst.msk [vmem:[#allocation2] sm:$0xff] %vm479, %v288
  %481 = vst.msk [vmem:[#allocation2 + $0x8] sm:$0xff] %vm479, %v290
  %482 = vst.msk [vmem:[#allocation2 + $0x10] sm:$0xff] %vm479, %v292
  %483 = vst.msk [vmem:[#allocation2 + $0x18] sm:$0xff] %vm479, %v294
  %484 = vst.msk [vmem:[#allocation2 + $0x20] sm:$0xff] %vm479, %v296
  %485 = vst.msk [vmem:[#allocation2 + $0x28] sm:$0xff] %vm479, %v298
  %486 = vst.msk [vmem:[#allocation2 + $0x30] sm:$0xff] %vm479, %v300
  %487 = vst.msk [vmem:[#allocation2 + $0x38] sm:$0xff] %vm479, %v302
  %488 = vst.msk [vmem:[#allocation2 + $0x40] sm:$0xff] %vm479, %v304
  %489 = vst.msk [vmem:[#allocation2 + $0x48] sm:$0xff] %vm479, %v306
  %490 = vst.msk [vmem:[#allocation2 + $0x50] sm:$0xff] %vm479, %v308
  %491 = vst.msk [vmem:[#allocation2 + $0x58] sm:$0xff] %vm479, %v310
  %492 = vst.msk [vmem:[#allocation2 + $0x60] sm:$0xff] %vm479, %v312
  %493 = vst.msk [vmem:[#allocation2 + $0x68] sm:$0xff] %vm479, %v314
  %494 = vst.msk [vmem:[#allocation2 + $0x70] sm:$0xff] %vm479, %v316
  %495 = vst.msk [vmem:[#allocation2 + $0x78] sm:$0xff] %vm479, %v318
  %496 = vst.msk [vmem:[#allocation2 + $0x80] sm:$0xff] %vm479, %v320
  %497 = vst.msk [vmem:[#allocation2 + $0x88] sm:$0xff] %vm479, %v322
  %498 = vst.msk [vmem:[#allocation2 + $0x90] sm:$0xff] %vm479, %v324
  %499 = vst.msk [vmem:[#allocation2 + $0x98] sm:$0xff] %vm479, %v326
  %500 = vst.msk [vmem:[#allocation2 + $0xa0] sm:$0xff] %vm479, %v328
  %501 = vst.msk [vmem:[#allocation2 + $0xa8] sm:$0xff] %vm479, %v330
  %502 = vst.msk [vmem:[#allocation2 + $0xb0] sm:$0xff] %vm479, %v332
  %503 = vst.msk [vmem:[#allocation2 + $0xb8] sm:$0xff] %vm479, %v334
  %504 = vst.msk [vmem:[#allocation2 + $0xc0] sm:$0xff] %vm479, %v336
  %505 = vst.msk [vmem:[#allocation2 + $0xc8] sm:$0xff] %vm479, %v338
  %506 = vst.msk [vmem:[#allocation2 + $0xd0] sm:$0xff] %vm479, %v340
  %507 = vst.msk [vmem:[#allocation2 + $0xd8] sm:$0xff] %vm479, %v342
  %508 = vst.msk [vmem:[#allocation2 + $0xe0] sm:$0xff] %vm479, %v344
  %509 = vst.msk [vmem:[#allocation2 + $0xe8] sm:$0xff] %vm479, %v346
  %510 = vst.msk [vmem:[#allocation2 + $0xf0] sm:$0xff] %vm479, %v348
  %511 = vst.msk [vmem:[#allocation2 + $0xf8] sm:$0xff] %vm479, %v350
  %512 = vst.msk [vmem:[#allocation2 + $0x100] sm:$0xff] %vm479, %v352
  %513 = vst.msk [vmem:[#allocation2 + $0x108] sm:$0xff] %vm479, %v354
  %514 = vst.msk [vmem:[#allocation2 + $0x110] sm:$0xff] %vm479, %v356
  %515 = vst.msk [vmem:[#allocation2 + $0x118] sm:$0xff] %vm479, %v358
  %516 = vst.msk [vmem:[#allocation2 + $0x120] sm:$0xff] %vm479, %v360
  %517 = vst.msk [vmem:[#allocation2 + $0x128] sm:$0xff] %vm479, %v362
  %518 = vst.msk [vmem:[#allocation2 + $0x130] sm:$0xff] %vm479, %v364
  %519 = vst.msk [vmem:[#allocation2 + $0x138] sm:$0xff] %vm479, %v366
  %520 = vst.msk [vmem:[#allocation2 + $0x140] sm:$0xff] %vm479, %v368
  %521 = vst.msk [vmem:[#allocation2 + $0x148] sm:$0xff] %vm479, %v370
  %522 = vst.msk [vmem:[#allocation2 + $0x150] sm:$0xff] %vm479, %v372
  %523 = vst.msk [vmem:[#allocation2 + $0x158] sm:$0xff] %vm479, %v374
  %524 = vst.msk [vmem:[#allocation2 + $0x160] sm:$0xff] %vm479, %v376
  %525 = vst.msk [vmem:[#allocation2 + $0x168] sm:$0xff] %vm479, %v378
  %526 = vst.msk [vmem:[#allocation2 + $0x170] sm:$0xff] %vm479, %v380
  %527 = vst.msk [vmem:[#allocation2 + $0x178] sm:$0xff] %vm479, %v382
  %528 = vst.msk [vmem:[#allocation2 + $0x180] sm:$0xff] %vm479, %v384
  %529 = vst.msk [vmem:[#allocation2 + $0x188] sm:$0xff] %vm479, %v386
  %530 = vst.msk [vmem:[#allocation2 + $0x190] sm:$0xff] %vm479, %v388
  %531 = vst.msk [vmem:[#allocation2 + $0x198] sm:$0xff] %vm479, %v390
  %532 = vst.msk [vmem:[#allocation2 + $0x1a0] sm:$0xff] %vm479, %v392
  %533 = vst.msk [vmem:[#allocation2 + $0x1a8] sm:$0xff] %vm479, %v394
  %534 = vst.msk [vmem:[#allocation2 + $0x1b0] sm:$0xff] %vm479, %v396
  %535 = vst.msk [vmem:[#allocation2 + $0x1b8] sm:$0xff] %vm479, %v398
  %536 = vst.msk [vmem:[#allocation2 + $0x1c0] sm:$0xff] %vm479, %v400
  %537 = vst.msk [vmem:[#allocation2 + $0x1c8] sm:$0xff] %vm479, %v402
  %538 = vst.msk [vmem:[#allocation2 + $0x1d0] sm:$0xff] %vm479, %v404
  %539 = vst.msk [vmem:[#allocation2 + $0x1d8] sm:$0xff] %vm479, %v406
  %540 = vst.msk [vmem:[#allocation2 + $0x1e0] sm:$0xff] %vm479, %v408
  %541 = vst.msk [vmem:[#allocation2 + $0x1e8] sm:$0xff] %vm479, %v410
  %542 = vst.msk [vmem:[#allocation2 + $0x1f0] sm:$0xff] %vm479, %v412
  %543 = vst.msk [vmem:[#allocation2 + $0x1f8] sm:$0xff] %vm479, %v414
  %v544 = vld [vmem:[%s0 + $0x2] sm:$0xff]
  %v545 = vld [vmem:[%s0 + $0xa] sm:$0xff]
  %v546 = vld [vmem:[%s0 + $0x1a] sm:$0xff]
  %v547 = vld [vmem:[%s0 + $0x22] sm:$0xff]
  %v548 = vld [vmem:[%s0 + $0x32] sm:$0xff]
  %v549 = vld [vmem:[%s0 + $0x3a] sm:$0xff]
  %v550 = vld [vmem:[%s0 + $0x4a] sm:$0xff]
  %v551 = vld [vmem:[%s0 + $0x52] sm:$0xff]
  %v552 = vld [vmem:[%s0 + $0x62] sm:$0xff]
  %v553 = vld [vmem:[%s0 + $0x6a] sm:$0xff]
  %v554 = vld [vmem:[%s0 + $0x7a] sm:$0xff]
  %v555 = vld [vmem:[%s0 + $0x82] sm:$0xff]
  %v556 = vld [vmem:[%s0 + $0x92] sm:$0xff]
  %v557 = vld [vmem:[%s0 + $0x9a] sm:$0xff]
  %v558 = vld [vmem:[%s0 + $0xaa] sm:$0xff]
  %v559 = vld [vmem:[%s0 + $0xb2] sm:$0xff]
  %v560 = vld [vmem:[%s0 + $0xc2] sm:$0xff]
  %v561 = vld [vmem:[%s0 + $0xca] sm:$0xff]
  %v562 = vld [vmem:[%s0 + $0xda] sm:$0xff]
  %v563 = vld [vmem:[%s0 + $0xe2] sm:$0xff]
  %v564 = vld [vmem:[%s0 + $0xf2] sm:$0xff]
  %v565 = vld [vmem:[%s0 + $0xfa] sm:$0xff]
  %v566 = vld [vmem:[%s0 + $0x10a] sm:$0xff]
  %v567 = vld [vmem:[%s0 + $0x112] sm:$0xff]
  %v568 = vld [vmem:[%s0 + $0x122] sm:$0xff]
  %v569 = vld [vmem:[%s0 + $0x12a] sm:$0xff]
  %v570 = vld [vmem:[%s0 + $0x13a] sm:$0xff]
  %v571 = vld [vmem:[%s0 + $0x142] sm:$0xff]
  %v572 = vld [vmem:[%s0 + $0x152] sm:$0xff]
  %v573 = vld [vmem:[%s0 + $0x15a] sm:$0xff]
  %v574 = vld [vmem:[%s0 + $0x16a] sm:$0xff]
  %v575 = vld [vmem:[%s0 + $0x172] sm:$0xff]
  %v576 = vld [vmem:[%s0 + $0x1b2] sm:$0xff]
  %v577 = vld [vmem:[%s0 + $0x1ba] sm:$0xff]
  %v578 = vld [vmem:[%s0 + $0x1ca] sm:$0xff]
  %v579 = vld [vmem:[%s0 + $0x1d2] sm:$0xff]
  %v580 = vld [vmem:[%s0 + $0x1e2] sm:$0xff]
  %v581 = vld [vmem:[%s0 + $0x1ea] sm:$0xff]
  %v582 = vld [vmem:[%s0 + $0x1fa] sm:$0xff]
  %v583 = vld [vmem:[%s0 + $0x202] sm:$0xff]
  %v584 = vld [vmem:[%s0 + $0x212] sm:$0xff]
  %v585 = vld [vmem:[%s0 + $0x21a] sm:$0xff]
  %v586 = vld [vmem:[%s0 + $0x22a] sm:$0xff]
  %v587 = vld [vmem:[%s0 + $0x232] sm:$0xff]
  %v588 = vld [vmem:[%s0 + $0x242] sm:$0xff]
  %v589 = vld [vmem:[%s0 + $0x24a] sm:$0xff]
  %v590 = vld [vmem:[%s0 + $0x25a] sm:$0xff]
  %v591 = vld [vmem:[%s0 + $0x262] sm:$0xff]
  %v592 = vld [vmem:[%s0 + $0x272] sm:$0xff]
  %v593 = vld [vmem:[%s0 + $0x27a] sm:$0xff]
  %v594 = vld [vmem:[%s0 + $0x28a] sm:$0xff]
  %v595 = vld [vmem:[%s0 + $0x292] sm:$0xff]
  %v596 = vld [vmem:[%s0 + $0x2a2] sm:$0xff]
  %v597 = vld [vmem:[%s0 + $0x2aa] sm:$0xff]
  %v598 = vld [vmem:[%s0 + $0x2ba] sm:$0xff]
  %v599 = vld [vmem:[%s0 + $0x2c2] sm:$0xff]
  %v600 = vld [vmem:[%s0 + $0x2d2] sm:$0xff]
  %v601 = vld [vmem:[%s0 + $0x2da] sm:$0xff]
  %v602 = vld [vmem:[%s0 + $0x2ea] sm:$0xff]
  %v603 = vld [vmem:[%s0 + $0x2f2] sm:$0xff]
  %v604 = vld [vmem:[%s0 + $0x302] sm:$0xff]
  %v605 = vld [vmem:[%s0 + $0x30a] sm:$0xff]
  %v606 = vld [vmem:[%s0 + $0x31a] sm:$0xff]
  %v607 = vld [vmem:[%s0 + $0x322] sm:$0xff]
  %672 = vrot.lane.b32.xlu0 %v544, 16
  %v673 = vpop.permute.xlu0 %672
  %674 = vrot.lane.b32.xlu0 %v545, 16
  %v675 = vpop.permute.xlu0 %674
  %676 = vrot.lane.b32.xlu0 %v546, 16
  %v677 = vpop.permute.xlu0 %676
  %678 = vrot.lane.b32.xlu0 %v547, 16
  %v679 = vpop.permute.xlu0 %678
  %680 = vrot.lane.b32.xlu0 %v548, 16
  %v681 = vpop.permute.xlu0 %680
  %682 = vrot.lane.b32.xlu0 %v549, 16
  %v683 = vpop.permute.xlu0 %682
  %684 = vrot.lane.b32.xlu0 %v550, 16
  %v685 = vpop.permute.xlu0 %684
  %686 = vrot.lane.b32.xlu0 %v551, 16
  %v687 = vpop.permute.xlu0 %686
  %688 = vrot.lane.b32.xlu0 %v552, 16
  %v689 = vpop.permute.xlu0 %688
  %690 = vrot.lane.b32.xlu0 %v553, 16
  %v691 = vpop.permute.xlu0 %690
  %692 = vrot.lane.b32.xlu0 %v554, 16
  %v693 = vpop.permute.xlu0 %692
  %694 = vrot.lane.b32.xlu0 %v555, 16
  %v695 = vpop.permute.xlu0 %694
  %696 = vrot.lane.b32.xlu0 %v556, 16
  %v697 = vpop.permute.xlu0 %696
  %698 = vrot.lane.b32.xlu0 %v557, 16
  %v699 = vpop.permute.xlu0 %698
  %700 = vrot.lane.b32.xlu0 %v558, 16
  %v701 = vpop.permute.xlu0 %700
  %702 = vrot.lane.b32.xlu0 %v559, 16
  %v703 = vpop.permute.xlu0 %702
  %704 = vrot.lane.b32.xlu0 %v560, 16
  %v705 = vpop.permute.xlu0 %704
  %706 = vrot.lane.b32.xlu0 %v561, 16
  %v707 = vpop.permute.xlu0 %706
  %708 = vrot.lane.b32.xlu0 %v562, 16
  %v709 = vpop.permute.xlu0 %708
  %710 = vrot.lane.b32.xlu0 %v563, 16
  %v711 = vpop.permute.xlu0 %710
  %712 = vrot.lane.b32.xlu0 %v564, 16
  %v713 = vpop.permute.xlu0 %712
  %714 = vrot.lane.b32.xlu0 %v565, 16
  %v715 = vpop.permute.xlu0 %714
  %716 = vrot.lane.b32.xlu0 %v566, 16
  %v717 = vpop.permute.xlu0 %716
  %718 = vrot.lane.b32.xlu0 %v567, 16
  %v719 = vpop.permute.xlu0 %718
  %720 = vrot.lane.b32.xlu0 %v568, 16
  %v721 = vpop.permute.xlu0 %720
  %722 = vrot.lane.b32.xlu0 %v569, 16
  %v723 = vpop.permute.xlu0 %722
  %724 = vrot.lane.b32.xlu0 %v570, 16
  %v725 = vpop.permute.xlu0 %724
  %726 = vrot.lane.b32.xlu0 %v571, 16
  %v727 = vpop.permute.xlu0 %726
  %728 = vrot.lane.b32.xlu0 %v572, 16
  %v729 = vpop.permute.xlu0 %728
  %730 = vrot.lane.b32.xlu0 %v573, 16
  %v731 = vpop.permute.xlu0 %730
  %732 = vrot.lane.b32.xlu0 %v574, 16
  %v733 = vpop.permute.xlu0 %732
  %734 = vrot.lane.b32.xlu0 %v575, 16
  %v735 = vpop.permute.xlu0 %734
  %736 = vrot.lane.b32.xlu0 %v576, 16
  %v737 = vpop.permute.xlu0 %736
  %738 = vrot.lane.b32.xlu0 %v577, 16
  %v739 = vpop.permute.xlu0 %738
  %740 = vrot.lane.b32.xlu0 %v578, 16
  %v741 = vpop.permute.xlu0 %740
  %742 = vrot.lane.b32.xlu0 %v579, 16
  %v743 = vpop.permute.xlu0 %742
  %744 = vrot.lane.b32.xlu0 %v580, 16
  %v745 = vpop.permute.xlu0 %744
  %746 = vrot.lane.b32.xlu0 %v581, 16
  %v747 = vpop.permute.xlu0 %746
  %748 = vrot.lane.b32.xlu0 %v582, 16
  %v749 = vpop.permute.xlu0 %748
  %750 = vrot.lane.b32.xlu0 %v583, 16
  %v751 = vpop.permute.xlu0 %750
  %752 = vrot.lane.b32.xlu0 %v584, 16
  %v753 = vpop.permute.xlu0 %752
  %754 = vrot.lane.b32.xlu0 %v585, 16
  %v755 = vpop.permute.xlu0 %754
  %756 = vrot.lane.b32.xlu0 %v586, 16
  %v757 = vpop.permute.xlu0 %756
  %758 = vrot.lane.b32.xlu0 %v587, 16
  %v759 = vpop.permute.xlu0 %758
  %760 = vrot.lane.b32.xlu0 %v588, 16
  %v761 = vpop.permute.xlu0 %760
  %762 = vrot.lane.b32.xlu0 %v589, 16
  %v763 = vpop.permute.xlu0 %762
  %764 = vrot.lane.b32.xlu0 %v590, 16
  %v765 = vpop.permute.xlu0 %764
  %766 = vrot.lane.b32.xlu0 %v591, 16
  %v767 = vpop.permute.xlu0 %766
  %768 = vrot.lane.b32.xlu0 %v592, 16
  %v769 = vpop.permute.xlu0 %768
  %770 = vrot.lane.b32.xlu0 %v593, 16
  %v771 = vpop.permute.xlu0 %770
  %772 = vrot.lane.b32.xlu0 %v594, 16
  %v773 = vpop.permute.xlu0 %772
  %774 = vrot.lane.b32.xlu0 %v595, 16
  %v775 = vpop.permute.xlu0 %774
  %776 = vrot.lane.b32.xlu0 %v596, 16
  %v777 = vpop.permute.xlu0 %776
  %778 = vrot.lane.b32.xlu0 %v597, 16
  %v779 = vpop.permute.xlu0 %778
  %780 = vrot.lane.b32.xlu0 %v598, 16
  %v781 = vpop.permute.xlu0 %780
  %782 = vrot.lane.b32.xlu0 %v599, 16
  %v783 = vpop.permute.xlu0 %782
  %784 = vrot.lane.b32.xlu0 %v600, 16
  %v785 = vpop.permute.xlu0 %784
  %786 = vrot.lane.b32.xlu0 %v601, 16
  %v787 = vpop.permute.xlu0 %786
  %788 = vrot.lane.b32.xlu0 %v602, 16
  %v789 = vpop.permute.xlu0 %788
  %790 = vrot.lane.b32.xlu0 %v603, 16
  %v791 = vpop.permute.xlu0 %790
  %792 = vrot.lane.b32.xlu0 %v604, 16
  %v793 = vpop.permute.xlu0 %792
  %794 = vrot.lane.b32.xlu0 %v605, 16
  %v795 = vpop.permute.xlu0 %794
  %796 = vrot.lane.b32.xlu0 %v606, 16
  %v797 = vpop.permute.xlu0 %796
  %798 = vrot.lane.b32.xlu0 %v607, 16
  %v799 = vpop.permute.xlu0 %798
  %vm864 = vcmask 195712
  %865 = vst.msk [vmem:[#allocation2] sm:$0xff] %vm864, %v673
  %866 = vst.msk [vmem:[#allocation2 + $0x8] sm:$0xff] %vm864, %v675
  %867 = vst.msk [vmem:[#allocation2 + $0x10] sm:$0xff] %vm864, %v677
  %868 = vst.msk [vmem:[#allocation2 + $0x18] sm:$0xff] %vm864, %v679
  %869 = vst.msk [vmem:[#allocation2 + $0x20] sm:$0xff] %vm864, %v681
  %870 = vst.msk [vmem:[#allocation2 + $0x28] sm:$0xff] %vm864, %v683
  %871 = vst.msk [vmem:[#allocation2 + $0x30] sm:$0xff] %vm864, %v685
  %872 = vst.msk [vmem:[#allocation2 + $0x38] sm:$0xff] %vm864, %v687
  %873 = vst.msk [vmem:[#allocation2 + $0x40] sm:$0xff] %vm864, %v689
  %874 = vst.msk [vmem:[#allocation2 + $0x48] sm:$0xff] %vm864, %v691
  %875 = vst.msk [vmem:[#allocation2 + $0x50] sm:$0xff] %vm864, %v693
  %876 = vst.msk [vmem:[#allocation2 + $0x58] sm:$0xff] %vm864, %v695
  %877 = vst.msk [vmem:[#allocation2 + $0x60] sm:$0xff] %vm864, %v697
  %878 = vst.msk [vmem:[#allocation2 + $0x68] sm:$0xff] %vm864, %v699
  %879 = vst.msk [vmem:[#allocation2 + $0x70] sm:$0xff] %vm864, %v701
  %880 = vst.msk [vmem:[#allocation2 + $0x78] sm:$0xff] %vm864, %v703
  %881 = vst.msk [vmem:[#allocation2 + $0x80] sm:$0xff] %vm864, %v705
  %882 = vst.msk [vmem:[#allocation2 + $0x88] sm:$0xff] %vm864, %v707
  %883 = vst.msk [vmem:[#allocation2 + $0x90] sm:$0xff] %vm864, %v709
  %884 = vst.msk [vmem:[#allocation2 + $0x98] sm:$0xff] %vm864, %v711
  %885 = vst.msk [vmem:[#allocation2 + $0xa0] sm:$0xff] %vm864, %v713
  %886 = vst.msk [vmem:[#allocation2 + $0xa8] sm:$0xff] %vm864, %v715
  %887 = vst.msk [vmem:[#allocation2 + $0xb0] sm:$0xff] %vm864, %v717
  %888 = vst.msk [vmem:[#allocation2 + $0xb8] sm:$0xff] %vm864, %v719
  %889 = vst.msk [vmem:[#allocation2 + $0xc0] sm:$0xff] %vm864, %v721
  %890 = vst.msk [vmem:[#allocation2 + $0xc8] sm:$0xff] %vm864, %v723
  %891 = vst.msk [vmem:[#allocation2 + $0xd0] sm:$0xff] %vm864, %v725
  %892 = vst.msk [vmem:[#allocation2 + $0xd8] sm:$0xff] %vm864, %v727
  %893 = vst.msk [vmem:[#allocation2 + $0xe0] sm:$0xff] %vm864, %v729
  %894 = vst.msk [vmem:[#allocation2 + $0xe8] sm:$0xff] %vm864, %v731
  %895 = vst.msk [vmem:[#allocation2 + $0xf0] sm:$0xff] %vm864, %v733
  %896 = vst.msk [vmem:[#allocation2 + $0xf8] sm:$0xff] %vm864, %v735
  %897 = vst.msk [vmem:[#allocation2 + $0x100] sm:$0xff] %vm864, %v737
  %898 = vst.msk [vmem:[#allocation2 + $0x108] sm:$0xff] %vm864, %v739
  %899 = vst.msk [vmem:[#allocation2 + $0x110] sm:$0xff] %vm864, %v741
  %900 = vst.msk [vmem:[#allocation2 + $0x118] sm:$0xff] %vm864, %v743
  %901 = vst.msk [vmem:[#allocation2 + $0x120] sm:$0xff] %vm864, %v745
  %902 = vst.msk [vmem:[#allocation2 + $0x128] sm:$0xff] %vm864, %v747
  %903 = vst.msk [vmem:[#allocation2 + $0x130] sm:$0xff] %vm864, %v749
  %904 = vst.msk [vmem:[#allocation2 + $0x138] sm:$0xff] %vm864, %v751
  %905 = vst.msk [vmem:[#allocation2 + $0x140] sm:$0xff] %vm864, %v753
  %906 = vst.msk [vmem:[#allocation2 + $0x148] sm:$0xff] %vm864, %v755
  %907 = vst.msk [vmem:[#allocation2 + $0x150] sm:$0xff] %vm864, %v757
  %908 = vst.msk [vmem:[#allocation2 + $0x158] sm:$0xff] %vm864, %v759
  %909 = vst.msk [vmem:[#allocation2 + $0x160] sm:$0xff] %vm864, %v761
  %910 = vst.msk [vmem:[#allocation2 + $0x168] sm:$0xff] %vm864, %v763
  %911 = vst.msk [vmem:[#allocation2 + $0x170] sm:$0xff] %vm864, %v765
  %912 = vst.msk [vmem:[#allocation2 + $0x178] sm:$0xff] %vm864, %v767
  %913 = vst.msk [vmem:[#allocation2 + $0x180] sm:$0xff] %vm864, %v769
  %914 = vst.msk [vmem:[#allocation2 + $0x188] sm:$0xff] %vm864, %v771
  %915 = vst.msk [vmem:[#allocation2 + $0x190] sm:$0xff] %vm864, %v773
  %916 = vst.msk [vmem:[#allocation2 + $0x198] sm:$0xff] %vm864, %v775
  %917 = vst.msk [vmem:[#allocation2 + $0x1a0] sm:$0xff] %vm864, %v777
  %918 = vst.msk [vmem:[#allocation2 + $0x1a8] sm:$0xff] %vm864, %v779
  %919 = vst.msk [vmem:[#allocation2 + $0x1b0] sm:$0xff] %vm864, %v781
  %920 = vst.msk [vmem:[#allocation2 + $0x1b8] sm:$0xff] %vm864, %v783
  %921 = vst.msk [vmem:[#allocation2 + $0x1c0] sm:$0xff] %vm864, %v785
  %922 = vst.msk [vmem:[#allocation2 + $0x1c8] sm:$0xff] %vm864, %v787
  %923 = vst.msk [vmem:[#allocation2 + $0x1d0] sm:$0xff] %vm864, %v789
  %924 = vst.msk [vmem:[#allocation2 + $0x1d8] sm:$0xff] %vm864, %v791
  %925 = vst.msk [vmem:[#allocation2 + $0x1e0] sm:$0xff] %vm864, %v793
  %926 = vst.msk [vmem:[#allocation2 + $0x1e8] sm:$0xff] %vm864, %v795
  %927 = vst.msk [vmem:[#allocation2 + $0x1f0] sm:$0xff] %vm864, %v797
  %928 = vst.msk [vmem:[#allocation2 + $0x1f8] sm:$0xff] %vm864, %v799
  %s929 = scalar_lea.vmem %s0, 24
  %v930 = vld [vmem:[%s929] sm:$0xff]
  %v931 = vld [vmem:[%s929 + $0x8] sm:$0xff]
  %v932 = vld [vmem:[%s929 + $0x18] sm:$0xff]
  %v933 = vld [vmem:[%s929 + $0x20] sm:$0xff]
  %v934 = vld [vmem:[%s929 + $0x30] sm:$0xff]
  %v935 = vld [vmem:[%s929 + $0x38] sm:$0xff]
  %v936 = vld [vmem:[%s929 + $0x48] sm:$0xff]
  %v937 = vld [vmem:[%s929 + $0x50] sm:$0xff]
  %v938 = vld [vmem:[%s929 + $0x60] sm:$0xff]
  %v939 = vld [vmem:[%s929 + $0x68] sm:$0xff]
  %v940 = vld [vmem:[%s929 + $0x78] sm:$0xff]
  %v941 = vld [vmem:[%s929 + $0x80] sm:$0xff]
  %v942 = vld [vmem:[%s929 + $0x90] sm:$0xff]
  %v943 = vld [vmem:[%s929 + $0x98] sm:$0xff]
  %v944 = vld [vmem:[%s929 + $0xa8] sm:$0xff]
  %v945 = vld [vmem:[%s929 + $0xb0] sm:$0xff]
  %v946 = vld [vmem:[%s929 + $0xc0] sm:$0xff]
  %v947 = vld [vmem:[%s929 + $0xc8] sm:$0xff]
  %v948 = vld [vmem:[%s929 + $0xd8] sm:$0xff]
  %v949 = vld [vmem:[%s929 + $0xe0] sm:$0xff]
  %v950 = vld [vmem:[%s929 + $0xf0] sm:$0xff]
  %v951 = vld [vmem:[%s929 + $0xf8] sm:$0xff]
  %v952 = vld [vmem:[%s929 + $0x108] sm:$0xff]
  %v953 = vld [vmem:[%s929 + $0x110] sm:$0xff]
  %v954 = vld [vmem:[%s929 + $0x120] sm:$0xff]
  %v955 = vld [vmem:[%s929 + $0x128] sm:$0xff]
  %v956 = vld [vmem:[%s929 + $0x138] sm:$0xff]
  %v957 = vld [vmem:[%s929 + $0x140] sm:$0xff]
  %v958 = vld [vmem:[%s929 + $0x150] sm:$0xff]
  %v959 = vld [vmem:[%s929 + $0x158] sm:$0xff]
  %v960 = vld [vmem:[%s929 + $0x168] sm:$0xff]
  %v961 = vld [vmem:[%s929 + $0x170] sm:$0xff]
  %v962 = vld [vmem:[%s929 + $0x1b0] sm:$0xff]
  %v963 = vld [vmem:[%s929 + $0x1b8] sm:$0xff]
  %v964 = vld [vmem:[%s929 + $0x1c8] sm:$0xff]
  %v965 = vld [vmem:[%s929 + $0x1d0] sm:$0xff]
  %v966 = vld [vmem:[%s929 + $0x1e0] sm:$0xff]
  %v967 = vld [vmem:[%s929 + $0x1e8] sm:$0xff]
  %v968 = vld [vmem:[%s929 + $0x1f8] sm:$0xff]
  %v969 = vld [vmem:[%s929 + $0x200] sm:$0xff]
  %v970 = vld [vmem:[%s929 + $0x210] sm:$0xff]
  %v971 = vld [vmem:[%s929 + $0x218] sm:$0xff]
  %v972 = vld [vmem:[%s929 + $0x228] sm:$0xff]
  %v973 = vld [vmem:[%s929 + $0x230] sm:$0xff]
  %v974 = vld [vmem:[%s929 + $0x240] sm:$0xff]
  %v975 = vld [vmem:[%s929 + $0x248] sm:$0xff]
  %v976 = vld [vmem:[%s929 + $0x258] sm:$0xff]
  %v977 = vld [vmem:[%s929 + $0x260] sm:$0xff]
  %v978 = vld [vmem:[%s929 + $0x270] sm:$0xff]
  %v979 = vld [vmem:[%s929 + $0x278] sm:$0xff]
  %v980 = vld [vmem:[%s929 + $0x288] sm:$0xff]
  %v981 = vld [vmem:[%s929 + $0x290] sm:$0xff]
  %v982 = vld [vmem:[%s929 + $0x2a0] sm:$0xff]
  %v983 = vld [vmem:[%s929 + $0x2a8] sm:$0xff]
  %v984 = vld [vmem:[%s929 + $0x2b8] sm:$0xff]
  %v985 = vld [vmem:[%s929 + $0x2c0] sm:$0xff]
  %v986 = vld [vmem:[%s929 + $0x2d0] sm:$0xff]
  %v987 = vld [vmem:[%s929 + $0x2d8] sm:$0xff]
  %v988 = vld [vmem:[%s929 + $0x2e8] sm:$0xff]
  %v989 = vld [vmem:[%s929 + $0x2f0] sm:$0xff]
  %v990 = vld [vmem:[%s929 + $0x300] sm:$0xff]
  %v991 = vld [vmem:[%s929 + $0x308] sm:$0xff]
  %v992 = vld [vmem:[%s929 + $0x318] sm:$0xff]
  %v993 = vld [vmem:[%s929 + $0x320] sm:$0xff]
  %1058 = vrot.lane.b32.xlu0 %v930, 24
  %v1059 = vpop.permute.xlu0 %1058
  %1060 = vrot.lane.b32.xlu0 %v931, 24
  %v1061 = vpop.permute.xlu0 %1060
  %1062 = vrot.lane.b32.xlu0 %v932, 24
  %v1063 = vpop.permute.xlu0 %1062
  %1064 = vrot.lane.b32.xlu0 %v933, 24
  %v1065 = vpop.permute.xlu0 %1064
  %1066 = vrot.lane.b32.xlu0 %v934, 24
  %v1067 = vpop.permute.xlu0 %1066
  %1068 = vrot.lane.b32.xlu0 %v935, 24
  %v1069 = vpop.permute.xlu0 %1068
  %1070 = vrot.lane.b32.xlu0 %v936, 24
  %v1071 = vpop.permute.xlu0 %1070
  %1072 = vrot.lane.b32.xlu0 %v937, 24
  %v1073 = vpop.permute.xlu0 %1072
  %1074 = vrot.lane.b32.xlu0 %v938, 24
  %v1075 = vpop.permute.xlu0 %1074
  %1076 = vrot.lane.b32.xlu0 %v939, 24
  %v1077 = vpop.permute.xlu0 %1076
  %1078 = vrot.lane.b32.xlu0 %v940, 24
  %v1079 = vpop.permute.xlu0 %1078
  %1080 = vrot.lane.b32.xlu0 %v941, 24
  %v1081 = vpop.permute.xlu0 %1080
  %1082 = vrot.lane.b32.xlu0 %v942, 24
  %v1083 = vpop.permute.xlu0 %1082
  %1084 = vrot.lane.b32.xlu0 %v943, 24
  %v1085 = vpop.permute.xlu0 %1084
  %1086 = vrot.lane.b32.xlu0 %v944, 24
  %v1087 = vpop.permute.xlu0 %1086
  %1088 = vrot.lane.b32.xlu0 %v945, 24
  %v1089 = vpop.permute.xlu0 %1088
  %1090 = vrot.lane.b32.xlu0 %v946, 24
  %v1091 = vpop.permute.xlu0 %1090
  %1092 = vrot.lane.b32.xlu0 %v947, 24
  %v1093 = vpop.permute.xlu0 %1092
  %1094 = vrot.lane.b32.xlu0 %v948, 24
  %v1095 = vpop.permute.xlu0 %1094
  %1096 = vrot.lane.b32.xlu0 %v949, 24
  %v1097 = vpop.permute.xlu0 %1096
  %1098 = vrot.lane.b32.xlu0 %v950, 24
  %v1099 = vpop.permute.xlu0 %1098
  %1100 = vrot.lane.b32.xlu0 %v951, 24
  %v1101 = vpop.permute.xlu0 %1100
  %1102 = vrot.lane.b32.xlu0 %v952, 24
  %v1103 = vpop.permute.xlu0 %1102
  %1104 = vrot.lane.b32.xlu0 %v953, 24
  %v1105 = vpop.permute.xlu0 %1104
  %1106 = vrot.lane.b32.xlu0 %v954, 24
  %v1107 = vpop.permute.xlu0 %1106
  %1108 = vrot.lane.b32.xlu0 %v955, 24
  %v1109 = vpop.permute.xlu0 %1108
  %1110 = vrot.lane.b32.xlu0 %v956, 24
  %v1111 = vpop.permute.xlu0 %1110
  %1112 = vrot.lane.b32.xlu0 %v957, 24
  %v1113 = vpop.permute.xlu0 %1112
  %1114 = vrot.lane.b32.xlu0 %v958, 24
  %v1115 = vpop.permute.xlu0 %1114
  %1116 = vrot.lane.b32.xlu0 %v959, 24
  %v1117 = vpop.permute.xlu0 %1116
  %1118 = vrot.lane.b32.xlu0 %v960, 24
  %v1119 = vpop.permute.xlu0 %1118
  %1120 = vrot.lane.b32.xlu0 %v961, 24
  %v1121 = vpop.permute.xlu0 %1120
  %1122 = vrot.lane.b32.xlu0 %v962, 24
  %v1123 = vpop.permute.xlu0 %1122
  %1124 = vrot.lane.b32.xlu0 %v963, 24
  %v1125 = vpop.permute.xlu0 %1124
  %1126 = vrot.lane.b32.xlu0 %v964, 24
  %v1127 = vpop.permute.xlu0 %1126
  %1128 = vrot.lane.b32.xlu0 %v965, 24
  %v1129 = vpop.permute.xlu0 %1128
  %1130 = vrot.lane.b32.xlu0 %v966, 24
  %v1131 = vpop.permute.xlu0 %1130
  %1132 = vrot.lane.b32.xlu0 %v967, 24
  %v1133 = vpop.permute.xlu0 %1132
  %1134 = vrot.lane.b32.xlu0 %v968, 24
  %v1135 = vpop.permute.xlu0 %1134
  %1136 = vrot.lane.b32.xlu0 %v969, 24
  %v1137 = vpop.permute.xlu0 %1136
  %1138 = vrot.lane.b32.xlu0 %v970, 24
  %v1139 = vpop.permute.xlu0 %1138
  %1140 = vrot.lane.b32.xlu0 %v971, 24
  %v1141 = vpop.permute.xlu0 %1140
  %1142 = vrot.lane.b32.xlu0 %v972, 24
  %v1143 = vpop.permute.xlu0 %1142
  %1144 = vrot.lane.b32.xlu0 %v973, 24
  %v1145 = vpop.permute.xlu0 %1144
  %1146 = vrot.lane.b32.xlu0 %v974, 24
  %v1147 = vpop.permute.xlu0 %1146
  %1148 = vrot.lane.b32.xlu0 %v975, 24
  %v1149 = vpop.permute.xlu0 %1148
  %1150 = vrot.lane.b32.xlu0 %v976, 24
  %v1151 = vpop.permute.xlu0 %1150
  %1152 = vrot.lane.b32.xlu0 %v977, 24
  %v1153 = vpop.permute.xlu0 %1152
  %1154 = vrot.lane.b32.xlu0 %v978, 24
  %v1155 = vpop.permute.xlu0 %1154
  %1156 = vrot.lane.b32.xlu0 %v979, 24
  %v1157 = vpop.permute.xlu0 %1156
  %1158 = vrot.lane.b32.xlu0 %v980, 24
  %v1159 = vpop.permute.xlu0 %1158
  %1160 = vrot.lane.b32.xlu0 %v981, 24
  %v1161 = vpop.permute.xlu0 %1160
  %1162 = vrot.lane.b32.xlu0 %v982, 24
  %v1163 = vpop.permute.xlu0 %1162
  %1164 = vrot.lane.b32.xlu0 %v983, 24
  %v1165 = vpop.permute.xlu0 %1164
  %1166 = vrot.lane.b32.xlu0 %v984, 24
  %v1167 = vpop.permute.xlu0 %1166
  %1168 = vrot.lane.b32.xlu0 %v985, 24
  %v1169 = vpop.permute.xlu0 %1168
  %1170 = vrot.lane.b32.xlu0 %v986, 24
  %v1171 = vpop.permute.xlu0 %1170
  %1172 = vrot.lane.b32.xlu0 %v987, 24
  %v1173 = vpop.permute.xlu0 %1172
  %1174 = vrot.lane.b32.xlu0 %v988, 24
  %v1175 = vpop.permute.xlu0 %1174
  %1176 = vrot.lane.b32.xlu0 %v989, 24
  %v1177 = vpop.permute.xlu0 %1176
  %1178 = vrot.lane.b32.xlu0 %v990, 24
  %v1179 = vpop.permute.xlu0 %1178
  %1180 = vrot.lane.b32.xlu0 %v991, 24
  %v1181 = vpop.permute.xlu0 %1180
  %1182 = vrot.lane.b32.xlu0 %v992, 24
  %v1183 = vpop.permute.xlu0 %1182
  %1184 = vrot.lane.b32.xlu0 %v993, 24
  %v1185 = vpop.permute.xlu0 %1184
  %vm1250 = vcmask 261312
  %1251 = vst.msk [vmem:[#allocation2] sm:$0xff] %vm1250, %v1059
  %1252 = vst.msk [vmem:[#allocation2 + $0x8] sm:$0xff] %vm1250, %v1061
  %1253 = vst.msk [vmem:[#allocation2 + $0x10] sm:$0xff] %vm1250, %v1063
  %1254 = vst.msk [vmem:[#allocation2 + $0x18] sm:$0xff] %vm1250, %v1065
  %1255 = vst.msk [vmem:[#allocation2 + $0x20] sm:$0xff] %vm1250, %v1067
  %1256 = vst.msk [vmem:[#allocation2 + $0x28] sm:$0xff] %vm1250, %v1069
  %1257 = vst.msk [vmem:[#allocation2 + $0x30] sm:$0xff] %vm1250, %v1071
  %1258 = vst.msk [vmem:[#allocation2 + $0x38] sm:$0xff] %vm1250, %v1073
  %1259 = vst.msk [vmem:[#allocation2 + $0x40] sm:$0xff] %vm1250, %v1075
  %1260 = vst.msk [vmem:[#allocation2 + $0x48] sm:$0xff] %vm1250, %v1077
  %1261 = vst.msk [vmem:[#allocation2 + $0x50] sm:$0xff] %vm1250, %v1079
  %1262 = vst.msk [vmem:[#allocation2 + $0x58] sm:$0xff] %vm1250, %v1081
  %1263 = vst.msk [vmem:[#allocation2 + $0x60] sm:$0xff] %vm1250, %v1083
  %1264 = vst.msk [vmem:[#allocation2 + $0x68] sm:$0xff] %vm1250, %v1085
  %1265 = vst.msk [vmem:[#allocation2 + $0x70] sm:$0xff] %vm1250, %v1087
  %1266 = vst.msk [vmem:[#allocation2 + $0x78] sm:$0xff] %vm1250, %v1089
  %1267 = vst.msk [vmem:[#allocation2 + $0x80] sm:$0xff] %vm1250, %v1091
  %1268 = vst.msk [vmem:[#allocation2 + $0x88] sm:$0xff] %vm1250, %v1093
  %1269 = vst.msk [vmem:[#allocation2 + $0x90] sm:$0xff] %vm1250, %v1095
  %1270 = vst.msk [vmem:[#allocation2 + $0x98] sm:$0xff] %vm1250, %v1097
  %1271 = vst.msk [vmem:[#allocation2 + $0xa0] sm:$0xff] %vm1250, %v1099
  %1272 = vst.msk [vmem:[#allocation2 + $0xa8] sm:$0xff] %vm1250, %v1101
  %1273 = vst.msk [vmem:[#allocation2 + $0xb0] sm:$0xff] %vm1250, %v1103
  %1274 = vst.msk [vmem:[#allocation2 + $0xb8] sm:$0xff] %vm1250, %v1105
  %1275 = vst.msk [vmem:[#allocation2 + $0xc0] sm:$0xff] %vm1250, %v1107
  %1276 = vst.msk [vmem:[#allocation2 + $0xc8] sm:$0xff] %vm1250, %v1109
  %1277 = vst.msk [vmem:[#allocation2 + $0xd0] sm:$0xff] %vm1250, %v1111
  %1278 = vst.msk [vmem:[#allocation2 + $0xd8] sm:$0xff] %vm1250, %v1113
  %1279 = vst.msk [vmem:[#allocation2 + $0xe0] sm:$0xff] %vm1250, %v1115
  %1280 = vst.msk [vmem:[#allocation2 + $0xe8] sm:$0xff] %vm1250, %v1117
  %1281 = vst.msk [vmem:[#allocation2 + $0xf0] sm:$0xff] %vm1250, %v1119
  %1282 = vst.msk [vmem:[#allocation2 + $0xf8] sm:$0xff] %vm1250, %v1121
  %1283 = vst.msk [vmem:[#allocation2 + $0x100] sm:$0xff] %vm1250, %v1123
  %1284 = vst.msk [vmem:[#allocation2 + $0x108] sm:$0xff] %vm1250, %v1125
  %1285 = vst.msk [vmem:[#allocation2 + $0x110] sm:$0xff] %vm1250, %v1127
  %1286 = vst.msk [vmem:[#allocation2 + $0x118] sm:$0xff] %vm1250, %v1129
  %1287 = vst.msk [vmem:[#allocation2 + $0x120] sm:$0xff] %vm1250, %v1131
  %1288 = vst.msk [vmem:[#allocation2 + $0x128] sm:$0xff] %vm1250, %v1133
  %1289 = vst.msk [vmem:[#allocation2 + $0x130] sm:$0xff] %vm1250, %v1135
  %1290 = vst.msk [vmem:[#allocation2 + $0x138] sm:$0xff] %vm1250, %v1137
  %1291 = vst.msk [vmem:[#allocation2 + $0x140] sm:$0xff] %vm1250, %v1139
  %1292 = vst.msk [vmem:[#allocation2 + $0x148] sm:$0xff] %vm1250, %v1141
  %1293 = vst.msk [vmem:[#allocation2 + $0x150] sm:$0xff] %vm1250, %v1143
  %1294 = vst.msk [vmem:[#allocation2 + $0x158] sm:$0xff] %vm1250, %v1145
  %1295 = vst.msk [vmem:[#allocation2 + $0x160] sm:$0xff] %vm1250, %v1147
  %1296 = vst.msk [vmem:[#allocation2 + $0x168] sm:$0xff] %vm1250, %v1149
  %1297 = vst.msk [vmem:[#allocation2 + $0x170] sm:$0xff] %vm1250, %v1151
  %1298 = vst.msk [vmem:[#allocation2 + $0x178] sm:$0xff] %vm1250, %v1153
  %1299 = vst.msk [vmem:[#allocation2 + $0x180] sm:$0xff] %vm1250, %v1155
  %1300 = vst.msk [vmem:[#allocation2 + $0x188] sm:$0xff] %vm1250, %v1157
  %1301 = vst.msk [vmem:[#allocation2 + $0x190] sm:$0xff] %vm1250, %v1159
  %1302 = vst.msk [vmem:[#allocation2 + $0x198] sm:$0xff] %vm1250, %v1161
  %1303 = vst.msk [vmem:[#allocation2 + $0x1a0] sm:$0xff] %vm1250, %v1163
  %1304 = vst.msk [vmem:[#allocation2 + $0x1a8] sm:$0xff] %vm1250, %v1165
  %1305 = vst.msk [vmem:[#allocation2 + $0x1b0] sm:$0xff] %vm1250, %v1167
  %1306 = vst.msk [vmem:[#allocation2 + $0x1b8] sm:$0xff] %vm1250, %v1169
  %1307 = vst.msk [vmem:[#allocation2 + $0x1c0] sm:$0xff] %vm1250, %v1171
  %1308 = vst.msk [vmem:[#allocation2 + $0x1c8] sm:$0xff] %vm1250, %v1173
  %1309 = vst.msk [vmem:[#allocation2 + $0x1d0] sm:$0xff] %vm1250, %v1175
  %1310 = vst.msk [vmem:[#allocation2 + $0x1d8] sm:$0xff] %vm1250, %v1177
  %1311 = vst.msk [vmem:[#allocation2 + $0x1e0] sm:$0xff] %vm1250, %v1179
  %1312 = vst.msk [vmem:[#allocation2 + $0x1e8] sm:$0xff] %vm1250, %v1181
  %1313 = vst.msk [vmem:[#allocation2 + $0x1f0] sm:$0xff] %vm1250, %v1183
  %1314 = vst.msk [vmem:[#allocation2 + $0x1f8] sm:$0xff] %vm1250, %v1185
  %v1315 = vld [vmem:[%s929 + $0x1] sm:$0xff]
  %v1316 = vld [vmem:[%s929 + $0x9] sm:$0xff]
  %v1317 = vld [vmem:[%s929 + $0x19] sm:$0xff]
  %v1318 = vld [vmem:[%s929 + $0x21] sm:$0xff]
  %v1319 = vld [vmem:[%s929 + $0x31] sm:$0xff]
  %v1320 = vld [vmem:[%s929 + $0x39] sm:$0xff]
  %v1321 = vld [vmem:[%s929 + $0x49] sm:$0xff]
  %v1322 = vld [vmem:[%s929 + $0x51] sm:$0xff]
  %v1323 = vld [vmem:[%s929 + $0x61] sm:$0xff]
  %v1324 = vld [vmem:[%s929 + $0x69] sm:$0xff]
  %v1325 = vld [vmem:[%s929 + $0x79] sm:$0xff]
  %v1326 = vld [vmem:[%s929 + $0x81] sm:$0xff]
  %v1327 = vld [vmem:[%s929 + $0x91] sm:$0xff]
  %v1328 = vld [vmem:[%s929 + $0x99] sm:$0xff]
  %v1329 = vld [vmem:[%s929 + $0xa9] sm:$0xff]
  %v1330 = vld [vmem:[%s929 + $0xb1] sm:$0xff]
  %v1331 = vld [vmem:[%s929 + $0xc1] sm:$0xff]
  %v1332 = vld [vmem:[%s929 + $0xc9] sm:$0xff]
  %v1333 = vld [vmem:[%s929 + $0xd9] sm:$0xff]
  %v1334 = vld [vmem:[%s929 + $0xe1] sm:$0xff]
  %v1335 = vld [vmem:[%s929 + $0xf1] sm:$0xff]
  %v1336 = vld [vmem:[%s929 + $0xf9] sm:$0xff]
  %v1337 = vld [vmem:[%s929 + $0x109] sm:$0xff]
  %v1338 = vld [vmem:[%s929 + $0x111] sm:$0xff]
  %v1339 = vld [vmem:[%s929 + $0x121] sm:$0xff]
  %v1340 = vld [vmem:[%s929 + $0x129] sm:$0xff]
  %v1341 = vld [vmem:[%s929 + $0x139] sm:$0xff]
  %v1342 = vld [vmem:[%s929 + $0x141] sm:$0xff]
  %v1343 = vld [vmem:[%s929 + $0x151] sm:$0xff]
  %v1344 = vld [vmem:[%s929 + $0x159] sm:$0xff]
  %v1345 = vld [vmem:[%s929 + $0x169] sm:$0xff]
  %v1346 = vld [vmem:[%s929 + $0x171] sm:$0xff]
  %v1347 = vld [vmem:[%s929 + $0x1b1] sm:$0xff]
  %v1348 = vld [vmem:[%s929 + $0x1b9] sm:$0xff]
  %v1349 = vld [vmem:[%s929 + $0x1c9] sm:$0xff]
  %v1350 = vld [vmem:[%s929 + $0x1d1] sm:$0xff]
  %v1351 = vld [vmem:[%s929 + $0x1e1] sm:$0xff]
  %v1352 = vld [vmem:[%s929 + $0x1e9] sm:$0xff]
  %v1353 = vld [vmem:[%s929 + $0x1f9] sm:$0xff]
  %v1354 = vld [vmem:[%s929 + $0x201] sm:$0xff]
  %v1355 = vld [vmem:[%s929 + $0x211] sm:$0xff]
  %v1356 = vld [vmem:[%s929 + $0x219] sm:$0xff]
  %v1357 = vld [vmem:[%s929 + $0x229] sm:$0xff]
  %v1358 = vld [vmem:[%s929 + $0x231] sm:$0xff]
  %v1359 = vld [vmem:[%s929 + $0x241] sm:$0xff]
  %v1360 = vld [vmem:[%s929 + $0x249] sm:$0xff]
  %v1361 = vld [vmem:[%s929 + $0x259] sm:$0xff]
  %v1362 = vld [vmem:[%s929 + $0x261] sm:$0xff]
  %v1363 = vld [vmem:[%s929 + $0x271] sm:$0xff]
  %v1364 = vld [vmem:[%s929 + $0x279] sm:$0xff]
  %v1365 = vld [vmem:[%s929 + $0x289] sm:$0xff]
  %v1366 = vld [vmem:[%s929 + $0x291] sm:$0xff]
  %v1367 = vld [vmem:[%s929 + $0x2a1] sm:$0xff]
  %v1368 = vld [vmem:[%s929 + $0x2a9] sm:$0xff]
  %v1369 = vld [vmem:[%s929 + $0x2b9] sm:$0xff]
  %v1370 = vld [vmem:[%s929 + $0x2c1] sm:$0xff]
  %v1371 = vld [vmem:[%s929 + $0x2d1] sm:$0xff]
  %v1372 = vld [vmem:[%s929 + $0x2d9] sm:$0xff]
  %v1373 = vld [vmem:[%s929 + $0x2e9] sm:$0xff]
  %v1374 = vld [vmem:[%s929 + $0x2f1] sm:$0xff]
  %v1375 = vld [vmem:[%s929 + $0x301] sm:$0xff]
  %v1376 = vld [vmem:[%s929 + $0x309] sm:$0xff]
  %v1377 = vld [vmem:[%s929 + $0x319] sm:$0xff]
  %v1378 = vld [vmem:[%s929 + $0x321] sm:$0xff]
  %1443 = vrot.lane.b32.xlu0 %v1315, 32
  %v1444 = vpop.permute.xlu0 %1443
  %1445 = vrot.lane.b32.xlu0 %v1316, 32
  %v1446 = vpop.permute.xlu0 %1445
  %1447 = vrot.lane.b32.xlu0 %v1317, 32
  %v1448 = vpop.permute.xlu0 %1447
  %1449 = vrot.lane.b32.xlu0 %v1318, 32
  %v1450 = vpop.permute.xlu0 %1449
  %1451 = vrot.lane.b32.xlu0 %v1319, 32
  %v1452 = vpop.permute.xlu0 %1451
  %1453 = vrot.lane.b32.xlu0 %v1320, 32
  %v1454 = vpop.permute.xlu0 %1453
  %1455 = vrot.lane.b32.xlu0 %v1321, 32
  %v1456 = vpop.permute.xlu0 %1455
  %1457 = vrot.lane.b32.xlu0 %v1322, 32
  %v1458 = vpop.permute.xlu0 %1457
  %1459 = vrot.lane.b32.xlu0 %v1323, 32
  %v1460 = vpop.permute.xlu0 %1459
  %1461 = vrot.lane.b32.xlu0 %v1324, 32
  %v1462 = vpop.permute.xlu0 %1461
  %1463 = vrot.lane.b32.xlu0 %v1325, 32
  %v1464 = vpop.permute.xlu0 %1463
  %1465 = vrot.lane.b32.xlu0 %v1326, 32
  %v1466 = vpop.permute.xlu0 %1465
  %1467 = vrot.lane.b32.xlu0 %v1327, 32
  %v1468 = vpop.permute.xlu0 %1467
  %1469 = vrot.lane.b32.xlu0 %v1328, 32
  %v1470 = vpop.permute.xlu0 %1469
  %1471 = vrot.lane.b32.xlu0 %v1329, 32
  %v1472 = vpop.permute.xlu0 %1471
  %1473 = vrot.lane.b32.xlu0 %v1330, 32
  %v1474 = vpop.permute.xlu0 %1473
  %1475 = vrot.lane.b32.xlu0 %v1331, 32
  %v1476 = vpop.permute.xlu0 %1475
  %1477 = vrot.lane.b32.xlu0 %v1332, 32
  %v1478 = vpop.permute.xlu0 %1477
  %1479 = vrot.lane.b32.xlu0 %v1333, 32
  %v1480 = vpop.permute.xlu0 %1479
  %1481 = vrot.lane.b32.xlu0 %v1334, 32
  %v1482 = vpop.permute.xlu0 %1481
  %1483 = vrot.lane.b32.xlu0 %v1335, 32
  %v1484 = vpop.permute.xlu0 %1483
  %1485 = vrot.lane.b32.xlu0 %v1336, 32
  %v1486 = vpop.permute.xlu0 %1485
  %1487 = vrot.lane.b32.xlu0 %v1337, 32
  %v1488 = vpop.permute.xlu0 %1487
  %1489 = vrot.lane.b32.xlu0 %v1338, 32
  %v1490 = vpop.permute.xlu0 %1489
  %1491 = vrot.lane.b32.xlu0 %v1339, 32
  %v1492 = vpop.permute.xlu0 %1491
  %1493 = vrot.lane.b32.xlu0 %v1340, 32
  %v1494 = vpop.permute.xlu0 %1493
  %1495 = vrot.lane.b32.xlu0 %v1341, 32
  %v1496 = vpop.permute.xlu0 %1495
  %1497 = vrot.lane.b32.xlu0 %v1342, 32
  %v1498 = vpop.permute.xlu0 %1497
  %1499 = vrot.lane.b32.xlu0 %v1343, 32
  %v1500 = vpop.permute.xlu0 %1499
  %1501 = vrot.lane.b32.xlu0 %v1344, 32
  %v1502 = vpop.permute.xlu0 %1501
  %1503 = vrot.lane.b32.xlu0 %v1345, 32
  %v1504 = vpop.permute.xlu0 %1503
  %1505 = vrot.lane.b32.xlu0 %v1346, 32
  %v1506 = vpop.permute.xlu0 %1505
  %1507 = vrot.lane.b32.xlu0 %v1347, 32
  %v1508 = vpop.permute.xlu0 %1507
  %1509 = vrot.lane.b32.xlu0 %v1348, 32
  %v1510 = vpop.permute.xlu0 %1509
  %1511 = vrot.lane.b32.xlu0 %v1349, 32
  %v1512 = vpop.permute.xlu0 %1511
  %1513 = vrot.lane.b32.xlu0 %v1350, 32
  %v1514 = vpop.permute.xlu0 %1513
  %1515 = vrot.lane.b32.xlu0 %v1351, 32
  %v1516 = vpop.permute.xlu0 %1515
  %1517 = vrot.lane.b32.xlu0 %v1352, 32
  %v1518 = vpop.permute.xlu0 %1517
  %1519 = vrot.lane.b32.xlu0 %v1353, 32
  %v1520 = vpop.permute.xlu0 %1519
  %1521 = vrot.lane.b32.xlu0 %v1354, 32
  %v1522 = vpop.permute.xlu0 %1521
  %1523 = vrot.lane.b32.xlu0 %v1355, 32
  %v1524 = vpop.permute.xlu0 %1523
  %1525 = vrot.lane.b32.xlu0 %v1356, 32
  %v1526 = vpop.permute.xlu0 %1525
  %1527 = vrot.lane.b32.xlu0 %v1357, 32
  %v1528 = vpop.permute.xlu0 %1527
  %1529 = vrot.lane.b32.xlu0 %v1358, 32
  %v1530 = vpop.permute.xlu0 %1529
  %1531 = vrot.lane.b32.xlu0 %v1359, 32
  %v1532 = vpop.permute.xlu0 %1531
  %1533 = vrot.lane.b32.xlu0 %v1360, 32
  %v1534 = vpop.permute.xlu0 %1533
  %1535 = vrot.lane.b32.xlu0 %v1361, 32
  %v1536 = vpop.permute.xlu0 %1535
  %1537 = vrot.lane.b32.xlu0 %v1362, 32
  %v1538 = vpop.permute.xlu0 %1537
  %1539 = vrot.lane.b32.xlu0 %v1363, 32
  %v1540 = vpop.permute.xlu0 %1539
  %1541 = vrot.lane.b32.xlu0 %v1364, 32
  %v1542 = vpop.permute.xlu0 %1541
  %1543 = vrot.lane.b32.xlu0 %v1365, 32
  %v1544 = vpop.permute.xlu0 %1543
  %1545 = vrot.lane.b32.xlu0 %v1366, 32
  %v1546 = vpop.permute.xlu0 %1545
  %1547 = vrot.lane.b32.xlu0 %v1367, 32
  %v1548 = vpop.permute.xlu0 %1547
  %1549 = vrot.lane.b32.xlu0 %v1368, 32
  %v1550 = vpop.permute.xlu0 %1549
  %1551 = vrot.lane.b32.xlu0 %v1369, 32
  %v1552 = vpop.permute.xlu0 %1551
  %1553 = vrot.lane.b32.xlu0 %v1370, 32
  %v1554 = vpop.permute.xlu0 %1553
  %1555 = vrot.lane.b32.xlu0 %v1371, 32
  %v1556 = vpop.permute.xlu0 %1555
  %1557 = vrot.lane.b32.xlu0 %v1372, 32
  %v1558 = vpop.permute.xlu0 %1557
  %1559 = vrot.lane.b32.xlu0 %v1373, 32
  %v1560 = vpop.permute.xlu0 %1559
  %1561 = vrot.lane.b32.xlu0 %v1374, 32
  %v1562 = vpop.permute.xlu0 %1561
  %1563 = vrot.lane.b32.xlu0 %v1375, 32
  %v1564 = vpop.permute.xlu0 %1563
  %1565 = vrot.lane.b32.xlu0 %v1376, 32
  %v1566 = vpop.permute.xlu0 %1565
  %1567 = vrot.lane.b32.xlu0 %v1377, 32
  %v1568 = vpop.permute.xlu0 %1567
  %1569 = vrot.lane.b32.xlu0 %v1378, 32
  %v1570 = vpop.permute.xlu0 %1569
  %vm1635 = vcmask 326912
  %1636 = vst.msk [vmem:[#allocation2] sm:$0xff] %vm1635, %v1444
  %1637 = vst.msk [vmem:[#allocation2 + $0x8] sm:$0xff] %vm1635, %v1446
  %1638 = vst.msk [vmem:[#allocation2 + $0x10] sm:$0xff] %vm1635, %v1448
  %1639 = vst.msk [vmem:[#allocation2 + $0x18] sm:$0xff] %vm1635, %v1450
  %1640 = vst.msk [vmem:[#allocation2 + $0x20] sm:$0xff] %vm1635, %v1452
  %1641 = vst.msk [vmem:[#allocation2 + $0x28] sm:$0xff] %vm1635, %v1454
  %1642 = vst.msk [vmem:[#allocation2 + $0x30] sm:$0xff] %vm1635, %v1456
  %1643 = vst.msk [vmem:[#allocation2 + $0x38] sm:$0xff] %vm1635, %v1458
  %1644 = vst.msk [vmem:[#allocation2 + $0x40] sm:$0xff] %vm1635, %v1460
  %1645 = vst.msk [vmem:[#allocation2 + $0x48] sm:$0xff] %vm1635, %v1462
  %1646 = vst.msk [vmem:[#allocation2 + $0x50] sm:$0xff] %vm1635, %v1464
  %1647 = vst.msk [vmem:[#allocation2 + $0x58] sm:$0xff] %vm1635, %v1466
  %1648 = vst.msk [vmem:[#allocation2 + $0x60] sm:$0xff] %vm1635, %v1468
  %1649 = vst.msk [vmem:[#allocation2 + $0x68] sm:$0xff] %vm1635, %v1470
  %1650 = vst.msk [vmem:[#allocation2 + $0x70] sm:$0xff] %vm1635, %v1472
  %1651 = vst.msk [vmem:[#allocation2 + $0x78] sm:$0xff] %vm1635, %v1474
  %1652 = vst.msk [vmem:[#allocation2 + $0x80] sm:$0xff] %vm1635, %v1476
  %1653 = vst.msk [vmem:[#allocation2 + $0x88] sm:$0xff] %vm1635, %v1478
  %1654 = vst.msk [vmem:[#allocation2 + $0x90] sm:$0xff] %vm1635, %v1480
  %1655 = vst.msk [vmem:[#allocation2 + $0x98] sm:$0xff] %vm1635, %v1482
  %1656 = vst.msk [vmem:[#allocation2 + $0xa0] sm:$0xff] %vm1635, %v1484
  %1657 = vst.msk [vmem:[#allocation2 + $0xa8] sm:$0xff] %vm1635, %v1486
  %1658 = vst.msk [vmem:[#allocation2 + $0xb0] sm:$0xff] %vm1635, %v1488
  %1659 = vst.msk [vmem:[#allocation2 + $0xb8] sm:$0xff] %vm1635, %v1490
  %1660 = vst.msk [vmem:[#allocation2 + $0xc0] sm:$0xff] %vm1635, %v1492
  %1661 = vst.msk [vmem:[#allocation2 + $0xc8] sm:$0xff] %vm1635, %v1494
  %1662 = vst.msk [vmem:[#allocation2 + $0xd0] sm:$0xff] %vm1635, %v1496
  %1663 = vst.msk [vmem:[#allocation2 + $0xd8] sm:$0xff] %vm1635, %v1498
  %1664 = vst.msk [vmem:[#allocation2 + $0xe0] sm:$0xff] %vm1635, %v1500
  %1665 = vst.msk [vmem:[#allocation2 + $0xe8] sm:$0xff] %vm1635, %v1502
  %1666 = vst.msk [vmem:[#allocation2 + $0xf0] sm:$0xff] %vm1635, %v1504
  %1667 = vst.msk [vmem:[#allocation2 + $0xf8] sm:$0xff] %vm1635, %v1506
  %1668 = vst.msk [vmem:[#allocation2 + $0x100] sm:$0xff] %vm1635, %v1508
  %1669 = vst.msk [vmem:[#allocation2 + $0x108] sm:$0xff] %vm1635, %v1510
  %1670 = vst.msk [vmem:[#allocation2 + $0x110] sm:$0xff] %vm1635, %v1512
  %1671 = vst.msk [vmem:[#allocation2 + $0x118] sm:$0xff] %vm1635, %v1514
  %1672 = vst.msk [vmem:[#allocation2 + $0x120] sm:$0xff] %vm1635, %v1516
  %1673 = vst.msk [vmem:[#allocation2 + $0x128] sm:$0xff] %vm1635, %v1518
  %1674 = vst.msk [vmem:[#allocation2 + $0x130] sm:$0xff] %vm1635, %v1520
  %1675 = vst.msk [vmem:[#allocation2 + $0x138] sm:$0xff] %vm1635, %v1522
  %1676 = vst.msk [vmem:[#allocation2 + $0x140] sm:$0xff] %vm1635, %v1524
  %1677 = vst.msk [vmem:[#allocation2 + $0x148] sm:$0xff] %vm1635, %v1526
  %1678 = vst.msk [vmem:[#allocation2 + $0x150] sm:$0xff] %vm1635, %v1528
  %1679 = vst.msk [vmem:[#allocation2 + $0x158] sm:$0xff] %vm1635, %v1530
  %1680 = vst.msk [vmem:[#allocation2 + $0x160] sm:$0xff] %vm1635, %v1532
  %1681 = vst.msk [vmem:[#allocation2 + $0x168] sm:$0xff] %vm1635, %v1534
  %1682 = vst.msk [vmem:[#allocation2 + $0x170] sm:$0xff] %vm1635, %v1536
  %1683 = vst.msk [vmem:[#allocation2 + $0x178] sm:$0xff] %vm1635, %v1538
  %1684 = vst.msk [vmem:[#allocation2 + $0x180] sm:$0xff] %vm1635, %v1540
  %1685 = vst.msk [vmem:[#allocation2 + $0x188] sm:$0xff] %vm1635, %v1542
  %1686 = vst.msk [vmem:[#allocation2 + $0x190] sm:$0xff] %vm1635, %v1544
  %1687 = vst.msk [vmem:[#allocation2 + $0x198] sm:$0xff] %vm1635, %v1546
  %1688 = vst.msk [vmem:[#allocation2 + $0x1a0] sm:$0xff] %vm1635, %v1548
  %1689 = vst.msk [vmem:[#allocation2 + $0x1a8] sm:$0xff] %vm1635, %v1550
  %1690 = vst.msk [vmem:[#allocation2 + $0x1b0] sm:$0xff] %vm1635, %v1552
  %1691 = vst.msk [vmem:[#allocation2 + $0x1b8] sm:$0xff] %vm1635, %v1554
  %1692 = vst.msk [vmem:[#allocation2 + $0x1c0] sm:$0xff] %vm1635, %v1556
  %1693 = vst.msk [vmem:[#allocation2 + $0x1c8] sm:$0xff] %vm1635, %v1558
  %1694 = vst.msk [vmem:[#allocation2 + $0x1d0] sm:$0xff] %vm1635, %v1560
  %1695 = vst.msk [vmem:[#allocation2 + $0x1d8] sm:$0xff] %vm1635, %v1562
  %1696 = vst.msk [vmem:[#allocation2 + $0x1e0] sm:$0xff] %vm1635, %v1564
  %1697 = vst.msk [vmem:[#allocation2 + $0x1e8] sm:$0xff] %vm1635, %v1566
  %1698 = vst.msk [vmem:[#allocation2 + $0x1f0] sm:$0xff] %vm1635, %v1568
  %1699 = vst.msk [vmem:[#allocation2 + $0x1f8] sm:$0xff] %vm1635, %v1570
  %v1700 = vld [vmem:[%s929 + $0x2] sm:$0xff]
  %v1701 = vld [vmem:[%s929 + $0xa] sm:$0xff]
  %v1702 = vld [vmem:[%s929 + $0x1a] sm:$0xff]
  %v1703 = vld [vmem:[%s929 + $0x22] sm:$0xff]
  %v1704 = vld [vmem:[%s929 + $0x32] sm:$0xff]
  %v1705 = vld [vmem:[%s929 + $0x3a] sm:$0xff]
  %v1706 = vld [vmem:[%s929 + $0x4a] sm:$0xff]
  %v1707 = vld [vmem:[%s929 + $0x52] sm:$0xff]
  %v1708 = vld [vmem:[%s929 + $0x62] sm:$0xff]
  %v1709 = vld [vmem:[%s929 + $0x6a] sm:$0xff]
  %v1710 = vld [vmem:[%s929 + $0x7a] sm:$0xff]
  %v1711 = vld [vmem:[%s929 + $0x82] sm:$0xff]
  %v1712 = vld [vmem:[%s929 + $0x92] sm:$0xff]
  %v1713 = vld [vmem:[%s929 + $0x9a] sm:$0xff]
  %v1714 = vld [vmem:[%s929 + $0xaa] sm:$0xff]
  %v1715 = vld [vmem:[%s929 + $0xb2] sm:$0xff]
  %v1716 = vld [vmem:[%s929 + $0xc2] sm:$0xff]
  %v1717 = vld [vmem:[%s929 + $0xca] sm:$0xff]
  %v1718 = vld [vmem:[%s929 + $0xda] sm:$0xff]
  %v1719 = vld [vmem:[%s929 + $0xe2] sm:$0xff]
  %v1720 = vld [vmem:[%s929 + $0xf2] sm:$0xff]
  %v1721 = vld [vmem:[%s929 + $0xfa] sm:$0xff]
  %v1722 = vld [vmem:[%s929 + $0x10a] sm:$0xff]
  %v1723 = vld [vmem:[%s929 + $0x112] sm:$0xff]
  %v1724 = vld [vmem:[%s929 + $0x122] sm:$0xff]
  %v1725 = vld [vmem:[%s929 + $0x12a] sm:$0xff]
  %v1726 = vld [vmem:[%s929 + $0x13a] sm:$0xff]
  %v1727 = vld [vmem:[%s929 + $0x142] sm:$0xff]
  %v1728 = vld [vmem:[%s929 + $0x152] sm:$0xff]
  %v1729 = vld [vmem:[%s929 + $0x15a] sm:$0xff]
  %v1730 = vld [vmem:[%s929 + $0x16a] sm:$0xff]
  %v1731 = vld [vmem:[%s929 + $0x172] sm:$0xff]
  %v1732 = vld [vmem:[%s929 + $0x1b2] sm:$0xff]
  %v1733 = vld [vmem:[%s929 + $0x1ba] sm:$0xff]
  %v1734 = vld [vmem:[%s929 + $0x1ca] sm:$0xff]
  %v1735 = vld [vmem:[%s929 + $0x1d2] sm:$0xff]
  %v1736 = vld [vmem:[%s929 + $0x1e2] sm:$0xff]
  %v1737 = vld [vmem:[%s929 + $0x1ea] sm:$0xff]
  %v1738 = vld [vmem:[%s929 + $0x1fa] sm:$0xff]
  %v1739 = vld [vmem:[%s929 + $0x202] sm:$0xff]
  %v1740 = vld [vmem:[%s929 + $0x212] sm:$0xff]
  %v1741 = vld [vmem:[%s929 + $0x21a] sm:$0xff]
  %v1742 = vld [vmem:[%s929 + $0x22a] sm:$0xff]
  %v1743 = vld [vmem:[%s929 + $0x232] sm:$0xff]
  %v1744 = vld [vmem:[%s929 + $0x242] sm:$0xff]
  %v1745 = vld [vmem:[%s929 + $0x24a] sm:$0xff]
  %v1746 = vld [vmem:[%s929 + $0x25a] sm:$0xff]
  %v1747 = vld [vmem:[%s929 + $0x262] sm:$0xff]
  %v1748 = vld [vmem:[%s929 + $0x272] sm:$0xff]
  %v1749 = vld [vmem:[%s929 + $0x27a] sm:$0xff]
  %v1750 = vld [vmem:[%s929 + $0x28a] sm:$0xff]
  %v1751 = vld [vmem:[%s929 + $0x292] sm:$0xff]
  %v1752 = vld [vmem:[%s929 + $0x2a2] sm:$0xff]
  %v1753 = vld [vmem:[%s929 + $0x2aa] sm:$0xff]
  %v1754 = vld [vmem:[%s929 + $0x2ba] sm:$0xff]
  %v1755 = vld [vmem:[%s929 + $0x2c2] sm:$0xff]
  %v1756 = vld [vmem:[%s929 + $0x2d2] sm:$0xff]
  %v1757 = vld [vmem:[%s929 + $0x2da] sm:$0xff]
  %v1758 = vld [vmem:[%s929 + $0x2ea] sm:$0xff]
  %v1759 = vld [vmem:[%s929 + $0x2f2] sm:$0xff]
  %v1760 = vld [vmem:[%s929 + $0x302] sm:$0xff]
  %v1761 = vld [vmem:[%s929 + $0x30a] sm:$0xff]
  %v1762 = vld [vmem:[%s929 + $0x31a] sm:$0xff]
  %v1763 = vld [vmem:[%s929 + $0x322] sm:$0xff]
  %1828 = vrot.lane.b32.xlu0 %v1700, 40
  %v1829 = vpop.permute.xlu0 %1828
  %1830 = vrot.lane.b32.xlu0 %v1701, 40
  %v1831 = vpop.permute.xlu0 %1830
  %1832 = vrot.lane.b32.xlu0 %v1702, 40
  %v1833 = vpop.permute.xlu0 %1832
  %1834 = vrot.lane.b32.xlu0 %v1703, 40
  %v1835 = vpop.permute.xlu0 %1834
  %1836 = vrot.lane.b32.xlu0 %v1704, 40
  %v1837 = vpop.permute.xlu0 %1836
  %1838 = vrot.lane.b32.xlu0 %v1705, 40
  %v1839 = vpop.permute.xlu0 %1838
  %1840 = vrot.lane.b32.xlu0 %v1706, 40
  %v1841 = vpop.permute.xlu0 %1840
  %1842 = vrot.lane.b32.xlu0 %v1707, 40
  %v1843 = vpop.permute.xlu0 %1842
  %1844 = vrot.lane.b32.xlu0 %v1708, 40
  %v1845 = vpop.permute.xlu0 %1844
  %1846 = vrot.lane.b32.xlu0 %v1709, 40
  %v1847 = vpop.permute.xlu0 %1846
  %1848 = vrot.lane.b32.xlu0 %v1710, 40
  %v1849 = vpop.permute.xlu0 %1848
  %1850 = vrot.lane.b32.xlu0 %v1711, 40
  %v1851 = vpop.permute.xlu0 %1850
  %1852 = vrot.lane.b32.xlu0 %v1712, 40
  %v1853 = vpop.permute.xlu0 %1852
  %1854 = vrot.lane.b32.xlu0 %v1713, 40
  %v1855 = vpop.permute.xlu0 %1854
  %1856 = vrot.lane.b32.xlu0 %v1714, 40
  %v1857 = vpop.permute.xlu0 %1856
  %1858 = vrot.lane.b32.xlu0 %v1715, 40
  %v1859 = vpop.permute.xlu0 %1858
  %1860 = vrot.lane.b32.xlu0 %v1716, 40
  %v1861 = vpop.permute.xlu0 %1860
  %1862 = vrot.lane.b32.xlu0 %v1717, 40
  %v1863 = vpop.permute.xlu0 %1862
  %1864 = vrot.lane.b32.xlu0 %v1718, 40
  %v1865 = vpop.permute.xlu0 %1864
  %1866 = vrot.lane.b32.xlu0 %v1719, 40
  %v1867 = vpop.permute.xlu0 %1866
  %1868 = vrot.lane.b32.xlu0 %v1720, 40
  %v1869 = vpop.permute.xlu0 %1868
  %1870 = vrot.lane.b32.xlu0 %v1721, 40
  %v1871 = vpop.permute.xlu0 %1870
  %1872 = vrot.lane.b32.xlu0 %v1722, 40
  %v1873 = vpop.permute.xlu0 %1872
  %1874 = vrot.lane.b32.xlu0 %v1723, 40
  %v1875 = vpop.permute.xlu0 %1874
  %1876 = vrot.lane.b32.xlu0 %v1724, 40
  %v1877 = vpop.permute.xlu0 %1876
  %1878 = vrot.lane.b32.xlu0 %v1725, 40
  %v1879 = vpop.permute.xlu0 %1878
  %1880 = vrot.lane.b32.xlu0 %v1726, 40
  %v1881 = vpop.permute.xlu0 %1880
  %1882 = vrot.lane.b32.xlu0 %v1727, 40
  %v1883 = vpop.permute.xlu0 %1882
  %1884 = vrot.lane.b32.xlu0 %v1728, 40
  %v1885 = vpop.permute.xlu0 %1884
  %1886 = vrot.lane.b32.xlu0 %v1729, 40
  %v1887 = vpop.permute.xlu0 %1886
  %1888 = vrot.lane.b32.xlu0 %v1730, 40
  %v1889 = vpop.permute.xlu0 %1888
  %1890 = vrot.lane.b32.xlu0 %v1731, 40
  %v1891 = vpop.permute.xlu0 %1890
  %1892 = vrot.lane.b32.xlu0 %v1732, 40
  %v1893 = vpop.permute.xlu0 %1892
  %1894 = vrot.lane.b32.xlu0 %v1733, 40
  %v1895 = vpop.permute.xlu0 %1894
  %1896 = vrot.lane.b32.xlu0 %v1734, 40
  %v1897 = vpop.permute.xlu0 %1896
  %1898 = vrot.lane.b32.xlu0 %v1735, 40
  %v1899 = vpop.permute.xlu0 %1898
  %1900 = vrot.lane.b32.xlu0 %v1736, 40
  %v1901 = vpop.permute.xlu0 %1900
  %1902 = vrot.lane.b32.xlu0 %v1737, 40
  %v1903 = vpop.permute.xlu0 %1902
  %1904 = vrot.lane.b32.xlu0 %v1738, 40
  %v1905 = vpop.permute.xlu0 %1904
  %1906 = vrot.lane.b32.xlu0 %v1739, 40
  %v1907 = vpop.permute.xlu0 %1906
  %1908 = vrot.lane.b32.xlu0 %v1740, 40
  %v1909 = vpop.permute.xlu0 %1908
  %1910 = vrot.lane.b32.xlu0 %v1741, 40
  %v1911 = vpop.permute.xlu0 %1910
  %1912 = vrot.lane.b32.xlu0 %v1742, 40
  %v1913 = vpop.permute.xlu0 %1912
  %1914 = vrot.lane.b32.xlu0 %v1743, 40
  %v1915 = vpop.permute.xlu0 %1914
  %1916 = vrot.lane.b32.xlu0 %v1744, 40
  %v1917 = vpop.permute.xlu0 %1916
  %1918 = vrot.lane.b32.xlu0 %v1745, 40
  %v1919 = vpop.permute.xlu0 %1918
  %1920 = vrot.lane.b32.xlu0 %v1746, 40
  %v1921 = vpop.permute.xlu0 %1920
  %1922 = vrot.lane.b32.xlu0 %v1747, 40
  %v1923 = vpop.permute.xlu0 %1922
  %1924 = vrot.lane.b32.xlu0 %v1748, 40
  %v1925 = vpop.permute.xlu0 %1924
  %1926 = vrot.lane.b32.xlu0 %v1749, 40
  %v1927 = vpop.permute.xlu0 %1926
  %1928 = vrot.lane.b32.xlu0 %v1750, 40
  %v1929 = vpop.permute.xlu0 %1928
  %1930 = vrot.lane.b32.xlu0 %v1751, 40
  %v1931 = vpop.permute.xlu0 %1930
  %1932 = vrot.lane.b32.xlu0 %v1752, 40
  %v1933 = vpop.permute.xlu0 %1932
  %1934 = vrot.lane.b32.xlu0 %v1753, 40
  %v1935 = vpop.permute.xlu0 %1934
  %1936 = vrot.lane.b32.xlu0 %v1754, 40
  %v1937 = vpop.permute.xlu0 %1936
  %1938 = vrot.lane.b32.xlu0 %v1755, 40
  %v1939 = vpop.permute.xlu0 %1938
  %1940 = vrot.lane.b32.xlu0 %v1756, 40
  %v1941 = vpop.permute.xlu0 %1940
  %1942 = vrot.lane.b32.xlu0 %v1757, 40
  %v1943 = vpop.permute.xlu0 %1942
  %1944 = vrot.lane.b32.xlu0 %v1758, 40
  %v1945 = vpop.permute.xlu0 %1944
  %1946 = vrot.lane.b32.xlu0 %v1759, 40
  %v1947 = vpop.permute.xlu0 %1946
  %1948 = vrot.lane.b32.xlu0 %v1760, 40
  %v1949 = vpop.permute.xlu0 %1948
  %1950 = vrot.lane.b32.xlu0 %v1761, 40
  %v1951 = vpop.permute.xlu0 %1950
  %1952 = vrot.lane.b32.xlu0 %v1762, 40
  %v1953 = vpop.permute.xlu0 %1952
  %1954 = vrot.lane.b32.xlu0 %v1763, 40
  %v1955 = vpop.permute.xlu0 %1954
  %vm2020 = vcmask 392512
  %2021 = vst.msk [vmem:[#allocation2] sm:$0xff] %vm2020, %v1829
  %2022 = vst.msk [vmem:[#allocation2 + $0x8] sm:$0xff] %vm2020, %v1831
  %2023 = vst.msk [vmem:[#allocation2 + $0x10] sm:$0xff] %vm2020, %v1833
  %2024 = vst.msk [vmem:[#allocation2 + $0x18] sm:$0xff] %vm2020, %v1835
  %2025 = vst.msk [vmem:[#allocation2 + $0x20] sm:$0xff] %vm2020, %v1837
  %2026 = vst.msk [vmem:[#allocation2 + $0x28] sm:$0xff] %vm2020, %v1839
  %2027 = vst.msk [vmem:[#allocation2 + $0x30] sm:$0xff] %vm2020, %v1841
  %2028 = vst.msk [vmem:[#allocation2 + $0x38] sm:$0xff] %vm2020, %v1843
  %2029 = vst.msk [vmem:[#allocation2 + $0x40] sm:$0xff] %vm2020, %v1845
  %2030 = vst.msk [vmem:[#allocation2 + $0x48] sm:$0xff] %vm2020, %v1847
  %2031 = vst.msk [vmem:[#allocation2 + $0x50] sm:$0xff] %vm2020, %v1849
  %2032 = vst.msk [vmem:[#allocation2 + $0x58] sm:$0xff] %vm2020, %v1851
  %2033 = vst.msk [vmem:[#allocation2 + $0x60] sm:$0xff] %vm2020, %v1853
  %2034 = vst.msk [vmem:[#allocation2 + $0x68] sm:$0xff] %vm2020, %v1855
  %2035 = vst.msk [vmem:[#allocation2 + $0x70] sm:$0xff] %vm2020, %v1857
  %2036 = vst.msk [vmem:[#allocation2 + $0x78] sm:$0xff] %vm2020, %v1859
  %2037 = vst.msk [vmem:[#allocation2 + $0x80] sm:$0xff] %vm2020, %v1861
  %2038 = vst.msk [vmem:[#allocation2 + $0x88] sm:$0xff] %vm2020, %v1863
  %2039 = vst.msk [vmem:[#allocation2 + $0x90] sm:$0xff] %vm2020, %v1865
  %2040 = vst.msk [vmem:[#allocation2 + $0x98] sm:$0xff] %vm2020, %v1867
  %2041 = vst.msk [vmem:[#allocation2 + $0xa0] sm:$0xff] %vm2020, %v1869
  %2042 = vst.msk [vmem:[#allocation2 + $0xa8] sm:$0xff] %vm2020, %v1871
  %2043 = vst.msk [vmem:[#allocation2 + $0xb0] sm:$0xff] %vm2020, %v1873
  %2044 = vst.msk [vmem:[#allocation2 + $0xb8] sm:$0xff] %vm2020, %v1875
  %2045 = vst.msk [vmem:[#allocation2 + $0xc0] sm:$0xff] %vm2020, %v1877
  %2046 = vst.msk [vmem:[#allocation2 + $0xc8] sm:$0xff] %vm2020, %v1879
  %2047 = vst.msk [vmem:[#allocation2 + $0xd0] sm:$0xff] %vm2020, %v1881
  %2048 = vst.msk [vmem:[#allocation2 + $0xd8] sm:$0xff] %vm2020, %v1883
  %2049 = vst.msk [vmem:[#allocation2 + $0xe0] sm:$0xff] %vm2020, %v1885
  %2050 = vst.msk [vmem:[#allocation2 + $0xe8] sm:$0xff] %vm2020, %v1887
  %2051 = vst.msk [vmem:[#allocation2 + $0xf0] sm:$0xff] %vm2020, %v1889
  %2052 = vst.msk [vmem:[#allocation2 + $0xf8] sm:$0xff] %vm2020, %v1891
  %2053 = vst.msk [vmem:[#allocation2 + $0x100] sm:$0xff] %vm2020, %v1893
  %2054 = vst.msk [vmem:[#allocation2 + $0x108] sm:$0xff] %vm2020, %v1895
  %2055 = vst.msk [vmem:[#allocation2 + $0x110] sm:$0xff] %vm2020, %v1897
  %2056 = vst.msk [vmem:[#allocation2 + $0x118] sm:$0xff] %vm2020, %v1899
  %2057 = vst.msk [vmem:[#allocation2 + $0x120] sm:$0xff] %vm2020, %v1901
  %2058 = vst.msk [vmem:[#allocation2 + $0x128] sm:$0xff] %vm2020, %v1903
  %2059 = vst.msk [vmem:[#allocation2 + $0x130] sm:$0xff] %vm2020, %v1905
  %2060 = vst.msk [vmem:[#allocation2 + $0x138] sm:$0xff] %vm2020, %v1907
  %2061 = vst.msk [vmem:[#allocation2 + $0x140] sm:$0xff] %vm2020, %v1909
  %2062 = vst.msk [vmem:[#allocation2 + $0x148] sm:$0xff] %vm2020, %v1911
  %2063 = vst.msk [vmem:[#allocation2 + $0x150] sm:$0xff] %vm2020, %v1913
  %2064 = vst.msk [vmem:[#allocation2 + $0x158] sm:$0xff] %vm2020, %v1915
  %2065 = vst.msk [vmem:[#allocation2 + $0x160] sm:$0xff] %vm2020, %v1917
  %2066 = vst.msk [vmem:[#allocation2 + $0x168] sm:$0xff] %vm2020, %v1919
  %2067 = vst.msk [vmem:[#allocation2 + $0x170] sm:$0xff] %vm2020, %v1921
  %2068 = vst.msk [vmem:[#allocation2 + $0x178] sm:$0xff] %vm2020, %v1923
  %2069 = vst.msk [vmem:[#allocation2 + $0x180] sm:$0xff] %vm2020, %v1925
  %2070 = vst.msk [vmem:[#allocation2 + $0x188] sm:$0xff] %vm2020, %v1927
  %2071 = vst.msk [vmem:[#allocation2 + $0x190] sm:$0xff] %vm2020, %v1929
  %2072 = vst.msk [vmem:[#allocation2 + $0x198] sm:$0xff] %vm2020, %v1931
  %2073 = vst.msk [vmem:[#allocation2 + $0x1a0] sm:$0xff] %vm2020, %v1933
  %2074 = vst.msk [vmem:[#allocation2 + $0x1a8] sm:$0xff] %vm2020, %v1935
  %2075 = vst.msk [vmem:[#allocation2 + $0x1b0] sm:$0xff] %vm2020, %v1937
  %2076 = vst.msk [vmem:[#allocation2 + $0x1b8] sm:$0xff] %vm2020, %v1939
  %2077 = vst.msk [vmem:[#allocation2 + $0x1c0] sm:$0xff] %vm2020, %v1941
  %2078 = vst.msk [vmem:[#allocation2 + $0x1c8] sm:$0xff] %vm2020, %v1943
  %2079 = vst.msk [vmem:[#allocation2 + $0x1d0] sm:$0xff] %vm2020, %v1945
  %2080 = vst.msk [vmem:[#allocation2 + $0x1d8] sm:$0xff] %vm2020, %v1947
  %2081 = vst.msk [vmem:[#allocation2 + $0x1e0] sm:$0xff] %vm2020, %v1949
  %2082 = vst.msk [vmem:[#allocation2 + $0x1e8] sm:$0xff] %vm2020, %v1951
  %2083 = vst.msk [vmem:[#allocation2 + $0x1f0] sm:$0xff] %vm2020, %v1953
  %2084 = vst.msk [vmem:[#allocation2 + $0x1f8] sm:$0xff] %vm2020, %v1955
  %s2085 = scalar_lea.vmem %s0, 48
  %v2086 = vld [vmem:[%s2085] sm:$0xff]
  %v2087 = vld [vmem:[%s2085 + $0x8] sm:$0xff]
  %v2088 = vld [vmem:[%s2085 + $0x18] sm:$0xff]
  %v2089 = vld [vmem:[%s2085 + $0x20] sm:$0xff]
  %v2090 = vld [vmem:[%s2085 + $0x30] sm:$0xff]
  %v2091 = vld [vmem:[%s2085 + $0x38] sm:$0xff]
  %v2092 = vld [vmem:[%s2085 + $0x48] sm:$0xff]
  %v2093 = vld [vmem:[%s2085 + $0x50] sm:$0xff]
  %v2094 = vld [vmem:[%s2085 + $0x60] sm:$0xff]
  %v2095 = vld [vmem:[%s2085 + $0x68] sm:$0xff]
  %v2096 = vld [vmem:[%s2085 + $0x78] sm:$0xff]
  %v2097 = vld [vmem:[%s2085 + $0x80] sm:$0xff]
  %v2098 = vld [vmem:[%s2085 + $0x90] sm:$0xff]
  %v2099 = vld [vmem:[%s2085 + $0x98] sm:$0xff]
  %v2100 = vld [vmem:[%s2085 + $0xa8] sm:$0xff]
  %v2101 = vld [vmem:[%s2085 + $0xb0] sm:$0xff]
  %v2102 = vld [vmem:[%s2085 + $0xc0] sm:$0xff]
  %v2103 = vld [vmem:[%s2085 + $0xc8] sm:$0xff]
  %v2104 = vld [vmem:[%s2085 + $0xd8] sm:$0xff]
  %v2105 = vld [vmem:[%s2085 + $0xe0] sm:$0xff]
  %v2106 = vld [vmem:[%s2085 + $0xf0] sm:$0xff]
  %v2107 = vld [vmem:[%s2085 + $0xf8] sm:$0xff]
  %v2108 = vld [vmem:[%s2085 + $0x108] sm:$0xff]
  %v2109 = vld [vmem:[%s2085 + $0x110] sm:$0xff]
  %v2110 = vld [vmem:[%s2085 + $0x120] sm:$0xff]
  %v2111 = vld [vmem:[%s2085 + $0x128] sm:$0xff]
  %v2112 = vld [vmem:[%s2085 + $0x138] sm:$0xff]
  %v2113 = vld [vmem:[%s2085 + $0x140] sm:$0xff]
  %v2114 = vld [vmem:[%s2085 + $0x150] sm:$0xff]
  %v2115 = vld [vmem:[%s2085 + $0x158] sm:$0xff]
  %v2116 = vld [vmem:[%s2085 + $0x168] sm:$0xff]
  %v2117 = vld [vmem:[%s2085 + $0x170] sm:$0xff]
  %v2118 = vld [vmem:[%s2085 + $0x1b0] sm:$0xff]
  %v2119 = vld [vmem:[%s2085 + $0x1b8] sm:$0xff]
  %v2120 = vld [vmem:[%s2085 + $0x1c8] sm:$0xff]
  %v2121 = vld [vmem:[%s2085 + $0x1d0] sm:$0xff]
  %v2122 = vld [vmem:[%s2085 + $0x1e0] sm:$0xff]
  %v2123 = vld [vmem:[%s2085 + $0x1e8] sm:$0xff]
  %v2124 = vld [vmem:[%s2085 + $0x1f8] sm:$0xff]
  %v2125 = vld [vmem:[%s2085 + $0x200] sm:$0xff]
  %v2126 = vld [vmem:[%s2085 + $0x210] sm:$0xff]
  %v2127 = vld [vmem:[%s2085 + $0x218] sm:$0xff]
  %v2128 = vld [vmem:[%s2085 + $0x228] sm:$0xff]
  %v2129 = vld [vmem:[%s2085 + $0x230] sm:$0xff]
  %v2130 = vld [vmem:[%s2085 + $0x240] sm:$0xff]
  %v2131 = vld [vmem:[%s2085 + $0x248] sm:$0xff]
  %v2132 = vld [vmem:[%s2085 + $0x258] sm:$0xff]
  %v2133 = vld [vmem:[%s2085 + $0x260] sm:$0xff]
  %v2134 = vld [vmem:[%s2085 + $0x270] sm:$0xff]
  %v2135 = vld [vmem:[%s2085 + $0x278] sm:$0xff]
  %v2136 = vld [vmem:[%s2085 + $0x288] sm:$0xff]
  %v2137 = vld [vmem:[%s2085 + $0x290] sm:$0xff]
  %v2138 = vld [vmem:[%s2085 + $0x2a0] sm:$0xff]
  %v2139 = vld [vmem:[%s2085 + $0x2a8] sm:$0xff]
  %v2140 = vld [vmem:[%s2085 + $0x2b8] sm:$0xff]
  %v2141 = vld [vmem:[%s2085 + $0x2c0] sm:$0xff]
  %v2142 = vld [vmem:[%s2085 + $0x2d0] sm:$0xff]
  %v2143 = vld [vmem:[%s2085 + $0x2d8] sm:$0xff]
  %v2144 = vld [vmem:[%s2085 + $0x2e8] sm:$0xff]
  %v2145 = vld [vmem:[%s2085 + $0x2f0] sm:$0xff]
  %v2146 = vld [vmem:[%s2085 + $0x300] sm:$0xff]
  %v2147 = vld [vmem:[%s2085 + $0x308] sm:$0xff]
  %v2148 = vld [vmem:[%s2085 + $0x318] sm:$0xff]
  %v2149 = vld [vmem:[%s2085 + $0x320] sm:$0xff]
  %2214 = vrot.lane.b32.xlu0 %v2086, 48
  %v2215 = vpop.permute.xlu0 %2214
  %2216 = vrot.lane.b32.xlu0 %v2087, 48
  %v2217 = vpop.permute.xlu0 %2216
  %2218 = vrot.lane.b32.xlu0 %v2088, 48
  %v2219 = vpop.permute.xlu0 %2218
  %2220 = vrot.lane.b32.xlu0 %v2089, 48
  %v2221 = vpop.permute.xlu0 %2220
  %2222 = vrot.lane.b32.xlu0 %v2090, 48
  %v2223 = vpop.permute.xlu0 %2222
  %2224 = vrot.lane.b32.xlu0 %v2091, 48
  %v2225 = vpop.permute.xlu0 %2224
  %2226 = vrot.lane.b32.xlu0 %v2092, 48
  %v2227 = vpop.permute.xlu0 %2226
  %2228 = vrot.lane.b32.xlu0 %v2093, 48
  %v2229 = vpop.permute.xlu0 %2228
  %2230 = vrot.lane.b32.xlu0 %v2094, 48
  %v2231 = vpop.permute.xlu0 %2230
  %2232 = vrot.lane.b32.xlu0 %v2095, 48
  %v2233 = vpop.permute.xlu0 %2232
  %2234 = vrot.lane.b32.xlu0 %v2096, 48
  %v2235 = vpop.permute.xlu0 %2234
  %2236 = vrot.lane.b32.xlu0 %v2097, 48
  %v2237 = vpop.permute.xlu0 %2236
  %2238 = vrot.lane.b32.xlu0 %v2098, 48
  %v2239 = vpop.permute.xlu0 %2238
  %2240 = vrot.lane.b32.xlu0 %v2099, 48
  %v2241 = vpop.permute.xlu0 %2240
  %2242 = vrot.lane.b32.xlu0 %v2100, 48
  %v2243 = vpop.permute.xlu0 %2242
  %2244 = vrot.lane.b32.xlu0 %v2101, 48
  %v2245 = vpop.permute.xlu0 %2244
  %2246 = vrot.lane.b32.xlu0 %v2102, 48
  %v2247 = vpop.permute.xlu0 %2246
  %2248 = vrot.lane.b32.xlu0 %v2103, 48
  %v2249 = vpop.permute.xlu0 %2248
  %2250 = vrot.lane.b32.xlu0 %v2104, 48
  %v2251 = vpop.permute.xlu0 %2250
  %2252 = vrot.lane.b32.xlu0 %v2105, 48
  %v2253 = vpop.permute.xlu0 %2252
  %2254 = vrot.lane.b32.xlu0 %v2106, 48
  %v2255 = vpop.permute.xlu0 %2254
  %2256 = vrot.lane.b32.xlu0 %v2107, 48
  %v2257 = vpop.permute.xlu0 %2256
  %2258 = vrot.lane.b32.xlu0 %v2108, 48
  %v2259 = vpop.permute.xlu0 %2258
  %2260 = vrot.lane.b32.xlu0 %v2109, 48
  %v2261 = vpop.permute.xlu0 %2260
  %2262 = vrot.lane.b32.xlu0 %v2110, 48
  %v2263 = vpop.permute.xlu0 %2262
  %2264 = vrot.lane.b32.xlu0 %v2111, 48
  %v2265 = vpop.permute.xlu0 %2264
  %2266 = vrot.lane.b32.xlu0 %v2112, 48
  %v2267 = vpop.permute.xlu0 %2266
  %2268 = vrot.lane.b32.xlu0 %v2113, 48
  %v2269 = vpop.permute.xlu0 %2268
  %2270 = vrot.lane.b32.xlu0 %v2114, 48
  %v2271 = vpop.permute.xlu0 %2270
  %2272 = vrot.lane.b32.xlu0 %v2115, 48
  %v2273 = vpop.permute.xlu0 %2272
  %2274 = vrot.lane.b32.xlu0 %v2116, 48
  %v2275 = vpop.permute.xlu0 %2274
  %2276 = vrot.lane.b32.xlu0 %v2117, 48
  %v2277 = vpop.permute.xlu0 %2276
  %2278 = vrot.lane.b32.xlu0 %v2118, 48
  %v2279 = vpop.permute.xlu0 %2278
  %2280 = vrot.lane.b32.xlu0 %v2119, 48
  %v2281 = vpop.permute.xlu0 %2280
  %2282 = vrot.lane.b32.xlu0 %v2120, 48
  %v2283 = vpop.permute.xlu0 %2282
  %2284 = vrot.lane.b32.xlu0 %v2121, 48
  %v2285 = vpop.permute.xlu0 %2284
  %2286 = vrot.lane.b32.xlu0 %v2122, 48
  %v2287 = vpop.permute.xlu0 %2286
  %2288 = vrot.lane.b32.xlu0 %v2123, 48
  %v2289 = vpop.permute.xlu0 %2288
  %2290 = vrot.lane.b32.xlu0 %v2124, 48
  %v2291 = vpop.permute.xlu0 %2290
  %2292 = vrot.lane.b32.xlu0 %v2125, 48
  %v2293 = vpop.permute.xlu0 %2292
  %2294 = vrot.lane.b32.xlu0 %v2126, 48
  %v2295 = vpop.permute.xlu0 %2294
  %2296 = vrot.lane.b32.xlu0 %v2127, 48
  %v2297 = vpop.permute.xlu0 %2296
  %2298 = vrot.lane.b32.xlu0 %v2128, 48
  %v2299 = vpop.permute.xlu0 %2298
  %2300 = vrot.lane.b32.xlu0 %v2129, 48
  %v2301 = vpop.permute.xlu0 %2300
  %2302 = vrot.lane.b32.xlu0 %v2130, 48
  %v2303 = vpop.permute.xlu0 %2302
  %2304 = vrot.lane.b32.xlu0 %v2131, 48
  %v2305 = vpop.permute.xlu0 %2304
  %2306 = vrot.lane.b32.xlu0 %v2132, 48
  %v2307 = vpop.permute.xlu0 %2306
  %2308 = vrot.lane.b32.xlu0 %v2133, 48
  %v2309 = vpop.permute.xlu0 %2308
  %2310 = vrot.lane.b32.xlu0 %v2134, 48
  %v2311 = vpop.permute.xlu0 %2310
  %2312 = vrot.lane.b32.xlu0 %v2135, 48
  %v2313 = vpop.permute.xlu0 %2312
  %2314 = vrot.lane.b32.xlu0 %v2136, 48
  %v2315 = vpop.permute.xlu0 %2314
  %2316 = vrot.lane.b32.xlu0 %v2137, 48
  %v2317 = vpop.permute.xlu0 %2316
  %2318 = vrot.lane.b32.xlu0 %v2138, 48
  %v2319 = vpop.permute.xlu0 %2318
  %2320 = vrot.lane.b32.xlu0 %v2139, 48
  %v2321 = vpop.permute.xlu0 %2320
  %2322 = vrot.lane.b32.xlu0 %v2140, 48
  %v2323 = vpop.permute.xlu0 %2322
  %2324 = vrot.lane.b32.xlu0 %v2141, 48
  %v2325 = vpop.permute.xlu0 %2324
  %2326 = vrot.lane.b32.xlu0 %v2142, 48
  %v2327 = vpop.permute.xlu0 %2326
  %2328 = vrot.lane.b32.xlu0 %v2143, 48
  %v2329 = vpop.permute.xlu0 %2328
  %2330 = vrot.lane.b32.xlu0 %v2144, 48
  %v2331 = vpop.permute.xlu0 %2330
  %2332 = vrot.lane.b32.xlu0 %v2145, 48
  %v2333 = vpop.permute.xlu0 %2332
  %2334 = vrot.lane.b32.xlu0 %v2146, 48
  %v2335 = vpop.permute.xlu0 %2334
  %2336 = vrot.lane.b32.xlu0 %v2147, 48
  %v2337 = vpop.permute.xlu0 %2336
  %2338 = vrot.lane.b32.xlu0 %v2148, 48
  %v2339 = vpop.permute.xlu0 %2338
  %2340 = vrot.lane.b32.xlu0 %v2149, 48
  %v2341 = vpop.permute.xlu0 %2340
  %vm2406 = vcmask 458112
  %2407 = vst.msk [vmem:[#allocation2] sm:$0xff] %vm2406, %v2215
  %2408 = vst.msk [vmem:[#allocation2 + $0x8] sm:$0xff] %vm2406, %v2217
  %2409 = vst.msk [vmem:[#allocation2 + $0x10] sm:$0xff] %vm2406, %v2219
  %2410 = vst.msk [vmem:[#allocation2 + $0x18] sm:$0xff] %vm2406, %v2221
  %2411 = vst.msk [vmem:[#allocation2 + $0x20] sm:$0xff] %vm2406, %v2223
  %2412 = vst.msk [vmem:[#allocation2 + $0x28] sm:$0xff] %vm2406, %v2225
  %2413 = vst.msk [vmem:[#allocation2 + $0x30] sm:$0xff] %vm2406, %v2227
  %2414 = vst.msk [vmem:[#allocation2 + $0x38] sm:$0xff] %vm2406, %v2229
  %2415 = vst.msk [vmem:[#allocation2 + $0x40] sm:$0xff] %vm2406, %v2231
  %2416 = vst.msk [vmem:[#allocation2 + $0x48] sm:$0xff] %vm2406, %v2233
  %2417 = vst.msk [vmem:[#allocation2 + $0x50] sm:$0xff] %vm2406, %v2235
  %2418 = vst.msk [vmem:[#allocation2 + $0x58] sm:$0xff] %vm2406, %v2237
  %2419 = vst.msk [vmem:[#allocation2 + $0x60] sm:$0xff] %vm2406, %v2239
  %2420 = vst.msk [vmem:[#allocation2 + $0x68] sm:$0xff] %vm2406, %v2241
  %2421 = vst.msk [vmem:[#allocation2 + $0x70] sm:$0xff] %vm2406, %v2243
  %2422 = vst.msk [vmem:[#allocation2 + $0x78] sm:$0xff] %vm2406, %v2245
  %2423 = vst.msk [vmem:[#allocation2 + $0x80] sm:$0xff] %vm2406, %v2247
  %2424 = vst.msk [vmem:[#allocation2 + $0x88] sm:$0xff] %vm2406, %v2249
  %2425 = vst.msk [vmem:[#allocation2 + $0x90] sm:$0xff] %vm2406, %v2251
  %2426 = vst.msk [vmem:[#allocation2 + $0x98] sm:$0xff] %vm2406, %v2253
  %2427 = vst.msk [vmem:[#allocation2 + $0xa0] sm:$0xff] %vm2406, %v2255
  %2428 = vst.msk [vmem:[#allocation2 + $0xa8] sm:$0xff] %vm2406, %v2257
  %2429 = vst.msk [vmem:[#allocation2 + $0xb0] sm:$0xff] %vm2406, %v2259
  %2430 = vst.msk [vmem:[#allocation2 + $0xb8] sm:$0xff] %vm2406, %v2261
  %2431 = vst.msk [vmem:[#allocation2 + $0xc0] sm:$0xff] %vm2406, %v2263
  %2432 = vst.msk [vmem:[#allocation2 + $0xc8] sm:$0xff] %vm2406, %v2265
  %2433 = vst.msk [vmem:[#allocation2 + $0xd0] sm:$0xff] %vm2406, %v2267
  %2434 = vst.msk [vmem:[#allocation2 + $0xd8] sm:$0xff] %vm2406, %v2269
  %2435 = vst.msk [vmem:[#allocation2 + $0xe0] sm:$0xff] %vm2406, %v2271
  %2436 = vst.msk [vmem:[#allocation2 + $0xe8] sm:$0xff] %vm2406, %v2273
  %2437 = vst.msk [vmem:[#allocation2 + $0xf0] sm:$0xff] %vm2406, %v2275
  %2438 = vst.msk [vmem:[#allocation2 + $0xf8] sm:$0xff] %vm2406, %v2277
  %2439 = vst.msk [vmem:[#allocation2 + $0x100] sm:$0xff] %vm2406, %v2279
  %2440 = vst.msk [vmem:[#allocation2 + $0x108] sm:$0xff] %vm2406, %v2281
  %2441 = vst.msk [vmem:[#allocation2 + $0x110] sm:$0xff] %vm2406, %v2283
  %2442 = vst.msk [vmem:[#allocation2 + $0x118] sm:$0xff] %vm2406, %v2285
  %2443 = vst.msk [vmem:[#allocation2 + $0x120] sm:$0xff] %vm2406, %v2287
  %2444 = vst.msk [vmem:[#allocation2 + $0x128] sm:$0xff] %vm2406, %v2289
  %2445 = vst.msk [vmem:[#allocation2 + $0x130] sm:$0xff] %vm2406, %v2291
  %2446 = vst.msk [vmem:[#allocation2 + $0x138] sm:$0xff] %vm2406, %v2293
  %2447 = vst.msk [vmem:[#allocation2 + $0x140] sm:$0xff] %vm2406, %v2295
  %2448 = vst.msk [vmem:[#allocation2 + $0x148] sm:$0xff] %vm2406, %v2297
  %2449 = vst.msk [vmem:[#allocation2 + $0x150] sm:$0xff] %vm2406, %v2299
  %2450 = vst.msk [vmem:[#allocation2 + $0x158] sm:$0xff] %vm2406, %v2301
  %2451 = vst.msk [vmem:[#allocation2 + $0x160] sm:$0xff] %vm2406, %v2303
  %2452 = vst.msk [vmem:[#allocation2 + $0x168] sm:$0xff] %vm2406, %v2305
  %2453 = vst.msk [vmem:[#allocation2 + $0x170] sm:$0xff] %vm2406, %v2307
  %2454 = vst.msk [vmem:[#allocation2 + $0x178] sm:$0xff] %vm2406, %v2309
  %2455 = vst.msk [vmem:[#allocation2 + $0x180] sm:$0xff] %vm2406, %v2311
  %2456 = vst.msk [vmem:[#allocation2 + $0x188] sm:$0xff] %vm2406, %v2313
  %2457 = vst.msk [vmem:[#allocation2 + $0x190] sm:$0xff] %vm2406, %v2315
  %2458 = vst.msk [vmem:[#allocation2 + $0x198] sm:$0xff] %vm2406, %v2317
  %2459 = vst.msk [vmem:[#allocation2 + $0x1a0] sm:$0xff] %vm2406, %v2319
  %2460 = vst.msk [vmem:[#allocation2 + $0x1a8] sm:$0xff] %vm2406, %v2321
  %2461 = vst.msk [vmem:[#allocation2 + $0x1b0] sm:$0xff] %vm2406, %v2323
  %2462 = vst.msk [vmem:[#allocation2 + $0x1b8] sm:$0xff] %vm2406, %v2325
  %2463 = vst.msk [vmem:[#allocation2 + $0x1c0] sm:$0xff] %vm2406, %v2327
  %2464 = vst.msk [vmem:[#allocation2 + $0x1c8] sm:$0xff] %vm2406, %v2329
  %2465 = vst.msk [vmem:[#allocation2 + $0x1d0] sm:$0xff] %vm2406, %v2331
  %2466 = vst.msk [vmem:[#allocation2 + $0x1d8] sm:$0xff] %vm2406, %v2333
  %2467 = vst.msk [vmem:[#allocation2 + $0x1e0] sm:$0xff] %vm2406, %v2335
  %2468 = vst.msk [vmem:[#allocation2 + $0x1e8] sm:$0xff] %vm2406, %v2337
  %2469 = vst.msk [vmem:[#allocation2 + $0x1f0] sm:$0xff] %vm2406, %v2339
  %2470 = vst.msk [vmem:[#allocation2 + $0x1f8] sm:$0xff] %vm2406, %v2341
  %v2471 = vld [vmem:[%s2085 + $0x1] sm:$0xff]
  %v2472 = vld [vmem:[%s2085 + $0x9] sm:$0xff]
  %v2473 = vld [vmem:[%s2085 + $0x19] sm:$0xff]
  %v2474 = vld [vmem:[%s2085 + $0x21] sm:$0xff]
  %v2475 = vld [vmem:[%s2085 + $0x31] sm:$0xff]
  %v2476 = vld [vmem:[%s2085 + $0x39] sm:$0xff]
  %v2477 = vld [vmem:[%s2085 + $0x49] sm:$0xff]
  %v2478 = vld [vmem:[%s2085 + $0x51] sm:$0xff]
  %v2479 = vld [vmem:[%s2085 + $0x61] sm:$0xff]
  %v2480 = vld [vmem:[%s2085 + $0x69] sm:$0xff]
  %v2481 = vld [vmem:[%s2085 + $0x79] sm:$0xff]
  %v2482 = vld [vmem:[%s2085 + $0x81] sm:$0xff]
  %v2483 = vld [vmem:[%s2085 + $0x91] sm:$0xff]
  %v2484 = vld [vmem:[%s2085 + $0x99] sm:$0xff]
  %v2485 = vld [vmem:[%s2085 + $0xa9] sm:$0xff]
  %v2486 = vld [vmem:[%s2085 + $0xb1] sm:$0xff]
  %v2487 = vld [vmem:[%s2085 + $0xc1] sm:$0xff]
  %v2488 = vld [vmem:[%s2085 + $0xc9] sm:$0xff]
  %v2489 = vld [vmem:[%s2085 + $0xd9] sm:$0xff]
  %v2490 = vld [vmem:[%s2085 + $0xe1] sm:$0xff]
  %v2491 = vld [vmem:[%s2085 + $0xf1] sm:$0xff]
  %v2492 = vld [vmem:[%s2085 + $0xf9] sm:$0xff]
  %v2493 = vld [vmem:[%s2085 + $0x109] sm:$0xff]
  %v2494 = vld [vmem:[%s2085 + $0x111] sm:$0xff]
  %v2495 = vld [vmem:[%s2085 + $0x121] sm:$0xff]
  %v2496 = vld [vmem:[%s2085 + $0x129] sm:$0xff]
  %v2497 = vld [vmem:[%s2085 + $0x139] sm:$0xff]
  %v2498 = vld [vmem:[%s2085 + $0x141] sm:$0xff]
  %v2499 = vld [vmem:[%s2085 + $0x151] sm:$0xff]
  %v2500 = vld [vmem:[%s2085 + $0x159] sm:$0xff]
  %v2501 = vld [vmem:[%s2085 + $0x169] sm:$0xff]
  %v2502 = vld [vmem:[%s2085 + $0x171] sm:$0xff]
  %v2503 = vld [vmem:[%s2085 + $0x1b1] sm:$0xff]
  %v2504 = vld [vmem:[%s2085 + $0x1b9] sm:$0xff]
  %v2505 = vld [vmem:[%s2085 + $0x1c9] sm:$0xff]
  %v2506 = vld [vmem:[%s2085 + $0x1d1] sm:$0xff]
  %v2507 = vld [vmem:[%s2085 + $0x1e1] sm:$0xff]
  %v2508 = vld [vmem:[%s2085 + $0x1e9] sm:$0xff]
  %v2509 = vld [vmem:[%s2085 + $0x1f9] sm:$0xff]
  %v2510 = vld [vmem:[%s2085 + $0x201] sm:$0xff]
  %v2511 = vld [vmem:[%s2085 + $0x211] sm:$0xff]
  %v2512 = vld [vmem:[%s2085 + $0x219] sm:$0xff]
  %v2513 = vld [vmem:[%s2085 + $0x229] sm:$0xff]
  %v2514 = vld [vmem:[%s2085 + $0x231] sm:$0xff]
  %v2515 = vld [vmem:[%s2085 + $0x241] sm:$0xff]
  %v2516 = vld [vmem:[%s2085 + $0x249] sm:$0xff]
  %v2517 = vld [vmem:[%s2085 + $0x259] sm:$0xff]
  %v2518 = vld [vmem:[%s2085 + $0x261] sm:$0xff]
  %v2519 = vld [vmem:[%s2085 + $0x271] sm:$0xff]
  %v2520 = vld [vmem:[%s2085 + $0x279] sm:$0xff]
  %v2521 = vld [vmem:[%s2085 + $0x289] sm:$0xff]
  %v2522 = vld [vmem:[%s2085 + $0x291] sm:$0xff]
  %v2523 = vld [vmem:[%s2085 + $0x2a1] sm:$0xff]
  %v2524 = vld [vmem:[%s2085 + $0x2a9] sm:$0xff]
  %v2525 = vld [vmem:[%s2085 + $0x2b9] sm:$0xff]
  %v2526 = vld [vmem:[%s2085 + $0x2c1] sm:$0xff]
  %v2527 = vld [vmem:[%s2085 + $0x2d1] sm:$0xff]
  %v2528 = vld [vmem:[%s2085 + $0x2d9] sm:$0xff]
  %v2529 = vld [vmem:[%s2085 + $0x2e9] sm:$0xff]
  %v2530 = vld [vmem:[%s2085 + $0x2f1] sm:$0xff]
  %v2531 = vld [vmem:[%s2085 + $0x301] sm:$0xff]
  %v2532 = vld [vmem:[%s2085 + $0x309] sm:$0xff]
  %v2533 = vld [vmem:[%s2085 + $0x319] sm:$0xff]
  %v2534 = vld [vmem:[%s2085 + $0x321] sm:$0xff]
  %2599 = vrot.lane.b32.xlu0 %v2471, 56
  %v2600 = vpop.permute.xlu0 %2599
  %2601 = vrot.lane.b32.xlu0 %v2472, 56
  %v2602 = vpop.permute.xlu0 %2601
  %2603 = vrot.lane.b32.xlu0 %v2473, 56
  %v2604 = vpop.permute.xlu0 %2603
  %2605 = vrot.lane.b32.xlu0 %v2474, 56
  %v2606 = vpop.permute.xlu0 %2605
  %2607 = vrot.lane.b32.xlu0 %v2475, 56
  %v2608 = vpop.permute.xlu0 %2607
  %2609 = vrot.lane.b32.xlu0 %v2476, 56
  %v2610 = vpop.permute.xlu0 %2609
  %2611 = vrot.lane.b32.xlu0 %v2477, 56
  %v2612 = vpop.permute.xlu0 %2611
  %2613 = vrot.lane.b32.xlu0 %v2478, 56
  %v2614 = vpop.permute.xlu0 %2613
  %2615 = vrot.lane.b32.xlu0 %v2479, 56
  %v2616 = vpop.permute.xlu0 %2615
  %2617 = vrot.lane.b32.xlu0 %v2480, 56
  %v2618 = vpop.permute.xlu0 %2617
  %2619 = vrot.lane.b32.xlu0 %v2481, 56
  %v2620 = vpop.permute.xlu0 %2619
  %2621 = vrot.lane.b32.xlu0 %v2482, 56
  %v2622 = vpop.permute.xlu0 %2621
  %2623 = vrot.lane.b32.xlu0 %v2483, 56
  %v2624 = vpop.permute.xlu0 %2623
  %2625 = vrot.lane.b32.xlu0 %v2484, 56
  %v2626 = vpop.permute.xlu0 %2625
  %2627 = vrot.lane.b32.xlu0 %v2485, 56
  %v2628 = vpop.permute.xlu0 %2627
  %2629 = vrot.lane.b32.xlu0 %v2486, 56
  %v2630 = vpop.permute.xlu0 %2629
  %2631 = vrot.lane.b32.xlu0 %v2487, 56
  %v2632 = vpop.permute.xlu0 %2631
  %2633 = vrot.lane.b32.xlu0 %v2488, 56
  %v2634 = vpop.permute.xlu0 %2633
  %2635 = vrot.lane.b32.xlu0 %v2489, 56
  %v2636 = vpop.permute.xlu0 %2635
  %2637 = vrot.lane.b32.xlu0 %v2490, 56
  %v2638 = vpop.permute.xlu0 %2637
  %2639 = vrot.lane.b32.xlu0 %v2491, 56
  %v2640 = vpop.permute.xlu0 %2639
  %2641 = vrot.lane.b32.xlu0 %v2492, 56
  %v2642 = vpop.permute.xlu0 %2641
  %2643 = vrot.lane.b32.xlu0 %v2493, 56
  %v2644 = vpop.permute.xlu0 %2643
  %2645 = vrot.lane.b32.xlu0 %v2494, 56
  %v2646 = vpop.permute.xlu0 %2645
  %2647 = vrot.lane.b32.xlu0 %v2495, 56
  %v2648 = vpop.permute.xlu0 %2647
  %2649 = vrot.lane.b32.xlu0 %v2496, 56
  %v2650 = vpop.permute.xlu0 %2649
  %2651 = vrot.lane.b32.xlu0 %v2497, 56
  %v2652 = vpop.permute.xlu0 %2651
  %2653 = vrot.lane.b32.xlu0 %v2498, 56
  %v2654 = vpop.permute.xlu0 %2653
  %2655 = vrot.lane.b32.xlu0 %v2499, 56
  %v2656 = vpop.permute.xlu0 %2655
  %2657 = vrot.lane.b32.xlu0 %v2500, 56
  %v2658 = vpop.permute.xlu0 %2657
  %2659 = vrot.lane.b32.xlu0 %v2501, 56
  %v2660 = vpop.permute.xlu0 %2659
  %2661 = vrot.lane.b32.xlu0 %v2502, 56
  %v2662 = vpop.permute.xlu0 %2661
  %2663 = vrot.lane.b32.xlu0 %v2503, 56
  %v2664 = vpop.permute.xlu0 %2663
  %2665 = vrot.lane.b32.xlu0 %v2504, 56
  %v2666 = vpop.permute.xlu0 %2665
  %2667 = vrot.lane.b32.xlu0 %v2505, 56
  %v2668 = vpop.permute.xlu0 %2667
  %2669 = vrot.lane.b32.xlu0 %v2506, 56
  %v2670 = vpop.permute.xlu0 %2669
  %2671 = vrot.lane.b32.xlu0 %v2507, 56
  %v2672 = vpop.permute.xlu0 %2671
  %2673 = vrot.lane.b32.xlu0 %v2508, 56
  %v2674 = vpop.permute.xlu0 %2673
  %2675 = vrot.lane.b32.xlu0 %v2509, 56
  %v2676 = vpop.permute.xlu0 %2675
  %2677 = vrot.lane.b32.xlu0 %v2510, 56
  %v2678 = vpop.permute.xlu0 %2677
  %2679 = vrot.lane.b32.xlu0 %v2511, 56
  %v2680 = vpop.permute.xlu0 %2679
  %2681 = vrot.lane.b32.xlu0 %v2512, 56
  %v2682 = vpop.permute.xlu0 %2681
  %2683 = vrot.lane.b32.xlu0 %v2513, 56
  %v2684 = vpop.permute.xlu0 %2683
  %2685 = vrot.lane.b32.xlu0 %v2514, 56
  %v2686 = vpop.permute.xlu0 %2685
  %2687 = vrot.lane.b32.xlu0 %v2515, 56
  %v2688 = vpop.permute.xlu0 %2687
  %2689 = vrot.lane.b32.xlu0 %v2516, 56
  %v2690 = vpop.permute.xlu0 %2689
  %2691 = vrot.lane.b32.xlu0 %v2517, 56
  %v2692 = vpop.permute.xlu0 %2691
  %2693 = vrot.lane.b32.xlu0 %v2518, 56
  %v2694 = vpop.permute.xlu0 %2693
  %2695 = vrot.lane.b32.xlu0 %v2519, 56
  %v2696 = vpop.permute.xlu0 %2695
  %2697 = vrot.lane.b32.xlu0 %v2520, 56
  %v2698 = vpop.permute.xlu0 %2697
  %2699 = vrot.lane.b32.xlu0 %v2521, 56
  %v2700 = vpop.permute.xlu0 %2699
  %2701 = vrot.lane.b32.xlu0 %v2522, 56
  %v2702 = vpop.permute.xlu0 %2701
  %2703 = vrot.lane.b32.xlu0 %v2523, 56
  %v2704 = vpop.permute.xlu0 %2703
  %2705 = vrot.lane.b32.xlu0 %v2524, 56
  %v2706 = vpop.permute.xlu0 %2705
  %2707 = vrot.lane.b32.xlu0 %v2525, 56
  %v2708 = vpop.permute.xlu0 %2707
  %2709 = vrot.lane.b32.xlu0 %v2526, 56
  %v2710 = vpop.permute.xlu0 %2709
  %2711 = vrot.lane.b32.xlu0 %v2527, 56
  %v2712 = vpop.permute.xlu0 %2711
  %2713 = vrot.lane.b32.xlu0 %v2528, 56
  %v2714 = vpop.permute.xlu0 %2713
  %2715 = vrot.lane.b32.xlu0 %v2529, 56
  %v2716 = vpop.permute.xlu0 %2715
  %2717 = vrot.lane.b32.xlu0 %v2530, 56
  %v2718 = vpop.permute.xlu0 %2717
  %2719 = vrot.lane.b32.xlu0 %v2531, 56
  %v2720 = vpop.permute.xlu0 %2719
  %2721 = vrot.lane.b32.xlu0 %v2532, 56
  %v2722 = vpop.permute.xlu0 %2721
  %2723 = vrot.lane.b32.xlu0 %v2533, 56
  %v2724 = vpop.permute.xlu0 %2723
  %2725 = vrot.lane.b32.xlu0 %v2534, 56
  %v2726 = vpop.permute.xlu0 %2725
  %vm2791 = vcmask 523712
  %2792 = vst.msk [vmem:[#allocation2] sm:$0xff] %vm2791, %v2600
  %2793 = vst.msk [vmem:[#allocation2 + $0x8] sm:$0xff] %vm2791, %v2602
  %2794 = vst.msk [vmem:[#allocation2 + $0x10] sm:$0xff] %vm2791, %v2604
  %2795 = vst.msk [vmem:[#allocation2 + $0x18] sm:$0xff] %vm2791, %v2606
  %2796 = vst.msk [vmem:[#allocation2 + $0x20] sm:$0xff] %vm2791, %v2608
  %2797 = vst.msk [vmem:[#allocation2 + $0x28] sm:$0xff] %vm2791, %v2610
  %2798 = vst.msk [vmem:[#allocation2 + $0x30] sm:$0xff] %vm2791, %v2612
  %2799 = vst.msk [vmem:[#allocation2 + $0x38] sm:$0xff] %vm2791, %v2614
  %2800 = vst.msk [vmem:[#allocation2 + $0x40] sm:$0xff] %vm2791, %v2616
  %2801 = vst.msk [vmem:[#allocation2 + $0x48] sm:$0xff] %vm2791, %v2618
  %2802 = vst.msk [vmem:[#allocation2 + $0x50] sm:$0xff] %vm2791, %v2620
  %2803 = vst.msk [vmem:[#allocation2 + $0x58] sm:$0xff] %vm2791, %v2622
  %2804 = vst.msk [vmem:[#allocation2 + $0x60] sm:$0xff] %vm2791, %v2624
  %2805 = vst.msk [vmem:[#allocation2 + $0x68] sm:$0xff] %vm2791, %v2626
  %2806 = vst.msk [vmem:[#allocation2 + $0x70] sm:$0xff] %vm2791, %v2628
  %2807 = vst.msk [vmem:[#allocation2 + $0x78] sm:$0xff] %vm2791, %v2630
  %2808 = vst.msk [vmem:[#allocation2 + $0x80] sm:$0xff] %vm2791, %v2632
  %2809 = vst.msk [vmem:[#allocation2 + $0x88] sm:$0xff] %vm2791, %v2634
  %2810 = vst.msk [vmem:[#allocation2 + $0x90] sm:$0xff] %vm2791, %v2636
  %2811 = vst.msk [vmem:[#allocation2 + $0x98] sm:$0xff] %vm2791, %v2638
  %2812 = vst.msk [vmem:[#allocation2 + $0xa0] sm:$0xff] %vm2791, %v2640
  %2813 = vst.msk [vmem:[#allocation2 + $0xa8] sm:$0xff] %vm2791, %v2642
  %2814 = vst.msk [vmem:[#allocation2 + $0xb0] sm:$0xff] %vm2791, %v2644
  %2815 = vst.msk [vmem:[#allocation2 + $0xb8] sm:$0xff] %vm2791, %v2646
  %2816 = vst.msk [vmem:[#allocation2 + $0xc0] sm:$0xff] %vm2791, %v2648
  %2817 = vst.msk [vmem:[#allocation2 + $0xc8] sm:$0xff] %vm2791, %v2650
  %2818 = vst.msk [vmem:[#allocation2 + $0xd0] sm:$0xff] %vm2791, %v2652
  %2819 = vst.msk [vmem:[#allocation2 + $0xd8] sm:$0xff] %vm2791, %v2654
  %2820 = vst.msk [vmem:[#allocation2 + $0xe0] sm:$0xff] %vm2791, %v2656
  %2821 = vst.msk [vmem:[#allocation2 + $0xe8] sm:$0xff] %vm2791, %v2658
  %2822 = vst.msk [vmem:[#allocation2 + $0xf0] sm:$0xff] %vm2791, %v2660
  %2823 = vst.msk [vmem:[#allocation2 + $0xf8] sm:$0xff] %vm2791, %v2662
  %2824 = vst.msk [vmem:[#allocation2 + $0x100] sm:$0xff] %vm2791, %v2664
  %2825 = vst.msk [vmem:[#allocation2 + $0x108] sm:$0xff] %vm2791, %v2666
  %2826 = vst.msk [vmem:[#allocation2 + $0x110] sm:$0xff] %vm2791, %v2668
  %2827 = vst.msk [vmem:[#allocation2 + $0x118] sm:$0xff] %vm2791, %v2670
  %2828 = vst.msk [vmem:[#allocation2 + $0x120] sm:$0xff] %vm2791, %v2672
  %2829 = vst.msk [vmem:[#allocation2 + $0x128] sm:$0xff] %vm2791, %v2674
  %2830 = vst.msk [vmem:[#allocation2 + $0x130] sm:$0xff] %vm2791, %v2676
  %2831 = vst.msk [vmem:[#allocation2 + $0x138] sm:$0xff] %vm2791, %v2678
  %2832 = vst.msk [vmem:[#allocation2 + $0x140] sm:$0xff] %vm2791, %v2680
  %2833 = vst.msk [vmem:[#allocation2 + $0x148] sm:$0xff] %vm2791, %v2682
  %2834 = vst.msk [vmem:[#allocation2 + $0x150] sm:$0xff] %vm2791, %v2684
  %2835 = vst.msk [vmem:[#allocation2 + $0x158] sm:$0xff] %vm2791, %v2686
  %2836 = vst.msk [vmem:[#allocation2 + $0x160] sm:$0xff] %vm2791, %v2688
  %2837 = vst.msk [vmem:[#allocation2 + $0x168] sm:$0xff] %vm2791, %v2690
  %2838 = vst.msk [vmem:[#allocation2 + $0x170] sm:$0xff] %vm2791, %v2692
  %2839 = vst.msk [vmem:[#allocation2 + $0x178] sm:$0xff] %vm2791, %v2694
  %2840 = vst.msk [vmem:[#allocation2 + $0x180] sm:$0xff] %vm2791, %v2696
  %2841 = vst.msk [vmem:[#allocation2 + $0x188] sm:$0xff] %vm2791, %v2698
  %2842 = vst.msk [vmem:[#allocation2 + $0x190] sm:$0xff] %vm2791, %v2700
  %2843 = vst.msk [vmem:[#allocation2 + $0x198] sm:$0xff] %vm2791, %v2702
  %2844 = vst.msk [vmem:[#allocation2 + $0x1a0] sm:$0xff] %vm2791, %v2704
  %2845 = vst.msk [vmem:[#allocation2 + $0x1a8] sm:$0xff] %vm2791, %v2706
  %2846 = vst.msk [vmem:[#allocation2 + $0x1b0] sm:$0xff] %vm2791, %v2708
  %2847 = vst.msk [vmem:[#allocation2 + $0x1b8] sm:$0xff] %vm2791, %v2710
  %2848 = vst.msk [vmem:[#allocation2 + $0x1c0] sm:$0xff] %vm2791, %v2712
  %2849 = vst.msk [vmem:[#allocation2 + $0x1c8] sm:$0xff] %vm2791, %v2714
  %2850 = vst.msk [vmem:[#allocation2 + $0x1d0] sm:$0xff] %vm2791, %v2716
  %2851 = vst.msk [vmem:[#allocation2 + $0x1d8] sm:$0xff] %vm2791, %v2718
  %2852 = vst.msk [vmem:[#allocation2 + $0x1e0] sm:$0xff] %vm2791, %v2720
  %2853 = vst.msk [vmem:[#allocation2 + $0x1e8] sm:$0xff] %vm2791, %v2722
  %2854 = vst.msk [vmem:[#allocation2 + $0x1f0] sm:$0xff] %vm2791, %v2724
  %2855 = vst.msk [vmem:[#allocation2 + $0x1f8] sm:$0xff] %vm2791, %v2726
  %v2856 = vld [vmem:[%s2085 + $0x2] sm:$0xff]
  %v2857 = vld [vmem:[%s2085 + $0xa] sm:$0xff]
  %v2858 = vld [vmem:[%s2085 + $0x1a] sm:$0xff]
  %v2859 = vld [vmem:[%s2085 + $0x22] sm:$0xff]
  %v2860 = vld [vmem:[%s2085 + $0x32] sm:$0xff]
  %v2861 = vld [vmem:[%s2085 + $0x3a] sm:$0xff]
  %v2862 = vld [vmem:[%s2085 + $0x4a] sm:$0xff]
  %v2863 = vld [vmem:[%s2085 + $0x52] sm:$0xff]
  %v2864 = vld [vmem:[%s2085 + $0x62] sm:$0xff]
  %v2865 = vld [vmem:[%s2085 + $0x6a] sm:$0xff]
  %v2866 = vld [vmem:[%s2085 + $0x7a] sm:$0xff]
  %v2867 = vld [vmem:[%s2085 + $0x82] sm:$0xff]
  %v2868 = vld [vmem:[%s2085 + $0x92] sm:$0xff]
  %v2869 = vld [vmem:[%s2085 + $0x9a] sm:$0xff]
  %v2870 = vld [vmem:[%s2085 + $0xaa] sm:$0xff]
  %v2871 = vld [vmem:[%s2085 + $0xb2] sm:$0xff]
  %v2872 = vld [vmem:[%s2085 + $0xc2] sm:$0xff]
  %v2873 = vld [vmem:[%s2085 + $0xca] sm:$0xff]
  %v2874 = vld [vmem:[%s2085 + $0xda] sm:$0xff]
  %v2875 = vld [vmem:[%s2085 + $0xe2] sm:$0xff]
  %v2876 = vld [vmem:[%s2085 + $0xf2] sm:$0xff]
  %v2877 = vld [vmem:[%s2085 + $0xfa] sm:$0xff]
  %v2878 = vld [vmem:[%s2085 + $0x10a] sm:$0xff]
  %v2879 = vld [vmem:[%s2085 + $0x112] sm:$0xff]
  %v2880 = vld [vmem:[%s2085 + $0x122] sm:$0xff]
  %v2881 = vld [vmem:[%s2085 + $0x12a] sm:$0xff]
  %v2882 = vld [vmem:[%s2085 + $0x13a] sm:$0xff]
  %v2883 = vld [vmem:[%s2085 + $0x142] sm:$0xff]
  %v2884 = vld [vmem:[%s2085 + $0x152] sm:$0xff]
  %v2885 = vld [vmem:[%s2085 + $0x15a] sm:$0xff]
  %v2886 = vld [vmem:[%s2085 + $0x16a] sm:$0xff]
  %v2887 = vld [vmem:[%s2085 + $0x172] sm:$0xff]
  %v2888 = vld [vmem:[%s2085 + $0x1b2] sm:$0xff]
  %v2889 = vld [vmem:[%s2085 + $0x1ba] sm:$0xff]
  %v2890 = vld [vmem:[%s2085 + $0x1ca] sm:$0xff]
  %v2891 = vld [vmem:[%s2085 + $0x1d2] sm:$0xff]
  %v2892 = vld [vmem:[%s2085 + $0x1e2] sm:$0xff]
  %v2893 = vld [vmem:[%s2085 + $0x1ea] sm:$0xff]
  %v2894 = vld [vmem:[%s2085 + $0x1fa] sm:$0xff]
  %v2895 = vld [vmem:[%s2085 + $0x202] sm:$0xff]
  %v2896 = vld [vmem:[%s2085 + $0x212] sm:$0xff]
  %v2897 = vld [vmem:[%s2085 + $0x21a] sm:$0xff]
  %v2898 = vld [vmem:[%s2085 + $0x22a] sm:$0xff]
  %v2899 = vld [vmem:[%s2085 + $0x232] sm:$0xff]
  %v2900 = vld [vmem:[%s2085 + $0x242] sm:$0xff]
  %v2901 = vld [vmem:[%s2085 + $0x24a] sm:$0xff]
  %v2902 = vld [vmem:[%s2085 + $0x25a] sm:$0xff]
  %v2903 = vld [vmem:[%s2085 + $0x262] sm:$0xff]
  %v2904 = vld [vmem:[%s2085 + $0x272] sm:$0xff]
  %v2905 = vld [vmem:[%s2085 + $0x27a] sm:$0xff]
  %v2906 = vld [vmem:[%s2085 + $0x28a] sm:$0xff]
  %v2907 = vld [vmem:[%s2085 + $0x292] sm:$0xff]
  %v2908 = vld [vmem:[%s2085 + $0x2a2] sm:$0xff]
  %v2909 = vld [vmem:[%s2085 + $0x2aa] sm:$0xff]
  %v2910 = vld [vmem:[%s2085 + $0x2ba] sm:$0xff]
  %v2911 = vld [vmem:[%s2085 + $0x2c2] sm:$0xff]
  %v2912 = vld [vmem:[%s2085 + $0x2d2] sm:$0xff]
  %v2913 = vld [vmem:[%s2085 + $0x2da] sm:$0xff]
  %v2914 = vld [vmem:[%s2085 + $0x2ea] sm:$0xff]
  %v2915 = vld [vmem:[%s2085 + $0x2f2] sm:$0xff]
  %v2916 = vld [vmem:[%s2085 + $0x302] sm:$0xff]
  %v2917 = vld [vmem:[%s2085 + $0x30a] sm:$0xff]
  %v2918 = vld [vmem:[%s2085 + $0x31a] sm:$0xff]
  %v2919 = vld [vmem:[%s2085 + $0x322] sm:$0xff]
  %2984 = vrot.lane.b32.xlu0 %v2856, 64
  %v2985 = vpop.permute.xlu0 %2984
  %2986 = vrot.lane.b32.xlu0 %v2857, 64
  %v2987 = vpop.permute.xlu0 %2986
  %2988 = vrot.lane.b32.xlu0 %v2858, 64
  %v2989 = vpop.permute.xlu0 %2988
  %2990 = vrot.lane.b32.xlu0 %v2859, 64
  %v2991 = vpop.permute.xlu0 %2990
  %2992 = vrot.lane.b32.xlu0 %v2860, 64
  %v2993 = vpop.permute.xlu0 %2992
  %2994 = vrot.lane.b32.xlu0 %v2861, 64
  %v2995 = vpop.permute.xlu0 %2994
  %2996 = vrot.lane.b32.xlu0 %v2862, 64
  %v2997 = vpop.permute.xlu0 %2996
  %2998 = vrot.lane.b32.xlu0 %v2863, 64
  %v2999 = vpop.permute.xlu0 %2998
  %3000 = vrot.lane.b32.xlu0 %v2864, 64
  %v3001 = vpop.permute.xlu0 %3000
  %3002 = vrot.lane.b32.xlu0 %v2865, 64
  %v3003 = vpop.permute.xlu0 %3002
  %3004 = vrot.lane.b32.xlu0 %v2866, 64
  %v3005 = vpop.permute.xlu0 %3004
  %3006 = vrot.lane.b32.xlu0 %v2867, 64
  %v3007 = vpop.permute.xlu0 %3006
  %3008 = vrot.lane.b32.xlu0 %v2868, 64
  %v3009 = vpop.permute.xlu0 %3008
  %3010 = vrot.lane.b32.xlu0 %v2869, 64
  %v3011 = vpop.permute.xlu0 %3010
  %3012 = vrot.lane.b32.xlu0 %v2870, 64
  %v3013 = vpop.permute.xlu0 %3012
  %3014 = vrot.lane.b32.xlu0 %v2871, 64
  %v3015 = vpop.permute.xlu0 %3014
  %3016 = vrot.lane.b32.xlu0 %v2872, 64
  %v3017 = vpop.permute.xlu0 %3016
  %3018 = vrot.lane.b32.xlu0 %v2873, 64
  %v3019 = vpop.permute.xlu0 %3018
  %3020 = vrot.lane.b32.xlu0 %v2874, 64
  %v3021 = vpop.permute.xlu0 %3020
  %3022 = vrot.lane.b32.xlu0 %v2875, 64
  %v3023 = vpop.permute.xlu0 %3022
  %3024 = vrot.lane.b32.xlu0 %v2876, 64
  %v3025 = vpop.permute.xlu0 %3024
  %3026 = vrot.lane.b32.xlu0 %v2877, 64
  %v3027 = vpop.permute.xlu0 %3026
  %3028 = vrot.lane.b32.xlu0 %v2878, 64
  %v3029 = vpop.permute.xlu0 %3028
  %3030 = vrot.lane.b32.xlu0 %v2879, 64
  %v3031 = vpop.permute.xlu0 %3030
  %3032 = vrot.lane.b32.xlu0 %v2880, 64
  %v3033 = vpop.permute.xlu0 %3032
  %3034 = vrot.lane.b32.xlu0 %v2881, 64
  %v3035 = vpop.permute.xlu0 %3034
  %3036 = vrot.lane.b32.xlu0 %v2882, 64
  %v3037 = vpop.permute.xlu0 %3036
  %3038 = vrot.lane.b32.xlu0 %v2883, 64
  %v3039 = vpop.permute.xlu0 %3038
  %3040 = vrot.lane.b32.xlu0 %v2884, 64
  %v3041 = vpop.permute.xlu0 %3040
  %3042 = vrot.lane.b32.xlu0 %v2885, 64
  %v3043 = vpop.permute.xlu0 %3042
  %3044 = vrot.lane.b32.xlu0 %v2886, 64
  %v3045 = vpop.permute.xlu0 %3044
  %3046 = vrot.lane.b32.xlu0 %v2887, 64
  %v3047 = vpop.permute.xlu0 %3046
  %3048 = vrot.lane.b32.xlu0 %v2888, 64
  %v3049 = vpop.permute.xlu0 %3048
  %3050 = vrot.lane.b32.xlu0 %v2889, 64
  %v3051 = vpop.permute.xlu0 %3050
  %3052 = vrot.lane.b32.xlu0 %v2890, 64
  %v3053 = vpop.permute.xlu0 %3052
  %3054 = vrot.lane.b32.xlu0 %v2891, 64
  %v3055 = vpop.permute.xlu0 %3054
  %3056 = vrot.lane.b32.xlu0 %v2892, 64
  %v3057 = vpop.permute.xlu0 %3056
  %3058 = vrot.lane.b32.xlu0 %v2893, 64
  %v3059 = vpop.permute.xlu0 %3058
  %3060 = vrot.lane.b32.xlu0 %v2894, 64
  %v3061 = vpop.permute.xlu0 %3060
  %3062 = vrot.lane.b32.xlu0 %v2895, 64
  %v3063 = vpop.permute.xlu0 %3062
  %3064 = vrot.lane.b32.xlu0 %v2896, 64
  %v3065 = vpop.permute.xlu0 %3064
  %3066 = vrot.lane.b32.xlu0 %v2897, 64
  %v3067 = vpop.permute.xlu0 %3066
  %3068 = vrot.lane.b32.xlu0 %v2898, 64
  %v3069 = vpop.permute.xlu0 %3068
  %3070 = vrot.lane.b32.xlu0 %v2899, 64
  %v3071 = vpop.permute.xlu0 %3070
  %3072 = vrot.lane.b32.xlu0 %v2900, 64
  %v3073 = vpop.permute.xlu0 %3072
  %3074 = vrot.lane.b32.xlu0 %v2901, 64
  %v3075 = vpop.permute.xlu0 %3074
  %3076 = vrot.lane.b32.xlu0 %v2902, 64
  %v3077 = vpop.permute.xlu0 %3076
  %3078 = vrot.lane.b32.xlu0 %v2903, 64
  %v3079 = vpop.permute.xlu0 %3078
  %3080 = vrot.lane.b32.xlu0 %v2904, 64
  %v3081 = vpop.permute.xlu0 %3080
  %3082 = vrot.lane.b32.xlu0 %v2905, 64
  %v3083 = vpop.permute.xlu0 %3082
  %3084 = vrot.lane.b32.xlu0 %v2906, 64
  %v3085 = vpop.permute.xlu0 %3084
  %3086 = vrot.lane.b32.xlu0 %v2907, 64
  %v3087 = vpop.permute.xlu0 %3086
  %3088 = vrot.lane.b32.xlu0 %v2908, 64
  %v3089 = vpop.permute.xlu0 %3088
  %3090 = vrot.lane.b32.xlu0 %v2909, 64
  %v3091 = vpop.permute.xlu0 %3090
  %3092 = vrot.lane.b32.xlu0 %v2910, 64
  %v3093 = vpop.permute.xlu0 %3092
  %3094 = vrot.lane.b32.xlu0 %v2911, 64
  %v3095 = vpop.permute.xlu0 %3094
  %3096 = vrot.lane.b32.xlu0 %v2912, 64
  %v3097 = vpop.permute.xlu0 %3096
  %3098 = vrot.lane.b32.xlu0 %v2913, 64
  %v3099 = vpop.permute.xlu0 %3098
  %3100 = vrot.lane.b32.xlu0 %v2914, 64
  %v3101 = vpop.permute.xlu0 %3100
  %3102 = vrot.lane.b32.xlu0 %v2915, 64
  %v3103 = vpop.permute.xlu0 %3102
  %3104 = vrot.lane.b32.xlu0 %v2916, 64
  %v3105 = vpop.permute.xlu0 %3104
  %3106 = vrot.lane.b32.xlu0 %v2917, 64
  %v3107 = vpop.permute.xlu0 %3106
  %3108 = vrot.lane.b32.xlu0 %v2918, 64
  %v3109 = vpop.permute.xlu0 %3108
  %3110 = vrot.lane.b32.xlu0 %v2919, 64
  %v3111 = vpop.permute.xlu0 %3110
  %vm3176 = vcmask 589312
  %3177 = vst.msk [vmem:[#allocation2] sm:$0xff] %vm3176, %v2985
  %3178 = vst.msk [vmem:[#allocation2 + $0x8] sm:$0xff] %vm3176, %v2987
  %3179 = vst.msk [vmem:[#allocation2 + $0x10] sm:$0xff] %vm3176, %v2989
  %3180 = vst.msk [vmem:[#allocation2 + $0x18] sm:$0xff] %vm3176, %v2991
  %3181 = vst.msk [vmem:[#allocation2 + $0x20] sm:$0xff] %vm3176, %v2993
  %3182 = vst.msk [vmem:[#allocation2 + $0x28] sm:$0xff] %vm3176, %v2995
  %3183 = vst.msk [vmem:[#allocation2 + $0x30] sm:$0xff] %vm3176, %v2997
  %3184 = vst.msk [vmem:[#allocation2 + $0x38] sm:$0xff] %vm3176, %v2999
  %3185 = vst.msk [vmem:[#allocation2 + $0x40] sm:$0xff] %vm3176, %v3001
  %3186 = vst.msk [vmem:[#allocation2 + $0x48] sm:$0xff] %vm3176, %v3003
  %3187 = vst.msk [vmem:[#allocation2 + $0x50] sm:$0xff] %vm3176, %v3005
  %3188 = vst.msk [vmem:[#allocation2 + $0x58] sm:$0xff] %vm3176, %v3007
  %3189 = vst.msk [vmem:[#allocation2 + $0x60] sm:$0xff] %vm3176, %v3009
  %3190 = vst.msk [vmem:[#allocation2 + $0x68] sm:$0xff] %vm3176, %v3011
  %3191 = vst.msk [vmem:[#allocation2 + $0x70] sm:$0xff] %vm3176, %v3013
  %3192 = vst.msk [vmem:[#allocation2 + $0x78] sm:$0xff] %vm3176, %v3015
  %3193 = vst.msk [vmem:[#allocation2 + $0x80] sm:$0xff] %vm3176, %v3017
  %3194 = vst.msk [vmem:[#allocation2 + $0x88] sm:$0xff] %vm3176, %v3019
  %3195 = vst.msk [vmem:[#allocation2 + $0x90] sm:$0xff] %vm3176, %v3021
  %3196 = vst.msk [vmem:[#allocation2 + $0x98] sm:$0xff] %vm3176, %v3023
  %3197 = vst.msk [vmem:[#allocation2 + $0xa0] sm:$0xff] %vm3176, %v3025
  %3198 = vst.msk [vmem:[#allocation2 + $0xa8] sm:$0xff] %vm3176, %v3027
  %3199 = vst.msk [vmem:[#allocation2 + $0xb0] sm:$0xff] %vm3176, %v3029
  %3200 = vst.msk [vmem:[#allocation2 + $0xb8] sm:$0xff] %vm3176, %v3031
  %3201 = vst.msk [vmem:[#allocation2 + $0xc0] sm:$0xff] %vm3176, %v3033
  %3202 = vst.msk [vmem:[#allocation2 + $0xc8] sm:$0xff] %vm3176, %v3035
  %3203 = vst.msk [vmem:[#allocation2 + $0xd0] sm:$0xff] %vm3176, %v3037
  %3204 = vst.msk [vmem:[#allocation2 + $0xd8] sm:$0xff] %vm3176, %v3039
  %3205 = vst.msk [vmem:[#allocation2 + $0xe0] sm:$0xff] %vm3176, %v3041
  %3206 = vst.msk [vmem:[#allocation2 + $0xe8] sm:$0xff] %vm3176, %v3043
  %3207 = vst.msk [vmem:[#allocation2 + $0xf0] sm:$0xff] %vm3176, %v3045
  %3208 = vst.msk [vmem:[#allocation2 + $0xf8] sm:$0xff] %vm3176, %v3047
  %3209 = vst.msk [vmem:[#allocation2 + $0x100] sm:$0xff] %vm3176, %v3049
  %3210 = vst.msk [vmem:[#allocation2 + $0x108] sm:$0xff] %vm3176, %v3051
  %3211 = vst.msk [vmem:[#allocation2 + $0x110] sm:$0xff] %vm3176, %v3053
  %3212 = vst.msk [vmem:[#allocation2 + $0x118] sm:$0xff] %vm3176, %v3055
  %3213 = vst.msk [vmem:[#allocation2 + $0x120] sm:$0xff] %vm3176, %v3057
  %3214 = vst.msk [vmem:[#allocation2 + $0x128] sm:$0xff] %vm3176, %v3059
  %3215 = vst.msk [vmem:[#allocation2 + $0x130] sm:$0xff] %vm3176, %v3061
  %3216 = vst.msk [vmem:[#allocation2 + $0x138] sm:$0xff] %vm3176, %v3063
  %3217 = vst.msk [vmem:[#allocation2 + $0x140] sm:$0xff] %vm3176, %v3065
  %3218 = vst.msk [vmem:[#allocation2 + $0x148] sm:$0xff] %vm3176, %v3067
  %3219 = vst.msk [vmem:[#allocation2 + $0x150] sm:$0xff] %vm3176, %v3069
  %3220 = vst.msk [vmem:[#allocation2 + $0x158] sm:$0xff] %vm3176, %v3071
  %3221 = vst.msk [vmem:[#allocation2 + $0x160] sm:$0xff] %vm3176, %v3073
  %3222 = vst.msk [vmem:[#allocation2 + $0x168] sm:$0xff] %vm3176, %v3075
  %3223 = vst.msk [vmem:[#allocation2 + $0x170] sm:$0xff] %vm3176, %v3077
  %3224 = vst.msk [vmem:[#allocation2 + $0x178] sm:$0xff] %vm3176, %v3079
  %3225 = vst.msk [vmem:[#allocation2 + $0x180] sm:$0xff] %vm3176, %v3081
  %3226 = vst.msk [vmem:[#allocation2 + $0x188] sm:$0xff] %vm3176, %v3083
  %3227 = vst.msk [vmem:[#allocation2 + $0x190] sm:$0xff] %vm3176, %v3085
  %3228 = vst.msk [vmem:[#allocation2 + $0x198] sm:$0xff] %vm3176, %v3087
  %3229 = vst.msk [vmem:[#allocation2 + $0x1a0] sm:$0xff] %vm3176, %v3089
  %3230 = vst.msk [vmem:[#allocation2 + $0x1a8] sm:$0xff] %vm3176, %v3091
  %3231 = vst.msk [vmem:[#allocation2 + $0x1b0] sm:$0xff] %vm3176, %v3093
  %3232 = vst.msk [vmem:[#allocation2 + $0x1b8] sm:$0xff] %vm3176, %v3095
  %3233 = vst.msk [vmem:[#allocation2 + $0x1c0] sm:$0xff] %vm3176, %v3097
  %3234 = vst.msk [vmem:[#allocation2 + $0x1c8] sm:$0xff] %vm3176, %v3099
  %3235 = vst.msk [vmem:[#allocation2 + $0x1d0] sm:$0xff] %vm3176, %v3101
  %3236 = vst.msk [vmem:[#allocation2 + $0x1d8] sm:$0xff] %vm3176, %v3103
  %3237 = vst.msk [vmem:[#allocation2 + $0x1e0] sm:$0xff] %vm3176, %v3105
  %3238 = vst.msk [vmem:[#allocation2 + $0x1e8] sm:$0xff] %vm3176, %v3107
  %3239 = vst.msk [vmem:[#allocation2 + $0x1f0] sm:$0xff] %vm3176, %v3109
  %3240 = vst.msk [vmem:[#allocation2 + $0x1f8] sm:$0xff] %vm3176, %v3111
  %v3241 = vld [vmem:[#allocation2] sm:$0xff]
  %v3242 = vld [vmem:[#allocation2 + $0x8] sm:$0xff]
  %v3243 = vld [vmem:[#allocation2 + $0x10] sm:$0xff]
  %v3244 = vld [vmem:[#allocation2 + $0x18] sm:$0xff]
  %v3245 = vld [vmem:[#allocation2 + $0x20] sm:$0xff]
  %v3246 = vld [vmem:[#allocation2 + $0x28] sm:$0xff]
  %v3247 = vld [vmem:[#allocation2 + $0x30] sm:$0xff]
  %v3248 = vld [vmem:[#allocation2 + $0x38] sm:$0xff]
  %v3249 = vld [vmem:[#allocation2 + $0x40] sm:$0xff]
  %v3250 = vld [vmem:[#allocation2 + $0x48] sm:$0xff]
  %v3251 = vld [vmem:[#allocation2 + $0x50] sm:$0xff]
  %v3252 = vld [vmem:[#allocation2 + $0x58] sm:$0xff]
  %v3253 = vld [vmem:[#allocation2 + $0x60] sm:$0xff]
  %v3254 = vld [vmem:[#allocation2 + $0x68] sm:$0xff]
  %v3255 = vld [vmem:[#allocation2 + $0x70] sm:$0xff]
  %v3256 = vld [vmem:[#allocation2 + $0x78] sm:$0xff]
  %v3257 = vld [vmem:[#allocation2 + $0x80] sm:$0xff]
  %v3258 = vld [vmem:[#allocation2 + $0x88] sm:$0xff]
  %v3259 = vld [vmem:[#allocation2 + $0x90] sm:$0xff]
  %v3260 = vld [vmem:[#allocation2 + $0x98] sm:$0xff]
  %v3261 = vld [vmem:[#allocation2 + $0xa0] sm:$0xff]
  %v3262 = vld [vmem:[#allocation2 + $0xa8] sm:$0xff]
  %v3263 = vld [vmem:[#allocation2 + $0xb0] sm:$0xff]
  %v3264 = vld [vmem:[#allocation2 + $0xb8] sm:$0xff]
  %v3265 = vld [vmem:[#allocation2 + $0xc0] sm:$0xff]
  %v3266 = vld [vmem:[#allocation2 + $0xc8] sm:$0xff]
  %v3267 = vld [vmem:[#allocation2 + $0xd0] sm:$0xff]
  %v3268 = vld [vmem:[#allocation2 + $0xd8] sm:$0xff]
  %v3269 = vld [vmem:[#allocation2 + $0xe0] sm:$0xff]
  %v3270 = vld [vmem:[#allocation2 + $0xe8] sm:$0xff]
  %v3271 = vld [vmem:[#allocation2 + $0xf0] sm:$0xff]
  %v3272 = vld [vmem:[#allocation2 + $0xf8] sm:$0xff]
  %v3273 = vld [vmem:[#allocation2 + $0x100] sm:$0xff]
  %v3274 = vld [vmem:[#allocation2 + $0x108] sm:$0xff]
  %v3275 = vld [vmem:[#allocation2 + $0x110] sm:$0xff]
  %v3276 = vld [vmem:[#allocation2 + $0x118] sm:$0xff]
  %v3277 = vld [vmem:[#allocation2 + $0x120] sm:$0xff]
  %v3278 = vld [vmem:[#allocation2 + $0x128] sm:$0xff]
  %v3279 = vld [vmem:[#allocation2 + $0x130] sm:$0xff]
  %v3280 = vld [vmem:[#allocation2 + $0x138] sm:$0xff]
  %v3281 = vld [vmem:[#allocation2 + $0x140] sm:$0xff]
  %v3282 = vld [vmem:[#allocation2 + $0x148] sm:$0xff]
  %v3283 = vld [vmem:[#allocation2 + $0x150] sm:$0xff]
  %v3284 = vld [vmem:[#allocation2 + $0x158] sm:$0xff]
  %v3285 = vld [vmem:[#allocation2 + $0x160] sm:$0xff]
  %v3286 = vld [vmem:[#allocation2 + $0x168] sm:$0xff]
  %v3287 = vld [vmem:[#allocation2 + $0x170] sm:$0xff]
  %v3288 = vld [vmem:[#allocation2 + $0x178] sm:$0xff]
  %v3289 = vld [vmem:[#allocation2 + $0x180] sm:$0xff]
  %v3290 = vld [vmem:[#allocation2 + $0x188] sm:$0xff]
  %v3291 = vld [vmem:[#allocation2 + $0x190] sm:$0xff]
  %v3292 = vld [vmem:[#allocation2 + $0x198] sm:$0xff]
  %v3293 = vld [vmem:[#allocation2 + $0x1a0] sm:$0xff]
  %v3294 = vld [vmem:[#allocation2 + $0x1a8] sm:$0xff]
  %v3295 = vld [vmem:[#allocation2 + $0x1b0] sm:$0xff]
  %v3296 = vld [vmem:[#allocation2 + $0x1b8] sm:$0xff]
  %v3297 = vld [vmem:[#allocation2 + $0x1c0] sm:$0xff]
  %v3298 = vld [vmem:[#allocation2 + $0x1c8] sm:$0xff]
  %v3299 = vld [vmem:[#allocation2 + $0x1d0] sm:$0xff]
  %v3300 = vld [vmem:[#allocation2 + $0x1d8] sm:$0xff]
  %v3301 = vld [vmem:[#allocation2 + $0x1e0] sm:$0xff]
  %v3302 = vld [vmem:[#allocation2 + $0x1e8] sm:$0xff]
  %v3303 = vld [vmem:[#allocation2 + $0x1f0] sm:$0xff]
  %v3304 = vld [vmem:[#allocation2 + $0x1f8] sm:$0xff]
  %v3305 = vpack.c.bf16 %v3242, %v3241
  %v3306 = vpack.c.bf16 %v3244, %v3243
  %v3307 = vpack.c.bf16 %v3246, %v3245
  %v3308 = vpack.c.bf16 %v3248, %v3247
  %v3309 = vpack.c.bf16 %v3250, %v3249
  %v3310 = vpack.c.bf16 %v3252, %v3251
  %v3311 = vpack.c.bf16 %v3254, %v3253
  %v3312 = vpack.c.bf16 %v3256, %v3255
  %v3313 = vpack.c.bf16 %v3258, %v3257
  %v3314 = vpack.c.bf16 %v3260, %v3259
  %v3315 = vpack.c.bf16 %v3262, %v3261
  %v3316 = vpack.c.bf16 %v3264, %v3263
  %v3317 = vpack.c.bf16 %v3266, %v3265
  %v3318 = vpack.c.bf16 %v3268, %v3267
  %v3319 = vpack.c.bf16 %v3270, %v3269
  %v3320 = vpack.c.bf16 %v3272, %v3271
  %v3321 = vpack.c.bf16 %v3274, %v3273
  %v3322 = vpack.c.bf16 %v3276, %v3275
  %v3323 = vpack.c.bf16 %v3278, %v3277
  %v3324 = vpack.c.bf16 %v3280, %v3279
  %v3325 = vpack.c.bf16 %v3282, %v3281
  %v3326 = vpack.c.bf16 %v3284, %v3283
  %v3327 = vpack.c.bf16 %v3286, %v3285
  %v3328 = vpack.c.bf16 %v3288, %v3287
  %v3329 = vpack.c.bf16 %v3290, %v3289
  %v3330 = vpack.c.bf16 %v3292, %v3291
  %v3331 = vpack.c.bf16 %v3294, %v3293
  %v3332 = vpack.c.bf16 %v3296, %v3295
  %v3333 = vpack.c.bf16 %v3298, %v3297
  %v3334 = vpack.c.bf16 %v3300, %v3299
  %v3335 = vpack.c.bf16 %v3302, %v3301
  %v3336 = vpack.c.bf16 %v3304, %v3303
  %v3337 = vld [vmem:[%s2] sm:$0xf]
  %v3338 = vld [vmem:[%s2 + $0x4] sm:$0xf]
  %v3339 = vld [vmem:[%s2 + $0x8] sm:$0xf]
  %v3340 = vld [vmem:[%s2 + $0xc] sm:$0xf]
  %v3341 = vld [vmem:[%s2 + $0x10] sm:$0xf]
  %v3342 = vld [vmem:[%s2 + $0x14] sm:$0xf]
  %v3343 = vld [vmem:[%s2 + $0x18] sm:$0xf]
  %v3344 = vld [vmem:[%s2 + $0x1c] sm:$0xf]
  %v3345 = vld [vmem:[%s2 + $0x20] sm:$0xf]
  %v3355 = vunpack.c.l.b16 %v3337
  %v3356 = vunpack.c.l.b16 %v3338
  %v3357 = vunpack.c.l.b16 %v3339
  %v3358 = vunpack.c.l.b16 %v3340
  %v3359 = vunpack.c.l.b16 %v3341
  %v3360 = vunpack.c.l.b16 %v3342
  %v3361 = vunpack.c.l.b16 %v3343
  %v3362 = vunpack.c.l.b16 %v3344
  %v3363 = vunpack.c.l.b16 %v3345
  %v3364 = vpack.c.b16 %v3356, %v3355
  %v3365 = vpack.c.b16 %v3358, %v3357
  %v3366 = vpack.c.b16 %v3360, %v3359
  %v3367 = vpack.c.b16 %v3362, %v3361
  %v3368 = vpack.c.b16 %v3363, %v3363
  %vm3373 = vcmask 588800
  %v3375 = vsel %vm3373, %v3305, 0
  %v3378 = vsel %vm3373, %v3306, 0
  %v3381 = vsel %vm3373, %v3307, 0
  %v3384 = vsel %vm3373, %v3308, 0
  %v3387 = vsel %vm3373, %v3309, 0
  %v3390 = vsel %vm3373, %v3310, 0
  %v3393 = vsel %vm3373, %v3311, 0
  %v3396 = vsel %vm3373, %v3312, 0
  %v3399 = vsel %vm3373, %v3313, 0
  %v3402 = vsel %vm3373, %v3314, 0
  %v3405 = vsel %vm3373, %v3315, 0
  %v3408 = vsel %vm3373, %v3316, 0
  %v3411 = vsel %vm3373, %v3317, 0
  %v3414 = vsel %vm3373, %v3318, 0
  %v3417 = vsel %vm3373, %v3319, 0
  %v3420 = vsel %vm3373, %v3320, 0
  %v3423 = vsel %vm3373, %v3321, 0
  %v3426 = vsel %vm3373, %v3322, 0
  %v3429 = vsel %vm3373, %v3323, 0
  %v3432 = vsel %vm3373, %v3324, 0
  %v3435 = vsel %vm3373, %v3325, 0
  %v3438 = vsel %vm3373, %v3326, 0
  %v3441 = vsel %vm3373, %v3327, 0
  %v3444 = vsel %vm3373, %v3328, 0
  %v3447 = vsel %vm3373, %v3329, 0
  %v3450 = vsel %vm3373, %v3330, 0
  %v3453 = vsel %vm3373, %v3331, 0
  %v3456 = vsel %vm3373, %v3332, 0
  %v3459 = vsel %vm3373, %v3333, 0
  %v3462 = vsel %vm3373, %v3334, 0
  %v3465 = vsel %vm3373, %v3335, 0
  %v3468 = vsel %vm3373, %v3336, 0
  %vm3470 = vcmask 1043456
  %v3472 = vsel %vm3470, %v3368, 0
  %3474 = vmatprep.subr.bf16.mxu0 0
  %3475 = vmatpush1.bf16.msra.mxu0 0
  %3476 = vmatprep.subr.bf16.mxu0 0
  %3477 = vmatpush1.bf16.msra.mxu0 0
  %3478 = vmatprep.subr.bf16.mxu0 0
  %3479 = vmatpush1.bf16.msra.mxu0 0
  %3480 = vmatprep.subr.bf16.mxu0 0
  %3481 = vmatpush1.bf16.msra.mxu0 %v3472
  %3482 = vmatprep.subr.bf16.mxu0 0
  %3483 = vmatpush1.bf16.msra.mxu0 %v3367
  %3484 = vmatprep.subr.bf16.mxu0 0
  %3485 = vmatpush1.bf16.msra.mxu0 %v3366
  %3486 = vmatprep.subr.bf16.mxu0 0
  %3487 = vmatpush1.bf16.msra.mxu0 %v3365
  %3488 = vmatprep.subr.bf16.mxu0 0
  %3489 = vmatpush1.bf16.msra.mxu0 %v3364
  %3490 = vmatprep.subr.bf16.mxu0 0
  %3491 = vmatpush2.bf16.msra.mxu0 0
  %3492 = vmatprep.subr.bf16.mxu0 0
  %3493 = vmatpush2.bf16.msra.mxu0 0
  %3494 = vmatprep.subr.bf16.mxu0 0
  %3495 = vmatpush2.bf16.msra.mxu0 0
  %3496 = vmatprep.subr.bf16.mxu0 0
  %3497 = vmatpush2.bf16.msra.mxu0 0
  %3498 = vmatprep.subr.bf16.mxu0 0
  %3499 = vmatpush2.bf16.msra.mxu0 0
  %3500 = vmatprep.subr.bf16.mxu0 0
  %3501 = vmatpush2.bf16.msra.mxu0 0
  %3502 = vmatprep.subr.bf16.mxu0 0
  %3503 = vmatpush2.bf16.msra.mxu0 0
  %3504 = vmatprep.subr.bf16.mxu0 0
  %3505 = vmatpush2.bf16.msra.mxu0 0
  %3506 = vmatprep.mubr.bf16.mxu0 0
  %3507 = vmatmul.mubr.bf16.gmra.mxu0 %v3375
  %v3508 = vpop.f32.mrf.mxu0
  %v3509 = vadd.f32 0.0, %v3508
  %v3510 = vpop.f32.mrf.mxu0
  %v3511 = vpop.f32.mrf.mxu0
  %v3512 = vadd.f32 0.0, %v3511
  %v3513 = vpop.f32.mrf.mxu0
  %3514 = vmatprep.mubr.bf16.mxu0 0
  %3515 = vmatmul.mubr.bf16.gmra.mxu0 %v3378
  %v3516 = vpop.f32.mrf.mxu0
  %v3517 = vadd.f32 0.0, %v3516
  %v3518 = vpop.f32.mrf.mxu0
  %v3519 = vpop.f32.mrf.mxu0
  %v3520 = vadd.f32 0.0, %v3519
  %v3521 = vpop.f32.mrf.mxu0
  %3522 = vmatprep.mubr.bf16.mxu0 0
  %3523 = vmatmul.mubr.bf16.gmra.mxu0 %v3381
  %v3524 = vpop.f32.mrf.mxu0
  %v3525 = vadd.f32 0.0, %v3524
  %v3526 = vpop.f32.mrf.mxu0
  %v3527 = vpop.f32.mrf.mxu0
  %v3528 = vadd.f32 0.0, %v3527
  %v3529 = vpop.f32.mrf.mxu0
  %3530 = vmatprep.mubr.bf16.mxu0 0
  %3531 = vmatmul.mubr.bf16.gmra.mxu0 %v3384
  %v3532 = vpop.f32.mrf.mxu0
  %v3533 = vadd.f32 0.0, %v3532
  %v3534 = vpop.f32.mrf.mxu0
  %v3535 = vpop.f32.mrf.mxu0
  %v3536 = vadd.f32 0.0, %v3535
  %v3537 = vpop.f32.mrf.mxu0
  %3538 = vmatprep.mubr.bf16.mxu0 0
  %3539 = vmatmul.mubr.bf16.gmra.mxu0 %v3387
  %v3540 = vpop.f32.mrf.mxu0
  %v3541 = vadd.f32 0.0, %v3540
  %v3542 = vpop.f32.mrf.mxu0
  %v3543 = vpop.f32.mrf.mxu0
  %v3544 = vadd.f32 0.0, %v3543
  %v3545 = vpop.f32.mrf.mxu0
  %3546 = vmatprep.mubr.bf16.mxu0 0
  %3547 = vmatmul.mubr.bf16.gmra.mxu0 %v3390
  %v3548 = vpop.f32.mrf.mxu0
  %v3549 = vadd.f32 0.0, %v3548
  %v3550 = vpop.f32.mrf.mxu0
  %v3551 = vpop.f32.mrf.mxu0
  %v3552 = vadd.f32 0.0, %v3551
  %v3553 = vpop.f32.mrf.mxu0
  %3554 = vmatprep.mubr.bf16.mxu0 0
  %3555 = vmatmul.mubr.bf16.gmra.mxu0 %v3393
  %v3556 = vpop.f32.mrf.mxu0
  %v3557 = vadd.f32 0.0, %v3556
  %v3558 = vpop.f32.mrf.mxu0
  %v3559 = vpop.f32.mrf.mxu0
  %v3560 = vadd.f32 0.0, %v3559
  %v3561 = vpop.f32.mrf.mxu0
  %3562 = vmatprep.mubr.bf16.mxu0 0
  %3563 = vmatmul.mubr.bf16.gmra.mxu0 %v3396
  %v3564 = vpop.f32.mrf.mxu0
  %v3565 = vadd.f32 0.0, %v3564
  %v3566 = vpop.f32.mrf.mxu0
  %v3567 = vpop.f32.mrf.mxu0
  %v3568 = vadd.f32 0.0, %v3567
  %v3569 = vpop.f32.mrf.mxu0
  %3570 = vmatprep.mubr.bf16.mxu0 0
  %3571 = vmatmul.mubr.bf16.gmra.mxu0 %v3399
  %v3572 = vpop.f32.mrf.mxu0
  %v3573 = vadd.f32 0.0, %v3572
  %v3574 = vpop.f32.mrf.mxu0
  %v3575 = vpop.f32.mrf.mxu0
  %v3576 = vadd.f32 0.0, %v3575
  %v3577 = vpop.f32.mrf.mxu0
  %3578 = vmatprep.mubr.bf16.mxu0 0
  %3579 = vmatmul.mubr.bf16.gmra.mxu0 %v3402
  %v3580 = vpop.f32.mrf.mxu0
  %v3581 = vadd.f32 0.0, %v3580
  %v3582 = vpop.f32.mrf.mxu0
  %v3583 = vpop.f32.mrf.mxu0
  %v3584 = vadd.f32 0.0, %v3583
  %v3585 = vpop.f32.mrf.mxu0
  %3586 = vmatprep.mubr.bf16.mxu0 0
  %3587 = vmatmul.mubr.bf16.gmra.mxu0 %v3405
  %v3588 = vpop.f32.mrf.mxu0
  %v3589 = vadd.f32 0.0, %v3588
  %v3590 = vpop.f32.mrf.mxu0
  %v3591 = vpop.f32.mrf.mxu0
  %v3592 = vadd.f32 0.0, %v3591
  %v3593 = vpop.f32.mrf.mxu0
  %3594 = vmatprep.mubr.bf16.mxu0 0
  %3595 = vmatmul.mubr.bf16.gmra.mxu0 %v3408
  %v3596 = vpop.f32.mrf.mxu0
  %v3597 = vadd.f32 0.0, %v3596
  %v3598 = vpop.f32.mrf.mxu0
  %v3599 = vpop.f32.mrf.mxu0
  %v3600 = vadd.f32 0.0, %v3599
  %v3601 = vpop.f32.mrf.mxu0
  %3602 = vmatprep.mubr.bf16.mxu0 0
  %3603 = vmatmul.mubr.bf16.gmra.mxu0 %v3411
  %v3604 = vpop.f32.mrf.mxu0
  %v3605 = vadd.f32 0.0, %v3604
  %v3606 = vpop.f32.mrf.mxu0
  %v3607 = vpop.f32.mrf.mxu0
  %v3608 = vadd.f32 0.0, %v3607
  %v3609 = vpop.f32.mrf.mxu0
  %3610 = vmatprep.mubr.bf16.mxu0 0
  %3611 = vmatmul.mubr.bf16.gmra.mxu0 %v3414
  %v3612 = vpop.f32.mrf.mxu0
  %v3613 = vadd.f32 0.0, %v3612
  %v3614 = vpop.f32.mrf.mxu0
  %v3615 = vpop.f32.mrf.mxu0
  %v3616 = vadd.f32 0.0, %v3615
  %v3617 = vpop.f32.mrf.mxu0
  %3618 = vmatprep.mubr.bf16.mxu0 0
  %3619 = vmatmul.mubr.bf16.gmra.mxu0 %v3417
  %v3620 = vpop.f32.mrf.mxu0
  %v3621 = vadd.f32 0.0, %v3620
  %v3622 = vpop.f32.mrf.mxu0
  %v3623 = vpop.f32.mrf.mxu0
  %v3624 = vadd.f32 0.0, %v3623
  %v3625 = vpop.f32.mrf.mxu0
  %3626 = vmatprep.mubr.bf16.mxu0 0
  %3627 = vmatmul.mubr.bf16.gmra.mxu0 %v3420
  %v3628 = vpop.f32.mrf.mxu0
  %v3629 = vadd.f32 0.0, %v3628
  %v3630 = vpop.f32.mrf.mxu0
  %v3631 = vpop.f32.mrf.mxu0
  %v3632 = vadd.f32 0.0, %v3631
  %v3633 = vpop.f32.mrf.mxu0
  %3634 = vmatprep.mubr.bf16.mxu0 0
  %3635 = vmatmul.mubr.bf16.gmra.mxu0 %v3423
  %v3636 = vpop.f32.mrf.mxu0
  %v3637 = vadd.f32 0.0, %v3636
  %v3638 = vpop.f32.mrf.mxu0
  %v3639 = vpop.f32.mrf.mxu0
  %v3640 = vadd.f32 0.0, %v3639
  %v3641 = vpop.f32.mrf.mxu0
  %3642 = vmatprep.mubr.bf16.mxu0 0
  %3643 = vmatmul.mubr.bf16.gmra.mxu0 %v3426
  %v3644 = vpop.f32.mrf.mxu0
  %v3645 = vadd.f32 0.0, %v3644
  %v3646 = vpop.f32.mrf.mxu0
  %v3647 = vpop.f32.mrf.mxu0
  %v3648 = vadd.f32 0.0, %v3647
  %v3649 = vpop.f32.mrf.mxu0
  %3650 = vmatprep.mubr.bf16.mxu0 0
  %3651 = vmatmul.mubr.bf16.gmra.mxu0 %v3429
  %v3652 = vpop.f32.mrf.mxu0
  %v3653 = vadd.f32 0.0, %v3652
  %v3654 = vpop.f32.mrf.mxu0
  %v3655 = vpop.f32.mrf.mxu0
  %v3656 = vadd.f32 0.0, %v3655
  %v3657 = vpop.f32.mrf.mxu0
  %3658 = vmatprep.mubr.bf16.mxu0 0
  %3659 = vmatmul.mubr.bf16.gmra.mxu0 %v3432
  %v3660 = vpop.f32.mrf.mxu0
  %v3661 = vadd.f32 0.0, %v3660
  %v3662 = vpop.f32.mrf.mxu0
  %v3663 = vpop.f32.mrf.mxu0
  %v3664 = vadd.f32 0.0, %v3663
  %v3665 = vpop.f32.mrf.mxu0
  %3666 = vmatprep.mubr.bf16.mxu0 0
  %3667 = vmatmul.mubr.bf16.gmra.mxu0 %v3435
  %v3668 = vpop.f32.mrf.mxu0
  %v3669 = vadd.f32 0.0, %v3668
  %v3670 = vpop.f32.mrf.mxu0
  %v3671 = vpop.f32.mrf.mxu0
  %v3672 = vadd.f32 0.0, %v3671
  %v3673 = vpop.f32.mrf.mxu0
  %3674 = vmatprep.mubr.bf16.mxu0 0
  %3675 = vmatmul.mubr.bf16.gmra.mxu0 %v3438
  %v3676 = vpop.f32.mrf.mxu0
  %v3677 = vadd.f32 0.0, %v3676
  %v3678 = vpop.f32.mrf.mxu0
  %v3679 = vpop.f32.mrf.mxu0
  %v3680 = vadd.f32 0.0, %v3679
  %v3681 = vpop.f32.mrf.mxu0
  %3682 = vmatprep.mubr.bf16.mxu0 0
  %3683 = vmatmul.mubr.bf16.gmra.mxu0 %v3441
  %v3684 = vpop.f32.mrf.mxu0
  %v3685 = vadd.f32 0.0, %v3684
  %v3686 = vpop.f32.mrf.mxu0
  %v3687 = vpop.f32.mrf.mxu0
  %v3688 = vadd.f32 0.0, %v3687
  %v3689 = vpop.f32.mrf.mxu0
  %3690 = vmatprep.mubr.bf16.mxu0 0
  %3691 = vmatmul.mubr.bf16.gmra.mxu0 %v3444
  %v3692 = vpop.f32.mrf.mxu0
  %v3693 = vadd.f32 0.0, %v3692
  %v3694 = vpop.f32.mrf.mxu0
  %v3695 = vpop.f32.mrf.mxu0
  %v3696 = vadd.f32 0.0, %v3695
  %v3697 = vpop.f32.mrf.mxu0
  %3698 = vmatprep.mubr.bf16.mxu0 0
  %3699 = vmatmul.mubr.bf16.gmra.mxu0 %v3447
  %v3700 = vpop.f32.mrf.mxu0
  %v3701 = vadd.f32 0.0, %v3700
  %v3702 = vpop.f32.mrf.mxu0
  %v3703 = vpop.f32.mrf.mxu0
  %v3704 = vadd.f32 0.0, %v3703
  %v3705 = vpop.f32.mrf.mxu0
  %3706 = vmatprep.mubr.bf16.mxu0 0
  %3707 = vmatmul.mubr.bf16.gmra.mxu0 %v3450
  %v3708 = vpop.f32.mrf.mxu0
  %v3709 = vadd.f32 0.0, %v3708
  %v3710 = vpop.f32.mrf.mxu0
  %v3711 = vpop.f32.mrf.mxu0
  %v3712 = vadd.f32 0.0, %v3711
  %v3713 = vpop.f32.mrf.mxu0
  %3714 = vmatprep.mubr.bf16.mxu0 0
  %3715 = vmatmul.mubr.bf16.gmra.mxu0 %v3453
  %v3716 = vpop.f32.mrf.mxu0
  %v3717 = vadd.f32 0.0, %v3716
  %v3718 = vpop.f32.mrf.mxu0
  %v3719 = vpop.f32.mrf.mxu0
  %v3720 = vadd.f32 0.0, %v3719
  %v3721 = vpop.f32.mrf.mxu0
  %3722 = vmatprep.mubr.bf16.mxu0 0
  %3723 = vmatmul.mubr.bf16.gmra.mxu0 %v3456
  %v3724 = vpop.f32.mrf.mxu0
  %v3725 = vadd.f32 0.0, %v3724
  %v3726 = vpop.f32.mrf.mxu0
  %v3727 = vpop.f32.mrf.mxu0
  %v3728 = vadd.f32 0.0, %v3727
  %v3729 = vpop.f32.mrf.mxu0
  %3730 = vmatprep.mubr.bf16.mxu0 0
  %3731 = vmatmul.mubr.bf16.gmra.mxu0 %v3459
  %v3732 = vpop.f32.mrf.mxu0
  %v3733 = vadd.f32 0.0, %v3732
  %v3734 = vpop.f32.mrf.mxu0
  %v3735 = vpop.f32.mrf.mxu0
  %v3736 = vadd.f32 0.0, %v3735
  %v3737 = vpop.f32.mrf.mxu0
  %3738 = vmatprep.mubr.bf16.mxu0 0
  %3739 = vmatmul.mubr.bf16.gmra.mxu0 %v3462
  %v3740 = vpop.f32.mrf.mxu0
  %v3741 = vadd.f32 0.0, %v3740
  %v3742 = vpop.f32.mrf.mxu0
  %v3743 = vpop.f32.mrf.mxu0
  %v3744 = vadd.f32 0.0, %v3743
  %v3745 = vpop.f32.mrf.mxu0
  %3746 = vmatprep.mubr.bf16.mxu0 0
  %3747 = vmatmul.mubr.bf16.gmra.mxu0 %v3465
  %v3748 = vpop.f32.mrf.mxu0
  %v3749 = vadd.f32 0.0, %v3748
  %v3750 = vpop.f32.mrf.mxu0
  %v3751 = vpop.f32.mrf.mxu0
  %v3752 = vadd.f32 0.0, %v3751
  %v3753 = vpop.f32.mrf.mxu0
  %3754 = vmatprep.mubr.bf16.mxu0 0
  %3755 = vmatmul.mubr.bf16.gmra.mxu0 %v3468
  %v3756 = vpop.f32.mrf.mxu0
  %v3757 = vadd.f32 0.0, %v3756
  %v3758 = vpop.f32.mrf.mxu0
  %v3759 = vpop.f32.mrf.mxu0
  %v3760 = vadd.f32 0.0, %v3759
  %v3761 = vpop.f32.mrf.mxu0
  %3762 = vdwg.mxu0
  %v3763 = vsel %vm94, %v3509, 0.0
  %v3764 = vsel %vm94, %v3512, 0.0
  %v3765 = vadd.f32 %v3763, %v3764
  %v3766 = vsel %vm94, %v3517, 0.0
  %v3767 = vadd.f32 %v3765, %v3766
  %v3768 = vsel %vm94, %v3520, 0.0
  %v3769 = vadd.f32 %v3767, %v3768
  %v3770 = vsel %vm94, %v3525, 0.0
  %v3771 = vadd.f32 %v3769, %v3770
  %v3772 = vsel %vm94, %v3528, 0.0
  %v3773 = vadd.f32 %v3771, %v3772
  %v3774 = vsel %vm94, %v3533, 0.0
  %v3775 = vadd.f32 %v3773, %v3774
  %v3776 = vsel %vm94, %v3536, 0.0
  %v3777 = vadd.f32 %v3775, %v3776
  %v3778 = vsel %vm94, %v3541, 0.0
  %v3779 = vadd.f32 %v3777, %v3778
  %v3780 = vsel %vm94, %v3544, 0.0
  %v3781 = vadd.f32 %v3779, %v3780
  %v3782 = vsel %vm94, %v3549, 0.0
  %v3783 = vadd.f32 %v3781, %v3782
  %v3784 = vsel %vm94, %v3552, 0.0
  %v3785 = vadd.f32 %v3783, %v3784
  %v3786 = vsel %vm94, %v3557, 0.0
  %v3787 = vadd.f32 %v3785, %v3786
  %v3788 = vsel %vm94, %v3560, 0.0
  %v3789 = vadd.f32 %v3787, %v3788
  %v3790 = vsel %vm94, %v3565, 0.0
  %v3791 = vadd.f32 %v3789, %v3790
  %v3792 = vsel %vm94, %v3568, 0.0
  %v3793 = vadd.f32 %v3791, %v3792
  %v3794 = vsel %vm94, %v3573, 0.0
  %v3795 = vadd.f32 %v3793, %v3794
  %v3796 = vsel %vm94, %v3576, 0.0
  %v3797 = vadd.f32 %v3795, %v3796
  %v3798 = vsel %vm94, %v3581, 0.0
  %v3799 = vadd.f32 %v3797, %v3798
  %v3800 = vsel %vm94, %v3584, 0.0
  %v3801 = vadd.f32 %v3799, %v3800
  %v3802 = vsel %vm94, %v3589, 0.0
  %v3803 = vadd.f32 %v3801, %v3802
  %v3804 = vsel %vm94, %v3592, 0.0
  %v3805 = vadd.f32 %v3803, %v3804
  %v3806 = vsel %vm94, %v3597, 0.0
  %v3807 = vadd.f32 %v3805, %v3806
  %v3808 = vsel %vm94, %v3600, 0.0
  %v3809 = vadd.f32 %v3807, %v3808
  %v3810 = vsel %vm94, %v3605, 0.0
  %v3811 = vadd.f32 %v3809, %v3810
  %v3812 = vsel %vm94, %v3608, 0.0
  %v3813 = vadd.f32 %v3811, %v3812
  %v3814 = vsel %vm94, %v3613, 0.0
  %v3815 = vadd.f32 %v3813, %v3814
  %v3816 = vsel %vm94, %v3616, 0.0
  %v3817 = vadd.f32 %v3815, %v3816
  %v3818 = vsel %vm94, %v3621, 0.0
  %v3819 = vadd.f32 %v3817, %v3818
  %v3820 = vsel %vm94, %v3624, 0.0
  %v3821 = vadd.f32 %v3819, %v3820
  %v3822 = vsel %vm94, %v3629, 0.0
  %v3823 = vadd.f32 %v3821, %v3822
  %v3824 = vsel %vm94, %v3632, 0.0
  %v3825 = vadd.f32 %v3823, %v3824
  %v3826 = vsel %vm94, %v3637, 0.0
  %v3827 = vadd.f32 %v3825, %v3826
  %v3828 = vsel %vm94, %v3640, 0.0
  %v3829 = vadd.f32 %v3827, %v3828
  %v3830 = vsel %vm94, %v3645, 0.0
  %v3831 = vadd.f32 %v3829, %v3830
  %v3832 = vsel %vm94, %v3648, 0.0
  %v3833 = vadd.f32 %v3831, %v3832
  %v3834 = vsel %vm94, %v3653, 0.0
  %v3835 = vadd.f32 %v3833, %v3834
  %v3836 = vsel %vm94, %v3656, 0.0
  %v3837 = vadd.f32 %v3835, %v3836
  %v3838 = vsel %vm94, %v3661, 0.0
  %v3839 = vadd.f32 %v3837, %v3838
  %v3840 = vsel %vm94, %v3664, 0.0
  %v3841 = vadd.f32 %v3839, %v3840
  %v3842 = vsel %vm94, %v3669, 0.0
  %v3843 = vadd.f32 %v3841, %v3842
  %v3844 = vsel %vm94, %v3672, 0.0
  %v3845 = vadd.f32 %v3843, %v3844
  %v3846 = vsel %vm94, %v3677, 0.0
  %v3847 = vadd.f32 %v3845, %v3846
  %v3848 = vsel %vm94, %v3680, 0.0
  %v3849 = vadd.f32 %v3847, %v3848
  %v3850 = vsel %vm94, %v3685, 0.0
  %v3851 = vadd.f32 %v3849, %v3850
  %v3852 = vsel %vm94, %v3688, 0.0
  %v3853 = vadd.f32 %v3851, %v3852
  %v3854 = vsel %vm94, %v3693, 0.0
  %v3855 = vadd.f32 %v3853, %v3854
  %v3856 = vsel %vm94, %v3696, 0.0
  %v3857 = vadd.f32 %v3855, %v3856
  %v3858 = vsel %vm94, %v3701, 0.0
  %v3859 = vadd.f32 %v3857, %v3858
  %v3860 = vsel %vm94, %v3704, 0.0
  %v3861 = vadd.f32 %v3859, %v3860
  %v3862 = vsel %vm94, %v3709, 0.0
  %v3863 = vadd.f32 %v3861, %v3862
  %v3864 = vsel %vm94, %v3712, 0.0
  %v3865 = vadd.f32 %v3863, %v3864
  %v3866 = vsel %vm94, %v3717, 0.0
  %v3867 = vadd.f32 %v3865, %v3866
  %v3868 = vsel %vm94, %v3720, 0.0
  %v3869 = vadd.f32 %v3867, %v3868
  %v3870 = vsel %vm94, %v3725, 0.0
  %v3871 = vadd.f32 %v3869, %v3870
  %v3872 = vsel %vm94, %v3728, 0.0
  %v3873 = vadd.f32 %v3871, %v3872
  %v3874 = vsel %vm94, %v3733, 0.0
  %v3875 = vadd.f32 %v3873, %v3874
  %v3876 = vsel %vm94, %v3736, 0.0
  %v3877 = vadd.f32 %v3875, %v3876
  %v3878 = vsel %vm94, %v3741, 0.0
  %v3879 = vadd.f32 %v3877, %v3878
  %v3880 = vsel %vm94, %v3744, 0.0
  %v3881 = vadd.f32 %v3879, %v3880
  %v3882 = vsel %vm94, %v3749, 0.0
  %v3883 = vadd.f32 %v3881, %v3882
  %v3884 = vsel %vm94, %v3752, 0.0
  %v3885 = vadd.f32 %v3883, %v3884
  %v3886 = vsel %vm94, %v3757, 0.0
  %v3887 = vadd.f32 %v3885, %v3886
  %v3888 = vsel %vm94, %v3760, 0.0
  %v3889 = vadd.f32 %v3887, %v3888
  %v3890 = vrot.slane %v3889, 4
  %v3891 = vadd.f32 %v3889, %v3890
  %v3892 = vrot.slane %v3891, 2
  %v3893 = vadd.f32 %v3891, %v3892
  %v3894 = vrot.slane %v3893, 1
  %v3895 = vadd.f32 %v3893, %v3894
  %v3896 = vmul.f32 %v3509, %v3509
  %v3897 = vmul.f32 %v3512, %v3512
  %v3898 = vmul.f32 %v3517, %v3517
  %v3899 = vmul.f32 %v3520, %v3520
  %v3900 = vmul.f32 %v3525, %v3525
  %v3901 = vmul.f32 %v3528, %v3528
  %v3902 = vmul.f32 %v3533, %v3533
  %v3903 = vmul.f32 %v3536, %v3536
  %v3904 = vmul.f32 %v3541, %v3541
  %v3905 = vmul.f32 %v3544, %v3544
  %v3906 = vmul.f32 %v3549, %v3549
  %v3907 = vmul.f32 %v3552, %v3552
  %v3908 = vmul.f32 %v3557, %v3557
  %v3909 = vmul.f32 %v3560, %v3560
  %v3910 = vmul.f32 %v3565, %v3565
  %v3911 = vmul.f32 %v3568, %v3568
  %v3912 = vmul.f32 %v3573, %v3573
  %v3913 = vmul.f32 %v3576, %v3576
  %v3914 = vmul.f32 %v3581, %v3581
  %v3915 = vmul.f32 %v3584, %v3584
  %v3916 = vmul.f32 %v3589, %v3589
  %v3917 = vmul.f32 %v3592, %v3592
  %v3918 = vmul.f32 %v3597, %v3597
  %v3919 = vmul.f32 %v3600, %v3600
  %v3920 = vmul.f32 %v3605, %v3605
  %v3921 = vmul.f32 %v3608, %v3608
  %v3922 = vmul.f32 %v3613, %v3613
  %v3923 = vmul.f32 %v3616, %v3616
  %v3924 = vmul.f32 %v3621, %v3621
  %v3925 = vmul.f32 %v3624, %v3624
  %v3926 = vmul.f32 %v3629, %v3629
  %v3927 = vmul.f32 %v3632, %v3632
  %v3928 = vmul.f32 %v3637, %v3637
  %v3929 = vmul.f32 %v3640, %v3640
  %v3930 = vmul.f32 %v3645, %v3645
  %v3931 = vmul.f32 %v3648, %v3648
  %v3932 = vmul.f32 %v3653, %v3653
  %v3933 = vmul.f32 %v3656, %v3656
  %v3934 = vmul.f32 %v3661, %v3661
  %v3935 = vmul.f32 %v3664, %v3664
  %v3936 = vmul.f32 %v3669, %v3669
  %v3937 = vmul.f32 %v3672, %v3672
  %v3938 = vmul.f32 %v3677, %v3677
  %v3939 = vmul.f32 %v3680, %v3680
  %v3940 = vmul.f32 %v3685, %v3685
  %v3941 = vmul.f32 %v3688, %v3688
  %v3942 = vmul.f32 %v3693, %v3693
  %v3943 = vmul.f32 %v3696, %v3696
  %v3944 = vmul.f32 %v3701, %v3701
  %v3945 = vmul.f32 %v3704, %v3704
  %v3946 = vmul.f32 %v3709, %v3709
  %v3947 = vmul.f32 %v3712, %v3712
  %v3948 = vmul.f32 %v3717, %v3717
  %v3949 = vmul.f32 %v3720, %v3720
  %v3950 = vmul.f32 %v3725, %v3725
  %v3951 = vmul.f32 %v3728, %v3728
  %v3952 = vmul.f32 %v3733, %v3733
  %v3953 = vmul.f32 %v3736, %v3736
  %v3954 = vmul.f32 %v3741, %v3741
  %v3955 = vmul.f32 %v3744, %v3744
  %v3956 = vmul.f32 %v3749, %v3749
  %v3957 = vmul.f32 %v3752, %v3752
  %v3958 = vmul.f32 %v3757, %v3757
  %v3959 = vmul.f32 %v3760, %v3760
  %v3960 = vsel %vm94, %v3896, 0.0
  %v3961 = vsel %vm94, %v3897, 0.0
  %v3962 = vadd.f32 %v3960, %v3961
  %v3963 = vsel %vm94, %v3898, 0.0
  %v3964 = vadd.f32 %v3962, %v3963
  %v3965 = vsel %vm94, %v3899, 0.0
  %v3966 = vadd.f32 %v3964, %v3965
  %v3967 = vsel %vm94, %v3900, 0.0
  %v3968 = vadd.f32 %v3966, %v3967
  %v3969 = vsel %vm94, %v3901, 0.0
  %v3970 = vadd.f32 %v3968, %v3969
  %v3971 = vsel %vm94, %v3902, 0.0
  %v3972 = vadd.f32 %v3970, %v3971
  %v3973 = vsel %vm94, %v3903, 0.0
  %v3974 = vadd.f32 %v3972, %v3973
  %v3975 = vsel %vm94, %v3904, 0.0
  %v3976 = vadd.f32 %v3974, %v3975
  %v3977 = vsel %vm94, %v3905, 0.0
  %v3978 = vadd.f32 %v3976, %v3977
  %v3979 = vsel %vm94, %v3906, 0.0
  %v3980 = vadd.f32 %v3978, %v3979
  %v3981 = vsel %vm94, %v3907, 0.0
  %v3982 = vadd.f32 %v3980, %v3981
  %v3983 = vsel %vm94, %v3908, 0.0
  %v3984 = vadd.f32 %v3982, %v3983
  %v3985 = vsel %vm94, %v3909, 0.0
  %v3986 = vadd.f32 %v3984, %v3985
  %v3987 = vsel %vm94, %v3910, 0.0
  %v3988 = vadd.f32 %v3986, %v3987
  %v3989 = vsel %vm94, %v3911, 0.0
  %v3990 = vadd.f32 %v3988, %v3989
  %v3991 = vsel %vm94, %v3912, 0.0
  %v3992 = vadd.f32 %v3990, %v3991
  %v3993 = vsel %vm94, %v3913, 0.0
  %v3994 = vadd.f32 %v3992, %v3993
  %v3995 = vsel %vm94, %v3914, 0.0
  %v3996 = vadd.f32 %v3994, %v3995
  %v3997 = vsel %vm94, %v3915, 0.0
  %v3998 = vadd.f32 %v3996, %v3997
  %v3999 = vsel %vm94, %v3916, 0.0
  %v4000 = vadd.f32 %v3998, %v3999
  %v4001 = vsel %vm94, %v3917, 0.0
  %v4002 = vadd.f32 %v4000, %v4001
  %v4003 = vsel %vm94, %v3918, 0.0
  %v4004 = vadd.f32 %v4002, %v4003
  %v4005 = vsel %vm94, %v3919, 0.0
  %v4006 = vadd.f32 %v4004, %v4005
  %v4007 = vsel %vm94, %v3920, 0.0
  %v4008 = vadd.f32 %v4006, %v4007
  %v4009 = vsel %vm94, %v3921, 0.0
  %v4010 = vadd.f32 %v4008, %v4009
  %v4011 = vsel %vm94, %v3922, 0.0
  %v4012 = vadd.f32 %v4010, %v4011
  %v4013 = vsel %vm94, %v3923, 0.0
  %v4014 = vadd.f32 %v4012, %v4013
  %v4015 = vsel %vm94, %v3924, 0.0
  %v4016 = vadd.f32 %v4014, %v4015
  %v4017 = vsel %vm94, %v3925, 0.0
  %v4018 = vadd.f32 %v4016, %v4017
  %v4019 = vsel %vm94, %v3926, 0.0
  %v4020 = vadd.f32 %v4018, %v4019
  %v4021 = vsel %vm94, %v3927, 0.0
  %v4022 = vadd.f32 %v4020, %v4021
  %v4023 = vsel %vm94, %v3928, 0.0
  %v4024 = vadd.f32 %v4022, %v4023
  %v4025 = vsel %vm94, %v3929, 0.0
  %v4026 = vadd.f32 %v4024, %v4025
  %v4027 = vsel %vm94, %v3930, 0.0
  %v4028 = vadd.f32 %v4026, %v4027
  %v4029 = vsel %vm94, %v3931, 0.0
  %v4030 = vadd.f32 %v4028, %v4029
  %v4031 = vsel %vm94, %v3932, 0.0
  %v4032 = vadd.f32 %v4030, %v4031
  %v4033 = vsel %vm94, %v3933, 0.0
  %v4034 = vadd.f32 %v4032, %v4033
  %v4035 = vsel %vm94, %v3934, 0.0
  %v4036 = vadd.f32 %v4034, %v4035
  %v4037 = vsel %vm94, %v3935, 0.0
  %v4038 = vadd.f32 %v4036, %v4037
  %v4039 = vsel %vm94, %v3936, 0.0
  %v4040 = vadd.f32 %v4038, %v4039
  %v4041 = vsel %vm94, %v3937, 0.0
  %v4042 = vadd.f32 %v4040, %v4041
  %v4043 = vsel %vm94, %v3938, 0.0
  %v4044 = vadd.f32 %v4042, %v4043
  %v4045 = vsel %vm94, %v3939, 0.0
  %v4046 = vadd.f32 %v4044, %v4045
  %v4047 = vsel %vm94, %v3940, 0.0
  %v4048 = vadd.f32 %v4046, %v4047
  %v4049 = vsel %vm94, %v3941, 0.0
  %v4050 = vadd.f32 %v4048, %v4049
  %v4051 = vsel %vm94, %v3942, 0.0
  %v4052 = vadd.f32 %v4050, %v4051
  %v4053 = vsel %vm94, %v3943, 0.0
  %v4054 = vadd.f32 %v4052, %v4053
  %v4055 = vsel %vm94, %v3944, 0.0
  %v4056 = vadd.f32 %v4054, %v4055
  %v4057 = vsel %vm94, %v3945, 0.0
  %v4058 = vadd.f32 %v4056, %v4057
  %v4059 = vsel %vm94, %v3946, 0.0
  %v4060 = vadd.f32 %v4058, %v4059
  %v4061 = vsel %vm94, %v3947, 0.0
  %v4062 = vadd.f32 %v4060, %v4061
  %v4063 = vsel %vm94, %v3948, 0.0
  %v4064 = vadd.f32 %v4062, %v4063
  %v4065 = vsel %vm94, %v3949, 0.0
  %v4066 = vadd.f32 %v4064, %v4065
  %v4067 = vsel %vm94, %v3950, 0.0
  %v4068 = vadd.f32 %v4066, %v4067
  %v4069 = vsel %vm94, %v3951, 0.0
  %v4070 = vadd.f32 %v4068, %v4069
  %v4071 = vsel %vm94, %v3952, 0.0
  %v4072 = vadd.f32 %v4070, %v4071
  %v4073 = vsel %vm94, %v3953, 0.0
  %v4074 = vadd.f32 %v4072, %v4073
  %v4075 = vsel %vm94, %v3954, 0.0
  %v4076 = vadd.f32 %v4074, %v4075
  %v4077 = vsel %vm94, %v3955, 0.0
  %v4078 = vadd.f32 %v4076, %v4077
  %v4079 = vsel %vm94, %v3956, 0.0
  %v4080 = vadd.f32 %v4078, %v4079
  %v4081 = vsel %vm94, %v3957, 0.0
  %v4082 = vadd.f32 %v4080, %v4081
  %v4083 = vsel %vm94, %v3958, 0.0
  %v4084 = vadd.f32 %v4082, %v4083
  %v4085 = vsel %vm94, %v3959, 0.0
  %v4086 = vadd.f32 %v4084, %v4085
  %v4087 = vrot.slane %v4086, 4
  %v4088 = vadd.f32 %v4086, %v4087
  %v4089 = vrot.slane %v4088, 2
  %v4090 = vadd.f32 %v4088, %v4089
  %v4091 = vrot.slane %v4090, 1
  %v4092 = vadd.f32 %v4090, %v4091
  %v4093 = vmul.f32 %v3895, 0.001953125
  %v4094 = vmul.f32 %v4092, 0.001953125
  %v4095 = vmul.f32 %v4093, %v4093
  %v4096 = vsub.f32 %v4094, %v4095
  %v4097 = vmax.f32 %v4096, 0.0
  %v4098 = vld [vmem:[%s3] sm:$0x1]
  %v4099 = vadd.f32 %v4097, 1e-05
  %v4100 = vrsqrt.pop %v4099
  %v4101 = vmul.f32 %v4098, %v4100
  %v4102 = vld [vmem:[%s4] sm:$0x1]
  %v4103 = vmul.f32 %v4093, %v4101
  %v4104 = vsub.f32 %v4102, %v4103
  %v4106 = vlaneseq
  %v4107 = vshrl.u32 %v4106, 7
  %v4108 = vsub.s32 0, %v4107
  %v4109 = vrot.slane %v4101, %v4108
  %v4111 = vmul.f32 %v3509, %v4109
  %v4112 = vmul.f32 %v3512, %v4109
  %v4113 = vmul.f32 %v3517, %v4109
  %v4114 = vmul.f32 %v3520, %v4109
  %v4115 = vmul.f32 %v3525, %v4109
  %v4116 = vmul.f32 %v3528, %v4109
  %v4117 = vmul.f32 %v3533, %v4109
  %v4118 = vmul.f32 %v3536, %v4109
  %v4119 = vmul.f32 %v3541, %v4109
  %v4120 = vmul.f32 %v3544, %v4109
  %v4121 = vmul.f32 %v3549, %v4109
  %v4122 = vmul.f32 %v3552, %v4109
  %v4123 = vmul.f32 %v3557, %v4109
  %v4124 = vmul.f32 %v3560, %v4109
  %v4125 = vmul.f32 %v3565, %v4109
  %v4126 = vmul.f32 %v3568, %v4109
  %v4127 = vmul.f32 %v3573, %v4109
  %v4128 = vmul.f32 %v3576, %v4109
  %v4129 = vmul.f32 %v3581, %v4109
  %v4130 = vmul.f32 %v3584, %v4109
  %v4131 = vmul.f32 %v3589, %v4109
  %v4132 = vmul.f32 %v3592, %v4109
  %v4133 = vmul.f32 %v3597, %v4109
  %v4134 = vmul.f32 %v3600, %v4109
  %v4135 = vmul.f32 %v3605, %v4109
  %v4136 = vmul.f32 %v3608, %v4109
  %v4137 = vmul.f32 %v3613, %v4109
  %v4138 = vmul.f32 %v3616, %v4109
  %v4139 = vmul.f32 %v3621, %v4109
  %v4140 = vmul.f32 %v3624, %v4109
  %v4141 = vmul.f32 %v3629, %v4109
  %v4142 = vmul.f32 %v3632, %v4109
  %v4143 = vmul.f32 %v3637, %v4109
  %v4144 = vmul.f32 %v3640, %v4109
  %v4145 = vmul.f32 %v3645, %v4109
  %v4146 = vmul.f32 %v3648, %v4109
  %v4147 = vmul.f32 %v3653, %v4109
  %v4148 = vmul.f32 %v3656, %v4109
  %v4149 = vmul.f32 %v3661, %v4109
  %v4150 = vmul.f32 %v3664, %v4109
  %v4151 = vmul.f32 %v3669, %v4109
  %v4152 = vmul.f32 %v3672, %v4109
  %v4153 = vmul.f32 %v3677, %v4109
  %v4154 = vmul.f32 %v3680, %v4109
  %v4155 = vmul.f32 %v3685, %v4109
  %v4156 = vmul.f32 %v3688, %v4109
  %v4157 = vmul.f32 %v3693, %v4109
  %v4158 = vmul.f32 %v3696, %v4109
  %v4159 = vmul.f32 %v3701, %v4109
  %v4160 = vmul.f32 %v3704, %v4109
  %v4161 = vmul.f32 %v3709, %v4109
  %v4162 = vmul.f32 %v3712, %v4109
  %v4163 = vmul.f32 %v3717, %v4109
  %v4164 = vmul.f32 %v3720, %v4109
  %v4165 = vmul.f32 %v3725, %v4109
  %v4166 = vmul.f32 %v3728, %v4109
  %v4167 = vmul.f32 %v3733, %v4109
  %v4168 = vmul.f32 %v3736, %v4109
  %v4169 = vmul.f32 %v3741, %v4109
  %v4170 = vmul.f32 %v3744, %v4109
  %v4171 = vmul.f32 %v3749, %v4109
  %v4172 = vmul.f32 %v3752, %v4109
  %v4173 = vmul.f32 %v3757, %v4109
  %v4174 = vmul.f32 %v3760, %v4109
  %v4176 = vlaneseq
  %v4177 = vshrl.u32 %v4176, 7
  %v4178 = vsub.s32 0, %v4177
  %v4179 = vrot.slane %v4104, %v4178
  %v4181 = vadd.f32 %v4111, %v4179
  %v4182 = vadd.f32 %v4112, %v4179
  %v4183 = vadd.f32 %v4113, %v4179
  %v4184 = vadd.f32 %v4114, %v4179
  %v4185 = vadd.f32 %v4115, %v4179
  %v4186 = vadd.f32 %v4116, %v4179
  %v4187 = vadd.f32 %v4117, %v4179
  %v4188 = vadd.f32 %v4118, %v4179
  %v4189 = vadd.f32 %v4119, %v4179
  %v4190 = vadd.f32 %v4120, %v4179
  %v4191 = vadd.f32 %v4121, %v4179
  %v4192 = vadd.f32 %v4122, %v4179
  %v4193 = vadd.f32 %v4123, %v4179
  %v4194 = vadd.f32 %v4124, %v4179
  %v4195 = vadd.f32 %v4125, %v4179
  %v4196 = vadd.f32 %v4126, %v4179
  %v4197 = vadd.f32 %v4127, %v4179
  %v4198 = vadd.f32 %v4128, %v4179
  %v4199 = vadd.f32 %v4129, %v4179
  %v4200 = vadd.f32 %v4130, %v4179
  %v4201 = vadd.f32 %v4131, %v4179
  %v4202 = vadd.f32 %v4132, %v4179
  %v4203 = vadd.f32 %v4133, %v4179
  %v4204 = vadd.f32 %v4134, %v4179
  %v4205 = vadd.f32 %v4135, %v4179
  %v4206 = vadd.f32 %v4136, %v4179
  %v4207 = vadd.f32 %v4137, %v4179
  %v4208 = vadd.f32 %v4138, %v4179
  %v4209 = vadd.f32 %v4139, %v4179
  %v4210 = vadd.f32 %v4140, %v4179
  %v4211 = vadd.f32 %v4141, %v4179
  %v4212 = vadd.f32 %v4142, %v4179
  %v4213 = vadd.f32 %v4143, %v4179
  %v4214 = vadd.f32 %v4144, %v4179
  %v4215 = vadd.f32 %v4145, %v4179
  %v4216 = vadd.f32 %v4146, %v4179
  %v4217 = vadd.f32 %v4147, %v4179
  %v4218 = vadd.f32 %v4148, %v4179
  %v4219 = vadd.f32 %v4149, %v4179
  %v4220 = vadd.f32 %v4150, %v4179
  %v4221 = vadd.f32 %v4151, %v4179
  %v4222 = vadd.f32 %v4152, %v4179
  %v4223 = vadd.f32 %v4153, %v4179
  %v4224 = vadd.f32 %v4154, %v4179
  %v4225 = vadd.f32 %v4155, %v4179
  %v4226 = vadd.f32 %v4156, %v4179
  %v4227 = vadd.f32 %v4157, %v4179
  %v4228 = vadd.f32 %v4158, %v4179
  %v4229 = vadd.f32 %v4159, %v4179
  %v4230 = vadd.f32 %v4160, %v4179
  %v4231 = vadd.f32 %v4161, %v4179
  %v4232 = vadd.f32 %v4162, %v4179
  %v4233 = vadd.f32 %v4163, %v4179
  %v4234 = vadd.f32 %v4164, %v4179
  %v4235 = vadd.f32 %v4165, %v4179
  %v4236 = vadd.f32 %v4166, %v4179
  %v4237 = vadd.f32 %v4167, %v4179
  %v4238 = vadd.f32 %v4168, %v4179
  %v4239 = vadd.f32 %v4169, %v4179
  %v4240 = vadd.f32 %v4170, %v4179
  %v4241 = vadd.f32 %v4171, %v4179
  %v4242 = vadd.f32 %v4172, %v4179
  %v4243 = vadd.f32 %v4173, %v4179
  %v4244 = vadd.f32 %v4174, %v4179
  %v4245 = vmax.f32 %v4181, 0.0
  %v4246 = vmax.f32 %v4182, 0.0
  %v4247 = vmax.f32 %v4183, 0.0
  %v4248 = vmax.f32 %v4184, 0.0
  %v4249 = vmax.f32 %v4185, 0.0
  %v4250 = vmax.f32 %v4186, 0.0
  %v4251 = vmax.f32 %v4187, 0.0
  %v4252 = vmax.f32 %v4188, 0.0
  %v4253 = vmax.f32 %v4189, 0.0
  %v4254 = vmax.f32 %v4190, 0.0
  %v4255 = vmax.f32 %v4191, 0.0
  %v4256 = vmax.f32 %v4192, 0.0
  %v4257 = vmax.f32 %v4193, 0.0
  %v4258 = vmax.f32 %v4194, 0.0
  %v4259 = vmax.f32 %v4195, 0.0
  %v4260 = vmax.f32 %v4196, 0.0
  %v4261 = vmax.f32 %v4197, 0.0
  %v4262 = vmax.f32 %v4198, 0.0
  %v4263 = vmax.f32 %v4199, 0.0
  %v4264 = vmax.f32 %v4200, 0.0
  %v4265 = vmax.f32 %v4201, 0.0
  %v4266 = vmax.f32 %v4202, 0.0
  %v4267 = vmax.f32 %v4203, 0.0
  %v4268 = vmax.f32 %v4204, 0.0
  %v4269 = vmax.f32 %v4205, 0.0
  %v4270 = vmax.f32 %v4206, 0.0
  %v4271 = vmax.f32 %v4207, 0.0
  %v4272 = vmax.f32 %v4208, 0.0
  %v4273 = vmax.f32 %v4209, 0.0
  %v4274 = vmax.f32 %v4210, 0.0
  %v4275 = vmax.f32 %v4211, 0.0
  %v4276 = vmax.f32 %v4212, 0.0
  %v4277 = vmax.f32 %v4213, 0.0
  %v4278 = vmax.f32 %v4214, 0.0
  %v4279 = vmax.f32 %v4215, 0.0
  %v4280 = vmax.f32 %v4216, 0.0
  %v4281 = vmax.f32 %v4217, 0.0
  %v4282 = vmax.f32 %v4218, 0.0
  %v4283 = vmax.f32 %v4219, 0.0
  %v4284 = vmax.f32 %v4220, 0.0
  %v4285 = vmax.f32 %v4221, 0.0
  %v4286 = vmax.f32 %v4222, 0.0
  %v4287 = vmax.f32 %v4223, 0.0
  %v4288 = vmax.f32 %v4224, 0.0
  %v4289 = vmax.f32 %v4225, 0.0
  %v4290 = vmax.f32 %v4226, 0.0
  %v4291 = vmax.f32 %v4227, 0.0
  %v4292 = vmax.f32 %v4228, 0.0
  %v4293 = vmax.f32 %v4229, 0.0
  %v4294 = vmax.f32 %v4230, 0.0
  %v4295 = vmax.f32 %v4231, 0.0
  %v4296 = vmax.f32 %v4232, 0.0
  %v4297 = vmax.f32 %v4233, 0.0
  %v4298 = vmax.f32 %v4234, 0.0
  %v4299 = vmax.f32 %v4235, 0.0
  %v4300 = vmax.f32 %v4236, 0.0
  %v4301 = vmax.f32 %v4237, 0.0
  %v4302 = vmax.f32 %v4238, 0.0
  %v4303 = vmax.f32 %v4239, 0.0
  %v4304 = vmax.f32 %v4240, 0.0
  %v4305 = vmax.f32 %v4241, 0.0
  %v4306 = vmax.f32 %v4242, 0.0
  %v4307 = vmax.f32 %v4243, 0.0
  %v4308 = vmax.f32 %v4244, 0.0
  %4309 = vst.msk [vmem:[#allocation3] sm:$0xff] %vm94, 0.0
  %4310 = vst.msk [vmem:[#allocation3 + $0x8] sm:$0xff] %vm94, 0.0
  %vm4311 = vcmask 58368
  %4312 = vst.msk [vmem:[#allocation3 + $0x10] sm:$0x3] %vm4311, 0.0
  %4313 = vst.msk [vmem:[#allocation3 + $0x1b0] sm:$0xff] %vm94, 0.0
  %4314 = vst.msk [vmem:[#allocation3 + $0x1b8] sm:$0xff] %vm94, 0.0
  %4315 = vst.msk [vmem:[#allocation3 + $0x1c0] sm:$0x3] %vm4311, 0.0
  %s4316 = scalar_lea.vmem [#allocation3], 408
  %4317 = vst.msk [vmem:[%s4316] sm:$0xff] %vm94, 0.0
  %4318 = vst.msk [vmem:[%s4316 + $0x8] sm:$0xff] %vm94, 0.0
  %4319 = vst.msk [vmem:[%s4316 + $0x10] sm:$0x3] %vm4311, 0.0
  %4320 = vst.msk [vmem:[%s4316 + $0x1b0] sm:$0xff] %vm94, 0.0
  %4321 = vst.msk [vmem:[%s4316 + $0x1b8] sm:$0xff] %vm94, 0.0
  %4322 = vst.msk [vmem:[%s4316 + $0x1c0] sm:$0x3] %vm4311, 0.0
  %vm4323 = vcmask 57344
  %4324 = vst.msk [vmem:[#allocation3] sm:$0x1] %vm4323, 0.0
  %4325 = vst.msk [vmem:[#allocation3 + $0x18] sm:$0x1] %vm4323, 0.0
  %4326 = vst.msk [vmem:[#allocation3 + $0x30] sm:$0x1] %vm4323, 0.0
  %4327 = vst.msk [vmem:[#allocation3 + $0x48] sm:$0x1] %vm4323, 0.0
  %4328 = vst.msk [vmem:[#allocation3 + $0x60] sm:$0x1] %vm4323, 0.0
  %4329 = vst.msk [vmem:[#allocation3 + $0x78] sm:$0x1] %vm4323, 0.0
  %4330 = vst.msk [vmem:[#allocation3 + $0x90] sm:$0x1] %vm4323, 0.0
  %4331 = vst.msk [vmem:[#allocation3 + $0xa8] sm:$0x1] %vm4323, 0.0
  %4332 = vst.msk [vmem:[#allocation3 + $0xc0] sm:$0x1] %vm4323, 0.0
  %4333 = vst.msk [vmem:[#allocation3 + $0xd8] sm:$0x1] %vm4323, 0.0
  %4334 = vst.msk [vmem:[#allocation3 + $0xf0] sm:$0x1] %vm4323, 0.0
  %4335 = vst.msk [vmem:[#allocation3 + $0x108] sm:$0x1] %vm4323, 0.0
  %4336 = vst.msk [vmem:[#allocation3 + $0x120] sm:$0x1] %vm4323, 0.0
  %4337 = vst.msk [vmem:[#allocation3 + $0x138] sm:$0x1] %vm4323, 0.0
  %4338 = vst.msk [vmem:[#allocation3 + $0x150] sm:$0x1] %vm4323, 0.0
  %4339 = vst.msk [vmem:[#allocation3 + $0x168] sm:$0x1] %vm4323, 0.0
  %4340 = vst.msk [vmem:[#allocation3 + $0x180] sm:$0x1] %vm4323, 0.0
  %4341 = vst.msk [vmem:[#allocation3 + $0x198] sm:$0x1] %vm4323, 0.0
  %4342 = vst.msk [vmem:[#allocation3 + $0x1b0] sm:$0x1] %vm4323, 0.0
  %4343 = vst.msk [vmem:[#allocation3 + $0x1c8] sm:$0x1] %vm4323, 0.0
  %4344 = vst.msk [vmem:[#allocation3 + $0x1e0] sm:$0x1] %vm4323, 0.0
  %4345 = vst.msk [vmem:[#allocation3 + $0x1f8] sm:$0x1] %vm4323, 0.0
  %4346 = vst.msk [vmem:[#allocation3 + $0x210] sm:$0x1] %vm4323, 0.0
  %4347 = vst.msk [vmem:[#allocation3 + $0x228] sm:$0x1] %vm4323, 0.0
  %4348 = vst.msk [vmem:[#allocation3 + $0x240] sm:$0x1] %vm4323, 0.0
  %4349 = vst.msk [vmem:[#allocation3 + $0x258] sm:$0x1] %vm4323, 0.0
  %4350 = vst.msk [vmem:[#allocation3 + $0x270] sm:$0x1] %vm4323, 0.0
  %4351 = vst.msk [vmem:[#allocation3 + $0x288] sm:$0x1] %vm4323, 0.0
  %4352 = vst.msk [vmem:[#allocation3 + $0x2a0] sm:$0x1] %vm4323, 0.0
  %4353 = vst.msk [vmem:[#allocation3 + $0x2b8] sm:$0x1] %vm4323, 0.0
  %4354 = vst.msk [vmem:[#allocation3 + $0x2d0] sm:$0x1] %vm4323, 0.0
  %4355 = vst.msk [vmem:[#allocation3 + $0x2e8] sm:$0x1] %vm4323, 0.0
  %4356 = vst.msk [vmem:[#allocation3 + $0x300] sm:$0x1] %vm4323, 0.0
  %4357 = vst.msk [vmem:[#allocation3 + $0x318] sm:$0x1] %vm4323, 0.0
  %4358 = vst.msk [vmem:[#allocation3 + $0x330] sm:$0x1] %vm4323, 0.0
  %4359 = vst.msk [vmem:[#allocation3 + $0x348] sm:$0x1] %vm4323, 0.0
  %4360 = vst.msk [vmem:[#allocation3 + $0x11] sm:$0x1] %vm4323, 0.0
  %4361 = vst.msk [vmem:[#allocation3 + $0x29] sm:$0x1] %vm4323, 0.0
  %4362 = vst.msk [vmem:[#allocation3 + $0x41] sm:$0x1] %vm4323, 0.0
  %4363 = vst.msk [vmem:[#allocation3 + $0x59] sm:$0x1] %vm4323, 0.0
  %4364 = vst.msk [vmem:[#allocation3 + $0x71] sm:$0x1] %vm4323, 0.0
  %4365 = vst.msk [vmem:[#allocation3 + $0x89] sm:$0x1] %vm4323, 0.0
  %4366 = vst.msk [vmem:[#allocation3 + $0xa1] sm:$0x1] %vm4323, 0.0
  %4367 = vst.msk [vmem:[#allocation3 + $0xb9] sm:$0x1] %vm4323, 0.0
  %4368 = vst.msk [vmem:[#allocation3 + $0xd1] sm:$0x1] %vm4323, 0.0
  %4369 = vst.msk [vmem:[#allocation3 + $0xe9] sm:$0x1] %vm4323, 0.0
  %4370 = vst.msk [vmem:[#allocation3 + $0x101] sm:$0x1] %vm4323, 0.0
  %4371 = vst.msk [vmem:[#allocation3 + $0x119] sm:$0x1] %vm4323, 0.0
  %4372 = vst.msk [vmem:[#allocation3 + $0x131] sm:$0x1] %vm4323, 0.0
  %4373 = vst.msk [vmem:[#allocation3 + $0x149] sm:$0x1] %vm4323, 0.0
  %4374 = vst.msk [vmem:[#allocation3 + $0x161] sm:$0x1] %vm4323, 0.0
  %4375 = vst.msk [vmem:[#allocation3 + $0x179] sm:$0x1] %vm4323, 0.0
  %4376 = vst.msk [vmem:[#allocation3 + $0x191] sm:$0x1] %vm4323, 0.0
  %4377 = vst.msk [vmem:[#allocation3 + $0x1a9] sm:$0x1] %vm4323, 0.0
  %4378 = vst.msk [vmem:[#allocation3 + $0x1c1] sm:$0x1] %vm4323, 0.0
  %4379 = vst.msk [vmem:[#allocation3 + $0x1d9] sm:$0x1] %vm4323, 0.0
  %4380 = vst.msk [vmem:[#allocation3 + $0x1f1] sm:$0x1] %vm4323, 0.0
  %4381 = vst.msk [vmem:[#allocation3 + $0x209] sm:$0x1] %vm4323, 0.0
  %4382 = vst.msk [vmem:[#allocation3 + $0x221] sm:$0x1] %vm4323, 0.0
  %4383 = vst.msk [vmem:[#allocation3 + $0x239] sm:$0x1] %vm4323, 0.0
  %4384 = vst.msk [vmem:[#allocation3 + $0x251] sm:$0x1] %vm4323, 0.0
  %4385 = vst.msk [vmem:[#allocation3 + $0x269] sm:$0x1] %vm4323, 0.0
  %4386 = vst.msk [vmem:[#allocation3 + $0x281] sm:$0x1] %vm4323, 0.0
  %4387 = vst.msk [vmem:[#allocation3 + $0x299] sm:$0x1] %vm4323, 0.0
  %4388 = vst.msk [vmem:[#allocation3 + $0x2b1] sm:$0x1] %vm4323, 0.0
  %4389 = vst.msk [vmem:[#allocation3 + $0x2c9] sm:$0x1] %vm4323, 0.0
  %4390 = vst.msk [vmem:[#allocation3 + $0x2e1] sm:$0x1] %vm4323, 0.0
  %4391 = vst.msk [vmem:[#allocation3 + $0x2f9] sm:$0x1] %vm4323, 0.0
  %4392 = vst.msk [vmem:[#allocation3 + $0x311] sm:$0x1] %vm4323, 0.0
  %4393 = vst.msk [vmem:[#allocation3 + $0x329] sm:$0x1] %vm4323, 0.0
  %4394 = vst.msk [vmem:[#allocation3 + $0x341] sm:$0x1] %vm4323, 0.0
  %4395 = vst.msk [vmem:[#allocation3 + $0x359] sm:$0x1] %vm4323, 0.0
  %s4396 = scalar_lea.vmem [#allocation3], 24
  %4397 = vst.msk [vmem:[%s4396 + $0x1] sm:$0xff] %vm94, %v4245
  %4398 = vst.msk [vmem:[%s4396 + $0x9] sm:$0xff] %vm94, %v4246
  %4399 = vst.msk [vmem:[%s4396 + $0x19] sm:$0xff] %vm94, %v4247
  %4400 = vst.msk [vmem:[%s4396 + $0x21] sm:$0xff] %vm94, %v4248
  %4401 = vst.msk [vmem:[%s4396 + $0x31] sm:$0xff] %vm94, %v4249
  %4402 = vst.msk [vmem:[%s4396 + $0x39] sm:$0xff] %vm94, %v4250
  %4403 = vst.msk [vmem:[%s4396 + $0x49] sm:$0xff] %vm94, %v4251
  %4404 = vst.msk [vmem:[%s4396 + $0x51] sm:$0xff] %vm94, %v4252
  %4405 = vst.msk [vmem:[%s4396 + $0x61] sm:$0xff] %vm94, %v4253
  %4406 = vst.msk [vmem:[%s4396 + $0x69] sm:$0xff] %vm94, %v4254
  %4407 = vst.msk [vmem:[%s4396 + $0x79] sm:$0xff] %vm94, %v4255
  %4408 = vst.msk [vmem:[%s4396 + $0x81] sm:$0xff] %vm94, %v4256
  %4409 = vst.msk [vmem:[%s4396 + $0x91] sm:$0xff] %vm94, %v4257
  %4410 = vst.msk [vmem:[%s4396 + $0x99] sm:$0xff] %vm94, %v4258
  %4411 = vst.msk [vmem:[%s4396 + $0xa9] sm:$0xff] %vm94, %v4259
  %4412 = vst.msk [vmem:[%s4396 + $0xb1] sm:$0xff] %vm94, %v4260
  %4413 = vst.msk [vmem:[%s4396 + $0xc1] sm:$0xff] %vm94, %v4261
  %4414 = vst.msk [vmem:[%s4396 + $0xc9] sm:$0xff] %vm94, %v4262
  %4415 = vst.msk [vmem:[%s4396 + $0xd9] sm:$0xff] %vm94, %v4263
  %4416 = vst.msk [vmem:[%s4396 + $0xe1] sm:$0xff] %vm94, %v4264
  %4417 = vst.msk [vmem:[%s4396 + $0xf1] sm:$0xff] %vm94, %v4265
  %4418 = vst.msk [vmem:[%s4396 + $0xf9] sm:$0xff] %vm94, %v4266
  %4419 = vst.msk [vmem:[%s4396 + $0x109] sm:$0xff] %vm94, %v4267
  %4420 = vst.msk [vmem:[%s4396 + $0x111] sm:$0xff] %vm94, %v4268
  %4421 = vst.msk [vmem:[%s4396 + $0x121] sm:$0xff] %vm94, %v4269
  %4422 = vst.msk [vmem:[%s4396 + $0x129] sm:$0xff] %vm94, %v4270
  %4423 = vst.msk [vmem:[%s4396 + $0x139] sm:$0xff] %vm94, %v4271
  %4424 = vst.msk [vmem:[%s4396 + $0x141] sm:$0xff] %vm94, %v4272
  %4425 = vst.msk [vmem:[%s4396 + $0x151] sm:$0xff] %vm94, %v4273
  %4426 = vst.msk [vmem:[%s4396 + $0x159] sm:$0xff] %vm94, %v4274
  %4427 = vst.msk [vmem:[%s4396 + $0x169] sm:$0xff] %vm94, %v4275
  %4428 = vst.msk [vmem:[%s4396 + $0x171] sm:$0xff] %vm94, %v4276
  %4429 = vst.msk [vmem:[%s4396 + $0x1b1] sm:$0xff] %vm94, %v4277
  %4430 = vst.msk [vmem:[%s4396 + $0x1b9] sm:$0xff] %vm94, %v4278
  %4431 = vst.msk [vmem:[%s4396 + $0x1c9] sm:$0xff] %vm94, %v4279
  %4432 = vst.msk [vmem:[%s4396 + $0x1d1] sm:$0xff] %vm94, %v4280
  %4433 = vst.msk [vmem:[%s4396 + $0x1e1] sm:$0xff] %vm94, %v4281
  %4434 = vst.msk [vmem:[%s4396 + $0x1e9] sm:$0xff] %vm94, %v4282
  %4435 = vst.msk [vmem:[%s4396 + $0x1f9] sm:$0xff] %vm94, %v4283
  %4436 = vst.msk [vmem:[%s4396 + $0x201] sm:$0xff] %vm94, %v4284
  %4437 = vst.msk [vmem:[%s4396 + $0x211] sm:$0xff] %vm94, %v4285
  %4438 = vst.msk [vmem:[%s4396 + $0x219] sm:$0xff] %vm94, %v4286
  %4439 = vst.msk [vmem:[%s4396 + $0x229] sm:$0xff] %vm94, %v4287
  %4440 = vst.msk [vmem:[%s4396 + $0x231] sm:$0xff] %vm94, %v4288
  %4441 = vst.msk [vmem:[%s4396 + $0x241] sm:$0xff] %vm94, %v4289
  %4442 = vst.msk [vmem:[%s4396 + $0x249] sm:$0xff] %vm94, %v4290
  %4443 = vst.msk [vmem:[%s4396 + $0x259] sm:$0xff] %vm94, %v4291
  %4444 = vst.msk [vmem:[%s4396 + $0x261] sm:$0xff] %vm94, %v4292
  %4445 = vst.msk [vmem:[%s4396 + $0x271] sm:$0xff] %vm94, %v4293
  %4446 = vst.msk [vmem:[%s4396 + $0x279] sm:$0xff] %vm94, %v4294
  %4447 = vst.msk [vmem:[%s4396 + $0x289] sm:$0xff] %vm94, %v4295
  %4448 = vst.msk [vmem:[%s4396 + $0x291] sm:$0xff] %vm94, %v4296
  %4449 = vst.msk [vmem:[%s4396 + $0x2a1] sm:$0xff] %vm94, %v4297
  %4450 = vst.msk [vmem:[%s4396 + $0x2a9] sm:$0xff] %vm94, %v4298
  %4451 = vst.msk [vmem:[%s4396 + $0x2b9] sm:$0xff] %vm94, %v4299
  %4452 = vst.msk [vmem:[%s4396 + $0x2c1] sm:$0xff] %vm94, %v4300
  %4453 = vst.msk [vmem:[%s4396 + $0x2d1] sm:$0xff] %vm94, %v4301
  %4454 = vst.msk [vmem:[%s4396 + $0x2d9] sm:$0xff] %vm94, %v4302
  %4455 = vst.msk [vmem:[%s4396 + $0x2e9] sm:$0xff] %vm94, %v4303
  %4456 = vst.msk [vmem:[%s4396 + $0x2f1] sm:$0xff] %vm94, %v4304
  %4457 = vst.msk [vmem:[%s4396 + $0x301] sm:$0xff] %vm94, %v4305
  %4458 = vst.msk [vmem:[%s4396 + $0x309] sm:$0xff] %vm94, %v4306
  %4459 = vst.msk [vmem:[%s4396 + $0x319] sm:$0xff] %vm94, %v4307
  %4460 = vst.msk [vmem:[%s4396 + $0x321] sm:$0xff] %vm94, %v4308
  %v4461 = vld [vmem:[#allocation3] sm:$0xff]
  %v4462 = vld [vmem:[#allocation3 + $0x8] sm:$0xff]
  %v4463 = vld [vmem:[#allocation3 + $0x18] sm:$0xff]
  %v4464 = vld [vmem:[#allocation3 + $0x20] sm:$0xff]
  %v4465 = vld [vmem:[#allocation3 + $0x30] sm:$0xff]
  %v4466 = vld [vmem:[#allocation3 + $0x38] sm:$0xff]
  %v4467 = vld [vmem:[#allocation3 + $0x48] sm:$0xff]
  %v4468 = vld [vmem:[#allocation3 + $0x50] sm:$0xff]
  %v4469 = vld [vmem:[#allocation3 + $0x60] sm:$0xff]
  %v4470 = vld [vmem:[#allocation3 + $0x68] sm:$0xff]
  %v4471 = vld [vmem:[#allocation3 + $0x78] sm:$0xff]
  %v4472 = vld [vmem:[#allocation3 + $0x80] sm:$0xff]
  %v4473 = vld [vmem:[#allocation3 + $0x90] sm:$0xff]
  %v4474 = vld [vmem:[#allocation3 + $0x98] sm:$0xff]
  %v4475 = vld [vmem:[#allocation3 + $0xa8] sm:$0xff]
  %v4476 = vld [vmem:[#allocation3 + $0xb0] sm:$0xff]
  %v4477 = vld [vmem:[#allocation3 + $0xc0] sm:$0xff]
  %v4478 = vld [vmem:[#allocation3 + $0xc8] sm:$0xff]
  %v4479 = vld [vmem:[#allocation3 + $0xd8] sm:$0xff]
  %v4480 = vld [vmem:[#allocation3 + $0xe0] sm:$0xff]
  %v4481 = vld [vmem:[#allocation3 + $0xf0] sm:$0xff]
  %v4482 = vld [vmem:[#allocation3 + $0xf8] sm:$0xff]
  %v4483 = vld [vmem:[#allocation3 + $0x108] sm:$0xff]
  %v4484 = vld [vmem:[#allocation3 + $0x110] sm:$0xff]
  %v4485 = vld [vmem:[#allocation3 + $0x120] sm:$0xff]
  %v4486 = vld [vmem:[#allocation3 + $0x128] sm:$0xff]
  %v4487 = vld [vmem:[#allocation3 + $0x138] sm:$0xff]
  %v4488 = vld [vmem:[#allocation3 + $0x140] sm:$0xff]
  %v4489 = vld [vmem:[#allocation3 + $0x150] sm:$0xff]
  %v4490 = vld [vmem:[#allocation3 + $0x158] sm:$0xff]
  %v4491 = vld [vmem:[#allocation3 + $0x168] sm:$0xff]
  %v4492 = vld [vmem:[#allocation3 + $0x170] sm:$0xff]
  %v4493 = vld [vmem:[#allocation3 + $0x1b0] sm:$0xff]
  %v4494 = vld [vmem:[#allocation3 + $0x1b8] sm:$0xff]
  %v4495 = vld [vmem:[#allocation3 + $0x1c8] sm:$0xff]
  %v4496 = vld [vmem:[#allocation3 + $0x1d0] sm:$0xff]
  %v4497 = vld [vmem:[#allocation3 + $0x1e0] sm:$0xff]
  %v4498 = vld [vmem:[#allocation3 + $0x1e8] sm:$0xff]
  %v4499 = vld [vmem:[#allocation3 + $0x1f8] sm:$0xff]
  %v4500 = vld [vmem:[#allocation3 + $0x200] sm:$0xff]
  %v4501 = vld [vmem:[#allocation3 + $0x210] sm:$0xff]
  %v4502 = vld [vmem:[#allocation3 + $0x218] sm:$0xff]
  %v4503 = vld [vmem:[#allocation3 + $0x228] sm:$0xff]
  %v4504 = vld [vmem:[#allocation3 + $0x230] sm:$0xff]
  %v4505 = vld [vmem:[#allocation3 + $0x240] sm:$0xff]
  %v4506 = vld [vmem:[#allocation3 + $0x248] sm:$0xff]
  %v4507 = vld [vmem:[#allocation3 + $0x258] sm:$0xff]
  %v4508 = vld [vmem:[#allocation3 + $0x260] sm:$0xff]
  %v4509 = vld [vmem:[#allocation3 + $0x270] sm:$0xff]
  %v4510 = vld [vmem:[#allocation3 + $0x278] sm:$0xff]
  %v4511 = vld [vmem:[#allocation3 + $0x288] sm:$0xff]
  %v4512 = vld [vmem:[#allocation3 + $0x290] sm:$0xff]
  %v4513 = vld [vmem:[#allocation3 + $0x2a0] sm:$0xff]
  %v4514 = vld [vmem:[#allocation3 + $0x2a8] sm:$0xff]
  %v4515 = vld [vmem:[#allocation3 + $0x2b8] sm:$0xff]
  %v4516 = vld [vmem:[#allocation3 + $0x2c0] sm:$0xff]
  %v4517 = vld [vmem:[#allocation3 + $0x2d0] sm:$0xff]
  %v4518 = vld [vmem:[#allocation3 + $0x2d8] sm:$0xff]
  %v4519 = vld [vmem:[#allocation3 + $0x2e8] sm:$0xff]
  %v4520 = vld [vmem:[#allocation3 + $0x2f0] sm:$0xff]
  %v4521 = vld [vmem:[#allocation3 + $0x300] sm:$0xff]
  %v4522 = vld [vmem:[#allocation3 + $0x308] sm:$0xff]
  %v4523 = vld [vmem:[#allocation3 + $0x318] sm:$0xff]
  %v4524 = vld [vmem:[#allocation3 + $0x320] sm:$0xff]
  %4525 = vst.msk [vmem:[#allocation2] sm:$0xff] %vm94, %v4461
  %4526 = vst.msk [vmem:[#allocation2 + $0x8] sm:$0xff] %vm94, %v4462
  %4527 = vst.msk [vmem:[#allocation2 + $0x10] sm:$0xff] %vm94, %v4463
  %4528 = vst.msk [vmem:[#allocation2 + $0x18] sm:$0xff] %vm94, %v4464
  %4529 = vst.msk [vmem:[#allocation2 + $0x20] sm:$0xff] %vm94, %v4465
  %4530 = vst.msk [vmem:[#allocation2 + $0x28] sm:$0xff] %vm94, %v4466
  %4531 = vst.msk [vmem:[#allocation2 + $0x30] sm:$0xff] %vm94, %v4467
  %4532 = vst.msk [vmem:[#allocation2 + $0x38] sm:$0xff] %vm94, %v4468
  %4533 = vst.msk [vmem:[#allocation2 + $0x40] sm:$0xff] %vm94, %v4469
  %4534 = vst.msk [vmem:[#allocation2 + $0x48] sm:$0xff] %vm94, %v4470
  %4535 = vst.msk [vmem:[#allocation2 + $0x50] sm:$0xff] %vm94, %v4471
  %4536 = vst.msk [vmem:[#allocation2 + $0x58] sm:$0xff] %vm94, %v4472
  %4537 = vst.msk [vmem:[#allocation2 + $0x60] sm:$0xff] %vm94, %v4473
  %4538 = vst.msk [vmem:[#allocation2 + $0x68] sm:$0xff] %vm94, %v4474
  %4539 = vst.msk [vmem:[#allocation2 + $0x70] sm:$0xff] %vm94, %v4475
  %4540 = vst.msk [vmem:[#allocation2 + $0x78] sm:$0xff] %vm94, %v4476
  %4541 = vst.msk [vmem:[#allocation2 + $0x80] sm:$0xff] %vm94, %v4477
  %4542 = vst.msk [vmem:[#allocation2 + $0x88] sm:$0xff] %vm94, %v4478
  %4543 = vst.msk [vmem:[#allocation2 + $0x90] sm:$0xff] %vm94, %v4479
  %4544 = vst.msk [vmem:[#allocation2 + $0x98] sm:$0xff] %vm94, %v4480
  %4545 = vst.msk [vmem:[#allocation2 + $0xa0] sm:$0xff] %vm94, %v4481
  %4546 = vst.msk [vmem:[#allocation2 + $0xa8] sm:$0xff] %vm94, %v4482
  %4547 = vst.msk [vmem:[#allocation2 + $0xb0] sm:$0xff] %vm94, %v4483
  %4548 = vst.msk [vmem:[#allocation2 + $0xb8] sm:$0xff] %vm94, %v4484
  %4549 = vst.msk [vmem:[#allocation2 + $0xc0] sm:$0xff] %vm94, %v4485
  %4550 = vst.msk [vmem:[#allocation2 + $0xc8] sm:$0xff] %vm94, %v4486
  %4551 = vst.msk [vmem:[#allocation2 + $0xd0] sm:$0xff] %vm94, %v4487
  %4552 = vst.msk [vmem:[#allocation2 + $0xd8] sm:$0xff] %vm94, %v4488
  %4553 = vst.msk [vmem:[#allocation2 + $0xe0] sm:$0xff] %vm94, %v4489
  %4554 = vst.msk [vmem:[#allocation2 + $0xe8] sm:$0xff] %vm94, %v4490
  %4555 = vst.msk [vmem:[#allocation2 + $0xf0] sm:$0xff] %vm94, %v4491
  %4556 = vst.msk [vmem:[#allocation2 + $0xf8] sm:$0xff] %vm94, %v4492
  %4557 = vst.msk [vmem:[#allocation2 + $0x100] sm:$0xff] %vm94, %v4493
  %4558 = vst.msk [vmem:[#allocation2 + $0x108] sm:$0xff] %vm94, %v4494
  %4559 = vst.msk [vmem:[#allocation2 + $0x110] sm:$0xff] %vm94, %v4495
  %4560 = vst.msk [vmem:[#allocation2 + $0x118] sm:$0xff] %vm94, %v4496
  %4561 = vst.msk [vmem:[#allocation2 + $0x120] sm:$0xff] %vm94, %v4497
  %4562 = vst.msk [vmem:[#allocation2 + $0x128] sm:$0xff] %vm94, %v4498
  %4563 = vst.msk [vmem:[#allocation2 + $0x130] sm:$0xff] %vm94, %v4499
  %4564 = vst.msk [vmem:[#allocation2 + $0x138] sm:$0xff] %vm94, %v4500
  %4565 = vst.msk [vmem:[#allocation2 + $0x140] sm:$0xff] %vm94, %v4501
  %4566 = vst.msk [vmem:[#allocation2 + $0x148] sm:$0xff] %vm94, %v4502
  %4567 = vst.msk [vmem:[#allocation2 + $0x150] sm:$0xff] %vm94, %v4503
  %4568 = vst.msk [vmem:[#allocation2 + $0x158] sm:$0xff] %vm94, %v4504
  %4569 = vst.msk [vmem:[#allocation2 + $0x160] sm:$0xff] %vm94, %v4505
  %4570 = vst.msk [vmem:[#allocation2 + $0x168] sm:$0xff] %vm94, %v4506
  %4571 = vst.msk [vmem:[#allocation2 + $0x170] sm:$0xff] %vm94, %v4507
  %4572 = vst.msk [vmem:[#allocation2 + $0x178] sm:$0xff] %vm94, %v4508
  %4573 = vst.msk [vmem:[#allocation2 + $0x180] sm:$0xff] %vm94, %v4509
  %4574 = vst.msk [vmem:[#allocation2 + $0x188] sm:$0xff] %vm94, %v4510
  %4575 = vst.msk [vmem:[#allocation2 + $0x190] sm:$0xff] %vm94, %v4511
  %4576 = vst.msk [vmem:[#allocation2 + $0x198] sm:$0xff] %vm94, %v4512
  %4577 = vst.msk [vmem:[#allocation2 + $0x1a0] sm:$0xff] %vm94, %v4513
  %4578 = vst.msk [vmem:[#allocation2 + $0x1a8] sm:$0xff] %vm94, %v4514
  %4579 = vst.msk [vmem:[#allocation2 + $0x1b0] sm:$0xff] %vm94, %v4515
  %4580 = vst.msk [vmem:[#allocation2 + $0x1b8] sm:$0xff] %vm94, %v4516
  %4581 = vst.msk [vmem:[#allocation2 + $0x1c0] sm:$0xff] %vm94, %v4517
  %4582 = vst.msk [vmem:[#allocation2 + $0x1c8] sm:$0xff] %vm94, %v4518
  %4583 = vst.msk [vmem:[#allocation2 + $0x1d0] sm:$0xff] %vm94, %v4519
  %4584 = vst.msk [vmem:[#allocation2 + $0x1d8] sm:$0xff] %vm94, %v4520
  %4585 = vst.msk [vmem:[#allocation2 + $0x1e0] sm:$0xff] %vm94, %v4521
  %4586 = vst.msk [vmem:[#allocation2 + $0x1e8] sm:$0xff] %vm94, %v4522
  %4587 = vst.msk [vmem:[#allocation2 + $0x1f0] sm:$0xff] %vm94, %v4523
  %4588 = vst.msk [vmem:[#allocation2 + $0x1f8] sm:$0xff] %vm94, %v4524
  %v4589 = vld [vmem:[#allocation3 + $0x1] sm:$0xff]
  %v4590 = vld [vmem:[#allocation3 + $0x9] sm:$0xff]
  %v4591 = vld [vmem:[#allocation3 + $0x19] sm:$0xff]
  %v4592 = vld [vmem:[#allocation3 + $0x21] sm:$0xff]
  %v4593 = vld [vmem:[#allocation3 + $0x31] sm:$0xff]
  %v4594 = vld [vmem:[#allocation3 + $0x39] sm:$0xff]
  %v4595 = vld [vmem:[#allocation3 + $0x49] sm:$0xff]
  %v4596 = vld [vmem:[#allocation3 + $0x51] sm:$0xff]
  %v4597 = vld [vmem:[#allocation3 + $0x61] sm:$0xff]
  %v4598 = vld [vmem:[#allocation3 + $0x69] sm:$0xff]
  %v4599 = vld [vmem:[#allocation3 + $0x79] sm:$0xff]
  %v4600 = vld [vmem:[#allocation3 + $0x81] sm:$0xff]
  %v4601 = vld [vmem:[#allocation3 + $0x91] sm:$0xff]
  %v4602 = vld [vmem:[#allocation3 + $0x99] sm:$0xff]
  %v4603 = vld [vmem:[#allocation3 + $0xa9] sm:$0xff]
  %v4604 = vld [vmem:[#allocation3 + $0xb1] sm:$0xff]
  %v4605 = vld [vmem:[#allocation3 + $0xc1] sm:$0xff]
  %v4606 = vld [vmem:[#allocation3 + $0xc9] sm:$0xff]
  %v4607 = vld [vmem:[#allocation3 + $0xd9] sm:$0xff]
  %v4608 = vld [vmem:[#allocation3 + $0xe1] sm:$0xff]
  %v4609 = vld [vmem:[#allocation3 + $0xf1] sm:$0xff]
  %v4610 = vld [vmem:[#allocation3 + $0xf9] sm:$0xff]
  %v4611 = vld [vmem:[#allocation3 + $0x109] sm:$0xff]
  %v4612 = vld [vmem:[#allocation3 + $0x111] sm:$0xff]
  %v4613 = vld [vmem:[#allocation3 + $0x121] sm:$0xff]
  %v4614 = vld [vmem:[#allocation3 + $0x129] sm:$0xff]
  %v4615 = vld [vmem:[#allocation3 + $0x139] sm:$0xff]
  %v4616 = vld [vmem:[#allocation3 + $0x141] sm:$0xff]
  %v4617 = vld [vmem:[#allocation3 + $0x151] sm:$0xff]
  %v4618 = vld [vmem:[#allocation3 + $0x159] sm:$0xff]
  %v4619 = vld [vmem:[#allocation3 + $0x169] sm:$0xff]
  %v4620 = vld [vmem:[#allocation3 + $0x171] sm:$0xff]
  %v4621 = vld [vmem:[#allocation3 + $0x1b1] sm:$0xff]
  %v4622 = vld [vmem:[#allocation3 + $0x1b9] sm:$0xff]
  %v4623 = vld [vmem:[#allocation3 + $0x1c9] sm:$0xff]
  %v4624 = vld [vmem:[#allocation3 + $0x1d1] sm:$0xff]
  %v4625 = vld [vmem:[#allocation3 + $0x1e1] sm:$0xff]
  %v4626 = vld [vmem:[#allocation3 + $0x1e9] sm:$0xff]
  %v4627 = vld [vmem:[#allocation3 + $0x1f9] sm:$0xff]
  %v4628 = vld [vmem:[#allocation3 + $0x201] sm:$0xff]
  %v4629 = vld [vmem:[#allocation3 + $0x211] sm:$0xff]
  %v4630 = vld [vmem:[#allocation3 + $0x219] sm:$0xff]
  %v4631 = vld [vmem:[#allocation3 + $0x229] sm:$0xff]
  %v4632 = vld [vmem:[#allocation3 + $0x231] sm:$0xff]
  %v4633 = vld [vmem:[#allocation3 + $0x241] sm:$0xff]
  %v4634 = vld [vmem:[#allocation3 + $0x249] sm:$0xff]
  %v4635 = vld [vmem:[#allocation3 + $0x259] sm:$0xff]
  %v4636 = vld [vmem:[#allocation3 + $0x261] sm:$0xff]
  %v4637 = vld [vmem:[#allocation3 + $0x271] sm:$0xff]
  %v4638 = vld [vmem:[#allocation3 + $0x279] sm:$0xff]
  %v4639 = vld [vmem:[#allocation3 + $0x289] sm:$0xff]
  %v4640 = vld [vmem:[#allocation3 + $0x291] sm:$0xff]
  %v4641 = vld [vmem:[#allocation3 + $0x2a1] sm:$0xff]
  %v4642 = vld [vmem:[#allocation3 + $0x2a9] sm:$0xff]
  %v4643 = vld [vmem:[#allocation3 + $0x2b9] sm:$0xff]
  %v4644 = vld [vmem:[#allocation3 + $0x2c1] sm:$0xff]
  %v4645 = vld [vmem:[#allocation3 + $0x2d1] sm:$0xff]
  %v4646 = vld [vmem:[#allocation3 + $0x2d9] sm:$0xff]
  %v4647 = vld [vmem:[#allocation3 + $0x2e9] sm:$0xff]
  %v4648 = vld [vmem:[#allocation3 + $0x2f1] sm:$0xff]
  %v4649 = vld [vmem:[#allocation3 + $0x301] sm:$0xff]
  %v4650 = vld [vmem:[#allocation3 + $0x309] sm:$0xff]
  %v4651 = vld [vmem:[#allocation3 + $0x319] sm:$0xff]
  %v4652 = vld [vmem:[#allocation3 + $0x321] sm:$0xff]
  %4717 = vrot.lane.b32.xlu0 %v4589, 8
  %v4718 = vpop.permute.xlu0 %4717
  %4719 = vrot.lane.b32.xlu0 %v4590, 8
  %v4720 = vpop.permute.xlu0 %4719
  %4721 = vrot.lane.b32.xlu0 %v4591, 8
  %v4722 = vpop.permute.xlu0 %4721
  %4723 = vrot.lane.b32.xlu0 %v4592, 8
  %v4724 = vpop.permute.xlu0 %4723
  %4725 = vrot.lane.b32.xlu0 %v4593, 8
  %v4726 = vpop.permute.xlu0 %4725
  %4727 = vrot.lane.b32.xlu0 %v4594, 8
  %v4728 = vpop.permute.xlu0 %4727
  %4729 = vrot.lane.b32.xlu0 %v4595, 8
  %v4730 = vpop.permute.xlu0 %4729
  %4731 = vrot.lane.b32.xlu0 %v4596, 8
  %v4732 = vpop.permute.xlu0 %4731
  %4733 = vrot.lane.b32.xlu0 %v4597, 8
  %v4734 = vpop.permute.xlu0 %4733
  %4735 = vrot.lane.b32.xlu0 %v4598, 8
  %v4736 = vpop.permute.xlu0 %4735
  %4737 = vrot.lane.b32.xlu0 %v4599, 8
  %v4738 = vpop.permute.xlu0 %4737
  %4739 = vrot.lane.b32.xlu0 %v4600, 8
  %v4740 = vpop.permute.xlu0 %4739
  %4741 = vrot.lane.b32.xlu0 %v4601, 8
  %v4742 = vpop.permute.xlu0 %4741
  %4743 = vrot.lane.b32.xlu0 %v4602, 8
  %v4744 = vpop.permute.xlu0 %4743
  %4745 = vrot.lane.b32.xlu0 %v4603, 8
  %v4746 = vpop.permute.xlu0 %4745
  %4747 = vrot.lane.b32.xlu0 %v4604, 8
  %v4748 = vpop.permute.xlu0 %4747
  %4749 = vrot.lane.b32.xlu0 %v4605, 8
  %v4750 = vpop.permute.xlu0 %4749
  %4751 = vrot.lane.b32.xlu0 %v4606, 8
  %v4752 = vpop.permute.xlu0 %4751
  %4753 = vrot.lane.b32.xlu0 %v4607, 8
  %v4754 = vpop.permute.xlu0 %4753
  %4755 = vrot.lane.b32.xlu0 %v4608, 8
  %v4756 = vpop.permute.xlu0 %4755
  %4757 = vrot.lane.b32.xlu0 %v4609, 8
  %v4758 = vpop.permute.xlu0 %4757
  %4759 = vrot.lane.b32.xlu0 %v4610, 8
  %v4760 = vpop.permute.xlu0 %4759
  %4761 = vrot.lane.b32.xlu0 %v4611, 8
  %v4762 = vpop.permute.xlu0 %4761
  %4763 = vrot.lane.b32.xlu0 %v4612, 8
  %v4764 = vpop.permute.xlu0 %4763
  %4765 = vrot.lane.b32.xlu0 %v4613, 8
  %v4766 = vpop.permute.xlu0 %4765
  %4767 = vrot.lane.b32.xlu0 %v4614, 8
  %v4768 = vpop.permute.xlu0 %4767
  %4769 = vrot.lane.b32.xlu0 %v4615, 8
  %v4770 = vpop.permute.xlu0 %4769
  %4771 = vrot.lane.b32.xlu0 %v4616, 8
  %v4772 = vpop.permute.xlu0 %4771
  %4773 = vrot.lane.b32.xlu0 %v4617, 8
  %v4774 = vpop.permute.xlu0 %4773
  %4775 = vrot.lane.b32.xlu0 %v4618, 8
  %v4776 = vpop.permute.xlu0 %4775
  %4777 = vrot.lane.b32.xlu0 %v4619, 8
  %v4778 = vpop.permute.xlu0 %4777
  %4779 = vrot.lane.b32.xlu0 %v4620, 8
  %v4780 = vpop.permute.xlu0 %4779
  %4781 = vrot.lane.b32.xlu0 %v4621, 8
  %v4782 = vpop.permute.xlu0 %4781
  %4783 = vrot.lane.b32.xlu0 %v4622, 8
  %v4784 = vpop.permute.xlu0 %4783
  %4785 = vrot.lane.b32.xlu0 %v4623, 8
  %v4786 = vpop.permute.xlu0 %4785
  %4787 = vrot.lane.b32.xlu0 %v4624, 8
  %v4788 = vpop.permute.xlu0 %4787
  %4789 = vrot.lane.b32.xlu0 %v4625, 8
  %v4790 = vpop.permute.xlu0 %4789
  %4791 = vrot.lane.b32.xlu0 %v4626, 8
  %v4792 = vpop.permute.xlu0 %4791
  %4793 = vrot.lane.b32.xlu0 %v4627, 8
  %v4794 = vpop.permute.xlu0 %4793
  %4795 = vrot.lane.b32.xlu0 %v4628, 8
  %v4796 = vpop.permute.xlu0 %4795
  %4797 = vrot.lane.b32.xlu0 %v4629, 8
  %v4798 = vpop.permute.xlu0 %4797
  %4799 = vrot.lane.b32.xlu0 %v4630, 8
  %v4800 = vpop.permute.xlu0 %4799
  %4801 = vrot.lane.b32.xlu0 %v4631, 8
  %v4802 = vpop.permute.xlu0 %4801
  %4803 = vrot.lane.b32.xlu0 %v4632, 8
  %v4804 = vpop.permute.xlu0 %4803
  %4805 = vrot.lane.b32.xlu0 %v4633, 8
  %v4806 = vpop.permute.xlu0 %4805
  %4807 = vrot.lane.b32.xlu0 %v4634, 8
  %v4808 = vpop.permute.xlu0 %4807
  %4809 = vrot.lane.b32.xlu0 %v4635, 8
  %v4810 = vpop.permute.xlu0 %4809
  %4811 = vrot.lane.b32.xlu0 %v4636, 8
  %v4812 = vpop.permute.xlu0 %4811
  %4813 = vrot.lane.b32.xlu0 %v4637, 8
  %v4814 = vpop.permute.xlu0 %4813
  %4815 = vrot.lane.b32.xlu0 %v4638, 8
  %v4816 = vpop.permute.xlu0 %4815
  %4817 = vrot.lane.b32.xlu0 %v4639, 8
  %v4818 = vpop.permute.xlu0 %4817
  %4819 = vrot.lane.b32.xlu0 %v4640, 8
  %v4820 = vpop.permute.xlu0 %4819
  %4821 = vrot.lane.b32.xlu0 %v4641, 8
  %v4822 = vpop.permute.xlu0 %4821
  %4823 = vrot.lane.b32.xlu0 %v4642, 8
  %v4824 = vpop.permute.xlu0 %4823
  %4825 = vrot.lane.b32.xlu0 %v4643, 8
  %v4826 = vpop.permute.xlu0 %4825
  %4827 = vrot.lane.b32.xlu0 %v4644, 8
  %v4828 = vpop.permute.xlu0 %4827
  %4829 = vrot.lane.b32.xlu0 %v4645, 8
  %v4830 = vpop.permute.xlu0 %4829
  %4831 = vrot.lane.b32.xlu0 %v4646, 8
  %v4832 = vpop.permute.xlu0 %4831
  %4833 = vrot.lane.b32.xlu0 %v4647, 8
  %v4834 = vpop.permute.xlu0 %4833
  %4835 = vrot.lane.b32.xlu0 %v4648, 8
  %v4836 = vpop.permute.xlu0 %4835
  %4837 = vrot.lane.b32.xlu0 %v4649, 8
  %v4838 = vpop.permute.xlu0 %4837
  %4839 = vrot.lane.b32.xlu0 %v4650, 8
  %v4840 = vpop.permute.xlu0 %4839
  %4841 = vrot.lane.b32.xlu0 %v4651, 8
  %v4842 = vpop.permute.xlu0 %4841
  %4843 = vrot.lane.b32.xlu0 %v4652, 8
  %v4844 = vpop.permute.xlu0 %4843
  %4909 = vst.msk [vmem:[#allocation2] sm:$0xff] %vm479, %v4718
  %4910 = vst.msk [vmem:[#allocation2 + $0x8] sm:$0xff] %vm479, %v4720
  %4911 = vst.msk [vmem:[#allocation2 + $0x10] sm:$0xff] %vm479, %v4722
  %4912 = vst.msk [vmem:[#allocation2 + $0x18] sm:$0xff] %vm479, %v4724
  %4913 = vst.msk [vmem:[#allocation2 + $0x20] sm:$0xff] %vm479, %v4726
  %4914 = vst.msk [vmem:[#allocation2 + $0x28] sm:$0xff] %vm479, %v4728
  %4915 = vst.msk [vmem:[#allocation2 + $0x30] sm:$0xff] %vm479, %v4730
  %4916 = vst.msk [vmem:[#allocation2 + $0x38] sm:$0xff] %vm479, %v4732
  %4917 = vst.msk [vmem:[#allocation2 + $0x40] sm:$0xff] %vm479, %v4734
  %4918 = vst.msk [vmem:[#allocation2 + $0x48] sm:$0xff] %vm479, %v4736
  %4919 = vst.msk [vmem:[#allocation2 + $0x50] sm:$0xff] %vm479, %v4738
  %4920 = vst.msk [vmem:[#allocation2 + $0x58] sm:$0xff] %vm479, %v4740
  %4921 = vst.msk [vmem:[#allocation2 + $0x60] sm:$0xff] %vm479, %v4742
  %4922 = vst.msk [vmem:[#allocation2 + $0x68] sm:$0xff] %vm479, %v4744
  %4923 = vst.msk [vmem:[#allocation2 + $0x70] sm:$0xff] %vm479, %v4746
  %4924 = vst.msk [vmem:[#allocation2 + $0x78] sm:$0xff] %vm479, %v4748
  %4925 = vst.msk [vmem:[#allocation2 + $0x80] sm:$0xff] %vm479, %v4750
  %4926 = vst.msk [vmem:[#allocation2 + $0x88] sm:$0xff] %vm479, %v4752
  %4927 = vst.msk [vmem:[#allocation2 + $0x90] sm:$0xff] %vm479, %v4754
  %4928 = vst.msk [vmem:[#allocation2 + $0x98] sm:$0xff] %vm479, %v4756
  %4929 = vst.msk [vmem:[#allocation2 + $0xa0] sm:$0xff] %vm479, %v4758
  %4930 = vst.msk [vmem:[#allocation2 + $0xa8] sm:$0xff] %vm479, %v4760
  %4931 = vst.msk [vmem:[#allocation2 + $0xb0] sm:$0xff] %vm479, %v4762
  %4932 = vst.msk [vmem:[#allocation2 + $0xb8] sm:$0xff] %vm479, %v4764
  %4933 = vst.msk [vmem:[#allocation2 + $0xc0] sm:$0xff] %vm479, %v4766
  %4934 = vst.msk [vmem:[#allocation2 + $0xc8] sm:$0xff] %vm479, %v4768
  %4935 = vst.msk [vmem:[#allocation2 + $0xd0] sm:$0xff] %vm479, %v4770
  %4936 = vst.msk [vmem:[#allocation2 + $0xd8] sm:$0xff] %vm479, %v4772
  %4937 = vst.msk [vmem:[#allocation2 + $0xe0] sm:$0xff] %vm479, %v4774
  %4938 = vst.msk [vmem:[#allocation2 + $0xe8] sm:$0xff] %vm479, %v4776
  %4939 = vst.msk [vmem:[#allocation2 + $0xf0] sm:$0xff] %vm479, %v4778
  %4940 = vst.msk [vmem:[#allocation2 + $0xf8] sm:$0xff] %vm479, %v4780
  %4941 = vst.msk [vmem:[#allocation2 + $0x100] sm:$0xff] %vm479, %v4782
  %4942 = vst.msk [vmem:[#allocation2 + $0x108] sm:$0xff] %vm479, %v4784
  %4943 = vst.msk [vmem:[#allocation2 + $0x110] sm:$0xff] %vm479, %v4786
  %4944 = vst.msk [vmem:[#allocation2 + $0x118] sm:$0xff] %vm479, %v4788
  %4945 = vst.msk [vmem:[#allocation2 + $0x120] sm:$0xff] %vm479, %v4790
  %4946 = vst.msk [vmem:[#allocation2 + $0x128] sm:$0xff] %vm479, %v4792
  %4947 = vst.msk [vmem:[#allocation2 + $0x130] sm:$0xff] %vm479, %v4794
  %4948 = vst.msk [vmem:[#allocation2 + $0x138] sm:$0xff] %vm479, %v4796
  %4949 = vst.msk [vmem:[#allocation2 + $0x140] sm:$0xff] %vm479, %v4798
  %4950 = vst.msk [vmem:[#allocation2 + $0x148] sm:$0xff] %vm479, %v4800
  %4951 = vst.msk [vmem:[#allocation2 + $0x150] sm:$0xff] %vm479, %v4802
  %4952 = vst.msk [vmem:[#allocation2 + $0x158] sm:$0xff] %vm479, %v4804
  %4953 = vst.msk [vmem:[#allocation2 + $0x160] sm:$0xff] %vm479, %v4806
  %4954 = vst.msk [vmem:[#allocation2 + $0x168] sm:$0xff] %vm479, %v4808
  %4955 = vst.msk [vmem:[#allocation2 + $0x170] sm:$0xff] %vm479, %v4810
  %4956 = vst.msk [vmem:[#allocation2 + $0x178] sm:$0xff] %vm479, %v4812
  %4957 = vst.msk [vmem:[#allocation2 + $0x180] sm:$0xff] %vm479, %v4814
  %4958 = vst.msk [vmem:[#allocation2 + $0x188] sm:$0xff] %vm479, %v4816
  %4959 = vst.msk [vmem:[#allocation2 + $0x190] sm:$0xff] %vm479, %v4818
  %4960 = vst.msk [vmem:[#allocation2 + $0x198] sm:$0xff] %vm479, %v4820
  %4961 = vst.msk [vmem:[#allocation2 + $0x1a0] sm:$0xff] %vm479, %v4822
  %4962 = vst.msk [vmem:[#allocation2 + $0x1a8] sm:$0xff] %vm479, %v4824
  %4963 = vst.msk [vmem:[#allocation2 + $0x1b0] sm:$0xff] %vm479, %v4826
  %4964 = vst.msk [vmem:[#allocation2 + $0x1b8] sm:$0xff] %vm479, %v4828
  %4965 = vst.msk [vmem:[#allocation2 + $0x1c0] sm:$0xff] %vm479, %v4830
  %4966 = vst.msk [vmem:[#allocation2 + $0x1c8] sm:$0xff] %vm479, %v4832
  %4967 = vst.msk [vmem:[#allocation2 + $0x1d0] sm:$0xff] %vm479, %v4834
  %4968 = vst.msk [vmem:[#allocation2 + $0x1d8] sm:$0xff] %vm479, %v4836
  %4969 = vst.msk [vmem:[#allocation2 + $0x1e0] sm:$0xff] %vm479, %v4838
  %4970 = vst.msk [vmem:[#allocation2 + $0x1e8] sm:$0xff] %vm479, %v4840
  %4971 = vst.msk [vmem:[#allocation2 + $0x1f0] sm:$0xff] %vm479, %v4842
  %4972 = vst.msk [vmem:[#allocation2 + $0x1f8] sm:$0xff] %vm479, %v4844
  %v4973 = vld [vmem:[#allocation3 + $0x2] sm:$0xff]
  %v4974 = vld [vmem:[#allocation3 + $0xa] sm:$0xff]
  %v4975 = vld [vmem:[#allocation3 + $0x1a] sm:$0xff]
  %v4976 = vld [vmem:[#allocation3 + $0x22] sm:$0xff]
  %v4977 = vld [vmem:[#allocation3 + $0x32] sm:$0xff]
  %v4978 = vld [vmem:[#allocation3 + $0x3a] sm:$0xff]
  %v4979 = vld [vmem:[#allocation3 + $0x4a] sm:$0xff]
  %v4980 = vld [vmem:[#allocation3 + $0x52] sm:$0xff]
  %v4981 = vld [vmem:[#allocation3 + $0x62] sm:$0xff]
  %v4982 = vld [vmem:[#allocation3 + $0x6a] sm:$0xff]
  %v4983 = vld [vmem:[#allocation3 + $0x7a] sm:$0xff]
  %v4984 = vld [vmem:[#allocation3 + $0x82] sm:$0xff]
  %v4985 = vld [vmem:[#allocation3 + $0x92] sm:$0xff]
  %v4986 = vld [vmem:[#allocation3 + $0x9a] sm:$0xff]
  %v4987 = vld [vmem:[#allocation3 + $0xaa] sm:$0xff]
  %v4988 = vld [vmem:[#allocation3 + $0xb2] sm:$0xff]
  %v4989 = vld [vmem:[#allocation3 + $0xc2] sm:$0xff]
  %v4990 = vld [vmem:[#allocation3 + $0xca] sm:$0xff]
  %v4991 = vld [vmem:[#allocation3 + $0xda] sm:$0xff]
  %v4992 = vld [vmem:[#allocation3 + $0xe2] sm:$0xff]
  %v4993 = vld [vmem:[#allocation3 + $0xf2] sm:$0xff]
  %v4994 = vld [vmem:[#allocation3 + $0xfa] sm:$0xff]
  %v4995 = vld [vmem:[#allocation3 + $0x10a] sm:$0xff]
  %v4996 = vld [vmem:[#allocation3 + $0x112] sm:$0xff]
  %v4997 = vld [vmem:[#allocation3 + $0x122] sm:$0xff]
  %v4998 = vld [vmem:[#allocation3 + $0x12a] sm:$0xff]
  %v4999 = vld [vmem:[#allocation3 + $0x13a] sm:$0xff]
  %v5000 = vld [vmem:[#allocation3 + $0x142] sm:$0xff]
  %v5001 = vld [vmem:[#allocation3 + $0x152] sm:$0xff]
  %v5002 = vld [vmem:[#allocation3 + $0x15a] sm:$0xff]
  %v5003 = vld [vmem:[#allocation3 + $0x16a] sm:$0xff]
  %v5004 = vld [vmem:[#allocation3 + $0x172] sm:$0xff]
  %v5005 = vld [vmem:[#allocation3 + $0x1b2] sm:$0xff]
  %v5006 = vld [vmem:[#allocation3 + $0x1ba] sm:$0xff]
  %v5007 = vld [vmem:[#allocation3 + $0x1ca] sm:$0xff]
  %v5008 = vld [vmem:[#allocation3 + $0x1d2] sm:$0xff]
  %v5009 = vld [vmem:[#allocation3 + $0x1e2] sm:$0xff]
  %v5010 = vld [vmem:[#allocation3 + $0x1ea] sm:$0xff]
  %v5011 = vld [vmem:[#allocation3 + $0x1fa] sm:$0xff]
  %v5012 = vld [vmem:[#allocation3 + $0x202] sm:$0xff]
  %v5013 = vld [vmem:[#allocation3 + $0x212] sm:$0xff]
  %v5014 = vld [vmem:[#allocation3 + $0x21a] sm:$0xff]
  %v5015 = vld [vmem:[#allocation3 + $0x22a] sm:$0xff]
  %v5016 = vld [vmem:[#allocation3 + $0x232] sm:$0xff]
  %v5017 = vld [vmem:[#allocation3 + $0x242] sm:$0xff]
  %v5018 = vld [vmem:[#allocation3 + $0x24a] sm:$0xff]
  %v5019 = vld [vmem:[#allocation3 + $0x25a] sm:$0xff]
  %v5020 = vld [vmem:[#allocation3 + $0x262] sm:$0xff]
  %v5021 = vld [vmem:[#allocation3 + $0x272] sm:$0xff]
  %v5022 = vld [vmem:[#allocation3 + $0x27a] sm:$0xff]
  %v5023 = vld [vmem:[#allocation3 + $0x28a] sm:$0xff]
  %v5024 = vld [vmem:[#allocation3 + $0x292] sm:$0xff]
  %v5025 = vld [vmem:[#allocation3 + $0x2a2] sm:$0xff]
  %v5026 = vld [vmem:[#allocation3 + $0x2aa] sm:$0xff]
  %v5027 = vld [vmem:[#allocation3 + $0x2ba] sm:$0xff]
  %v5028 = vld [vmem:[#allocation3 + $0x2c2] sm:$0xff]
  %v5029 = vld [vmem:[#allocation3 + $0x2d2] sm:$0xff]
  %v5030 = vld [vmem:[#allocation3 + $0x2da] sm:$0xff]
  %v5031 = vld [vmem:[#allocation3 + $0x2ea] sm:$0xff]
  %v5032 = vld [vmem:[#allocation3 + $0x2f2] sm:$0xff]
  %v5033 = vld [vmem:[#allocation3 + $0x302] sm:$0xff]
  %v5034 = vld [vmem:[#allocation3 + $0x30a] sm:$0xff]
  %v5035 = vld [vmem:[#allocation3 + $0x31a] sm:$0xff]
  %v5036 = vld [vmem:[#allocation3 + $0x322] sm:$0xff]
  %5101 = vrot.lane.b32.xlu0 %v4973, 16
  %v5102 = vpop.permute.xlu0 %5101
  %5103 = vrot.lane.b32.xlu0 %v4974, 16
  %v5104 = vpop.permute.xlu0 %5103
  %5105 = vrot.lane.b32.xlu0 %v4975, 16
  %v5106 = vpop.permute.xlu0 %5105
  %5107 = vrot.lane.b32.xlu0 %v4976, 16
  %v5108 = vpop.permute.xlu0 %5107
  %5109 = vrot.lane.b32.xlu0 %v4977, 16
  %v5110 = vpop.permute.xlu0 %5109
  %5111 = vrot.lane.b32.xlu0 %v4978, 16
  %v5112 = vpop.permute.xlu0 %5111
  %5113 = vrot.lane.b32.xlu0 %v4979, 16
  %v5114 = vpop.permute.xlu0 %5113
  %5115 = vrot.lane.b32.xlu0 %v4980, 16
  %v5116 = vpop.permute.xlu0 %5115
  %5117 = vrot.lane.b32.xlu0 %v4981, 16
  %v5118 = vpop.permute.xlu0 %5117
  %5119 = vrot.lane.b32.xlu0 %v4982, 16
  %v5120 = vpop.permute.xlu0 %5119
  %5121 = vrot.lane.b32.xlu0 %v4983, 16
  %v5122 = vpop.permute.xlu0 %5121
  %5123 = vrot.lane.b32.xlu0 %v4984, 16
  %v5124 = vpop.permute.xlu0 %5123
  %5125 = vrot.lane.b32.xlu0 %v4985, 16
  %v5126 = vpop.permute.xlu0 %5125
  %5127 = vrot.lane.b32.xlu0 %v4986, 16
  %v5128 = vpop.permute.xlu0 %5127
  %5129 = vrot.lane.b32.xlu0 %v4987, 16
  %v5130 = vpop.permute.xlu0 %5129
  %5131 = vrot.lane.b32.xlu0 %v4988, 16
  %v5132 = vpop.permute.xlu0 %5131
  %5133 = vrot.lane.b32.xlu0 %v4989, 16
  %v5134 = vpop.permute.xlu0 %5133
  %5135 = vrot.lane.b32.xlu0 %v4990, 16
  %v5136 = vpop.permute.xlu0 %5135
  %5137 = vrot.lane.b32.xlu0 %v4991, 16
  %v5138 = vpop.permute.xlu0 %5137
  %5139 = vrot.lane.b32.xlu0 %v4992, 16
  %v5140 = vpop.permute.xlu0 %5139
  %5141 = vrot.lane.b32.xlu0 %v4993, 16
  %v5142 = vpop.permute.xlu0 %5141
  %5143 = vrot.lane.b32.xlu0 %v4994, 16
  %v5144 = vpop.permute.xlu0 %5143
  %5145 = vrot.lane.b32.xlu0 %v4995, 16
  %v5146 = vpop.permute.xlu0 %5145
  %5147 = vrot.lane.b32.xlu0 %v4996, 16
  %v5148 = vpop.permute.xlu0 %5147
  %5149 = vrot.lane.b32.xlu0 %v4997, 16
  %v5150 = vpop.permute.xlu0 %5149
  %5151 = vrot.lane.b32.xlu0 %v4998, 16
  %v5152 = vpop.permute.xlu0 %5151
  %5153 = vrot.lane.b32.xlu0 %v4999, 16
  %v5154 = vpop.permute.xlu0 %5153
  %5155 = vrot.lane.b32.xlu0 %v5000, 16
  %v5156 = vpop.permute.xlu0 %5155
  %5157 = vrot.lane.b32.xlu0 %v5001, 16
  %v5158 = vpop.permute.xlu0 %5157
  %5159 = vrot.lane.b32.xlu0 %v5002, 16
  %v5160 = vpop.permute.xlu0 %5159
  %5161 = vrot.lane.b32.xlu0 %v5003, 16
  %v5162 = vpop.permute.xlu0 %5161
  %5163 = vrot.lane.b32.xlu0 %v5004, 16
  %v5164 = vpop.permute.xlu0 %5163
  %5165 = vrot.lane.b32.xlu0 %v5005, 16
  %v5166 = vpop.permute.xlu0 %5165
  %5167 = vrot.lane.b32.xlu0 %v5006, 16
  %v5168 = vpop.permute.xlu0 %5167
  %5169 = vrot.lane.b32.xlu0 %v5007, 16
  %v5170 = vpop.permute.xlu0 %5169
  %5171 = vrot.lane.b32.xlu0 %v5008, 16
  %v5172 = vpop.permute.xlu0 %5171
  %5173 = vrot.lane.b32.xlu0 %v5009, 16
  %v5174 = vpop.permute.xlu0 %5173
  %5175 = vrot.lane.b32.xlu0 %v5010, 16
  %v5176 = vpop.permute.xlu0 %5175
  %5177 = vrot.lane.b32.xlu0 %v5011, 16
  %v5178 = vpop.permute.xlu0 %5177
  %5179 = vrot.lane.b32.xlu0 %v5012, 16
  %v5180 = vpop.permute.xlu0 %5179
  %5181 = vrot.lane.b32.xlu0 %v5013, 16
  %v5182 = vpop.permute.xlu0 %5181
  %5183 = vrot.lane.b32.xlu0 %v5014, 16
  %v5184 = vpop.permute.xlu0 %5183
  %5185 = vrot.lane.b32.xlu0 %v5015, 16
  %v5186 = vpop.permute.xlu0 %5185
  %5187 = vrot.lane.b32.xlu0 %v5016, 16
  %v5188 = vpop.permute.xlu0 %5187
  %5189 = vrot.lane.b32.xlu0 %v5017, 16
  %v5190 = vpop.permute.xlu0 %5189
  %5191 = vrot.lane.b32.xlu0 %v5018, 16
  %v5192 = vpop.permute.xlu0 %5191
  %5193 = vrot.lane.b32.xlu0 %v5019, 16
  %v5194 = vpop.permute.xlu0 %5193
  %5195 = vrot.lane.b32.xlu0 %v5020, 16
  %v5196 = vpop.permute.xlu0 %5195
  %5197 = vrot.lane.b32.xlu0 %v5021, 16
  %v5198 = vpop.permute.xlu0 %5197
  %5199 = vrot.lane.b32.xlu0 %v5022, 16
  %v5200 = vpop.permute.xlu0 %5199
  %5201 = vrot.lane.b32.xlu0 %v5023, 16
  %v5202 = vpop.permute.xlu0 %5201
  %5203 = vrot.lane.b32.xlu0 %v5024, 16
  %v5204 = vpop.permute.xlu0 %5203
  %5205 = vrot.lane.b32.xlu0 %v5025, 16
  %v5206 = vpop.permute.xlu0 %5205
  %5207 = vrot.lane.b32.xlu0 %v5026, 16
  %v5208 = vpop.permute.xlu0 %5207
  %5209 = vrot.lane.b32.xlu0 %v5027, 16
  %v5210 = vpop.permute.xlu0 %5209
  %5211 = vrot.lane.b32.xlu0 %v5028, 16
  %v5212 = vpop.permute.xlu0 %5211
  %5213 = vrot.lane.b32.xlu0 %v5029, 16
  %v5214 = vpop.permute.xlu0 %5213
  %5215 = vrot.lane.b32.xlu0 %v5030, 16
  %v5216 = vpop.permute.xlu0 %5215
  %5217 = vrot.lane.b32.xlu0 %v5031, 16
  %v5218 = vpop.permute.xlu0 %5217
  %5219 = vrot.lane.b32.xlu0 %v5032, 16
  %v5220 = vpop.permute.xlu0 %5219
  %5221 = vrot.lane.b32.xlu0 %v5033, 16
  %v5222 = vpop.permute.xlu0 %5221
  %5223 = vrot.lane.b32.xlu0 %v5034, 16
  %v5224 = vpop.permute.xlu0 %5223
  %5225 = vrot.lane.b32.xlu0 %v5035, 16
  %v5226 = vpop.permute.xlu0 %5225
  %5227 = vrot.lane.b32.xlu0 %v5036, 16
  %v5228 = vpop.permute.xlu0 %5227
  %5293 = vst.msk [vmem:[#allocation2] sm:$0xff] %vm864, %v5102
  %5294 = vst.msk [vmem:[#allocation2 + $0x8] sm:$0xff] %vm864, %v5104
  %5295 = vst.msk [vmem:[#allocation2 + $0x10] sm:$0xff] %vm864, %v5106
  %5296 = vst.msk [vmem:[#allocation2 + $0x18] sm:$0xff] %vm864, %v5108
  %5297 = vst.msk [vmem:[#allocation2 + $0x20] sm:$0xff] %vm864, %v5110
  %5298 = vst.msk [vmem:[#allocation2 + $0x28] sm:$0xff] %vm864, %v5112
  %5299 = vst.msk [vmem:[#allocation2 + $0x30] sm:$0xff] %vm864, %v5114
  %5300 = vst.msk [vmem:[#allocation2 + $0x38] sm:$0xff] %vm864, %v5116
  %5301 = vst.msk [vmem:[#allocation2 + $0x40] sm:$0xff] %vm864, %v5118
  %5302 = vst.msk [vmem:[#allocation2 + $0x48] sm:$0xff] %vm864, %v5120
  %5303 = vst.msk [vmem:[#allocation2 + $0x50] sm:$0xff] %vm864, %v5122
  %5304 = vst.msk [vmem:[#allocation2 + $0x58] sm:$0xff] %vm864, %v5124
  %5305 = vst.msk [vmem:[#allocation2 + $0x60] sm:$0xff] %vm864, %v5126
  %5306 = vst.msk [vmem:[#allocation2 + $0x68] sm:$0xff] %vm864, %v5128
  %5307 = vst.msk [vmem:[#allocation2 + $0x70] sm:$0xff] %vm864, %v5130
  %5308 = vst.msk [vmem:[#allocation2 + $0x78] sm:$0xff] %vm864, %v5132
  %5309 = vst.msk [vmem:[#allocation2 + $0x80] sm:$0xff] %vm864, %v5134
  %5310 = vst.msk [vmem:[#allocation2 + $0x88] sm:$0xff] %vm864, %v5136
  %5311 = vst.msk [vmem:[#allocation2 + $0x90] sm:$0xff] %vm864, %v5138
  %5312 = vst.msk [vmem:[#allocation2 + $0x98] sm:$0xff] %vm864, %v5140
  %5313 = vst.msk [vmem:[#allocation2 + $0xa0] sm:$0xff] %vm864, %v5142
  %5314 = vst.msk [vmem:[#allocation2 + $0xa8] sm:$0xff] %vm864, %v5144
  %5315 = vst.msk [vmem:[#allocation2 + $0xb0] sm:$0xff] %vm864, %v5146
  %5316 = vst.msk [vmem:[#allocation2 + $0xb8] sm:$0xff] %vm864, %v5148
  %5317 = vst.msk [vmem:[#allocation2 + $0xc0] sm:$0xff] %vm864, %v5150
  %5318 = vst.msk [vmem:[#allocation2 + $0xc8] sm:$0xff] %vm864, %v5152
  %5319 = vst.msk [vmem:[#allocation2 + $0xd0] sm:$0xff] %vm864, %v5154
  %5320 = vst.msk [vmem:[#allocation2 + $0xd8] sm:$0xff] %vm864, %v5156
  %5321 = vst.msk [vmem:[#allocation2 + $0xe0] sm:$0xff] %vm864, %v5158
  %5322 = vst.msk [vmem:[#allocation2 + $0xe8] sm:$0xff] %vm864, %v5160
  %5323 = vst.msk [vmem:[#allocation2 + $0xf0] sm:$0xff] %vm864, %v5162
  %5324 = vst.msk [vmem:[#allocation2 + $0xf8] sm:$0xff] %vm864, %v5164
  %5325 = vst.msk [vmem:[#allocation2 + $0x100] sm:$0xff] %vm864, %v5166
  %5326 = vst.msk [vmem:[#allocation2 + $0x108] sm:$0xff] %vm864, %v5168
  %5327 = vst.msk [vmem:[#allocation2 + $0x110] sm:$0xff] %vm864, %v5170
  %5328 = vst.msk [vmem:[#allocation2 + $0x118] sm:$0xff] %vm864, %v5172
  %5329 = vst.msk [vmem:[#allocation2 + $0x120] sm:$0xff] %vm864, %v5174
  %5330 = vst.msk [vmem:[#allocation2 + $0x128] sm:$0xff] %vm864, %v5176
  %5331 = vst.msk [vmem:[#allocation2 + $0x130] sm:$0xff] %vm864, %v5178
  %5332 = vst.msk [vmem:[#allocation2 + $0x138] sm:$0xff] %vm864, %v5180
  %5333 = vst.msk [vmem:[#allocation2 + $0x140] sm:$0xff] %vm864, %v5182
  %5334 = vst.msk [vmem:[#allocation2 + $0x148] sm:$0xff] %vm864, %v5184
  %5335 = vst.msk [vmem:[#allocation2 + $0x150] sm:$0xff] %vm864, %v5186
  %5336 = vst.msk [vmem:[#allocation2 + $0x158] sm:$0xff] %vm864, %v5188
  %5337 = vst.msk [vmem:[#allocation2 + $0x160] sm:$0xff] %vm864, %v5190
  %5338 = vst.msk [vmem:[#allocation2 + $0x168] sm:$0xff] %vm864, %v5192
  %5339 = vst.msk [vmem:[#allocation2 + $0x170] sm:$0xff] %vm864, %v5194
  %5340 = vst.msk [vmem:[#allocation2 + $0x178] sm:$0xff] %vm864, %v5196
  %5341 = vst.msk [vmem:[#allocation2 + $0x180] sm:$0xff] %vm864, %v5198
  %5342 = vst.msk [vmem:[#allocation2 + $0x188] sm:$0xff] %vm864, %v5200
  %5343 = vst.msk [vmem:[#allocation2 + $0x190] sm:$0xff] %vm864, %v5202
  %5344 = vst.msk [vmem:[#allocation2 + $0x198] sm:$0xff] %vm864, %v5204
  %5345 = vst.msk [vmem:[#allocation2 + $0x1a0] sm:$0xff] %vm864, %v5206
  %5346 = vst.msk [vmem:[#allocation2 + $0x1a8] sm:$0xff] %vm864, %v5208
  %5347 = vst.msk [vmem:[#allocation2 + $0x1b0] sm:$0xff] %vm864, %v5210
  %5348 = vst.msk [vmem:[#allocation2 + $0x1b8] sm:$0xff] %vm864, %v5212
  %5349 = vst.msk [vmem:[#allocation2 + $0x1c0] sm:$0xff] %vm864, %v5214
  %5350 = vst.msk [vmem:[#allocation2 + $0x1c8] sm:$0xff] %vm864, %v5216
  %5351 = vst.msk [vmem:[#allocation2 + $0x1d0] sm:$0xff] %vm864, %v5218
  %5352 = vst.msk [vmem:[#allocation2 + $0x1d8] sm:$0xff] %vm864, %v5220
  %5353 = vst.msk [vmem:[#allocation2 + $0x1e0] sm:$0xff] %vm864, %v5222
  %5354 = vst.msk [vmem:[#allocation2 + $0x1e8] sm:$0xff] %vm864, %v5224
  %5355 = vst.msk [vmem:[#allocation2 + $0x1f0] sm:$0xff] %vm864, %v5226
  %5356 = vst.msk [vmem:[#allocation2 + $0x1f8] sm:$0xff] %vm864, %v5228
  %v5357 = vld [vmem:[%s4396] sm:$0xff]
  %v5358 = vld [vmem:[%s4396 + $0x8] sm:$0xff]
  %v5359 = vld [vmem:[%s4396 + $0x18] sm:$0xff]
  %v5360 = vld [vmem:[%s4396 + $0x20] sm:$0xff]
  %v5361 = vld [vmem:[%s4396 + $0x30] sm:$0xff]
  %v5362 = vld [vmem:[%s4396 + $0x38] sm:$0xff]
  %v5363 = vld [vmem:[%s4396 + $0x48] sm:$0xff]
  %v5364 = vld [vmem:[%s4396 + $0x50] sm:$0xff]
  %v5365 = vld [vmem:[%s4396 + $0x60] sm:$0xff]
  %v5366 = vld [vmem:[%s4396 + $0x68] sm:$0xff]
  %v5367 = vld [vmem:[%s4396 + $0x78] sm:$0xff]
  %v5368 = vld [vmem:[%s4396 + $0x80] sm:$0xff]
  %v5369 = vld [vmem:[%s4396 + $0x90] sm:$0xff]
  %v5370 = vld [vmem:[%s4396 + $0x98] sm:$0xff]
  %v5371 = vld [vmem:[%s4396 + $0xa8] sm:$0xff]
  %v5372 = vld [vmem:[%s4396 + $0xb0] sm:$0xff]
  %v5373 = vld [vmem:[%s4396 + $0xc0] sm:$0xff]
  %v5374 = vld [vmem:[%s4396 + $0xc8] sm:$0xff]
  %v5375 = vld [vmem:[%s4396 + $0xd8] sm:$0xff]
  %v5376 = vld [vmem:[%s4396 + $0xe0] sm:$0xff]
  %v5377 = vld [vmem:[%s4396 + $0xf0] sm:$0xff]
  %v5378 = vld [vmem:[%s4396 + $0xf8] sm:$0xff]
  %v5379 = vld [vmem:[%s4396 + $0x108] sm:$0xff]
  %v5380 = vld [vmem:[%s4396 + $0x110] sm:$0xff]
  %v5381 = vld [vmem:[%s4396 + $0x120] sm:$0xff]
  %v5382 = vld [vmem:[%s4396 + $0x128] sm:$0xff]
  %v5383 = vld [vmem:[%s4396 + $0x138] sm:$0xff]
  %v5384 = vld [vmem:[%s4396 + $0x140] sm:$0xff]
  %v5385 = vld [vmem:[%s4396 + $0x150] sm:$0xff]
  %v5386 = vld [vmem:[%s4396 + $0x158] sm:$0xff]
  %v5387 = vld [vmem:[%s4396 + $0x168] sm:$0xff]
  %v5388 = vld [vmem:[%s4396 + $0x170] sm:$0xff]
  %v5389 = vld [vmem:[%s4396 + $0x1b0] sm:$0xff]
  %v5390 = vld [vmem:[%s4396 + $0x1b8] sm:$0xff]
  %v5391 = vld [vmem:[%s4396 + $0x1c8] sm:$0xff]
  %v5392 = vld [vmem:[%s4396 + $0x1d0] sm:$0xff]
  %v5393 = vld [vmem:[%s4396 + $0x1e0] sm:$0xff]
  %v5394 = vld [vmem:[%s4396 + $0x1e8] sm:$0xff]
  %v5395 = vld [vmem:[%s4396 + $0x1f8] sm:$0xff]
  %v5396 = vld [vmem:[%s4396 + $0x200] sm:$0xff]
  %v5397 = vld [vmem:[%s4396 + $0x210] sm:$0xff]
  %v5398 = vld [vmem:[%s4396 + $0x218] sm:$0xff]
  %v5399 = vld [vmem:[%s4396 + $0x228] sm:$0xff]
  %v5400 = vld [vmem:[%s4396 + $0x230] sm:$0xff]
  %v5401 = vld [vmem:[%s4396 + $0x240] sm:$0xff]
  %v5402 = vld [vmem:[%s4396 + $0x248] sm:$0xff]
  %v5403 = vld [vmem:[%s4396 + $0x258] sm:$0xff]
  %v5404 = vld [vmem:[%s4396 + $0x260] sm:$0xff]
  %v5405 = vld [vmem:[%s4396 + $0x270] sm:$0xff]
  %v5406 = vld [vmem:[%s4396 + $0x278] sm:$0xff]
  %v5407 = vld [vmem:[%s4396 + $0x288] sm:$0xff]
  %v5408 = vld [vmem:[%s4396 + $0x290] sm:$0xff]
  %v5409 = vld [vmem:[%s4396 + $0x2a0] sm:$0xff]
  %v5410 = vld [vmem:[%s4396 + $0x2a8] sm:$0xff]
  %v5411 = vld [vmem:[%s4396 + $0x2b8] sm:$0xff]
  %v5412 = vld [vmem:[%s4396 + $0x2c0] sm:$0xff]
  %v5413 = vld [vmem:[%s4396 + $0x2d0] sm:$0xff]
  %v5414 = vld [vmem:[%s4396 + $0x2d8] sm:$0xff]
  %v5415 = vld [vmem:[%s4396 + $0x2e8] sm:$0xff]
  %v5416 = vld [vmem:[%s4396 + $0x2f0] sm:$0xff]
  %v5417 = vld [vmem:[%s4396 + $0x300] sm:$0xff]
  %v5418 = vld [vmem:[%s4396 + $0x308] sm:$0xff]
  %v5419 = vld [vmem:[%s4396 + $0x318] sm:$0xff]
  %v5420 = vld [vmem:[%s4396 + $0x320] sm:$0xff]
  %5485 = vrot.lane.b32.xlu0 %v5357, 24
  %v5486 = vpop.permute.xlu0 %5485
  %5487 = vrot.lane.b32.xlu0 %v5358, 24
  %v5488 = vpop.permute.xlu0 %5487
  %5489 = vrot.lane.b32.xlu0 %v5359, 24
  %v5490 = vpop.permute.xlu0 %5489
  %5491 = vrot.lane.b32.xlu0 %v5360, 24
  %v5492 = vpop.permute.xlu0 %5491
  %5493 = vrot.lane.b32.xlu0 %v5361, 24
  %v5494 = vpop.permute.xlu0 %5493
  %5495 = vrot.lane.b32.xlu0 %v5362, 24
  %v5496 = vpop.permute.xlu0 %5495
  %5497 = vrot.lane.b32.xlu0 %v5363, 24
  %v5498 = vpop.permute.xlu0 %5497
  %5499 = vrot.lane.b32.xlu0 %v5364, 24
  %v5500 = vpop.permute.xlu0 %5499
  %5501 = vrot.lane.b32.xlu0 %v5365, 24
  %v5502 = vpop.permute.xlu0 %5501
  %5503 = vrot.lane.b32.xlu0 %v5366, 24
  %v5504 = vpop.permute.xlu0 %5503
  %5505 = vrot.lane.b32.xlu0 %v5367, 24
  %v5506 = vpop.permute.xlu0 %5505
  %5507 = vrot.lane.b32.xlu0 %v5368, 24
  %v5508 = vpop.permute.xlu0 %5507
  %5509 = vrot.lane.b32.xlu0 %v5369, 24
  %v5510 = vpop.permute.xlu0 %5509
  %5511 = vrot.lane.b32.xlu0 %v5370, 24
  %v5512 = vpop.permute.xlu0 %5511
  %5513 = vrot.lane.b32.xlu0 %v5371, 24
  %v5514 = vpop.permute.xlu0 %5513
  %5515 = vrot.lane.b32.xlu0 %v5372, 24
  %v5516 = vpop.permute.xlu0 %5515
  %5517 = vrot.lane.b32.xlu0 %v5373, 24
  %v5518 = vpop.permute.xlu0 %5517
  %5519 = vrot.lane.b32.xlu0 %v5374, 24
  %v5520 = vpop.permute.xlu0 %5519
  %5521 = vrot.lane.b32.xlu0 %v5375, 24
  %v5522 = vpop.permute.xlu0 %5521
  %5523 = vrot.lane.b32.xlu0 %v5376, 24
  %v5524 = vpop.permute.xlu0 %5523
  %5525 = vrot.lane.b32.xlu0 %v5377, 24
  %v5526 = vpop.permute.xlu0 %5525
  %5527 = vrot.lane.b32.xlu0 %v5378, 24
  %v5528 = vpop.permute.xlu0 %5527
  %5529 = vrot.lane.b32.xlu0 %v5379, 24
  %v5530 = vpop.permute.xlu0 %5529
  %5531 = vrot.lane.b32.xlu0 %v5380, 24
  %v5532 = vpop.permute.xlu0 %5531
  %5533 = vrot.lane.b32.xlu0 %v5381, 24
  %v5534 = vpop.permute.xlu0 %5533
  %5535 = vrot.lane.b32.xlu0 %v5382, 24
  %v5536 = vpop.permute.xlu0 %5535
  %5537 = vrot.lane.b32.xlu0 %v5383, 24
  %v5538 = vpop.permute.xlu0 %5537
  %5539 = vrot.lane.b32.xlu0 %v5384, 24
  %v5540 = vpop.permute.xlu0 %5539
  %5541 = vrot.lane.b32.xlu0 %v5385, 24
  %v5542 = vpop.permute.xlu0 %5541
  %5543 = vrot.lane.b32.xlu0 %v5386, 24
  %v5544 = vpop.permute.xlu0 %5543
  %5545 = vrot.lane.b32.xlu0 %v5387, 24
  %v5546 = vpop.permute.xlu0 %5545
  %5547 = vrot.lane.b32.xlu0 %v5388, 24
  %v5548 = vpop.permute.xlu0 %5547
  %5549 = vrot.lane.b32.xlu0 %v5389, 24
  %v5550 = vpop.permute.xlu0 %5549
  %5551 = vrot.lane.b32.xlu0 %v5390, 24
  %v5552 = vpop.permute.xlu0 %5551
  %5553 = vrot.lane.b32.xlu0 %v5391, 24
  %v5554 = vpop.permute.xlu0 %5553
  %5555 = vrot.lane.b32.xlu0 %v5392, 24
  %v5556 = vpop.permute.xlu0 %5555
  %5557 = vrot.lane.b32.xlu0 %v5393, 24
  %v5558 = vpop.permute.xlu0 %5557
  %5559 = vrot.lane.b32.xlu0 %v5394, 24
  %v5560 = vpop.permute.xlu0 %5559
  %5561 = vrot.lane.b32.xlu0 %v5395, 24
  %v5562 = vpop.permute.xlu0 %5561
  %5563 = vrot.lane.b32.xlu0 %v5396, 24
  %v5564 = vpop.permute.xlu0 %5563
  %5565 = vrot.lane.b32.xlu0 %v5397, 24
  %v5566 = vpop.permute.xlu0 %5565
  %5567 = vrot.lane.b32.xlu0 %v5398, 24
  %v5568 = vpop.permute.xlu0 %5567
  %5569 = vrot.lane.b32.xlu0 %v5399, 24
  %v5570 = vpop.permute.xlu0 %5569
  %5571 = vrot.lane.b32.xlu0 %v5400, 24
  %v5572 = vpop.permute.xlu0 %5571
  %5573 = vrot.lane.b32.xlu0 %v5401, 24
  %v5574 = vpop.permute.xlu0 %5573
  %5575 = vrot.lane.b32.xlu0 %v5402, 24
  %v5576 = vpop.permute.xlu0 %5575
  %5577 = vrot.lane.b32.xlu0 %v5403, 24
  %v5578 = vpop.permute.xlu0 %5577
  %5579 = vrot.lane.b32.xlu0 %v5404, 24
  %v5580 = vpop.permute.xlu0 %5579
  %5581 = vrot.lane.b32.xlu0 %v5405, 24
  %v5582 = vpop.permute.xlu0 %5581
  %5583 = vrot.lane.b32.xlu0 %v5406, 24
  %v5584 = vpop.permute.xlu0 %5583
  %5585 = vrot.lane.b32.xlu0 %v5407, 24
  %v5586 = vpop.permute.xlu0 %5585
  %5587 = vrot.lane.b32.xlu0 %v5408, 24
  %v5588 = vpop.permute.xlu0 %5587
  %5589 = vrot.lane.b32.xlu0 %v5409, 24
  %v5590 = vpop.permute.xlu0 %5589
  %5591 = vrot.lane.b32.xlu0 %v5410, 24
  %v5592 = vpop.permute.xlu0 %5591
  %5593 = vrot.lane.b32.xlu0 %v5411, 24
  %v5594 = vpop.permute.xlu0 %5593
  %5595 = vrot.lane.b32.xlu0 %v5412, 24
  %v5596 = vpop.permute.xlu0 %5595
  %5597 = vrot.lane.b32.xlu0 %v5413, 24
  %v5598 = vpop.permute.xlu0 %5597
  %5599 = vrot.lane.b32.xlu0 %v5414, 24
  %v5600 = vpop.permute.xlu0 %5599
  %5601 = vrot.lane.b32.xlu0 %v5415, 24
  %v5602 = vpop.permute.xlu0 %5601
  %5603 = vrot.lane.b32.xlu0 %v5416, 24
  %v5604 = vpop.permute.xlu0 %5603
  %5605 = vrot.lane.b32.xlu0 %v5417, 24
  %v5606 = vpop.permute.xlu0 %5605
  %5607 = vrot.lane.b32.xlu0 %v5418, 24
  %v5608 = vpop.permute.xlu0 %5607
  %5609 = vrot.lane.b32.xlu0 %v5419, 24
  %v5610 = vpop.permute.xlu0 %5609
  %5611 = vrot.lane.b32.xlu0 %v5420, 24
  %v5612 = vpop.permute.xlu0 %5611
  %5677 = vst.msk [vmem:[#allocation2] sm:$0xff] %vm1250, %v5486
  %5678 = vst.msk [vmem:[#allocation2 + $0x8] sm:$0xff] %vm1250, %v5488
  %5679 = vst.msk [vmem:[#allocation2 + $0x10] sm:$0xff] %vm1250, %v5490
  %5680 = vst.msk [vmem:[#allocation2 + $0x18] sm:$0xff] %vm1250, %v5492
  %5681 = vst.msk [vmem:[#allocation2 + $0x20] sm:$0xff] %vm1250, %v5494
  %5682 = vst.msk [vmem:[#allocation2 + $0x28] sm:$0xff] %vm1250, %v5496
  %5683 = vst.msk [vmem:[#allocation2 + $0x30] sm:$0xff] %vm1250, %v5498
  %5684 = vst.msk [vmem:[#allocation2 + $0x38] sm:$0xff] %vm1250, %v5500
  %5685 = vst.msk [vmem:[#allocation2 + $0x40] sm:$0xff] %vm1250, %v5502
  %5686 = vst.msk [vmem:[#allocation2 + $0x48] sm:$0xff] %vm1250, %v5504
  %5687 = vst.msk [vmem:[#allocation2 + $0x50] sm:$0xff] %vm1250, %v5506
  %5688 = vst.msk [vmem:[#allocation2 + $0x58] sm:$0xff] %vm1250, %v5508
  %5689 = vst.msk [vmem:[#allocation2 + $0x60] sm:$0xff] %vm1250, %v5510
  %5690 = vst.msk [vmem:[#allocation2 + $0x68] sm:$0xff] %vm1250, %v5512
  %5691 = vst.msk [vmem:[#allocation2 + $0x70] sm:$0xff] %vm1250, %v5514
  %5692 = vst.msk [vmem:[#allocation2 + $0x78] sm:$0xff] %vm1250, %v5516
  %5693 = vst.msk [vmem:[#allocation2 + $0x80] sm:$0xff] %vm1250, %v5518
  %5694 = vst.msk [vmem:[#allocation2 + $0x88] sm:$0xff] %vm1250, %v5520
  %5695 = vst.msk [vmem:[#allocation2 + $0x90] sm:$0xff] %vm1250, %v5522
  %5696 = vst.msk [vmem:[#allocation2 + $0x98] sm:$0xff] %vm1250, %v5524
  %5697 = vst.msk [vmem:[#allocation2 + $0xa0] sm:$0xff] %vm1250, %v5526
  %5698 = vst.msk [vmem:[#allocation2 + $0xa8] sm:$0xff] %vm1250, %v5528
  %5699 = vst.msk [vmem:[#allocation2 + $0xb0] sm:$0xff] %vm1250, %v5530
  %5700 = vst.msk [vmem:[#allocation2 + $0xb8] sm:$0xff] %vm1250, %v5532
  %5701 = vst.msk [vmem:[#allocation2 + $0xc0] sm:$0xff] %vm1250, %v5534
  %5702 = vst.msk [vmem:[#allocation2 + $0xc8] sm:$0xff] %vm1250, %v5536
  %5703 = vst.msk [vmem:[#allocation2 + $0xd0] sm:$0xff] %vm1250, %v5538
  %5704 = vst.msk [vmem:[#allocation2 + $0xd8] sm:$0xff] %vm1250, %v5540
  %5705 = vst.msk [vmem:[#allocation2 + $0xe0] sm:$0xff] %vm1250, %v5542
  %5706 = vst.msk [vmem:[#allocation2 + $0xe8] sm:$0xff] %vm1250, %v5544
  %5707 = vst.msk [vmem:[#allocation2 + $0xf0] sm:$0xff] %vm1250, %v5546
  %5708 = vst.msk [vmem:[#allocation2 + $0xf8] sm:$0xff] %vm1250, %v5548
  %5709 = vst.msk [vmem:[#allocation2 + $0x100] sm:$0xff] %vm1250, %v5550
  %5710 = vst.msk [vmem:[#allocation2 + $0x108] sm:$0xff] %vm1250, %v5552
  %5711 = vst.msk [vmem:[#allocation2 + $0x110] sm:$0xff] %vm1250, %v5554
  %5712 = vst.msk [vmem:[#allocation2 + $0x118] sm:$0xff] %vm1250, %v5556
  %5713 = vst.msk [vmem:[#allocation2 + $0x120] sm:$0xff] %vm1250, %v5558
  %5714 = vst.msk [vmem:[#allocation2 + $0x128] sm:$0xff] %vm1250, %v5560
  %5715 = vst.msk [vmem:[#allocation2 + $0x130] sm:$0xff] %vm1250, %v5562
  %5716 = vst.msk [vmem:[#allocation2 + $0x138] sm:$0xff] %vm1250, %v5564
  %5717 = vst.msk [vmem:[#allocation2 + $0x140] sm:$0xff] %vm1250, %v5566
  %5718 = vst.msk [vmem:[#allocation2 + $0x148] sm:$0xff] %vm1250, %v5568
  %5719 = vst.msk [vmem:[#allocation2 + $0x150] sm:$0xff] %vm1250, %v5570
  %5720 = vst.msk [vmem:[#allocation2 + $0x158] sm:$0xff] %vm1250, %v5572
  %5721 = vst.msk [vmem:[#allocation2 + $0x160] sm:$0xff] %vm1250, %v5574
  %5722 = vst.msk [vmem:[#allocation2 + $0x168] sm:$0xff] %vm1250, %v5576
  %5723 = vst.msk [vmem:[#allocation2 + $0x170] sm:$0xff] %vm1250, %v5578
  %5724 = vst.msk [vmem:[#allocation2 + $0x178] sm:$0xff] %vm1250, %v5580
  %5725 = vst.msk [vmem:[#allocation2 + $0x180] sm:$0xff] %vm1250, %v5582
  %5726 = vst.msk [vmem:[#allocation2 + $0x188] sm:$0xff] %vm1250, %v5584
  %5727 = vst.msk [vmem:[#allocation2 + $0x190] sm:$0xff] %vm1250, %v5586
  %5728 = vst.msk [vmem:[#allocation2 + $0x198] sm:$0xff] %vm1250, %v5588
  %5729 = vst.msk [vmem:[#allocation2 + $0x1a0] sm:$0xff] %vm1250, %v5590
  %5730 = vst.msk [vmem:[#allocation2 + $0x1a8] sm:$0xff] %vm1250, %v5592
  %5731 = vst.msk [vmem:[#allocation2 + $0x1b0] sm:$0xff] %vm1250, %v5594
  %5732 = vst.msk [vmem:[#allocation2 + $0x1b8] sm:$0xff] %vm1250, %v5596
  %5733 = vst.msk [vmem:[#allocation2 + $0x1c0] sm:$0xff] %vm1250, %v5598
  %5734 = vst.msk [vmem:[#allocation2 + $0x1c8] sm:$0xff] %vm1250, %v5600
  %5735 = vst.msk [vmem:[#allocation2 + $0x1d0] sm:$0xff] %vm1250, %v5602
  %5736 = vst.msk [vmem:[#allocation2 + $0x1d8] sm:$0xff] %vm1250, %v5604
  %5737 = vst.msk [vmem:[#allocation2 + $0x1e0] sm:$0xff] %vm1250, %v5606
  %5738 = vst.msk [vmem:[#allocation2 + $0x1e8] sm:$0xff] %vm1250, %v5608
  %5739 = vst.msk [vmem:[#allocation2 + $0x1f0] sm:$0xff] %vm1250, %v5610
  %5740 = vst.msk [vmem:[#allocation2 + $0x1f8] sm:$0xff] %vm1250, %v5612
  %v5741 = vld [vmem:[%s4396 + $0x1] sm:$0xff]
  %v5742 = vld [vmem:[%s4396 + $0x9] sm:$0xff]
  %v5743 = vld [vmem:[%s4396 + $0x19] sm:$0xff]
  %v5744 = vld [vmem:[%s4396 + $0x21] sm:$0xff]
  %v5745 = vld [vmem:[%s4396 + $0x31] sm:$0xff]
  %v5746 = vld [vmem:[%s4396 + $0x39] sm:$0xff]
  %v5747 = vld [vmem:[%s4396 + $0x49] sm:$0xff]
  %v5748 = vld [vmem:[%s4396 + $0x51] sm:$0xff]
  %v5749 = vld [vmem:[%s4396 + $0x61] sm:$0xff]
  %v5750 = vld [vmem:[%s4396 + $0x69] sm:$0xff]
  %v5751 = vld [vmem:[%s4396 + $0x79] sm:$0xff]
  %v5752 = vld [vmem:[%s4396 + $0x81] sm:$0xff]
  %v5753 = vld [vmem:[%s4396 + $0x91] sm:$0xff]
  %v5754 = vld [vmem:[%s4396 + $0x99] sm:$0xff]
  %v5755 = vld [vmem:[%s4396 + $0xa9] sm:$0xff]
  %v5756 = vld [vmem:[%s4396 + $0xb1] sm:$0xff]
  %v5757 = vld [vmem:[%s4396 + $0xc1] sm:$0xff]
  %v5758 = vld [vmem:[%s4396 + $0xc9] sm:$0xff]
  %v5759 = vld [vmem:[%s4396 + $0xd9] sm:$0xff]
  %v5760 = vld [vmem:[%s4396 + $0xe1] sm:$0xff]
  %v5761 = vld [vmem:[%s4396 + $0xf1] sm:$0xff]
  %v5762 = vld [vmem:[%s4396 + $0xf9] sm:$0xff]
  %v5763 = vld [vmem:[%s4396 + $0x109] sm:$0xff]
  %v5764 = vld [vmem:[%s4396 + $0x111] sm:$0xff]
  %v5765 = vld [vmem:[%s4396 + $0x121] sm:$0xff]
  %v5766 = vld [vmem:[%s4396 + $0x129] sm:$0xff]
  %v5767 = vld [vmem:[%s4396 + $0x139] sm:$0xff]
  %v5768 = vld [vmem:[%s4396 + $0x141] sm:$0xff]
  %v5769 = vld [vmem:[%s4396 + $0x151] sm:$0xff]
  %v5770 = vld [vmem:[%s4396 + $0x159] sm:$0xff]
  %v5771 = vld [vmem:[%s4396 + $0x169] sm:$0xff]
  %v5772 = vld [vmem:[%s4396 + $0x171] sm:$0xff]
  %v5773 = vld [vmem:[%s4396 + $0x1b1] sm:$0xff]
  %v5774 = vld [vmem:[%s4396 + $0x1b9] sm:$0xff]
  %v5775 = vld [vmem:[%s4396 + $0x1c9] sm:$0xff]
  %v5776 = vld [vmem:[%s4396 + $0x1d1] sm:$0xff]
  %v5777 = vld [vmem:[%s4396 + $0x1e1] sm:$0xff]
  %v5778 = vld [vmem:[%s4396 + $0x1e9] sm:$0xff]
  %v5779 = vld [vmem:[%s4396 + $0x1f9] sm:$0xff]
  %v5780 = vld [vmem:[%s4396 + $0x201] sm:$0xff]
  %v5781 = vld [vmem:[%s4396 + $0x211] sm:$0xff]
  %v5782 = vld [vmem:[%s4396 + $0x219] sm:$0xff]
  %v5783 = vld [vmem:[%s4396 + $0x229] sm:$0xff]
  %v5784 = vld [vmem:[%s4396 + $0x231] sm:$0xff]
  %v5785 = vld [vmem:[%s4396 + $0x241] sm:$0xff]
  %v5786 = vld [vmem:[%s4396 + $0x249] sm:$0xff]
  %v5787 = vld [vmem:[%s4396 + $0x259] sm:$0xff]
  %v5788 = vld [vmem:[%s4396 + $0x261] sm:$0xff]
  %v5789 = vld [vmem:[%s4396 + $0x271] sm:$0xff]
  %v5790 = vld [vmem:[%s4396 + $0x279] sm:$0xff]
  %v5791 = vld [vmem:[%s4396 + $0x289] sm:$0xff]
  %v5792 = vld [vmem:[%s4396 + $0x291] sm:$0xff]
  %v5793 = vld [vmem:[%s4396 + $0x2a1] sm:$0xff]
  %v5794 = vld [vmem:[%s4396 + $0x2a9] sm:$0xff]
  %v5795 = vld [vmem:[%s4396 + $0x2b9] sm:$0xff]
  %v5796 = vld [vmem:[%s4396 + $0x2c1] sm:$0xff]
  %v5797 = vld [vmem:[%s4396 + $0x2d1] sm:$0xff]
  %v5798 = vld [vmem:[%s4396 + $0x2d9] sm:$0xff]
  %v5799 = vld [vmem:[%s4396 + $0x2e9] sm:$0xff]
  %v5800 = vld [vmem:[%s4396 + $0x2f1] sm:$0xff]
  %v5801 = vld [vmem:[%s4396 + $0x301] sm:$0xff]
  %v5802 = vld [vmem:[%s4396 + $0x309] sm:$0xff]
  %v5803 = vld [vmem:[%s4396 + $0x319] sm:$0xff]
  %v5804 = vld [vmem:[%s4396 + $0x321] sm:$0xff]
  %5869 = vrot.lane.b32.xlu0 %v5741, 32
  %v5870 = vpop.permute.xlu0 %5869
  %5871 = vrot.lane.b32.xlu0 %v5742, 32
  %v5872 = vpop.permute.xlu0 %5871
  %5873 = vrot.lane.b32.xlu0 %v5743, 32
  %v5874 = vpop.permute.xlu0 %5873
  %5875 = vrot.lane.b32.xlu0 %v5744, 32
  %v5876 = vpop.permute.xlu0 %5875
  %5877 = vrot.lane.b32.xlu0 %v5745, 32
  %v5878 = vpop.permute.xlu0 %5877
  %5879 = vrot.lane.b32.xlu0 %v5746, 32
  %v5880 = vpop.permute.xlu0 %5879
  %5881 = vrot.lane.b32.xlu0 %v5747, 32
  %v5882 = vpop.permute.xlu0 %5881
  %5883 = vrot.lane.b32.xlu0 %v5748, 32
  %v5884 = vpop.permute.xlu0 %5883
  %5885 = vrot.lane.b32.xlu0 %v5749, 32
  %v5886 = vpop.permute.xlu0 %5885
  %5887 = vrot.lane.b32.xlu0 %v5750, 32
  %v5888 = vpop.permute.xlu0 %5887
  %5889 = vrot.lane.b32.xlu0 %v5751, 32
  %v5890 = vpop.permute.xlu0 %5889
  %5891 = vrot.lane.b32.xlu0 %v5752, 32
  %v5892 = vpop.permute.xlu0 %5891
  %5893 = vrot.lane.b32.xlu0 %v5753, 32
  %v5894 = vpop.permute.xlu0 %5893
  %5895 = vrot.lane.b32.xlu0 %v5754, 32
  %v5896 = vpop.permute.xlu0 %5895
  %5897 = vrot.lane.b32.xlu0 %v5755, 32
  %v5898 = vpop.permute.xlu0 %5897
  %5899 = vrot.lane.b32.xlu0 %v5756, 32
  %v5900 = vpop.permute.xlu0 %5899
  %5901 = vrot.lane.b32.xlu0 %v5757, 32
  %v5902 = vpop.permute.xlu0 %5901
  %5903 = vrot.lane.b32.xlu0 %v5758, 32
  %v5904 = vpop.permute.xlu0 %5903
  %5905 = vrot.lane.b32.xlu0 %v5759, 32
  %v5906 = vpop.permute.xlu0 %5905
  %5907 = vrot.lane.b32.xlu0 %v5760, 32
  %v5908 = vpop.permute.xlu0 %5907
  %5909 = vrot.lane.b32.xlu0 %v5761, 32
  %v5910 = vpop.permute.xlu0 %5909
  %5911 = vrot.lane.b32.xlu0 %v5762, 32
  %v5912 = vpop.permute.xlu0 %5911
  %5913 = vrot.lane.b32.xlu0 %v5763, 32
  %v5914 = vpop.permute.xlu0 %5913
  %5915 = vrot.lane.b32.xlu0 %v5764, 32
  %v5916 = vpop.permute.xlu0 %5915
  %5917 = vrot.lane.b32.xlu0 %v5765, 32
  %v5918 = vpop.permute.xlu0 %5917
  %5919 = vrot.lane.b32.xlu0 %v5766, 32
  %v5920 = vpop.permute.xlu0 %5919
  %5921 = vrot.lane.b32.xlu0 %v5767, 32
  %v5922 = vpop.permute.xlu0 %5921
  %5923 = vrot.lane.b32.xlu0 %v5768, 32
  %v5924 = vpop.permute.xlu0 %5923
  %5925 = vrot.lane.b32.xlu0 %v5769, 32
  %v5926 = vpop.permute.xlu0 %5925
  %5927 = vrot.lane.b32.xlu0 %v5770, 32
  %v5928 = vpop.permute.xlu0 %5927
  %5929 = vrot.lane.b32.xlu0 %v5771, 32
  %v5930 = vpop.permute.xlu0 %5929
  %5931 = vrot.lane.b32.xlu0 %v5772, 32
  %v5932 = vpop.permute.xlu0 %5931
  %5933 = vrot.lane.b32.xlu0 %v5773, 32
  %v5934 = vpop.permute.xlu0 %5933
  %5935 = vrot.lane.b32.xlu0 %v5774, 32
  %v5936 = vpop.permute.xlu0 %5935
  %5937 = vrot.lane.b32.xlu0 %v5775, 32
  %v5938 = vpop.permute.xlu0 %5937
  %5939 = vrot.lane.b32.xlu0 %v5776, 32
  %v5940 = vpop.permute.xlu0 %5939
  %5941 = vrot.lane.b32.xlu0 %v5777, 32
  %v5942 = vpop.permute.xlu0 %5941
  %5943 = vrot.lane.b32.xlu0 %v5778, 32
  %v5944 = vpop.permute.xlu0 %5943
  %5945 = vrot.lane.b32.xlu0 %v5779, 32
  %v5946 = vpop.permute.xlu0 %5945
  %5947 = vrot.lane.b32.xlu0 %v5780, 32
  %v5948 = vpop.permute.xlu0 %5947
  %5949 = vrot.lane.b32.xlu0 %v5781, 32
  %v5950 = vpop.permute.xlu0 %5949
  %5951 = vrot.lane.b32.xlu0 %v5782, 32
  %v5952 = vpop.permute.xlu0 %5951
  %5953 = vrot.lane.b32.xlu0 %v5783, 32
  %v5954 = vpop.permute.xlu0 %5953
  %5955 = vrot.lane.b32.xlu0 %v5784, 32
  %v5956 = vpop.permute.xlu0 %5955
  %5957 = vrot.lane.b32.xlu0 %v5785, 32
  %v5958 = vpop.permute.xlu0 %5957
  %5959 = vrot.lane.b32.xlu0 %v5786, 32
  %v5960 = vpop.permute.xlu0 %5959
  %5961 = vrot.lane.b32.xlu0 %v5787, 32
  %v5962 = vpop.permute.xlu0 %5961
  %5963 = vrot.lane.b32.xlu0 %v5788, 32
  %v5964 = vpop.permute.xlu0 %5963
  %5965 = vrot.lane.b32.xlu0 %v5789, 32
  %v5966 = vpop.permute.xlu0 %5965
  %5967 = vrot.lane.b32.xlu0 %v5790, 32
  %v5968 = vpop.permute.xlu0 %5967
  %5969 = vrot.lane.b32.xlu0 %v5791, 32
  %v5970 = vpop.permute.xlu0 %5969
  %5971 = vrot.lane.b32.xlu0 %v5792, 32
  %v5972 = vpop.permute.xlu0 %5971
  %5973 = vrot.lane.b32.xlu0 %v5793, 32
  %v5974 = vpop.permute.xlu0 %5973
  %5975 = vrot.lane.b32.xlu0 %v5794, 32
  %v5976 = vpop.permute.xlu0 %5975
  %5977 = vrot.lane.b32.xlu0 %v5795, 32
  %v5978 = vpop.permute.xlu0 %5977
  %5979 = vrot.lane.b32.xlu0 %v5796, 32
  %v5980 = vpop.permute.xlu0 %5979
  %5981 = vrot.lane.b32.xlu0 %v5797, 32
  %v5982 = vpop.permute.xlu0 %5981
  %5983 = vrot.lane.b32.xlu0 %v5798, 32
  %v5984 = vpop.permute.xlu0 %5983
  %5985 = vrot.lane.b32.xlu0 %v5799, 32
  %v5986 = vpop.permute.xlu0 %5985
  %5987 = vrot.lane.b32.xlu0 %v5800, 32
  %v5988 = vpop.permute.xlu0 %5987
  %5989 = vrot.lane.b32.xlu0 %v5801, 32
  %v5990 = vpop.permute.xlu0 %5989
  %5991 = vrot.lane.b32.xlu0 %v5802, 32
  %v5992 = vpop.permute.xlu0 %5991
  %5993 = vrot.lane.b32.xlu0 %v5803, 32
  %v5994 = vpop.permute.xlu0 %5993
  %5995 = vrot.lane.b32.xlu0 %v5804, 32
  %v5996 = vpop.permute.xlu0 %5995
  %6061 = vst.msk [vmem:[#allocation2] sm:$0xff] %vm1635, %v5870
  %6062 = vst.msk [vmem:[#allocation2 + $0x8] sm:$0xff] %vm1635, %v5872
  %6063 = vst.msk [vmem:[#allocation2 + $0x10] sm:$0xff] %vm1635, %v5874
  %6064 = vst.msk [vmem:[#allocation2 + $0x18] sm:$0xff] %vm1635, %v5876
  %6065 = vst.msk [vmem:[#allocation2 + $0x20] sm:$0xff] %vm1635, %v5878
  %6066 = vst.msk [vmem:[#allocation2 + $0x28] sm:$0xff] %vm1635, %v5880
  %6067 = vst.msk [vmem:[#allocation2 + $0x30] sm:$0xff] %vm1635, %v5882
  %6068 = vst.msk [vmem:[#allocation2 + $0x38] sm:$0xff] %vm1635, %v5884
  %6069 = vst.msk [vmem:[#allocation2 + $0x40] sm:$0xff] %vm1635, %v5886
  %6070 = vst.msk [vmem:[#allocation2 + $0x48] sm:$0xff] %vm1635, %v5888
  %6071 = vst.msk [vmem:[#allocation2 + $0x50] sm:$0xff] %vm1635, %v5890
  %6072 = vst.msk [vmem:[#allocation2 + $0x58] sm:$0xff] %vm1635, %v5892
  %6073 = vst.msk [vmem:[#allocation2 + $0x60] sm:$0xff] %vm1635, %v5894
  %6074 = vst.msk [vmem:[#allocation2 + $0x68] sm:$0xff] %vm1635, %v5896
  %6075 = vst.msk [vmem:[#allocation2 + $0x70] sm:$0xff] %vm1635, %v5898
  %6076 = vst.msk [vmem:[#allocation2 + $0x78] sm:$0xff] %vm1635, %v5900
  %6077 = vst.msk [vmem:[#allocation2 + $0x80] sm:$0xff] %vm1635, %v5902
  %6078 = vst.msk [vmem:[#allocation2 + $0x88] sm:$0xff] %vm1635, %v5904
  %6079 = vst.msk [vmem:[#allocation2 + $0x90] sm:$0xff] %vm1635, %v5906
  %6080 = vst.msk [vmem:[#allocation2 + $0x98] sm:$0xff] %vm1635, %v5908
  %6081 = vst.msk [vmem:[#allocation2 + $0xa0] sm:$0xff] %vm1635, %v5910
  %6082 = vst.msk [vmem:[#allocation2 + $0xa8] sm:$0xff] %vm1635, %v5912
  %6083 = vst.msk [vmem:[#allocation2 + $0xb0] sm:$0xff] %vm1635, %v5914
  %6084 = vst.msk [vmem:[#allocation2 + $0xb8] sm:$0xff] %vm1635, %v5916
  %6085 = vst.msk [vmem:[#allocation2 + $0xc0] sm:$0xff] %vm1635, %v5918
  %6086 = vst.msk [vmem:[#allocation2 + $0xc8] sm:$0xff] %vm1635, %v5920
  %6087 = vst.msk [vmem:[#allocation2 + $0xd0] sm:$0xff] %vm1635, %v5922
  %6088 = vst.msk [vmem:[#allocation2 + $0xd8] sm:$0xff] %vm1635, %v5924
  %6089 = vst.msk [vmem:[#allocation2 + $0xe0] sm:$0xff] %vm1635, %v5926
  %6090 = vst.msk [vmem:[#allocation2 + $0xe8] sm:$0xff] %vm1635, %v5928
  %6091 = vst.msk [vmem:[#allocation2 + $0xf0] sm:$0xff] %vm1635, %v5930
  %6092 = vst.msk [vmem:[#allocation2 + $0xf8] sm:$0xff] %vm1635, %v5932
  %6093 = vst.msk [vmem:[#allocation2 + $0x100] sm:$0xff] %vm1635, %v5934
  %6094 = vst.msk [vmem:[#allocation2 + $0x108] sm:$0xff] %vm1635, %v5936
  %6095 = vst.msk [vmem:[#allocation2 + $0x110] sm:$0xff] %vm1635, %v5938
  %6096 = vst.msk [vmem:[#allocation2 + $0x118] sm:$0xff] %vm1635, %v5940
  %6097 = vst.msk [vmem:[#allocation2 + $0x120] sm:$0xff] %vm1635, %v5942
  %6098 = vst.msk [vmem:[#allocation2 + $0x128] sm:$0xff] %vm1635, %v5944
  %6099 = vst.msk [vmem:[#allocation2 + $0x130] sm:$0xff] %vm1635, %v5946
  %6100 = vst.msk [vmem:[#allocation2 + $0x138] sm:$0xff] %vm1635, %v5948
  %6101 = vst.msk [vmem:[#allocation2 + $0x140] sm:$0xff] %vm1635, %v5950
  %6102 = vst.msk [vmem:[#allocation2 + $0x148] sm:$0xff] %vm1635, %v5952
  %6103 = vst.msk [vmem:[#allocation2 + $0x150] sm:$0xff] %vm1635, %v5954
  %6104 = vst.msk [vmem:[#allocation2 + $0x158] sm:$0xff] %vm1635, %v5956
  %6105 = vst.msk [vmem:[#allocation2 + $0x160] sm:$0xff] %vm1635, %v5958
  %6106 = vst.msk [vmem:[#allocation2 + $0x168] sm:$0xff] %vm1635, %v5960
  %6107 = vst.msk [vmem:[#allocation2 + $0x170] sm:$0xff] %vm1635, %v5962
  %6108 = vst.msk [vmem:[#allocation2 + $0x178] sm:$0xff] %vm1635, %v5964
  %6109 = vst.msk [vmem:[#allocation2 + $0x180] sm:$0xff] %vm1635, %v5966
  %6110 = vst.msk [vmem:[#allocation2 + $0x188] sm:$0xff] %vm1635, %v5968
  %6111 = vst.msk [vmem:[#allocation2 + $0x190] sm:$0xff] %vm1635, %v5970
  %6112 = vst.msk [vmem:[#allocation2 + $0x198] sm:$0xff] %vm1635, %v5972
  %6113 = vst.msk [vmem:[#allocation2 + $0x1a0] sm:$0xff] %vm1635, %v5974
  %6114 = vst.msk [vmem:[#allocation2 + $0x1a8] sm:$0xff] %vm1635, %v5976
  %6115 = vst.msk [vmem:[#allocation2 + $0x1b0] sm:$0xff] %vm1635, %v5978
  %6116 = vst.msk [vmem:[#allocation2 + $0x1b8] sm:$0xff] %vm1635, %v5980
  %6117 = vst.msk [vmem:[#allocation2 + $0x1c0] sm:$0xff] %vm1635, %v5982
  %6118 = vst.msk [vmem:[#allocation2 + $0x1c8] sm:$0xff] %vm1635, %v5984
  %6119 = vst.msk [vmem:[#allocation2 + $0x1d0] sm:$0xff] %vm1635, %v5986
  %6120 = vst.msk [vmem:[#allocation2 + $0x1d8] sm:$0xff] %vm1635, %v5988
  %6121 = vst.msk [vmem:[#allocation2 + $0x1e0] sm:$0xff] %vm1635, %v5990
  %6122 = vst.msk [vmem:[#allocation2 + $0x1e8] sm:$0xff] %vm1635, %v5992
  %6123 = vst.msk [vmem:[#allocation2 + $0x1f0] sm:$0xff] %vm1635, %v5994
  %6124 = vst.msk [vmem:[#allocation2 + $0x1f8] sm:$0xff] %vm1635, %v5996
  %v6125 = vld [vmem:[%s4396 + $0x2] sm:$0xff]
  %v6126 = vld [vmem:[%s4396 + $0xa] sm:$0xff]
  %v6127 = vld [vmem:[%s4396 + $0x1a] sm:$0xff]
  %v6128 = vld [vmem:[%s4396 + $0x22] sm:$0xff]
  %v6129 = vld [vmem:[%s4396 + $0x32] sm:$0xff]
  %v6130 = vld [vmem:[%s4396 + $0x3a] sm:$0xff]
  %v6131 = vld [vmem:[%s4396 + $0x4a] sm:$0xff]
  %v6132 = vld [vmem:[%s4396 + $0x52] sm:$0xff]
  %v6133 = vld [vmem:[%s4396 + $0x62] sm:$0xff]
  %v6134 = vld [vmem:[%s4396 + $0x6a] sm:$0xff]
  %v6135 = vld [vmem:[%s4396 + $0x7a] sm:$0xff]
  %v6136 = vld [vmem:[%s4396 + $0x82] sm:$0xff]
  %v6137 = vld [vmem:[%s4396 + $0x92] sm:$0xff]
  %v6138 = vld [vmem:[%s4396 + $0x9a] sm:$0xff]
  %v6139 = vld [vmem:[%s4396 + $0xaa] sm:$0xff]
  %v6140 = vld [vmem:[%s4396 + $0xb2] sm:$0xff]
  %v6141 = vld [vmem:[%s4396 + $0xc2] sm:$0xff]
  %v6142 = vld [vmem:[%s4396 + $0xca] sm:$0xff]
  %v6143 = vld [vmem:[%s4396 + $0xda] sm:$0xff]
  %v6144 = vld [vmem:[%s4396 + $0xe2] sm:$0xff]
  %v6145 = vld [vmem:[%s4396 + $0xf2] sm:$0xff]
  %v6146 = vld [vmem:[%s4396 + $0xfa] sm:$0xff]
  %v6147 = vld [vmem:[%s4396 + $0x10a] sm:$0xff]
  %v6148 = vld [vmem:[%s4396 + $0x112] sm:$0xff]
  %v6149 = vld [vmem:[%s4396 + $0x122] sm:$0xff]
  %v6150 = vld [vmem:[%s4396 + $0x12a] sm:$0xff]
  %v6151 = vld [vmem:[%s4396 + $0x13a] sm:$0xff]
  %v6152 = vld [vmem:[%s4396 + $0x142] sm:$0xff]
  %v6153 = vld [vmem:[%s4396 + $0x152] sm:$0xff]
  %v6154 = vld [vmem:[%s4396 + $0x15a] sm:$0xff]
  %v6155 = vld [vmem:[%s4396 + $0x16a] sm:$0xff]
  %v6156 = vld [vmem:[%s4396 + $0x172] sm:$0xff]
  %v6157 = vld [vmem:[%s4396 + $0x1b2] sm:$0xff]
  %v6158 = vld [vmem:[%s4396 + $0x1ba] sm:$0xff]
  %v6159 = vld [vmem:[%s4396 + $0x1ca] sm:$0xff]
  %v6160 = vld [vmem:[%s4396 + $0x1d2] sm:$0xff]
  %v6161 = vld [vmem:[%s4396 + $0x1e2] sm:$0xff]
  %v6162 = vld [vmem:[%s4396 + $0x1ea] sm:$0xff]
  %v6163 = vld [vmem:[%s4396 + $0x1fa] sm:$0xff]
  %v6164 = vld [vmem:[%s4396 + $0x202] sm:$0xff]
  %v6165 = vld [vmem:[%s4396 + $0x212] sm:$0xff]
  %v6166 = vld [vmem:[%s4396 + $0x21a] sm:$0xff]
  %v6167 = vld [vmem:[%s4396 + $0x22a] sm:$0xff]
  %v6168 = vld [vmem:[%s4396 + $0x232] sm:$0xff]
  %v6169 = vld [vmem:[%s4396 + $0x242] sm:$0xff]
  %v6170 = vld [vmem:[%s4396 + $0x24a] sm:$0xff]
  %v6171 = vld [vmem:[%s4396 + $0x25a] sm:$0xff]
  %v6172 = vld [vmem:[%s4396 + $0x262] sm:$0xff]
  %v6173 = vld [vmem:[%s4396 + $0x272] sm:$0xff]
  %v6174 = vld [vmem:[%s4396 + $0x27a] sm:$0xff]
  %v6175 = vld [vmem:[%s4396 + $0x28a] sm:$0xff]
  %v6176 = vld [vmem:[%s4396 + $0x292] sm:$0xff]
  %v6177 = vld [vmem:[%s4396 + $0x2a2] sm:$0xff]
  %v6178 = vld [vmem:[%s4396 + $0x2aa] sm:$0xff]
  %v6179 = vld [vmem:[%s4396 + $0x2ba] sm:$0xff]
  %v6180 = vld [vmem:[%s4396 + $0x2c2] sm:$0xff]
  %v6181 = vld [vmem:[%s4396 + $0x2d2] sm:$0xff]
  %v6182 = vld [vmem:[%s4396 + $0x2da] sm:$0xff]
  %v6183 = vld [vmem:[%s4396 + $0x2ea] sm:$0xff]
  %v6184 = vld [vmem:[%s4396 + $0x2f2] sm:$0xff]
  %v6185 = vld [vmem:[%s4396 + $0x302] sm:$0xff]
  %v6186 = vld [vmem:[%s4396 + $0x30a] sm:$0xff]
  %v6187 = vld [vmem:[%s4396 + $0x31a] sm:$0xff]
  %v6188 = vld [vmem:[%s4396 + $0x322] sm:$0xff]
  %6253 = vrot.lane.b32.xlu0 %v6125, 40
  %v6254 = vpop.permute.xlu0 %6253
  %6255 = vrot.lane.b32.xlu0 %v6126, 40
  %v6256 = vpop.permute.xlu0 %6255
  %6257 = vrot.lane.b32.xlu0 %v6127, 40
  %v6258 = vpop.permute.xlu0 %6257
  %6259 = vrot.lane.b32.xlu0 %v6128, 40
  %v6260 = vpop.permute.xlu0 %6259
  %6261 = vrot.lane.b32.xlu0 %v6129, 40
  %v6262 = vpop.permute.xlu0 %6261
  %6263 = vrot.lane.b32.xlu0 %v6130, 40
  %v6264 = vpop.permute.xlu0 %6263
  %6265 = vrot.lane.b32.xlu0 %v6131, 40
  %v6266 = vpop.permute.xlu0 %6265
  %6267 = vrot.lane.b32.xlu0 %v6132, 40
  %v6268 = vpop.permute.xlu0 %6267
  %6269 = vrot.lane.b32.xlu0 %v6133, 40
  %v6270 = vpop.permute.xlu0 %6269
  %6271 = vrot.lane.b32.xlu0 %v6134, 40
  %v6272 = vpop.permute.xlu0 %6271
  %6273 = vrot.lane.b32.xlu0 %v6135, 40
  %v6274 = vpop.permute.xlu0 %6273
  %6275 = vrot.lane.b32.xlu0 %v6136, 40
  %v6276 = vpop.permute.xlu0 %6275
  %6277 = vrot.lane.b32.xlu0 %v6137, 40
  %v6278 = vpop.permute.xlu0 %6277
  %6279 = vrot.lane.b32.xlu0 %v6138, 40
  %v6280 = vpop.permute.xlu0 %6279
  %6281 = vrot.lane.b32.xlu0 %v6139, 40
  %v6282 = vpop.permute.xlu0 %6281
  %6283 = vrot.lane.b32.xlu0 %v6140, 40
  %v6284 = vpop.permute.xlu0 %6283
  %6285 = vrot.lane.b32.xlu0 %v6141, 40
  %v6286 = vpop.permute.xlu0 %6285
  %6287 = vrot.lane.b32.xlu0 %v6142, 40
  %v6288 = vpop.permute.xlu0 %6287
  %6289 = vrot.lane.b32.xlu0 %v6143, 40
  %v6290 = vpop.permute.xlu0 %6289
  %6291 = vrot.lane.b32.xlu0 %v6144, 40
  %v6292 = vpop.permute.xlu0 %6291
  %6293 = vrot.lane.b32.xlu0 %v6145, 40
  %v6294 = vpop.permute.xlu0 %6293
  %6295 = vrot.lane.b32.xlu0 %v6146, 40
  %v6296 = vpop.permute.xlu0 %6295
  %6297 = vrot.lane.b32.xlu0 %v6147, 40
  %v6298 = vpop.permute.xlu0 %6297
  %6299 = vrot.lane.b32.xlu0 %v6148, 40
  %v6300 = vpop.permute.xlu0 %6299
  %6301 = vrot.lane.b32.xlu0 %v6149, 40
  %v6302 = vpop.permute.xlu0 %6301
  %6303 = vrot.lane.b32.xlu0 %v6150, 40
  %v6304 = vpop.permute.xlu0 %6303
  %6305 = vrot.lane.b32.xlu0 %v6151, 40
  %v6306 = vpop.permute.xlu0 %6305
  %6307 = vrot.lane.b32.xlu0 %v6152, 40
  %v6308 = vpop.permute.xlu0 %6307
  %6309 = vrot.lane.b32.xlu0 %v6153, 40
  %v6310 = vpop.permute.xlu0 %6309
  %6311 = vrot.lane.b32.xlu0 %v6154, 40
  %v6312 = vpop.permute.xlu0 %6311
  %6313 = vrot.lane.b32.xlu0 %v6155, 40
  %v6314 = vpop.permute.xlu0 %6313
  %6315 = vrot.lane.b32.xlu0 %v6156, 40
  %v6316 = vpop.permute.xlu0 %6315
  %6317 = vrot.lane.b32.xlu0 %v6157, 40
  %v6318 = vpop.permute.xlu0 %6317
  %6319 = vrot.lane.b32.xlu0 %v6158, 40
  %v6320 = vpop.permute.xlu0 %6319
  %6321 = vrot.lane.b32.xlu0 %v6159, 40
  %v6322 = vpop.permute.xlu0 %6321
  %6323 = vrot.lane.b32.xlu0 %v6160, 40
  %v6324 = vpop.permute.xlu0 %6323
  %6325 = vrot.lane.b32.xlu0 %v6161, 40
  %v6326 = vpop.permute.xlu0 %6325
  %6327 = vrot.lane.b32.xlu0 %v6162, 40
  %v6328 = vpop.permute.xlu0 %6327
  %6329 = vrot.lane.b32.xlu0 %v6163, 40
  %v6330 = vpop.permute.xlu0 %6329
  %6331 = vrot.lane.b32.xlu0 %v6164, 40
  %v6332 = vpop.permute.xlu0 %6331
  %6333 = vrot.lane.b32.xlu0 %v6165, 40
  %v6334 = vpop.permute.xlu0 %6333
  %6335 = vrot.lane.b32.xlu0 %v6166, 40
  %v6336 = vpop.permute.xlu0 %6335
  %6337 = vrot.lane.b32.xlu0 %v6167, 40
  %v6338 = vpop.permute.xlu0 %6337
  %6339 = vrot.lane.b32.xlu0 %v6168, 40
  %v6340 = vpop.permute.xlu0 %6339
  %6341 = vrot.lane.b32.xlu0 %v6169, 40
  %v6342 = vpop.permute.xlu0 %6341
  %6343 = vrot.lane.b32.xlu0 %v6170, 40
  %v6344 = vpop.permute.xlu0 %6343
  %6345 = vrot.lane.b32.xlu0 %v6171, 40
  %v6346 = vpop.permute.xlu0 %6345
  %6347 = vrot.lane.b32.xlu0 %v6172, 40
  %v6348 = vpop.permute.xlu0 %6347
  %6349 = vrot.lane.b32.xlu0 %v6173, 40
  %v6350 = vpop.permute.xlu0 %6349
  %6351 = vrot.lane.b32.xlu0 %v6174, 40
  %v6352 = vpop.permute.xlu0 %6351
  %6353 = vrot.lane.b32.xlu0 %v6175, 40
  %v6354 = vpop.permute.xlu0 %6353
  %6355 = vrot.lane.b32.xlu0 %v6176, 40
  %v6356 = vpop.permute.xlu0 %6355
  %6357 = vrot.lane.b32.xlu0 %v6177, 40
  %v6358 = vpop.permute.xlu0 %6357
  %6359 = vrot.lane.b32.xlu0 %v6178, 40
  %v6360 = vpop.permute.xlu0 %6359
  %6361 = vrot.lane.b32.xlu0 %v6179, 40
  %v6362 = vpop.permute.xlu0 %6361
  %6363 = vrot.lane.b32.xlu0 %v6180, 40
  %v6364 = vpop.permute.xlu0 %6363
  %6365 = vrot.lane.b32.xlu0 %v6181, 40
  %v6366 = vpop.permute.xlu0 %6365
  %6367 = vrot.lane.b32.xlu0 %v6182, 40
  %v6368 = vpop.permute.xlu0 %6367
  %6369 = vrot.lane.b32.xlu0 %v6183, 40
  %v6370 = vpop.permute.xlu0 %6369
  %6371 = vrot.lane.b32.xlu0 %v6184, 40
  %v6372 = vpop.permute.xlu0 %6371
  %6373 = vrot.lane.b32.xlu0 %v6185, 40
  %v6374 = vpop.permute.xlu0 %6373
  %6375 = vrot.lane.b32.xlu0 %v6186, 40
  %v6376 = vpop.permute.xlu0 %6375
  %6377 = vrot.lane.b32.xlu0 %v6187, 40
  %v6378 = vpop.permute.xlu0 %6377
  %6379 = vrot.lane.b32.xlu0 %v6188, 40
  %v6380 = vpop.permute.xlu0 %6379
  %6445 = vst.msk [vmem:[#allocation2] sm:$0xff] %vm2020, %v6254
  %6446 = vst.msk [vmem:[#allocation2 + $0x8] sm:$0xff] %vm2020, %v6256
  %6447 = vst.msk [vmem:[#allocation2 + $0x10] sm:$0xff] %vm2020, %v6258
  %6448 = vst.msk [vmem:[#allocation2 + $0x18] sm:$0xff] %vm2020, %v6260
  %6449 = vst.msk [vmem:[#allocation2 + $0x20] sm:$0xff] %vm2020, %v6262
  %6450 = vst.msk [vmem:[#allocation2 + $0x28] sm:$0xff] %vm2020, %v6264
  %6451 = vst.msk [vmem:[#allocation2 + $0x30] sm:$0xff] %vm2020, %v6266
  %6452 = vst.msk [vmem:[#allocation2 + $0x38] sm:$0xff] %vm2020, %v6268
  %6453 = vst.msk [vmem:[#allocation2 + $0x40] sm:$0xff] %vm2020, %v6270
  %6454 = vst.msk [vmem:[#allocation2 + $0x48] sm:$0xff] %vm2020, %v6272
  %6455 = vst.msk [vmem:[#allocation2 + $0x50] sm:$0xff] %vm2020, %v6274
  %6456 = vst.msk [vmem:[#allocation2 + $0x58] sm:$0xff] %vm2020, %v6276
  %6457 = vst.msk [vmem:[#allocation2 + $0x60] sm:$0xff] %vm2020, %v6278
  %6458 = vst.msk [vmem:[#allocation2 + $0x68] sm:$0xff] %vm2020, %v6280
  %6459 = vst.msk [vmem:[#allocation2 + $0x70] sm:$0xff] %vm2020, %v6282
  %6460 = vst.msk [vmem:[#allocation2 + $0x78] sm:$0xff] %vm2020, %v6284
  %6461 = vst.msk [vmem:[#allocation2 + $0x80] sm:$0xff] %vm2020, %v6286
  %6462 = vst.msk [vmem:[#allocation2 + $0x88] sm:$0xff] %vm2020, %v6288
  %6463 = vst.msk [vmem:[#allocation2 + $0x90] sm:$0xff] %vm2020, %v6290
  %6464 = vst.msk [vmem:[#allocation2 + $0x98] sm:$0xff] %vm2020, %v6292
  %6465 = vst.msk [vmem:[#allocation2 + $0xa0] sm:$0xff] %vm2020, %v6294
  %6466 = vst.msk [vmem:[#allocation2 + $0xa8] sm:$0xff] %vm2020, %v6296
  %6467 = vst.msk [vmem:[#allocation2 + $0xb0] sm:$0xff] %vm2020, %v6298
  %6468 = vst.msk [vmem:[#allocation2 + $0xb8] sm:$0xff] %vm2020, %v6300
  %6469 = vst.msk [vmem:[#allocation2 + $0xc0] sm:$0xff] %vm2020, %v6302
  %6470 = vst.msk [vmem:[#allocation2 + $0xc8] sm:$0xff] %vm2020, %v6304
  %6471 = vst.msk [vmem:[#allocation2 + $0xd0] sm:$0xff] %vm2020, %v6306
  %6472 = vst.msk [vmem:[#allocation2 + $0xd8] sm:$0xff] %vm2020, %v6308
  %6473 = vst.msk [vmem:[#allocation2 + $0xe0] sm:$0xff] %vm2020, %v6310
  %6474 = vst.msk [vmem:[#allocation2 + $0xe8] sm:$0xff] %vm2020, %v6312
  %6475 = vst.msk [vmem:[#allocation2 + $0xf0] sm:$0xff] %vm2020, %v6314
  %6476 = vst.msk [vmem:[#allocation2 + $0xf8] sm:$0xff] %vm2020, %v6316
  %6477 = vst.msk [vmem:[#allocation2 + $0x100] sm:$0xff] %vm2020, %v6318
  %6478 = vst.msk [vmem:[#allocation2 + $0x108] sm:$0xff] %vm2020, %v6320
  %6479 = vst.msk [vmem:[#allocation2 + $0x110] sm:$0xff] %vm2020, %v6322
  %6480 = vst.msk [vmem:[#allocation2 + $0x118] sm:$0xff] %vm2020, %v6324
  %6481 = vst.msk [vmem:[#allocation2 + $0x120] sm:$0xff] %vm2020, %v6326
  %6482 = vst.msk [vmem:[#allocation2 + $0x128] sm:$0xff] %vm2020, %v6328
  %6483 = vst.msk [vmem:[#allocation2 + $0x130] sm:$0xff] %vm2020, %v6330
  %6484 = vst.msk [vmem:[#allocation2 + $0x138] sm:$0xff] %vm2020, %v6332
  %6485 = vst.msk [vmem:[#allocation2 + $0x140] sm:$0xff] %vm2020, %v6334
  %6486 = vst.msk [vmem:[#allocation2 + $0x148] sm:$0xff] %vm2020, %v6336
  %6487 = vst.msk [vmem:[#allocation2 + $0x150] sm:$0xff] %vm2020, %v6338
  %6488 = vst.msk [vmem:[#allocation2 + $0x158] sm:$0xff] %vm2020, %v6340
  %6489 = vst.msk [vmem:[#allocation2 + $0x160] sm:$0xff] %vm2020, %v6342
  %6490 = vst.msk [vmem:[#allocation2 + $0x168] sm:$0xff] %vm2020, %v6344
  %6491 = vst.msk [vmem:[#allocation2 + $0x170] sm:$0xff] %vm2020, %v6346
  %6492 = vst.msk [vmem:[#allocation2 + $0x178] sm:$0xff] %vm2020, %v6348
  %6493 = vst.msk [vmem:[#allocation2 + $0x180] sm:$0xff] %vm2020, %v6350
  %6494 = vst.msk [vmem:[#allocation2 + $0x188] sm:$0xff] %vm2020, %v6352
  %6495 = vst.msk [vmem:[#allocation2 + $0x190] sm:$0xff] %vm2020, %v6354
  %6496 = vst.msk [vmem:[#allocation2 + $0x198] sm:$0xff] %vm2020, %v6356
  %6497 = vst.msk [vmem:[#allocation2 + $0x1a0] sm:$0xff] %vm2020, %v6358
  %6498 = vst.msk [vmem:[#allocation2 + $0x1a8] sm:$0xff] %vm2020, %v6360
  %6499 = vst.msk [vmem:[#allocation2 + $0x1b0] sm:$0xff] %vm2020, %v6362
  %6500 = vst.msk [vmem:[#allocation2 + $0x1b8] sm:$0xff] %vm2020, %v6364
  %6501 = vst.msk [vmem:[#allocation2 + $0x1c0] sm:$0xff] %vm2020, %v6366
  %6502 = vst.msk [vmem:[#allocation2 + $0x1c8] sm:$0xff] %vm2020, %v6368
  %6503 = vst.msk [vmem:[#allocation2 + $0x1d0] sm:$0xff] %vm2020, %v6370
  %6504 = vst.msk [vmem:[#allocation2 + $0x1d8] sm:$0xff] %vm2020, %v6372
  %6505 = vst.msk [vmem:[#allocation2 + $0x1e0] sm:$0xff] %vm2020, %v6374
  %6506 = vst.msk [vmem:[#allocation2 + $0x1e8] sm:$0xff] %vm2020, %v6376
  %6507 = vst.msk [vmem:[#allocation2 + $0x1f0] sm:$0xff] %vm2020, %v6378
  %6508 = vst.msk [vmem:[#allocation2 + $0x1f8] sm:$0xff] %vm2020, %v6380
  %s6509 = scalar_lea.vmem [#allocation3], 48
  %v6510 = vld [vmem:[%s6509] sm:$0xff]
  %v6511 = vld [vmem:[%s6509 + $0x8] sm:$0xff]
  %v6512 = vld [vmem:[%s6509 + $0x18] sm:$0xff]
  %v6513 = vld [vmem:[%s6509 + $0x20] sm:$0xff]
  %v6514 = vld [vmem:[%s6509 + $0x30] sm:$0xff]
  %v6515 = vld [vmem:[%s6509 + $0x38] sm:$0xff]
  %v6516 = vld [vmem:[%s6509 + $0x48] sm:$0xff]
  %v6517 = vld [vmem:[%s6509 + $0x50] sm:$0xff]
  %v6518 = vld [vmem:[%s6509 + $0x60] sm:$0xff]
  %v6519 = vld [vmem:[%s6509 + $0x68] sm:$0xff]
  %v6520 = vld [vmem:[%s6509 + $0x78] sm:$0xff]
  %v6521 = vld [vmem:[%s6509 + $0x80] sm:$0xff]
  %v6522 = vld [vmem:[%s6509 + $0x90] sm:$0xff]
  %v6523 = vld [vmem:[%s6509 + $0x98] sm:$0xff]
  %v6524 = vld [vmem:[%s6509 + $0xa8] sm:$0xff]
  %v6525 = vld [vmem:[%s6509 + $0xb0] sm:$0xff]
  %v6526 = vld [vmem:[%s6509 + $0xc0] sm:$0xff]
  %v6527 = vld [vmem:[%s6509 + $0xc8] sm:$0xff]
  %v6528 = vld [vmem:[%s6509 + $0xd8] sm:$0xff]
  %v6529 = vld [vmem:[%s6509 + $0xe0] sm:$0xff]
  %v6530 = vld [vmem:[%s6509 + $0xf0] sm:$0xff]
  %v6531 = vld [vmem:[%s6509 + $0xf8] sm:$0xff]
  %v6532 = vld [vmem:[%s6509 + $0x108] sm:$0xff]
  %v6533 = vld [vmem:[%s6509 + $0x110] sm:$0xff]
  %v6534 = vld [vmem:[%s6509 + $0x120] sm:$0xff]
  %v6535 = vld [vmem:[%s6509 + $0x128] sm:$0xff]
  %v6536 = vld [vmem:[%s6509 + $0x138] sm:$0xff]
  %v6537 = vld [vmem:[%s6509 + $0x140] sm:$0xff]
  %v6538 = vld [vmem:[%s6509 + $0x150] sm:$0xff]
  %v6539 = vld [vmem:[%s6509 + $0x158] sm:$0xff]
  %v6540 = vld [vmem:[%s6509 + $0x168] sm:$0xff]
  %v6541 = vld [vmem:[%s6509 + $0x170] sm:$0xff]
  %v6542 = vld [vmem:[%s6509 + $0x1b0] sm:$0xff]
  %v6543 = vld [vmem:[%s6509 + $0x1b8] sm:$0xff]
  %v6544 = vld [vmem:[%s6509 + $0x1c8] sm:$0xff]
  %v6545 = vld [vmem:[%s6509 + $0x1d0] sm:$0xff]
  %v6546 = vld [vmem:[%s6509 + $0x1e0] sm:$0xff]
  %v6547 = vld [vmem:[%s6509 + $0x1e8] sm:$0xff]
  %v6548 = vld [vmem:[%s6509 + $0x1f8] sm:$0xff]
  %v6549 = vld [vmem:[%s6509 + $0x200] sm:$0xff]
  %v6550 = vld [vmem:[%s6509 + $0x210] sm:$0xff]
  %v6551 = vld [vmem:[%s6509 + $0x218] sm:$0xff]
  %v6552 = vld [vmem:[%s6509 + $0x228] sm:$0xff]
  %v6553 = vld [vmem:[%s6509 + $0x230] sm:$0xff]
  %v6554 = vld [vmem:[%s6509 + $0x240] sm:$0xff]
  %v6555 = vld [vmem:[%s6509 + $0x248] sm:$0xff]
  %v6556 = vld [vmem:[%s6509 + $0x258] sm:$0xff]
  %v6557 = vld [vmem:[%s6509 + $0x260] sm:$0xff]
  %v6558 = vld [vmem:[%s6509 + $0x270] sm:$0xff]
  %v6559 = vld [vmem:[%s6509 + $0x278] sm:$0xff]
  %v6560 = vld [vmem:[%s6509 + $0x288] sm:$0xff]
  %v6561 = vld [vmem:[%s6509 + $0x290] sm:$0xff]
  %v6562 = vld [vmem:[%s6509 + $0x2a0] sm:$0xff]
  %v6563 = vld [vmem:[%s6509 + $0x2a8] sm:$0xff]
  %v6564 = vld [vmem:[%s6509 + $0x2b8] sm:$0xff]
  %v6565 = vld [vmem:[%s6509 + $0x2c0] sm:$0xff]
  %v6566 = vld [vmem:[%s6509 + $0x2d0] sm:$0xff]
  %v6567 = vld [vmem:[%s6509 + $0x2d8] sm:$0xff]
  %v6568 = vld [vmem:[%s6509 + $0x2e8] sm:$0xff]
  %v6569 = vld [vmem:[%s6509 + $0x2f0] sm:$0xff]
  %v6570 = vld [vmem:[%s6509 + $0x300] sm:$0xff]
  %v6571 = vld [vmem:[%s6509 + $0x308] sm:$0xff]
  %v6572 = vld [vmem:[%s6509 + $0x318] sm:$0xff]
  %v6573 = vld [vmem:[%s6509 + $0x320] sm:$0xff]
  %6638 = vrot.lane.b32.xlu0 %v6510, 48
  %v6639 = vpop.permute.xlu0 %6638
  %6640 = vrot.lane.b32.xlu0 %v6511, 48
  %v6641 = vpop.permute.xlu0 %6640
  %6642 = vrot.lane.b32.xlu0 %v6512, 48
  %v6643 = vpop.permute.xlu0 %6642
  %6644 = vrot.lane.b32.xlu0 %v6513, 48
  %v6645 = vpop.permute.xlu0 %6644
  %6646 = vrot.lane.b32.xlu0 %v6514, 48
  %v6647 = vpop.permute.xlu0 %6646
  %6648 = vrot.lane.b32.xlu0 %v6515, 48
  %v6649 = vpop.permute.xlu0 %6648
  %6650 = vrot.lane.b32.xlu0 %v6516, 48
  %v6651 = vpop.permute.xlu0 %6650
  %6652 = vrot.lane.b32.xlu0 %v6517, 48
  %v6653 = vpop.permute.xlu0 %6652
  %6654 = vrot.lane.b32.xlu0 %v6518, 48
  %v6655 = vpop.permute.xlu0 %6654
  %6656 = vrot.lane.b32.xlu0 %v6519, 48
  %v6657 = vpop.permute.xlu0 %6656
  %6658 = vrot.lane.b32.xlu0 %v6520, 48
  %v6659 = vpop.permute.xlu0 %6658
  %6660 = vrot.lane.b32.xlu0 %v6521, 48
  %v6661 = vpop.permute.xlu0 %6660
  %6662 = vrot.lane.b32.xlu0 %v6522, 48
  %v6663 = vpop.permute.xlu0 %6662
  %6664 = vrot.lane.b32.xlu0 %v6523, 48
  %v6665 = vpop.permute.xlu0 %6664
  %6666 = vrot.lane.b32.xlu0 %v6524, 48
  %v6667 = vpop.permute.xlu0 %6666
  %6668 = vrot.lane.b32.xlu0 %v6525, 48
  %v6669 = vpop.permute.xlu0 %6668
  %6670 = vrot.lane.b32.xlu0 %v6526, 48
  %v6671 = vpop.permute.xlu0 %6670
  %6672 = vrot.lane.b32.xlu0 %v6527, 48
  %v6673 = vpop.permute.xlu0 %6672
  %6674 = vrot.lane.b32.xlu0 %v6528, 48
  %v6675 = vpop.permute.xlu0 %6674
  %6676 = vrot.lane.b32.xlu0 %v6529, 48
  %v6677 = vpop.permute.xlu0 %6676
  %6678 = vrot.lane.b32.xlu0 %v6530, 48
  %v6679 = vpop.permute.xlu0 %6678
  %6680 = vrot.lane.b32.xlu0 %v6531, 48
  %v6681 = vpop.permute.xlu0 %6680
  %6682 = vrot.lane.b32.xlu0 %v6532, 48
  %v6683 = vpop.permute.xlu0 %6682
  %6684 = vrot.lane.b32.xlu0 %v6533, 48
  %v6685 = vpop.permute.xlu0 %6684
  %6686 = vrot.lane.b32.xlu0 %v6534, 48
  %v6687 = vpop.permute.xlu0 %6686
  %6688 = vrot.lane.b32.xlu0 %v6535, 48
  %v6689 = vpop.permute.xlu0 %6688
  %6690 = vrot.lane.b32.xlu0 %v6536, 48
  %v6691 = vpop.permute.xlu0 %6690
  %6692 = vrot.lane.b32.xlu0 %v6537, 48
  %v6693 = vpop.permute.xlu0 %6692
  %6694 = vrot.lane.b32.xlu0 %v6538, 48
  %v6695 = vpop.permute.xlu0 %6694
  %6696 = vrot.lane.b32.xlu0 %v6539, 48
  %v6697 = vpop.permute.xlu0 %6696
  %6698 = vrot.lane.b32.xlu0 %v6540, 48
  %v6699 = vpop.permute.xlu0 %6698
  %6700 = vrot.lane.b32.xlu0 %v6541, 48
  %v6701 = vpop.permute.xlu0 %6700
  %6702 = vrot.lane.b32.xlu0 %v6542, 48
  %v6703 = vpop.permute.xlu0 %6702
  %6704 = vrot.lane.b32.xlu0 %v6543, 48
  %v6705 = vpop.permute.xlu0 %6704
  %6706 = vrot.lane.b32.xlu0 %v6544, 48
  %v6707 = vpop.permute.xlu0 %6706
  %6708 = vrot.lane.b32.xlu0 %v6545, 48
  %v6709 = vpop.permute.xlu0 %6708
  %6710 = vrot.lane.b32.xlu0 %v6546, 48
  %v6711 = vpop.permute.xlu0 %6710
  %6712 = vrot.lane.b32.xlu0 %v6547, 48
  %v6713 = vpop.permute.xlu0 %6712
  %6714 = vrot.lane.b32.xlu0 %v6548, 48
  %v6715 = vpop.permute.xlu0 %6714
  %6716 = vrot.lane.b32.xlu0 %v6549, 48
  %v6717 = vpop.permute.xlu0 %6716
  %6718 = vrot.lane.b32.xlu0 %v6550, 48
  %v6719 = vpop.permute.xlu0 %6718
  %6720 = vrot.lane.b32.xlu0 %v6551, 48
  %v6721 = vpop.permute.xlu0 %6720
  %6722 = vrot.lane.b32.xlu0 %v6552, 48
  %v6723 = vpop.permute.xlu0 %6722
  %6724 = vrot.lane.b32.xlu0 %v6553, 48
  %v6725 = vpop.permute.xlu0 %6724
  %6726 = vrot.lane.b32.xlu0 %v6554, 48
  %v6727 = vpop.permute.xlu0 %6726
  %6728 = vrot.lane.b32.xlu0 %v6555, 48
  %v6729 = vpop.permute.xlu0 %6728
  %6730 = vrot.lane.b32.xlu0 %v6556, 48
  %v6731 = vpop.permute.xlu0 %6730
  %6732 = vrot.lane.b32.xlu0 %v6557, 48
  %v6733 = vpop.permute.xlu0 %6732
  %6734 = vrot.lane.b32.xlu0 %v6558, 48
  %v6735 = vpop.permute.xlu0 %6734
  %6736 = vrot.lane.b32.xlu0 %v6559, 48
  %v6737 = vpop.permute.xlu0 %6736
  %6738 = vrot.lane.b32.xlu0 %v6560, 48
  %v6739 = vpop.permute.xlu0 %6738
  %6740 = vrot.lane.b32.xlu0 %v6561, 48
  %v6741 = vpop.permute.xlu0 %6740
  %6742 = vrot.lane.b32.xlu0 %v6562, 48
  %v6743 = vpop.permute.xlu0 %6742
  %6744 = vrot.lane.b32.xlu0 %v6563, 48
  %v6745 = vpop.permute.xlu0 %6744
  %6746 = vrot.lane.b32.xlu0 %v6564, 48
  %v6747 = vpop.permute.xlu0 %6746
  %6748 = vrot.lane.b32.xlu0 %v6565, 48
  %v6749 = vpop.permute.xlu0 %6748
  %6750 = vrot.lane.b32.xlu0 %v6566, 48
  %v6751 = vpop.permute.xlu0 %6750
  %6752 = vrot.lane.b32.xlu0 %v6567, 48
  %v6753 = vpop.permute.xlu0 %6752
  %6754 = vrot.lane.b32.xlu0 %v6568, 48
  %v6755 = vpop.permute.xlu0 %6754
  %6756 = vrot.lane.b32.xlu0 %v6569, 48
  %v6757 = vpop.permute.xlu0 %6756
  %6758 = vrot.lane.b32.xlu0 %v6570, 48
  %v6759 = vpop.permute.xlu0 %6758
  %6760 = vrot.lane.b32.xlu0 %v6571, 48
  %v6761 = vpop.permute.xlu0 %6760
  %6762 = vrot.lane.b32.xlu0 %v6572, 48
  %v6763 = vpop.permute.xlu0 %6762
  %6764 = vrot.lane.b32.xlu0 %v6573, 48
  %v6765 = vpop.permute.xlu0 %6764
  %6830 = vst.msk [vmem:[#allocation2] sm:$0xff] %vm2406, %v6639
  %6831 = vst.msk [vmem:[#allocation2 + $0x8] sm:$0xff] %vm2406, %v6641
  %6832 = vst.msk [vmem:[#allocation2 + $0x10] sm:$0xff] %vm2406, %v6643
  %6833 = vst.msk [vmem:[#allocation2 + $0x18] sm:$0xff] %vm2406, %v6645
  %6834 = vst.msk [vmem:[#allocation2 + $0x20] sm:$0xff] %vm2406, %v6647
  %6835 = vst.msk [vmem:[#allocation2 + $0x28] sm:$0xff] %vm2406, %v6649
  %6836 = vst.msk [vmem:[#allocation2 + $0x30] sm:$0xff] %vm2406, %v6651
  %6837 = vst.msk [vmem:[#allocation2 + $0x38] sm:$0xff] %vm2406, %v6653
  %6838 = vst.msk [vmem:[#allocation2 + $0x40] sm:$0xff] %vm2406, %v6655
  %6839 = vst.msk [vmem:[#allocation2 + $0x48] sm:$0xff] %vm2406, %v6657
  %6840 = vst.msk [vmem:[#allocation2 + $0x50] sm:$0xff] %vm2406, %v6659
  %6841 = vst.msk [vmem:[#allocation2 + $0x58] sm:$0xff] %vm2406, %v6661
  %6842 = vst.msk [vmem:[#allocation2 + $0x60] sm:$0xff] %vm2406, %v6663
  %6843 = vst.msk [vmem:[#allocation2 + $0x68] sm:$0xff] %vm2406, %v6665
  %6844 = vst.msk [vmem:[#allocation2 + $0x70] sm:$0xff] %vm2406, %v6667
  %6845 = vst.msk [vmem:[#allocation2 + $0x78] sm:$0xff] %vm2406, %v6669
  %6846 = vst.msk [vmem:[#allocation2 + $0x80] sm:$0xff] %vm2406, %v6671
  %6847 = vst.msk [vmem:[#allocation2 + $0x88] sm:$0xff] %vm2406, %v6673
  %6848 = vst.msk [vmem:[#allocation2 + $0x90] sm:$0xff] %vm2406, %v6675
  %6849 = vst.msk [vmem:[#allocation2 + $0x98] sm:$0xff] %vm2406, %v6677
  %6850 = vst.msk [vmem:[#allocation2 + $0xa0] sm:$0xff] %vm2406, %v6679
  %6851 = vst.msk [vmem:[#allocation2 + $0xa8] sm:$0xff] %vm2406, %v6681
  %6852 = vst.msk [vmem:[#allocation2 + $0xb0] sm:$0xff] %vm2406, %v6683
  %6853 = vst.msk [vmem:[#allocation2 + $0xb8] sm:$0xff] %vm2406, %v6685
  %6854 = vst.msk [vmem:[#allocation2 + $0xc0] sm:$0xff] %vm2406, %v6687
  %6855 = vst.msk [vmem:[#allocation2 + $0xc8] sm:$0xff] %vm2406, %v6689
  %6856 = vst.msk [vmem:[#allocation2 + $0xd0] sm:$0xff] %vm2406, %v6691
  %6857 = vst.msk [vmem:[#allocation2 + $0xd8] sm:$0xff] %vm2406, %v6693
  %6858 = vst.msk [vmem:[#allocation2 + $0xe0] sm:$0xff] %vm2406, %v6695
  %6859 = vst.msk [vmem:[#allocation2 + $0xe8] sm:$0xff] %vm2406, %v6697
  %6860 = vst.msk [vmem:[#allocation2 + $0xf0] sm:$0xff] %vm2406, %v6699
  %6861 = vst.msk [vmem:[#allocation2 + $0xf8] sm:$0xff] %vm2406, %v6701
  %6862 = vst.msk [vmem:[#allocation2 + $0x100] sm:$0xff] %vm2406, %v6703
  %6863 = vst.msk [vmem:[#allocation2 + $0x108] sm:$0xff] %vm2406, %v6705
  %6864 = vst.msk [vmem:[#allocation2 + $0x110] sm:$0xff] %vm2406, %v6707
  %6865 = vst.msk [vmem:[#allocation2 + $0x118] sm:$0xff] %vm2406, %v6709
  %6866 = vst.msk [vmem:[#allocation2 + $0x120] sm:$0xff] %vm2406, %v6711
  %6867 = vst.msk [vmem:[#allocation2 + $0x128] sm:$0xff] %vm2406, %v6713
  %6868 = vst.msk [vmem:[#allocation2 + $0x130] sm:$0xff] %vm2406, %v6715
  %6869 = vst.msk [vmem:[#allocation2 + $0x138] sm:$0xff] %vm2406, %v6717
  %6870 = vst.msk [vmem:[#allocation2 + $0x140] sm:$0xff] %vm2406, %v6719
  %6871 = vst.msk [vmem:[#allocation2 + $0x148] sm:$0xff] %vm2406, %v6721
  %6872 = vst.msk [vmem:[#allocation2 + $0x150] sm:$0xff] %vm2406, %v6723
  %6873 = vst.msk [vmem:[#allocation2 + $0x158] sm:$0xff] %vm2406, %v6725
  %6874 = vst.msk [vmem:[#allocation2 + $0x160] sm:$0xff] %vm2406, %v6727
  %6875 = vst.msk [vmem:[#allocation2 + $0x168] sm:$0xff] %vm2406, %v6729
  %6876 = vst.msk [vmem:[#allocation2 + $0x170] sm:$0xff] %vm2406, %v6731
  %6877 = vst.msk [vmem:[#allocation2 + $0x178] sm:$0xff] %vm2406, %v6733
  %6878 = vst.msk [vmem:[#allocation2 + $0x180] sm:$0xff] %vm2406, %v6735
  %6879 = vst.msk [vmem:[#allocation2 + $0x188] sm:$0xff] %vm2406, %v6737
  %6880 = vst.msk [vmem:[#allocation2 + $0x190] sm:$0xff] %vm2406, %v6739
  %6881 = vst.msk [vmem:[#allocation2 + $0x198] sm:$0xff] %vm2406, %v6741
  %6882 = vst.msk [vmem:[#allocation2 + $0x1a0] sm:$0xff] %vm2406, %v6743
  %6883 = vst.msk [vmem:[#allocation2 + $0x1a8] sm:$0xff] %vm2406, %v6745
  %6884 = vst.msk [vmem:[#allocation2 + $0x1b0] sm:$0xff] %vm2406, %v6747
  %6885 = vst.msk [vmem:[#allocation2 + $0x1b8] sm:$0xff] %vm2406, %v6749
  %6886 = vst.msk [vmem:[#allocation2 + $0x1c0] sm:$0xff] %vm2406, %v6751
  %6887 = vst.msk [vmem:[#allocation2 + $0x1c8] sm:$0xff] %vm2406, %v6753
  %6888 = vst.msk [vmem:[#allocation2 + $0x1d0] sm:$0xff] %vm2406, %v6755
  %6889 = vst.msk [vmem:[#allocation2 + $0x1d8] sm:$0xff] %vm2406, %v6757
  %6890 = vst.msk [vmem:[#allocation2 + $0x1e0] sm:$0xff] %vm2406, %v6759
  %6891 = vst.msk [vmem:[#allocation2 + $0x1e8] sm:$0xff] %vm2406, %v6761
  %6892 = vst.msk [vmem:[#allocation2 + $0x1f0] sm:$0xff] %vm2406, %v6763
  %6893 = vst.msk [vmem:[#allocation2 + $0x1f8] sm:$0xff] %vm2406, %v6765
  %v6894 = vld [vmem:[%s6509 + $0x1] sm:$0xff]
  %v6895 = vld [vmem:[%s6509 + $0x9] sm:$0xff]
  %v6896 = vld [vmem:[%s6509 + $0x19] sm:$0xff]
  %v6897 = vld [vmem:[%s6509 + $0x21] sm:$0xff]
  %v6898 = vld [vmem:[%s6509 + $0x31] sm:$0xff]
  %v6899 = vld [vmem:[%s6509 + $0x39] sm:$0xff]
  %v6900 = vld [vmem:[%s6509 + $0x49] sm:$0xff]
  %v6901 = vld [vmem:[%s6509 + $0x51] sm:$0xff]
  %v6902 = vld [vmem:[%s6509 + $0x61] sm:$0xff]
  %v6903 = vld [vmem:[%s6509 + $0x69] sm:$0xff]
  %v6904 = vld [vmem:[%s6509 + $0x79] sm:$0xff]
  %v6905 = vld [vmem:[%s6509 + $0x81] sm:$0xff]
  %v6906 = vld [vmem:[%s6509 + $0x91] sm:$0xff]
  %v6907 = vld [vmem:[%s6509 + $0x99] sm:$0xff]
  %v6908 = vld [vmem:[%s6509 + $0xa9] sm:$0xff]
  %v6909 = vld [vmem:[%s6509 + $0xb1] sm:$0xff]
  %v6910 = vld [vmem:[%s6509 + $0xc1] sm:$0xff]
  %v6911 = vld [vmem:[%s6509 + $0xc9] sm:$0xff]
  %v6912 = vld [vmem:[%s6509 + $0xd9] sm:$0xff]
  %v6913 = vld [vmem:[%s6509 + $0xe1] sm:$0xff]
  %v6914 = vld [vmem:[%s6509 + $0xf1] sm:$0xff]
  %v6915 = vld [vmem:[%s6509 + $0xf9] sm:$0xff]
  %v6916 = vld [vmem:[%s6509 + $0x109] sm:$0xff]
  %v6917 = vld [vmem:[%s6509 + $0x111] sm:$0xff]
  %v6918 = vld [vmem:[%s6509 + $0x121] sm:$0xff]
  %v6919 = vld [vmem:[%s6509 + $0x129] sm:$0xff]
  %v6920 = vld [vmem:[%s6509 + $0x139] sm:$0xff]
  %v6921 = vld [vmem:[%s6509 + $0x141] sm:$0xff]
  %v6922 = vld [vmem:[%s6509 + $0x151] sm:$0xff]
  %v6923 = vld [vmem:[%s6509 + $0x159] sm:$0xff]
  %v6924 = vld [vmem:[%s6509 + $0x169] sm:$0xff]
  %v6925 = vld [vmem:[%s6509 + $0x171] sm:$0xff]
  %v6926 = vld [vmem:[%s6509 + $0x1b1] sm:$0xff]
  %v6927 = vld [vmem:[%s6509 + $0x1b9] sm:$0xff]
  %v6928 = vld [vmem:[%s6509 + $0x1c9] sm:$0xff]
  %v6929 = vld [vmem:[%s6509 + $0x1d1] sm:$0xff]
  %v6930 = vld [vmem:[%s6509 + $0x1e1] sm:$0xff]
  %v6931 = vld [vmem:[%s6509 + $0x1e9] sm:$0xff]
  %v6932 = vld [vmem:[%s6509 + $0x1f9] sm:$0xff]
  %v6933 = vld [vmem:[%s6509 + $0x201] sm:$0xff]
  %v6934 = vld [vmem:[%s6509 + $0x211] sm:$0xff]
  %v6935 = vld [vmem:[%s6509 + $0x219] sm:$0xff]
  %v6936 = vld [vmem:[%s6509 + $0x229] sm:$0xff]
  %v6937 = vld [vmem:[%s6509 + $0x231] sm:$0xff]
  %v6938 = vld [vmem:[%s6509 + $0x241] sm:$0xff]
  %v6939 = vld [vmem:[%s6509 + $0x249] sm:$0xff]
  %v6940 = vld [vmem:[%s6509 + $0x259] sm:$0xff]
  %v6941 = vld [vmem:[%s6509 + $0x261] sm:$0xff]
  %v6942 = vld [vmem:[%s6509 + $0x271] sm:$0xff]
  %v6943 = vld [vmem:[%s6509 + $0x279] sm:$0xff]
  %v6944 = vld [vmem:[%s6509 + $0x289] sm:$0xff]
  %v6945 = vld [vmem:[%s6509 + $0x291] sm:$0xff]
  %v6946 = vld [vmem:[%s6509 + $0x2a1] sm:$0xff]
  %v6947 = vld [vmem:[%s6509 + $0x2a9] sm:$0xff]
  %v6948 = vld [vmem:[%s6509 + $0x2b9] sm:$0xff]
  %v6949 = vld [vmem:[%s6509 + $0x2c1] sm:$0xff]
  %v6950 = vld [vmem:[%s6509 + $0x2d1] sm:$0xff]
  %v6951 = vld [vmem:[%s6509 + $0x2d9] sm:$0xff]
  %v6952 = vld [vmem:[%s6509 + $0x2e9] sm:$0xff]
  %v6953 = vld [vmem:[%s6509 + $0x2f1] sm:$0xff]
  %v6954 = vld [vmem:[%s6509 + $0x301] sm:$0xff]
  %v6955 = vld [vmem:[%s6509 + $0x309] sm:$0xff]
  %v6956 = vld [vmem:[%s6509 + $0x319] sm:$0xff]
  %v6957 = vld [vmem:[%s6509 + $0x321] sm:$0xff]
  %7022 = vrot.lane.b32.xlu0 %v6894, 56
  %v7023 = vpop.permute.xlu0 %7022
  %7024 = vrot.lane.b32.xlu0 %v6895, 56
  %v7025 = vpop.permute.xlu0 %7024
  %7026 = vrot.lane.b32.xlu0 %v6896, 56
  %v7027 = vpop.permute.xlu0 %7026
  %7028 = vrot.lane.b32.xlu0 %v6897, 56
  %v7029 = vpop.permute.xlu0 %7028
  %7030 = vrot.lane.b32.xlu0 %v6898, 56
  %v7031 = vpop.permute.xlu0 %7030
  %7032 = vrot.lane.b32.xlu0 %v6899, 56
  %v7033 = vpop.permute.xlu0 %7032
  %7034 = vrot.lane.b32.xlu0 %v6900, 56
  %v7035 = vpop.permute.xlu0 %7034
  %7036 = vrot.lane.b32.xlu0 %v6901, 56
  %v7037 = vpop.permute.xlu0 %7036
  %7038 = vrot.lane.b32.xlu0 %v6902, 56
  %v7039 = vpop.permute.xlu0 %7038
  %7040 = vrot.lane.b32.xlu0 %v6903, 56
  %v7041 = vpop.permute.xlu0 %7040
  %7042 = vrot.lane.b32.xlu0 %v6904, 56
  %v7043 = vpop.permute.xlu0 %7042
  %7044 = vrot.lane.b32.xlu0 %v6905, 56
  %v7045 = vpop.permute.xlu0 %7044
  %7046 = vrot.lane.b32.xlu0 %v6906, 56
  %v7047 = vpop.permute.xlu0 %7046
  %7048 = vrot.lane.b32.xlu0 %v6907, 56
  %v7049 = vpop.permute.xlu0 %7048
  %7050 = vrot.lane.b32.xlu0 %v6908, 56
  %v7051 = vpop.permute.xlu0 %7050
  %7052 = vrot.lane.b32.xlu0 %v6909, 56
  %v7053 = vpop.permute.xlu0 %7052
  %7054 = vrot.lane.b32.xlu0 %v6910, 56
  %v7055 = vpop.permute.xlu0 %7054
  %7056 = vrot.lane.b32.xlu0 %v6911, 56
  %v7057 = vpop.permute.xlu0 %7056
  %7058 = vrot.lane.b32.xlu0 %v6912, 56
  %v7059 = vpop.permute.xlu0 %7058
  %7060 = vrot.lane.b32.xlu0 %v6913, 56
  %v7061 = vpop.permute.xlu0 %7060
  %7062 = vrot.lane.b32.xlu0 %v6914, 56
  %v7063 = vpop.permute.xlu0 %7062
  %7064 = vrot.lane.b32.xlu0 %v6915, 56
  %v7065 = vpop.permute.xlu0 %7064
  %7066 = vrot.lane.b32.xlu0 %v6916, 56
  %v7067 = vpop.permute.xlu0 %7066
  %7068 = vrot.lane.b32.xlu0 %v6917, 56
  %v7069 = vpop.permute.xlu0 %7068
  %7070 = vrot.lane.b32.xlu0 %v6918, 56
  %v7071 = vpop.permute.xlu0 %7070
  %7072 = vrot.lane.b32.xlu0 %v6919, 56
  %v7073 = vpop.permute.xlu0 %7072
  %7074 = vrot.lane.b32.xlu0 %v6920, 56
  %v7075 = vpop.permute.xlu0 %7074
  %7076 = vrot.lane.b32.xlu0 %v6921, 56
  %v7077 = vpop.permute.xlu0 %7076
  %7078 = vrot.lane.b32.xlu0 %v6922, 56
  %v7079 = vpop.permute.xlu0 %7078
  %7080 = vrot.lane.b32.xlu0 %v6923, 56
  %v7081 = vpop.permute.xlu0 %7080
  %7082 = vrot.lane.b32.xlu0 %v6924, 56
  %v7083 = vpop.permute.xlu0 %7082
  %7084 = vrot.lane.b32.xlu0 %v6925, 56
  %v7085 = vpop.permute.xlu0 %7084
  %7086 = vrot.lane.b32.xlu0 %v6926, 56
  %v7087 = vpop.permute.xlu0 %7086
  %7088 = vrot.lane.b32.xlu0 %v6927, 56
  %v7089 = vpop.permute.xlu0 %7088
  %7090 = vrot.lane.b32.xlu0 %v6928, 56
  %v7091 = vpop.permute.xlu0 %7090
  %7092 = vrot.lane.b32.xlu0 %v6929, 56
  %v7093 = vpop.permute.xlu0 %7092
  %7094 = vrot.lane.b32.xlu0 %v6930, 56
  %v7095 = vpop.permute.xlu0 %7094
  %7096 = vrot.lane.b32.xlu0 %v6931, 56
  %v7097 = vpop.permute.xlu0 %7096
  %7098 = vrot.lane.b32.xlu0 %v6932, 56
  %v7099 = vpop.permute.xlu0 %7098
  %7100 = vrot.lane.b32.xlu0 %v6933, 56
  %v7101 = vpop.permute.xlu0 %7100
  %7102 = vrot.lane.b32.xlu0 %v6934, 56
  %v7103 = vpop.permute.xlu0 %7102
  %7104 = vrot.lane.b32.xlu0 %v6935, 56
  %v7105 = vpop.permute.xlu0 %7104
  %7106 = vrot.lane.b32.xlu0 %v6936, 56
  %v7107 = vpop.permute.xlu0 %7106
  %7108 = vrot.lane.b32.xlu0 %v6937, 56
  %v7109 = vpop.permute.xlu0 %7108
  %7110 = vrot.lane.b32.xlu0 %v6938, 56
  %v7111 = vpop.permute.xlu0 %7110
  %7112 = vrot.lane.b32.xlu0 %v6939, 56
  %v7113 = vpop.permute.xlu0 %7112
  %7114 = vrot.lane.b32.xlu0 %v6940, 56
  %v7115 = vpop.permute.xlu0 %7114
  %7116 = vrot.lane.b32.xlu0 %v6941, 56
  %v7117 = vpop.permute.xlu0 %7116
  %7118 = vrot.lane.b32.xlu0 %v6942, 56
  %v7119 = vpop.permute.xlu0 %7118
  %7120 = vrot.lane.b32.xlu0 %v6943, 56
  %v7121 = vpop.permute.xlu0 %7120
  %7122 = vrot.lane.b32.xlu0 %v6944, 56
  %v7123 = vpop.permute.xlu0 %7122
  %7124 = vrot.lane.b32.xlu0 %v6945, 56
  %v7125 = vpop.permute.xlu0 %7124
  %7126 = vrot.lane.b32.xlu0 %v6946, 56
  %v7127 = vpop.permute.xlu0 %7126
  %7128 = vrot.lane.b32.xlu0 %v6947, 56
  %v7129 = vpop.permute.xlu0 %7128
  %7130 = vrot.lane.b32.xlu0 %v6948, 56
  %v7131 = vpop.permute.xlu0 %7130
  %7132 = vrot.lane.b32.xlu0 %v6949, 56
  %v7133 = vpop.permute.xlu0 %7132
  %7134 = vrot.lane.b32.xlu0 %v6950, 56
  %v7135 = vpop.permute.xlu0 %7134
  %7136 = vrot.lane.b32.xlu0 %v6951, 56
  %v7137 = vpop.permute.xlu0 %7136
  %7138 = vrot.lane.b32.xlu0 %v6952, 56
  %v7139 = vpop.permute.xlu0 %7138
  %7140 = vrot.lane.b32.xlu0 %v6953, 56
  %v7141 = vpop.permute.xlu0 %7140
  %7142 = vrot.lane.b32.xlu0 %v6954, 56
  %v7143 = vpop.permute.xlu0 %7142
  %7144 = vrot.lane.b32.xlu0 %v6955, 56
  %v7145 = vpop.permute.xlu0 %7144
  %7146 = vrot.lane.b32.xlu0 %v6956, 56
  %v7147 = vpop.permute.xlu0 %7146
  %7148 = vrot.lane.b32.xlu0 %v6957, 56
  %v7149 = vpop.permute.xlu0 %7148
  %7214 = vst.msk [vmem:[#allocation2] sm:$0xff] %vm2791, %v7023
  %7215 = vst.msk [vmem:[#allocation2 + $0x8] sm:$0xff] %vm2791, %v7025
  %7216 = vst.msk [vmem:[#allocation2 + $0x10] sm:$0xff] %vm2791, %v7027
  %7217 = vst.msk [vmem:[#allocation2 + $0x18] sm:$0xff] %vm2791, %v7029
  %7218 = vst.msk [vmem:[#allocation2 + $0x20] sm:$0xff] %vm2791, %v7031
  %7219 = vst.msk [vmem:[#allocation2 + $0x28] sm:$0xff] %vm2791, %v7033
  %7220 = vst.msk [vmem:[#allocation2 + $0x30] sm:$0xff] %vm2791, %v7035
  %7221 = vst.msk [vmem:[#allocation2 + $0x38] sm:$0xff] %vm2791, %v7037
  %7222 = vst.msk [vmem:[#allocation2 + $0x40] sm:$0xff] %vm2791, %v7039
  %7223 = vst.msk [vmem:[#allocation2 + $0x48] sm:$0xff] %vm2791, %v7041
  %7224 = vst.msk [vmem:[#allocation2 + $0x50] sm:$0xff] %vm2791, %v7043
  %7225 = vst.msk [vmem:[#allocation2 + $0x58] sm:$0xff] %vm2791, %v7045
  %7226 = vst.msk [vmem:[#allocation2 + $0x60] sm:$0xff] %vm2791, %v7047
  %7227 = vst.msk [vmem:[#allocation2 + $0x68] sm:$0xff] %vm2791, %v7049
  %7228 = vst.msk [vmem:[#allocation2 + $0x70] sm:$0xff] %vm2791, %v7051
  %7229 = vst.msk [vmem:[#allocation2 + $0x78] sm:$0xff] %vm2791, %v7053
  %7230 = vst.msk [vmem:[#allocation2 + $0x80] sm:$0xff] %vm2791, %v7055
  %7231 = vst.msk [vmem:[#allocation2 + $0x88] sm:$0xff] %vm2791, %v7057
  %7232 = vst.msk [vmem:[#allocation2 + $0x90] sm:$0xff] %vm2791, %v7059
  %7233 = vst.msk [vmem:[#allocation2 + $0x98] sm:$0xff] %vm2791, %v7061
  %7234 = vst.msk [vmem:[#allocation2 + $0xa0] sm:$0xff] %vm2791, %v7063
  %7235 = vst.msk [vmem:[#allocation2 + $0xa8] sm:$0xff] %vm2791, %v7065
  %7236 = vst.msk [vmem:[#allocation2 + $0xb0] sm:$0xff] %vm2791, %v7067
  %7237 = vst.msk [vmem:[#allocation2 + $0xb8] sm:$0xff] %vm2791, %v7069
  %7238 = vst.msk [vmem:[#allocation2 + $0xc0] sm:$0xff] %vm2791, %v7071
  %7239 = vst.msk [vmem:[#allocation2 + $0xc8] sm:$0xff] %vm2791, %v7073
  %7240 = vst.msk [vmem:[#allocation2 + $0xd0] sm:$0xff] %vm2791, %v7075
  %7241 = vst.msk [vmem:[#allocation2 + $0xd8] sm:$0xff] %vm2791, %v7077
  %7242 = vst.msk [vmem:[#allocation2 + $0xe0] sm:$0xff] %vm2791, %v7079
  %7243 = vst.msk [vmem:[#allocation2 + $0xe8] sm:$0xff] %vm2791, %v7081
  %7244 = vst.msk [vmem:[#allocation2 + $0xf0] sm:$0xff] %vm2791, %v7083
  %7245 = vst.msk [vmem:[#allocation2 + $0xf8] sm:$0xff] %vm2791, %v7085
  %7246 = vst.msk [vmem:[#allocation2 + $0x100] sm:$0xff] %vm2791, %v7087
  %7247 = vst.msk [vmem:[#allocation2 + $0x108] sm:$0xff] %vm2791, %v7089
  %7248 = vst.msk [vmem:[#allocation2 + $0x110] sm:$0xff] %vm2791, %v7091
  %7249 = vst.msk [vmem:[#allocation2 + $0x118] sm:$0xff] %vm2791, %v7093
  %7250 = vst.msk [vmem:[#allocation2 + $0x120] sm:$0xff] %vm2791, %v7095
  %7251 = vst.msk [vmem:[#allocation2 + $0x128] sm:$0xff] %vm2791, %v7097
  %7252 = vst.msk [vmem:[#allocation2 + $0x130] sm:$0xff] %vm2791, %v7099
  %7253 = vst.msk [vmem:[#allocation2 + $0x138] sm:$0xff] %vm2791, %v7101
  %7254 = vst.msk [vmem:[#allocation2 + $0x140] sm:$0xff] %vm2791, %v7103
  %7255 = vst.msk [vmem:[#allocation2 + $0x148] sm:$0xff] %vm2791, %v7105
  %7256 = vst.msk [vmem:[#allocation2 + $0x150] sm:$0xff] %vm2791, %v7107
  %7257 = vst.msk [vmem:[#allocation2 + $0x158] sm:$0xff] %vm2791, %v7109
  %7258 = vst.msk [vmem:[#allocation2 + $0x160] sm:$0xff] %vm2791, %v7111
  %7259 = vst.msk [vmem:[#allocation2 + $0x168] sm:$0xff] %vm2791, %v7113
  %7260 = vst.msk [vmem:[#allocation2 + $0x170] sm:$0xff] %vm2791, %v7115
  %7261 = vst.msk [vmem:[#allocation2 + $0x178] sm:$0xff] %vm2791, %v7117
  %7262 = vst.msk [vmem:[#allocation2 + $0x180] sm:$0xff] %vm2791, %v7119
  %7263 = vst.msk [vmem:[#allocation2 + $0x188] sm:$0xff] %vm2791, %v7121
  %7264 = vst.msk [vmem:[#allocation2 + $0x190] sm:$0xff] %vm2791, %v7123
  %7265 = vst.msk [vmem:[#allocation2 + $0x198] sm:$0xff] %vm2791, %v7125
  %7266 = vst.msk [vmem:[#allocation2 + $0x1a0] sm:$0xff] %vm2791, %v7127
  %7267 = vst.msk [vmem:[#allocation2 + $0x1a8] sm:$0xff] %vm2791, %v7129
  %7268 = vst.msk [vmem:[#allocation2 + $0x1b0] sm:$0xff] %vm2791, %v7131
  %7269 = vst.msk [vmem:[#allocation2 + $0x1b8] sm:$0xff] %vm2791, %v7133
  %7270 = vst.msk [vmem:[#allocation2 + $0x1c0] sm:$0xff] %vm2791, %v7135
  %7271 = vst.msk [vmem:[#allocation2 + $0x1c8] sm:$0xff] %vm2791, %v7137
  %7272 = vst.msk [vmem:[#allocation2 + $0x1d0] sm:$0xff] %vm2791, %v7139
  %7273 = vst.msk [vmem:[#allocation2 + $0x1d8] sm:$0xff] %vm2791, %v7141
  %7274 = vst.msk [vmem:[#allocation2 + $0x1e0] sm:$0xff] %vm2791, %v7143
  %7275 = vst.msk [vmem:[#allocation2 + $0x1e8] sm:$0xff] %vm2791, %v7145
  %7276 = vst.msk [vmem:[#allocation2 + $0x1f0] sm:$0xff] %vm2791, %v7147
  %7277 = vst.msk [vmem:[#allocation2 + $0x1f8] sm:$0xff] %vm2791, %v7149
  %v7278 = vld [vmem:[%s6509 + $0x2] sm:$0xff]
  %v7279 = vld [vmem:[%s6509 + $0xa] sm:$0xff]
  %v7280 = vld [vmem:[%s6509 + $0x1a] sm:$0xff]
  %v7281 = vld [vmem:[%s6509 + $0x22] sm:$0xff]
  %v7282 = vld [vmem:[%s6509 + $0x32] sm:$0xff]
  %v7283 = vld [vmem:[%s6509 + $0x3a] sm:$0xff]
  %v7284 = vld [vmem:[%s6509 + $0x4a] sm:$0xff]
  %v7285 = vld [vmem:[%s6509 + $0x52] sm:$0xff]
  %v7286 = vld [vmem:[%s6509 + $0x62] sm:$0xff]
  %v7287 = vld [vmem:[%s6509 + $0x6a] sm:$0xff]
  %v7288 = vld [vmem:[%s6509 + $0x7a] sm:$0xff]
  %v7289 = vld [vmem:[%s6509 + $0x82] sm:$0xff]
  %v7290 = vld [vmem:[%s6509 + $0x92] sm:$0xff]
  %v7291 = vld [vmem:[%s6509 + $0x9a] sm:$0xff]
  %v7292 = vld [vmem:[%s6509 + $0xaa] sm:$0xff]
  %v7293 = vld [vmem:[%s6509 + $0xb2] sm:$0xff]
  %v7294 = vld [vmem:[%s6509 + $0xc2] sm:$0xff]
  %v7295 = vld [vmem:[%s6509 + $0xca] sm:$0xff]
  %v7296 = vld [vmem:[%s6509 + $0xda] sm:$0xff]
  %v7297 = vld [vmem:[%s6509 + $0xe2] sm:$0xff]
  %v7298 = vld [vmem:[%s6509 + $0xf2] sm:$0xff]
  %v7299 = vld [vmem:[%s6509 + $0xfa] sm:$0xff]
  %v7300 = vld [vmem:[%s6509 + $0x10a] sm:$0xff]
  %v7301 = vld [vmem:[%s6509 + $0x112] sm:$0xff]
  %v7302 = vld [vmem:[%s6509 + $0x122] sm:$0xff]
  %v7303 = vld [vmem:[%s6509 + $0x12a] sm:$0xff]
  %v7304 = vld [vmem:[%s6509 + $0x13a] sm:$0xff]
  %v7305 = vld [vmem:[%s6509 + $0x142] sm:$0xff]
  %v7306 = vld [vmem:[%s6509 + $0x152] sm:$0xff]
  %v7307 = vld [vmem:[%s6509 + $0x15a] sm:$0xff]
  %v7308 = vld [vmem:[%s6509 + $0x16a] sm:$0xff]
  %v7309 = vld [vmem:[%s6509 + $0x172] sm:$0xff]
  %v7310 = vld [vmem:[%s6509 + $0x1b2] sm:$0xff]
  %v7311 = vld [vmem:[%s6509 + $0x1ba] sm:$0xff]
  %v7312 = vld [vmem:[%s6509 + $0x1ca] sm:$0xff]
  %v7313 = vld [vmem:[%s6509 + $0x1d2] sm:$0xff]
  %v7314 = vld [vmem:[%s6509 + $0x1e2] sm:$0xff]
  %v7315 = vld [vmem:[%s6509 + $0x1ea] sm:$0xff]
  %v7316 = vld [vmem:[%s6509 + $0x1fa] sm:$0xff]
  %v7317 = vld [vmem:[%s6509 + $0x202] sm:$0xff]
  %v7318 = vld [vmem:[%s6509 + $0x212] sm:$0xff]
  %v7319 = vld [vmem:[%s6509 + $0x21a] sm:$0xff]
  %v7320 = vld [vmem:[%s6509 + $0x22a] sm:$0xff]
  %v7321 = vld [vmem:[%s6509 + $0x232] sm:$0xff]
  %v7322 = vld [vmem:[%s6509 + $0x242] sm:$0xff]
  %v7323 = vld [vmem:[%s6509 + $0x24a] sm:$0xff]
  %v7324 = vld [vmem:[%s6509 + $0x25a] sm:$0xff]
  %v7325 = vld [vmem:[%s6509 + $0x262] sm:$0xff]
  %v7326 = vld [vmem:[%s6509 + $0x272] sm:$0xff]
  %v7327 = vld [vmem:[%s6509 + $0x27a] sm:$0xff]
  %v7328 = vld [vmem:[%s6509 + $0x28a] sm:$0xff]
  %v7329 = vld [vmem:[%s6509 + $0x292] sm:$0xff]
  %v7330 = vld [vmem:[%s6509 + $0x2a2] sm:$0xff]
  %v7331 = vld [vmem:[%s6509 + $0x2aa] sm:$0xff]
  %v7332 = vld [vmem:[%s6509 + $0x2ba] sm:$0xff]
  %v7333 = vld [vmem:[%s6509 + $0x2c2] sm:$0xff]
  %v7334 = vld [vmem:[%s6509 + $0x2d2] sm:$0xff]
  %v7335 = vld [vmem:[%s6509 + $0x2da] sm:$0xff]
  %v7336 = vld [vmem:[%s6509 + $0x2ea] sm:$0xff]
  %v7337 = vld [vmem:[%s6509 + $0x2f2] sm:$0xff]
  %v7338 = vld [vmem:[%s6509 + $0x302] sm:$0xff]
  %v7339 = vld [vmem:[%s6509 + $0x30a] sm:$0xff]
  %v7340 = vld [vmem:[%s6509 + $0x31a] sm:$0xff]
  %v7341 = vld [vmem:[%s6509 + $0x322] sm:$0xff]
  %7406 = vrot.lane.b32.xlu0 %v7278, 64
  %v7407 = vpop.permute.xlu0 %7406
  %7408 = vrot.lane.b32.xlu0 %v7279, 64
  %v7409 = vpop.permute.xlu0 %7408
  %7410 = vrot.lane.b32.xlu0 %v7280, 64
  %v7411 = vpop.permute.xlu0 %7410
  %7412 = vrot.lane.b32.xlu0 %v7281, 64
  %v7413 = vpop.permute.xlu0 %7412
  %7414 = vrot.lane.b32.xlu0 %v7282, 64
  %v7415 = vpop.permute.xlu0 %7414
  %7416 = vrot.lane.b32.xlu0 %v7283, 64
  %v7417 = vpop.permute.xlu0 %7416
  %7418 = vrot.lane.b32.xlu0 %v7284, 64
  %v7419 = vpop.permute.xlu0 %7418
  %7420 = vrot.lane.b32.xlu0 %v7285, 64
  %v7421 = vpop.permute.xlu0 %7420
  %7422 = vrot.lane.b32.xlu0 %v7286, 64
  %v7423 = vpop.permute.xlu0 %7422
  %7424 = vrot.lane.b32.xlu0 %v7287, 64
  %v7425 = vpop.permute.xlu0 %7424
  %7426 = vrot.lane.b32.xlu0 %v7288, 64
  %v7427 = vpop.permute.xlu0 %7426
  %7428 = vrot.lane.b32.xlu0 %v7289, 64
  %v7429 = vpop.permute.xlu0 %7428
  %7430 = vrot.lane.b32.xlu0 %v7290, 64
  %v7431 = vpop.permute.xlu0 %7430
  %7432 = vrot.lane.b32.xlu0 %v7291, 64
  %v7433 = vpop.permute.xlu0 %7432
  %7434 = vrot.lane.b32.xlu0 %v7292, 64
  %v7435 = vpop.permute.xlu0 %7434
  %7436 = vrot.lane.b32.xlu0 %v7293, 64
  %v7437 = vpop.permute.xlu0 %7436
  %7438 = vrot.lane.b32.xlu0 %v7294, 64
  %v7439 = vpop.permute.xlu0 %7438
  %7440 = vrot.lane.b32.xlu0 %v7295, 64
  %v7441 = vpop.permute.xlu0 %7440
  %7442 = vrot.lane.b32.xlu0 %v7296, 64
  %v7443 = vpop.permute.xlu0 %7442
  %7444 = vrot.lane.b32.xlu0 %v7297, 64
  %v7445 = vpop.permute.xlu0 %7444
  %7446 = vrot.lane.b32.xlu0 %v7298, 64
  %v7447 = vpop.permute.xlu0 %7446
  %7448 = vrot.lane.b32.xlu0 %v7299, 64
  %v7449 = vpop.permute.xlu0 %7448
  %7450 = vrot.lane.b32.xlu0 %v7300, 64
  %v7451 = vpop.permute.xlu0 %7450
  %7452 = vrot.lane.b32.xlu0 %v7301, 64
  %v7453 = vpop.permute.xlu0 %7452
  %7454 = vrot.lane.b32.xlu0 %v7302, 64
  %v7455 = vpop.permute.xlu0 %7454
  %7456 = vrot.lane.b32.xlu0 %v7303, 64
  %v7457 = vpop.permute.xlu0 %7456
  %7458 = vrot.lane.b32.xlu0 %v7304, 64
  %v7459 = vpop.permute.xlu0 %7458
  %7460 = vrot.lane.b32.xlu0 %v7305, 64
  %v7461 = vpop.permute.xlu0 %7460
  %7462 = vrot.lane.b32.xlu0 %v7306, 64
  %v7463 = vpop.permute.xlu0 %7462
  %7464 = vrot.lane.b32.xlu0 %v7307, 64
  %v7465 = vpop.permute.xlu0 %7464
  %7466 = vrot.lane.b32.xlu0 %v7308, 64
  %v7467 = vpop.permute.xlu0 %7466
  %7468 = vrot.lane.b32.xlu0 %v7309, 64
  %v7469 = vpop.permute.xlu0 %7468
  %7470 = vrot.lane.b32.xlu0 %v7310, 64
  %v7471 = vpop.permute.xlu0 %7470
  %7472 = vrot.lane.b32.xlu0 %v7311, 64
  %v7473 = vpop.permute.xlu0 %7472
  %7474 = vrot.lane.b32.xlu0 %v7312, 64
  %v7475 = vpop.permute.xlu0 %7474
  %7476 = vrot.lane.b32.xlu0 %v7313, 64
  %v7477 = vpop.permute.xlu0 %7476
  %7478 = vrot.lane.b32.xlu0 %v7314, 64
  %v7479 = vpop.permute.xlu0 %7478
  %7480 = vrot.lane.b32.xlu0 %v7315, 64
  %v7481 = vpop.permute.xlu0 %7480
  %7482 = vrot.lane.b32.xlu0 %v7316, 64
  %v7483 = vpop.permute.xlu0 %7482
  %7484 = vrot.lane.b32.xlu0 %v7317, 64
  %v7485 = vpop.permute.xlu0 %7484
  %7486 = vrot.lane.b32.xlu0 %v7318, 64
  %v7487 = vpop.permute.xlu0 %7486
  %7488 = vrot.lane.b32.xlu0 %v7319, 64
  %v7489 = vpop.permute.xlu0 %7488
  %7490 = vrot.lane.b32.xlu0 %v7320, 64
  %v7491 = vpop.permute.xlu0 %7490
  %7492 = vrot.lane.b32.xlu0 %v7321, 64
  %v7493 = vpop.permute.xlu0 %7492
  %7494 = vrot.lane.b32.xlu0 %v7322, 64
  %v7495 = vpop.permute.xlu0 %7494
  %7496 = vrot.lane.b32.xlu0 %v7323, 64
  %v7497 = vpop.permute.xlu0 %7496
  %7498 = vrot.lane.b32.xlu0 %v7324, 64
  %v7499 = vpop.permute.xlu0 %7498
  %7500 = vrot.lane.b32.xlu0 %v7325, 64
  %v7501 = vpop.permute.xlu0 %7500
  %7502 = vrot.lane.b32.xlu0 %v7326, 64
  %v7503 = vpop.permute.xlu0 %7502
  %7504 = vrot.lane.b32.xlu0 %v7327, 64
  %v7505 = vpop.permute.xlu0 %7504
  %7506 = vrot.lane.b32.xlu0 %v7328, 64
  %v7507 = vpop.permute.xlu0 %7506
  %7508 = vrot.lane.b32.xlu0 %v7329, 64
  %v7509 = vpop.permute.xlu0 %7508
  %7510 = vrot.lane.b32.xlu0 %v7330, 64
  %v7511 = vpop.permute.xlu0 %7510
  %7512 = vrot.lane.b32.xlu0 %v7331, 64
  %v7513 = vpop.permute.xlu0 %7512
  %7514 = vrot.lane.b32.xlu0 %v7332, 64
  %v7515 = vpop.permute.xlu0 %7514
  %7516 = vrot.lane.b32.xlu0 %v7333, 64
  %v7517 = vpop.permute.xlu0 %7516
  %7518 = vrot.lane.b32.xlu0 %v7334, 64
  %v7519 = vpop.permute.xlu0 %7518
  %7520 = vrot.lane.b32.xlu0 %v7335, 64
  %v7521 = vpop.permute.xlu0 %7520
  %7522 = vrot.lane.b32.xlu0 %v7336, 64
  %v7523 = vpop.permute.xlu0 %7522
  %7524 = vrot.lane.b32.xlu0 %v7337, 64
  %v7525 = vpop.permute.xlu0 %7524
  %7526 = vrot.lane.b32.xlu0 %v7338, 64
  %v7527 = vpop.permute.xlu0 %7526
  %7528 = vrot.lane.b32.xlu0 %v7339, 64
  %v7529 = vpop.permute.xlu0 %7528
  %7530 = vrot.lane.b32.xlu0 %v7340, 64
  %v7531 = vpop.permute.xlu0 %7530
  %7532 = vrot.lane.b32.xlu0 %v7341, 64
  %v7533 = vpop.permute.xlu0 %7532
  %7598 = vst.msk [vmem:[#allocation2] sm:$0xff] %vm3176, %v7407
  %7599 = vst.msk [vmem:[#allocation2 + $0x8] sm:$0xff] %vm3176, %v7409
  %7600 = vst.msk [vmem:[#allocation2 + $0x10] sm:$0xff] %vm3176, %v7411
  %7601 = vst.msk [vmem:[#allocation2 + $0x18] sm:$0xff] %vm3176, %v7413
  %7602 = vst.msk [vmem:[#allocation2 + $0x20] sm:$0xff] %vm3176, %v7415
  %7603 = vst.msk [vmem:[#allocation2 + $0x28] sm:$0xff] %vm3176, %v7417
  %7604 = vst.msk [vmem:[#allocation2 + $0x30] sm:$0xff] %vm3176, %v7419
  %7605 = vst.msk [vmem:[#allocation2 + $0x38] sm:$0xff] %vm3176, %v7421
  %7606 = vst.msk [vmem:[#allocation2 + $0x40] sm:$0xff] %vm3176, %v7423
  %7607 = vst.msk [vmem:[#allocation2 + $0x48] sm:$0xff] %vm3176, %v7425
  %7608 = vst.msk [vmem:[#allocation2 + $0x50] sm:$0xff] %vm3176, %v7427
  %7609 = vst.msk [vmem:[#allocation2 + $0x58] sm:$0xff] %vm3176, %v7429
  %7610 = vst.msk [vmem:[#allocation2 + $0x60] sm:$0xff] %vm3176, %v7431
  %7611 = vst.msk [vmem:[#allocation2 + $0x68] sm:$0xff] %vm3176, %v7433
  %7612 = vst.msk [vmem:[#allocation2 + $0x70] sm:$0xff] %vm3176, %v7435
  %7613 = vst.msk [vmem:[#allocation2 + $0x78] sm:$0xff] %vm3176, %v7437
  %7614 = vst.msk [vmem:[#allocation2 + $0x80] sm:$0xff] %vm3176, %v7439
  %7615 = vst.msk [vmem:[#allocation2 + $0x88] sm:$0xff] %vm3176, %v7441
  %7616 = vst.msk [vmem:[#allocation2 + $0x90] sm:$0xff] %vm3176, %v7443
  %7617 = vst.msk [vmem:[#allocation2 + $0x98] sm:$0xff] %vm3176, %v7445
  %7618 = vst.msk [vmem:[#allocation2 + $0xa0] sm:$0xff] %vm3176, %v7447
  %7619 = vst.msk [vmem:[#allocation2 + $0xa8] sm:$0xff] %vm3176, %v7449
  %7620 = vst.msk [vmem:[#allocation2 + $0xb0] sm:$0xff] %vm3176, %v7451
  %7621 = vst.msk [vmem:[#allocation2 + $0xb8] sm:$0xff] %vm3176, %v7453
  %7622 = vst.msk [vmem:[#allocation2 + $0xc0] sm:$0xff] %vm3176, %v7455
  %7623 = vst.msk [vmem:[#allocation2 + $0xc8] sm:$0xff] %vm3176, %v7457
  %7624 = vst.msk [vmem:[#allocation2 + $0xd0] sm:$0xff] %vm3176, %v7459
  %7625 = vst.msk [vmem:[#allocation2 + $0xd8] sm:$0xff] %vm3176, %v7461
  %7626 = vst.msk [vmem:[#allocation2 + $0xe0] sm:$0xff] %vm3176, %v7463
  %7627 = vst.msk [vmem:[#allocation2 + $0xe8] sm:$0xff] %vm3176, %v7465
  %7628 = vst.msk [vmem:[#allocation2 + $0xf0] sm:$0xff] %vm3176, %v7467
  %7629 = vst.msk [vmem:[#allocation2 + $0xf8] sm:$0xff] %vm3176, %v7469
  %7630 = vst.msk [vmem:[#allocation2 + $0x100] sm:$0xff] %vm3176, %v7471
  %7631 = vst.msk [vmem:[#allocation2 + $0x108] sm:$0xff] %vm3176, %v7473
  %7632 = vst.msk [vmem:[#allocation2 + $0x110] sm:$0xff] %vm3176, %v7475
  %7633 = vst.msk [vmem:[#allocation2 + $0x118] sm:$0xff] %vm3176, %v7477
  %7634 = vst.msk [vmem:[#allocation2 + $0x120] sm:$0xff] %vm3176, %v7479
  %7635 = vst.msk [vmem:[#allocation2 + $0x128] sm:$0xff] %vm3176, %v7481
  %7636 = vst.msk [vmem:[#allocation2 + $0x130] sm:$0xff] %vm3176, %v7483
  %7637 = vst.msk [vmem:[#allocation2 + $0x138] sm:$0xff] %vm3176, %v7485
  %7638 = vst.msk [vmem:[#allocation2 + $0x140] sm:$0xff] %vm3176, %v7487
  %7639 = vst.msk [vmem:[#allocation2 + $0x148] sm:$0xff] %vm3176, %v7489
  %7640 = vst.msk [vmem:[#allocation2 + $0x150] sm:$0xff] %vm3176, %v7491
  %7641 = vst.msk [vmem:[#allocation2 + $0x158] sm:$0xff] %vm3176, %v7493
  %7642 = vst.msk [vmem:[#allocation2 + $0x160] sm:$0xff] %vm3176, %v7495
  %7643 = vst.msk [vmem:[#allocation2 + $0x168] sm:$0xff] %vm3176, %v7497
  %7644 = vst.msk [vmem:[#allocation2 + $0x170] sm:$0xff] %vm3176, %v7499
  %7645 = vst.msk [vmem:[#allocation2 + $0x178] sm:$0xff] %vm3176, %v7501
  %7646 = vst.msk [vmem:[#allocation2 + $0x180] sm:$0xff] %vm3176, %v7503
  %7647 = vst.msk [vmem:[#allocation2 + $0x188] sm:$0xff] %vm3176, %v7505
  %7648 = vst.msk [vmem:[#allocation2 + $0x190] sm:$0xff] %vm3176, %v7507
  %7649 = vst.msk [vmem:[#allocation2 + $0x198] sm:$0xff] %vm3176, %v7509
  %7650 = vst.msk [vmem:[#allocation2 + $0x1a0] sm:$0xff] %vm3176, %v7511
  %7651 = vst.msk [vmem:[#allocation2 + $0x1a8] sm:$0xff] %vm3176, %v7513
  %7652 = vst.msk [vmem:[#allocation2 + $0x1b0] sm:$0xff] %vm3176, %v7515
  %7653 = vst.msk [vmem:[#allocation2 + $0x1b8] sm:$0xff] %vm3176, %v7517
  %7654 = vst.msk [vmem:[#allocation2 + $0x1c0] sm:$0xff] %vm3176, %v7519
  %7655 = vst.msk [vmem:[#allocation2 + $0x1c8] sm:$0xff] %vm3176, %v7521
  %7656 = vst.msk [vmem:[#allocation2 + $0x1d0] sm:$0xff] %vm3176, %v7523
  %7657 = vst.msk [vmem:[#allocation2 + $0x1d8] sm:$0xff] %vm3176, %v7525
  %7658 = vst.msk [vmem:[#allocation2 + $0x1e0] sm:$0xff] %vm3176, %v7527
  %7659 = vst.msk [vmem:[#allocation2 + $0x1e8] sm:$0xff] %vm3176, %v7529
  %7660 = vst.msk [vmem:[#allocation2 + $0x1f0] sm:$0xff] %vm3176, %v7531
  %7661 = vst.msk [vmem:[#allocation2 + $0x1f8] sm:$0xff] %vm3176, %v7533
  %v7662 = vld [vmem:[#allocation2] sm:$0xff]
  %v7663 = vld [vmem:[#allocation2 + $0x8] sm:$0xff]
  %v7664 = vld [vmem:[#allocation2 + $0x10] sm:$0xff]
  %v7665 = vld [vmem:[#allocation2 + $0x18] sm:$0xff]
  %v7666 = vld [vmem:[#allocation2 + $0x20] sm:$0xff]
  %v7667 = vld [vmem:[#allocation2 + $0x28] sm:$0xff]
  %v7668 = vld [vmem:[#allocation2 + $0x30] sm:$0xff]
  %v7669 = vld [vmem:[#allocation2 + $0x38] sm:$0xff]
  %v7670 = vld [vmem:[#allocation2 + $0x40] sm:$0xff]
  %v7671 = vld [vmem:[#allocation2 + $0x48] sm:$0xff]
  %v7672 = vld [vmem:[#allocation2 + $0x50] sm:$0xff]
  %v7673 = vld [vmem:[#allocation2 + $0x58] sm:$0xff]
  %v7674 = vld [vmem:[#allocation2 + $0x60] sm:$0xff]
  %v7675 = vld [vmem:[#allocation2 + $0x68] sm:$0xff]
  %v7676 = vld [vmem:[#allocation2 + $0x70] sm:$0xff]
  %v7677 = vld [vmem:[#allocation2 + $0x78] sm:$0xff]
  %v7678 = vld [vmem:[#allocation2 + $0x80] sm:$0xff]
  %v7679 = vld [vmem:[#allocation2 + $0x88] sm:$0xff]
  %v7680 = vld [vmem:[#allocation2 + $0x90] sm:$0xff]
  %v7681 = vld [vmem:[#allocation2 + $0x98] sm:$0xff]
  %v7682 = vld [vmem:[#allocation2 + $0xa0] sm:$0xff]
  %v7683 = vld [vmem:[#allocation2 + $0xa8] sm:$0xff]
  %v7684 = vld [vmem:[#allocation2 + $0xb0] sm:$0xff]
  %v7685 = vld [vmem:[#allocation2 + $0xb8] sm:$0xff]
  %v7686 = vld [vmem:[#allocation2 + $0xc0] sm:$0xff]
  %v7687 = vld [vmem:[#allocation2 + $0xc8] sm:$0xff]
  %v7688 = vld [vmem:[#allocation2 + $0xd0] sm:$0xff]
  %v7689 = vld [vmem:[#allocation2 + $0xd8] sm:$0xff]
  %v7690 = vld [vmem:[#allocation2 + $0xe0] sm:$0xff]
  %v7691 = vld [vmem:[#allocation2 + $0xe8] sm:$0xff]
  %v7692 = vld [vmem:[#allocation2 + $0xf0] sm:$0xff]
  %v7693 = vld [vmem:[#allocation2 + $0xf8] sm:$0xff]
  %v7694 = vld [vmem:[#allocation2 + $0x100] sm:$0xff]
  %v7695 = vld [vmem:[#allocation2 + $0x108] sm:$0xff]
  %v7696 = vld [vmem:[#allocation2 + $0x110] sm:$0xff]
  %v7697 = vld [vmem:[#allocation2 + $0x118] sm:$0xff]
  %v7698 = vld [vmem:[#allocation2 + $0x120] sm:$0xff]
  %v7699 = vld [vmem:[#allocation2 + $0x128] sm:$0xff]
  %v7700 = vld [vmem:[#allocation2 + $0x130] sm:$0xff]
  %v7701 = vld [vmem:[#allocation2 + $0x138] sm:$0xff]
  %v7702 = vld [vmem:[#allocation2 + $0x140] sm:$0xff]
  %v7703 = vld [vmem:[#allocation2 + $0x148] sm:$0xff]
  %v7704 = vld [vmem:[#allocation2 + $0x150] sm:$0xff]
  %v7705 = vld [vmem:[#allocation2 + $0x158] sm:$0xff]
  %v7706 = vld [vmem:[#allocation2 + $0x160] sm:$0xff]
  %v7707 = vld [vmem:[#allocation2 + $0x168] sm:$0xff]
  %v7708 = vld [vmem:[#allocation2 + $0x170] sm:$0xff]
  %v7709 = vld [vmem:[#allocation2 + $0x178] sm:$0xff]
  %v7710 = vld [vmem:[#allocation2 + $0x180] sm:$0xff]
  %v7711 = vld [vmem:[#allocation2 + $0x188] sm:$0xff]
  %v7712 = vld [vmem:[#allocation2 + $0x190] sm:$0xff]
  %v7713 = vld [vmem:[#allocation2 + $0x198] sm:$0xff]
  %v7714 = vld [vmem:[#allocation2 + $0x1a0] sm:$0xff]
  %v7715 = vld [vmem:[#allocation2 + $0x1a8] sm:$0xff]
  %v7716 = vld [vmem:[#allocation2 + $0x1b0] sm:$0xff]
  %v7717 = vld [vmem:[#allocation2 + $0x1b8] sm:$0xff]
  %v7718 = vld [vmem:[#allocation2 + $0x1c0] sm:$0xff]
  %v7719 = vld [vmem:[#allocation2 + $0x1c8] sm:$0xff]
  %v7720 = vld [vmem:[#allocation2 + $0x1d0] sm:$0xff]
  %v7721 = vld [vmem:[#allocation2 + $0x1d8] sm:$0xff]
  %v7722 = vld [vmem:[#allocation2 + $0x1e0] sm:$0xff]
  %v7723 = vld [vmem:[#allocation2 + $0x1e8] sm:$0xff]
  %v7724 = vld [vmem:[#allocation2 + $0x1f0] sm:$0xff]
  %v7725 = vld [vmem:[#allocation2 + $0x1f8] sm:$0xff]
  %v7726 = vpack.c.bf16 %v7663, %v7662
  %v7727 = vpack.c.bf16 %v7665, %v7664
  %v7728 = vpack.c.bf16 %v7667, %v7666
  %v7729 = vpack.c.bf16 %v7669, %v7668
  %v7730 = vpack.c.bf16 %v7671, %v7670
  %v7731 = vpack.c.bf16 %v7673, %v7672
  %v7732 = vpack.c.bf16 %v7675, %v7674
  %v7733 = vpack.c.bf16 %v7677, %v7676
  %v7734 = vpack.c.bf16 %v7679, %v7678
  %v7735 = vpack.c.bf16 %v7681, %v7680
  %v7736 = vpack.c.bf16 %v7683, %v7682
  %v7737 = vpack.c.bf16 %v7685, %v7684
  %v7738 = vpack.c.bf16 %v7687, %v7686
  %v7739 = vpack.c.bf16 %v7689, %v7688
  %v7740 = vpack.c.bf16 %v7691, %v7690
  %v7741 = vpack.c.bf16 %v7693, %v7692
  %v7742 = vpack.c.bf16 %v7695, %v7694
  %v7743 = vpack.c.bf16 %v7697, %v7696
  %v7744 = vpack.c.bf16 %v7699, %v7698
  %v7745 = vpack.c.bf16 %v7701, %v7700
  %v7746 = vpack.c.bf16 %v7703, %v7702
  %v7747 = vpack.c.bf16 %v7705, %v7704
  %v7748 = vpack.c.bf16 %v7707, %v7706
  %v7749 = vpack.c.bf16 %v7709, %v7708
  %v7750 = vpack.c.bf16 %v7711, %v7710
  %v7751 = vpack.c.bf16 %v7713, %v7712
  %v7752 = vpack.c.bf16 %v7715, %v7714
  %v7753 = vpack.c.bf16 %v7717, %v7716
  %v7754 = vpack.c.bf16 %v7719, %v7718
  %v7755 = vpack.c.bf16 %v7721, %v7720
  %v7756 = vpack.c.bf16 %v7723, %v7722
  %v7757 = vpack.c.bf16 %v7725, %v7724
  %v7758 = vld [vmem:[%s5] sm:$0xf]
  %v7759 = vld [vmem:[%s5 + $0x4] sm:$0xf]
  %v7760 = vld [vmem:[%s5 + $0x8] sm:$0xf]
  %v7761 = vld [vmem:[%s5 + $0xc] sm:$0xf]
  %v7762 = vld [vmem:[%s5 + $0x10] sm:$0xf]
  %v7763 = vld [vmem:[%s5 + $0x14] sm:$0xf]
  %v7764 = vld [vmem:[%s5 + $0x18] sm:$0xf]
  %v7765 = vld [vmem:[%s5 + $0x1c] sm:$0xf]
  %v7766 = vld [vmem:[%s5 + $0x20] sm:$0xf]
  %v7776 = vunpack.c.l.b16 %v7758
  %v7777 = vunpack.c.l.b16 %v7759
  %v7778 = vunpack.c.l.b16 %v7760
  %v7779 = vunpack.c.l.b16 %v7761
  %v7780 = vunpack.c.l.b16 %v7762
  %v7781 = vunpack.c.l.b16 %v7763
  %v7782 = vunpack.c.l.b16 %v7764
  %v7783 = vunpack.c.l.b16 %v7765
  %v7784 = vunpack.c.l.b16 %v7766
  %v7785 = vpack.c.b16 %v7777, %v7776
  %v7786 = vpack.c.b16 %v7779, %v7778
  %v7787 = vpack.c.b16 %v7781, %v7780
  %v7788 = vpack.c.b16 %v7783, %v7782
  %v7789 = vpack.c.b16 %v7784, %v7784
  %v7795 = vsel %vm3373, %v7726, 0
  %v7798 = vsel %vm3373, %v7727, 0
  %v7801 = vsel %vm3373, %v7728, 0
  %v7804 = vsel %vm3373, %v7729, 0
  %v7807 = vsel %vm3373, %v7730, 0
  %v7810 = vsel %vm3373, %v7731, 0
  %v7813 = vsel %vm3373, %v7732, 0
  %v7816 = vsel %vm3373, %v7733, 0
  %v7819 = vsel %vm3373, %v7734, 0
  %v7822 = vsel %vm3373, %v7735, 0
  %v7825 = vsel %vm3373, %v7736, 0
  %v7828 = vsel %vm3373, %v7737, 0
  %v7831 = vsel %vm3373, %v7738, 0
  %v7834 = vsel %vm3373, %v7739, 0
  %v7837 = vsel %vm3373, %v7740, 0
  %v7840 = vsel %vm3373, %v7741, 0
  %v7843 = vsel %vm3373, %v7742, 0
  %v7846 = vsel %vm3373, %v7743, 0
  %v7849 = vsel %vm3373, %v7744, 0
  %v7852 = vsel %vm3373, %v7745, 0
  %v7855 = vsel %vm3373, %v7746, 0
  %v7858 = vsel %vm3373, %v7747, 0
  %v7861 = vsel %vm3373, %v7748, 0
  %v7864 = vsel %vm3373, %v7749, 0
  %v7867 = vsel %vm3373, %v7750, 0
  %v7870 = vsel %vm3373, %v7751, 0
  %v7873 = vsel %vm3373, %v7752, 0
  %v7876 = vsel %vm3373, %v7753, 0
  %v7879 = vsel %vm3373, %v7754, 0
  %v7882 = vsel %vm3373, %v7755, 0
  %v7885 = vsel %vm3373, %v7756, 0
  %v7888 = vsel %vm3373, %v7757, 0
  %v7891 = vsel %vm3470, %v7789, 0
  %7893 = vmatprep.subr.bf16.mxu0 0
  %7894 = vmatpush1.bf16.msra.mxu0 0
  %7895 = vmatprep.subr.bf16.mxu0 0
  %7896 = vmatpush1.bf16.msra.mxu0 0
  %7897 = vmatprep.subr.bf16.mxu0 0
  %7898 = vmatpush1.bf16.msra.mxu0 0
  %7899 = vmatprep.subr.bf16.mxu0 0
  %7900 = vmatpush1.bf16.msra.mxu0 %v7891
  %7901 = vmatprep.subr.bf16.mxu0 0
  %7902 = vmatpush1.bf16.msra.mxu0 %v7788
  %7903 = vmatprep.subr.bf16.mxu0 0
  %7904 = vmatpush1.bf16.msra.mxu0 %v7787
  %7905 = vmatprep.subr.bf16.mxu0 0
  %7906 = vmatpush1.bf16.msra.mxu0 %v7786
  %7907 = vmatprep.subr.bf16.mxu0 0
  %7908 = vmatpush1.bf16.msra.mxu0 %v7785
  %7909 = vmatprep.subr.bf16.mxu0 0
  %7910 = vmatpush2.bf16.msra.mxu0 0
  %7911 = vmatprep.subr.bf16.mxu0 0
  %7912 = vmatpush2.bf16.msra.mxu0 0
  %7913 = vmatprep.subr.bf16.mxu0 0
  %7914 = vmatpush2.bf16.msra.mxu0 0
  %7915 = vmatprep.subr.bf16.mxu0 0
  %7916 = vmatpush2.bf16.msra.mxu0 0
  %7917 = vmatprep.subr.bf16.mxu0 0
  %7918 = vmatpush2.bf16.msra.mxu0 0
  %7919 = vmatprep.subr.bf16.mxu0 0
  %7920 = vmatpush2.bf16.msra.mxu0 0
  %7921 = vmatprep.subr.bf16.mxu0 0
  %7922 = vmatpush2.bf16.msra.mxu0 0
  %7923 = vmatprep.subr.bf16.mxu0 0
  %7924 = vmatpush2.bf16.msra.mxu0 0
  %7925 = vmatprep.mubr.bf16.mxu0 0
  %7926 = vmatmul.mubr.bf16.gmra.mxu0 %v7795
  %v7927 = vpop.f32.mrf.mxu0
  %v7928 = vadd.f32 0.0, %v7927
  %v7929 = vpop.f32.mrf.mxu0
  %v7930 = vpop.f32.mrf.mxu0
  %v7931 = vadd.f32 0.0, %v7930
  %v7932 = vpop.f32.mrf.mxu0
  %7933 = vmatprep.mubr.bf16.mxu0 0
  %7934 = vmatmul.mubr.bf16.gmra.mxu0 %v7798
  %v7935 = vpop.f32.mrf.mxu0
  %v7936 = vadd.f32 0.0, %v7935
  %v7937 = vpop.f32.mrf.mxu0
  %v7938 = vpop.f32.mrf.mxu0
  %v7939 = vadd.f32 0.0, %v7938
  %v7940 = vpop.f32.mrf.mxu0
  %7941 = vmatprep.mubr.bf16.mxu0 0
  %7942 = vmatmul.mubr.bf16.gmra.mxu0 %v7801
  %v7943 = vpop.f32.mrf.mxu0
  %v7944 = vadd.f32 0.0, %v7943
  %v7945 = vpop.f32.mrf.mxu0
  %v7946 = vpop.f32.mrf.mxu0
  %v7947 = vadd.f32 0.0, %v7946
  %v7948 = vpop.f32.mrf.mxu0
  %7949 = vmatprep.mubr.bf16.mxu0 0
  %7950 = vmatmul.mubr.bf16.gmra.mxu0 %v7804
  %v7951 = vpop.f32.mrf.mxu0
  %v7952 = vadd.f32 0.0, %v7951
  %v7953 = vpop.f32.mrf.mxu0
  %v7954 = vpop.f32.mrf.mxu0
  %v7955 = vadd.f32 0.0, %v7954
  %v7956 = vpop.f32.mrf.mxu0
  %7957 = vmatprep.mubr.bf16.mxu0 0
  %7958 = vmatmul.mubr.bf16.gmra.mxu0 %v7807
  %v7959 = vpop.f32.mrf.mxu0
  %v7960 = vadd.f32 0.0, %v7959
  %v7961 = vpop.f32.mrf.mxu0
  %v7962 = vpop.f32.mrf.mxu0
  %v7963 = vadd.f32 0.0, %v7962
  %v7964 = vpop.f32.mrf.mxu0
  %7965 = vmatprep.mubr.bf16.mxu0 0
  %7966 = vmatmul.mubr.bf16.gmra.mxu0 %v7810
  %v7967 = vpop.f32.mrf.mxu0
  %v7968 = vadd.f32 0.0, %v7967
  %v7969 = vpop.f32.mrf.mxu0
  %v7970 = vpop.f32.mrf.mxu0
  %v7971 = vadd.f32 0.0, %v7970
  %v7972 = vpop.f32.mrf.mxu0
  %7973 = vmatprep.mubr.bf16.mxu0 0
  %7974 = vmatmul.mubr.bf16.gmra.mxu0 %v7813
  %v7975 = vpop.f32.mrf.mxu0
  %v7976 = vadd.f32 0.0, %v7975
  %v7977 = vpop.f32.mrf.mxu0
  %v7978 = vpop.f32.mrf.mxu0
  %v7979 = vadd.f32 0.0, %v7978
  %v7980 = vpop.f32.mrf.mxu0
  %7981 = vmatprep.mubr.bf16.mxu0 0
  %7982 = vmatmul.mubr.bf16.gmra.mxu0 %v7816
  %v7983 = vpop.f32.mrf.mxu0
  %v7984 = vadd.f32 0.0, %v7983
  %v7985 = vpop.f32.mrf.mxu0
  %v7986 = vpop.f32.mrf.mxu0
  %v7987 = vadd.f32 0.0, %v7986
  %v7988 = vpop.f32.mrf.mxu0
  %7989 = vmatprep.mubr.bf16.mxu0 0
  %7990 = vmatmul.mubr.bf16.gmra.mxu0 %v7819
  %v7991 = vpop.f32.mrf.mxu0
  %v7992 = vadd.f32 0.0, %v7991
  %v7993 = vpop.f32.mrf.mxu0
  %v7994 = vpop.f32.mrf.mxu0
  %v7995 = vadd.f32 0.0, %v7994
  %v7996 = vpop.f32.mrf.mxu0
  %7997 = vmatprep.mubr.bf16.mxu0 0
  %7998 = vmatmul.mubr.bf16.gmra.mxu0 %v7822
  %v7999 = vpop.f32.mrf.mxu0
  %v8000 = vadd.f32 0.0, %v7999
  %v8001 = vpop.f32.mrf.mxu0
  %v8002 = vpop.f32.mrf.mxu0
  %v8003 = vadd.f32 0.0, %v8002
  %v8004 = vpop.f32.mrf.mxu0
  %8005 = vmatprep.mubr.bf16.mxu0 0
  %8006 = vmatmul.mubr.bf16.gmra.mxu0 %v7825
  %v8007 = vpop.f32.mrf.mxu0
  %v8008 = vadd.f32 0.0, %v8007
  %v8009 = vpop.f32.mrf.mxu0
  %v8010 = vpop.f32.mrf.mxu0
  %v8011 = vadd.f32 0.0, %v8010
  %v8012 = vpop.f32.mrf.mxu0
  %8013 = vmatprep.mubr.bf16.mxu0 0
  %8014 = vmatmul.mubr.bf16.gmra.mxu0 %v7828
  %v8015 = vpop.f32.mrf.mxu0
  %v8016 = vadd.f32 0.0, %v8015
  %v8017 = vpop.f32.mrf.mxu0
  %v8018 = vpop.f32.mrf.mxu0
  %v8019 = vadd.f32 0.0, %v8018
  %v8020 = vpop.f32.mrf.mxu0
  %8021 = vmatprep.mubr.bf16.mxu0 0
  %8022 = vmatmul.mubr.bf16.gmra.mxu0 %v7831
  %v8023 = vpop.f32.mrf.mxu0
  %v8024 = vadd.f32 0.0, %v8023
  %v8025 = vpop.f32.mrf.mxu0
  %v8026 = vpop.f32.mrf.mxu0
  %v8027 = vadd.f32 0.0, %v8026
  %v8028 = vpop.f32.mrf.mxu0
  %8029 = vmatprep.mubr.bf16.mxu0 0
  %8030 = vmatmul.mubr.bf16.gmra.mxu0 %v7834
  %v8031 = vpop.f32.mrf.mxu0
  %v8032 = vadd.f32 0.0, %v8031
  %v8033 = vpop.f32.mrf.mxu0
  %v8034 = vpop.f32.mrf.mxu0
  %v8035 = vadd.f32 0.0, %v8034
  %v8036 = vpop.f32.mrf.mxu0
  %8037 = vmatprep.mubr.bf16.mxu0 0
  %8038 = vmatmul.mubr.bf16.gmra.mxu0 %v7837
  %v8039 = vpop.f32.mrf.mxu0
  %v8040 = vadd.f32 0.0, %v8039
  %v8041 = vpop.f32.mrf.mxu0
  %v8042 = vpop.f32.mrf.mxu0
  %v8043 = vadd.f32 0.0, %v8042
  %v8044 = vpop.f32.mrf.mxu0
  %8045 = vmatprep.mubr.bf16.mxu0 0
  %8046 = vmatmul.mubr.bf16.gmra.mxu0 %v7840
  %v8047 = vpop.f32.mrf.mxu0
  %v8048 = vadd.f32 0.0, %v8047
  %v8049 = vpop.f32.mrf.mxu0
  %v8050 = vpop.f32.mrf.mxu0
  %v8051 = vadd.f32 0.0, %v8050
  %v8052 = vpop.f32.mrf.mxu0
  %8053 = vmatprep.mubr.bf16.mxu0 0
  %8054 = vmatmul.mubr.bf16.gmra.mxu0 %v7843
  %v8055 = vpop.f32.mrf.mxu0
  %v8056 = vadd.f32 0.0, %v8055
  %v8057 = vpop.f32.mrf.mxu0
  %v8058 = vpop.f32.mrf.mxu0
  %v8059 = vadd.f32 0.0, %v8058
  %v8060 = vpop.f32.mrf.mxu0
  %8061 = vmatprep.mubr.bf16.mxu0 0
  %8062 = vmatmul.mubr.bf16.gmra.mxu0 %v7846
  %v8063 = vpop.f32.mrf.mxu0
  %v8064 = vadd.f32 0.0, %v8063
  %v8065 = vpop.f32.mrf.mxu0
  %v8066 = vpop.f32.mrf.mxu0
  %v8067 = vadd.f32 0.0, %v8066
  %v8068 = vpop.f32.mrf.mxu0
  %8069 = vmatprep.mubr.bf16.mxu0 0
  %8070 = vmatmul.mubr.bf16.gmra.mxu0 %v7849
  %v8071 = vpop.f32.mrf.mxu0
  %v8072 = vadd.f32 0.0, %v8071
  %v8073 = vpop.f32.mrf.mxu0
  %v8074 = vpop.f32.mrf.mxu0
  %v8075 = vadd.f32 0.0, %v8074
  %v8076 = vpop.f32.mrf.mxu0
  %8077 = vmatprep.mubr.bf16.mxu0 0
  %8078 = vmatmul.mubr.bf16.gmra.mxu0 %v7852
  %v8079 = vpop.f32.mrf.mxu0
  %v8080 = vadd.f32 0.0, %v8079
  %v8081 = vpop.f32.mrf.mxu0
  %v8082 = vpop.f32.mrf.mxu0
  %v8083 = vadd.f32 0.0, %v8082
  %v8084 = vpop.f32.mrf.mxu0
  %8085 = vmatprep.mubr.bf16.mxu0 0
  %8086 = vmatmul.mubr.bf16.gmra.mxu0 %v7855
  %v8087 = vpop.f32.mrf.mxu0
  %v8088 = vadd.f32 0.0, %v8087
  %v8089 = vpop.f32.mrf.mxu0
  %v8090 = vpop.f32.mrf.mxu0
  %v8091 = vadd.f32 0.0, %v8090
  %v8092 = vpop.f32.mrf.mxu0
  %8093 = vmatprep.mubr.bf16.mxu0 0
  %8094 = vmatmul.mubr.bf16.gmra.mxu0 %v7858
  %v8095 = vpop.f32.mrf.mxu0
  %v8096 = vadd.f32 0.0, %v8095
  %v8097 = vpop.f32.mrf.mxu0
  %v8098 = vpop.f32.mrf.mxu0
  %v8099 = vadd.f32 0.0, %v8098
  %v8100 = vpop.f32.mrf.mxu0
  %8101 = vmatprep.mubr.bf16.mxu0 0
  %8102 = vmatmul.mubr.bf16.gmra.mxu0 %v7861
  %v8103 = vpop.f32.mrf.mxu0
  %v8104 = vadd.f32 0.0, %v8103
  %v8105 = vpop.f32.mrf.mxu0
  %v8106 = vpop.f32.mrf.mxu0
  %v8107 = vadd.f32 0.0, %v8106
  %v8108 = vpop.f32.mrf.mxu0
  %8109 = vmatprep.mubr.bf16.mxu0 0
  %8110 = vmatmul.mubr.bf16.gmra.mxu0 %v7864
  %v8111 = vpop.f32.mrf.mxu0
  %v8112 = vadd.f32 0.0, %v8111
  %v8113 = vpop.f32.mrf.mxu0
  %v8114 = vpop.f32.mrf.mxu0
  %v8115 = vadd.f32 0.0, %v8114
  %v8116 = vpop.f32.mrf.mxu0
  %8117 = vmatprep.mubr.bf16.mxu0 0
  %8118 = vmatmul.mubr.bf16.gmra.mxu0 %v7867
  %v8119 = vpop.f32.mrf.mxu0
  %v8120 = vadd.f32 0.0, %v8119
  %v8121 = vpop.f32.mrf.mxu0
  %v8122 = vpop.f32.mrf.mxu0
  %v8123 = vadd.f32 0.0, %v8122
  %v8124 = vpop.f32.mrf.mxu0
  %8125 = vmatprep.mubr.bf16.mxu0 0
  %8126 = vmatmul.mubr.bf16.gmra.mxu0 %v7870
  %v8127 = vpop.f32.mrf.mxu0
  %v8128 = vadd.f32 0.0, %v8127
  %v8129 = vpop.f32.mrf.mxu0
  %v8130 = vpop.f32.mrf.mxu0
  %v8131 = vadd.f32 0.0, %v8130
  %v8132 = vpop.f32.mrf.mxu0
  %8133 = vmatprep.mubr.bf16.mxu0 0
  %8134 = vmatmul.mubr.bf16.gmra.mxu0 %v7873
  %v8135 = vpop.f32.mrf.mxu0
  %v8136 = vadd.f32 0.0, %v8135
  %v8137 = vpop.f32.mrf.mxu0
  %v8138 = vpop.f32.mrf.mxu0
  %v8139 = vadd.f32 0.0, %v8138
  %v8140 = vpop.f32.mrf.mxu0
  %8141 = vmatprep.mubr.bf16.mxu0 0
  %8142 = vmatmul.mubr.bf16.gmra.mxu0 %v7876
  %v8143 = vpop.f32.mrf.mxu0
  %v8144 = vadd.f32 0.0, %v8143
  %v8145 = vpop.f32.mrf.mxu0
  %v8146 = vpop.f32.mrf.mxu0
  %v8147 = vadd.f32 0.0, %v8146
  %v8148 = vpop.f32.mrf.mxu0
  %8149 = vmatprep.mubr.bf16.mxu0 0
  %8150 = vmatmul.mubr.bf16.gmra.mxu0 %v7879
  %v8151 = vpop.f32.mrf.mxu0
  %v8152 = vadd.f32 0.0, %v8151
  %v8153 = vpop.f32.mrf.mxu0
  %v8154 = vpop.f32.mrf.mxu0
  %v8155 = vadd.f32 0.0, %v8154
  %v8156 = vpop.f32.mrf.mxu0
  %8157 = vmatprep.mubr.bf16.mxu0 0
  %8158 = vmatmul.mubr.bf16.gmra.mxu0 %v7882
  %v8159 = vpop.f32.mrf.mxu0
  %v8160 = vadd.f32 0.0, %v8159
  %v8161 = vpop.f32.mrf.mxu0
  %v8162 = vpop.f32.mrf.mxu0
  %v8163 = vadd.f32 0.0, %v8162
  %v8164 = vpop.f32.mrf.mxu0
  %8165 = vmatprep.mubr.bf16.mxu0 0
  %8166 = vmatmul.mubr.bf16.gmra.mxu0 %v7885
  %v8167 = vpop.f32.mrf.mxu0
  %v8168 = vadd.f32 0.0, %v8167
  %v8169 = vpop.f32.mrf.mxu0
  %v8170 = vpop.f32.mrf.mxu0
  %v8171 = vadd.f32 0.0, %v8170
  %v8172 = vpop.f32.mrf.mxu0
  %8173 = vmatprep.mubr.bf16.mxu0 0
  %8174 = vmatmul.mubr.bf16.gmra.mxu0 %v7888
  %v8175 = vpop.f32.mrf.mxu0
  %v8176 = vadd.f32 0.0, %v8175
  %v8177 = vpop.f32.mrf.mxu0
  %v8178 = vpop.f32.mrf.mxu0
  %v8179 = vadd.f32 0.0, %v8178
  %v8180 = vpop.f32.mrf.mxu0
  %8181 = vdwg.mxu0
  %v8182 = vsel %vm94, %v7928, 0.0
  %v8183 = vsel %vm94, %v7931, 0.0
  %v8184 = vadd.f32 %v8182, %v8183
  %v8185 = vsel %vm94, %v7936, 0.0
  %v8186 = vadd.f32 %v8184, %v8185
  %v8187 = vsel %vm94, %v7939, 0.0
  %v8188 = vadd.f32 %v8186, %v8187
  %v8189 = vsel %vm94, %v7944, 0.0
  %v8190 = vadd.f32 %v8188, %v8189
  %v8191 = vsel %vm94, %v7947, 0.0
  %v8192 = vadd.f32 %v8190, %v8191
  %v8193 = vsel %vm94, %v7952, 0.0
  %v8194 = vadd.f32 %v8192, %v8193
  %v8195 = vsel %vm94, %v7955, 0.0
  %v8196 = vadd.f32 %v8194, %v8195
  %v8197 = vsel %vm94, %v7960, 0.0
  %v8198 = vadd.f32 %v8196, %v8197
  %v8199 = vsel %vm94, %v7963, 0.0
  %v8200 = vadd.f32 %v8198, %v8199
  %v8201 = vsel %vm94, %v7968, 0.0
  %v8202 = vadd.f32 %v8200, %v8201
  %v8203 = vsel %vm94, %v7971, 0.0
  %v8204 = vadd.f32 %v8202, %v8203
  %v8205 = vsel %vm94, %v7976, 0.0
  %v8206 = vadd.f32 %v8204, %v8205
  %v8207 = vsel %vm94, %v7979, 0.0
  %v8208 = vadd.f32 %v8206, %v8207
  %v8209 = vsel %vm94, %v7984, 0.0
  %v8210 = vadd.f32 %v8208, %v8209
  %v8211 = vsel %vm94, %v7987, 0.0
  %v8212 = vadd.f32 %v8210, %v8211
  %v8213 = vsel %vm94, %v7992, 0.0
  %v8214 = vadd.f32 %v8212, %v8213
  %v8215 = vsel %vm94, %v7995, 0.0
  %v8216 = vadd.f32 %v8214, %v8215
  %v8217 = vsel %vm94, %v8000, 0.0
  %v8218 = vadd.f32 %v8216, %v8217
  %v8219 = vsel %vm94, %v8003, 0.0
  %v8220 = vadd.f32 %v8218, %v8219
  %v8221 = vsel %vm94, %v8008, 0.0
  %v8222 = vadd.f32 %v8220, %v8221
  %v8223 = vsel %vm94, %v8011, 0.0
  %v8224 = vadd.f32 %v8222, %v8223
  %v8225 = vsel %vm94, %v8016, 0.0
  %v8226 = vadd.f32 %v8224, %v8225
  %v8227 = vsel %vm94, %v8019, 0.0
  %v8228 = vadd.f32 %v8226, %v8227
  %v8229 = vsel %vm94, %v8024, 0.0
  %v8230 = vadd.f32 %v8228, %v8229
  %v8231 = vsel %vm94, %v8027, 0.0
  %v8232 = vadd.f32 %v8230, %v8231
  %v8233 = vsel %vm94, %v8032, 0.0
  %v8234 = vadd.f32 %v8232, %v8233
  %v8235 = vsel %vm94, %v8035, 0.0
  %v8236 = vadd.f32 %v8234, %v8235
  %v8237 = vsel %vm94, %v8040, 0.0
  %v8238 = vadd.f32 %v8236, %v8237
  %v8239 = vsel %vm94, %v8043, 0.0
  %v8240 = vadd.f32 %v8238, %v8239
  %v8241 = vsel %vm94, %v8048, 0.0
  %v8242 = vadd.f32 %v8240, %v8241
  %v8243 = vsel %vm94, %v8051, 0.0
  %v8244 = vadd.f32 %v8242, %v8243
  %v8245 = vsel %vm94, %v8056, 0.0
  %v8246 = vadd.f32 %v8244, %v8245
  %v8247 = vsel %vm94, %v8059, 0.0
  %v8248 = vadd.f32 %v8246, %v8247
  %v8249 = vsel %vm94, %v8064, 0.0
  %v8250 = vadd.f32 %v8248, %v8249
  %v8251 = vsel %vm94, %v8067, 0.0
  %v8252 = vadd.f32 %v8250, %v8251
  %v8253 = vsel %vm94, %v8072, 0.0
  %v8254 = vadd.f32 %v8252, %v8253
  %v8255 = vsel %vm94, %v8075, 0.0
  %v8256 = vadd.f32 %v8254, %v8255
  %v8257 = vsel %vm94, %v8080, 0.0
  %v8258 = vadd.f32 %v8256, %v8257
  %v8259 = vsel %vm94, %v8083, 0.0
  %v8260 = vadd.f32 %v8258, %v8259
  %v8261 = vsel %vm94, %v8088, 0.0
  %v8262 = vadd.f32 %v8260, %v8261
  %v8263 = vsel %vm94, %v8091, 0.0
  %v8264 = vadd.f32 %v8262, %v8263
  %v8265 = vsel %vm94, %v8096, 0.0
  %v8266 = vadd.f32 %v8264, %v8265
  %v8267 = vsel %vm94, %v8099, 0.0
  %v8268 = vadd.f32 %v8266, %v8267
  %v8269 = vsel %vm94, %v8104, 0.0
  %v8270 = vadd.f32 %v8268, %v8269
  %v8271 = vsel %vm94, %v8107, 0.0
  %v8272 = vadd.f32 %v8270, %v8271
  %v8273 = vsel %vm94, %v8112, 0.0
  %v8274 = vadd.f32 %v8272, %v8273
  %v8275 = vsel %vm94, %v8115, 0.0
  %v8276 = vadd.f32 %v8274, %v8275
  %v8277 = vsel %vm94, %v8120, 0.0
  %v8278 = vadd.f32 %v8276, %v8277
  %v8279 = vsel %vm94, %v8123, 0.0
  %v8280 = vadd.f32 %v8278, %v8279
  %v8281 = vsel %vm94, %v8128, 0.0
  %v8282 = vadd.f32 %v8280, %v8281
  %v8283 = vsel %vm94, %v8131, 0.0
  %v8284 = vadd.f32 %v8282, %v8283
  %v8285 = vsel %vm94, %v8136, 0.0
  %v8286 = vadd.f32 %v8284, %v8285
  %v8287 = vsel %vm94, %v8139, 0.0
  %v8288 = vadd.f32 %v8286, %v8287
  %v8289 = vsel %vm94, %v8144, 0.0
  %v8290 = vadd.f32 %v8288, %v8289
  %v8291 = vsel %vm94, %v8147, 0.0
  %v8292 = vadd.f32 %v8290, %v8291
  %v8293 = vsel %vm94, %v8152, 0.0
  %v8294 = vadd.f32 %v8292, %v8293
  %v8295 = vsel %vm94, %v8155, 0.0
  %v8296 = vadd.f32 %v8294, %v8295
  %v8297 = vsel %vm94, %v8160, 0.0
  %v8298 = vadd.f32 %v8296, %v8297
  %v8299 = vsel %vm94, %v8163, 0.0
  %v8300 = vadd.f32 %v8298, %v8299
  %v8301 = vsel %vm94, %v8168, 0.0
  %v8302 = vadd.f32 %v8300, %v8301
  %v8303 = vsel %vm94, %v8171, 0.0
  %v8304 = vadd.f32 %v8302, %v8303
  %v8305 = vsel %vm94, %v8176, 0.0
  %v8306 = vadd.f32 %v8304, %v8305
  %v8307 = vsel %vm94, %v8179, 0.0
  %v8308 = vadd.f32 %v8306, %v8307
  %v8309 = vrot.slane %v8308, 4
  %v8310 = vadd.f32 %v8308, %v8309
  %v8311 = vrot.slane %v8310, 2
  %v8312 = vadd.f32 %v8310, %v8311
  %v8313 = vrot.slane %v8312, 1
  %v8314 = vadd.f32 %v8312, %v8313
  %v8315 = vmul.f32 %v7928, %v7928
  %v8316 = vmul.f32 %v7931, %v7931
  %v8317 = vmul.f32 %v7936, %v7936
  %v8318 = vmul.f32 %v7939, %v7939
  %v8319 = vmul.f32 %v7944, %v7944
  %v8320 = vmul.f32 %v7947, %v7947
  %v8321 = vmul.f32 %v7952, %v7952
  %v8322 = vmul.f32 %v7955, %v7955
  %v8323 = vmul.f32 %v7960, %v7960
  %v8324 = vmul.f32 %v7963, %v7963
  %v8325 = vmul.f32 %v7968, %v7968
  %v8326 = vmul.f32 %v7971, %v7971
  %v8327 = vmul.f32 %v7976, %v7976
  %v8328 = vmul.f32 %v7979, %v7979
  %v8329 = vmul.f32 %v7984, %v7984
  %v8330 = vmul.f32 %v7987, %v7987
  %v8331 = vmul.f32 %v7992, %v7992
  %v8332 = vmul.f32 %v7995, %v7995
  %v8333 = vmul.f32 %v8000, %v8000
  %v8334 = vmul.f32 %v8003, %v8003
  %v8335 = vmul.f32 %v8008, %v8008
  %v8336 = vmul.f32 %v8011, %v8011
  %v8337 = vmul.f32 %v8016, %v8016
  %v8338 = vmul.f32 %v8019, %v8019
  %v8339 = vmul.f32 %v8024, %v8024
  %v8340 = vmul.f32 %v8027, %v8027
  %v8341 = vmul.f32 %v8032, %v8032
  %v8342 = vmul.f32 %v8035, %v8035
  %v8343 = vmul.f32 %v8040, %v8040
  %v8344 = vmul.f32 %v8043, %v8043
  %v8345 = vmul.f32 %v8048, %v8048
  %v8346 = vmul.f32 %v8051, %v8051
  %v8347 = vmul.f32 %v8056, %v8056
  %v8348 = vmul.f32 %v8059, %v8059
  %v8349 = vmul.f32 %v8064, %v8064
  %v8350 = vmul.f32 %v8067, %v8067
  %v8351 = vmul.f32 %v8072, %v8072
  %v8352 = vmul.f32 %v8075, %v8075
  %v8353 = vmul.f32 %v8080, %v8080
  %v8354 = vmul.f32 %v8083, %v8083
  %v8355 = vmul.f32 %v8088, %v8088
  %v8356 = vmul.f32 %v8091, %v8091
  %v8357 = vmul.f32 %v8096, %v8096
  %v8358 = vmul.f32 %v8099, %v8099
  %v8359 = vmul.f32 %v8104, %v8104
  %v8360 = vmul.f32 %v8107, %v8107
  %v8361 = vmul.f32 %v8112, %v8112
  %v8362 = vmul.f32 %v8115, %v8115
  %v8363 = vmul.f32 %v8120, %v8120
  %v8364 = vmul.f32 %v8123, %v8123
  %v8365 = vmul.f32 %v8128, %v8128
  %v8366 = vmul.f32 %v8131, %v8131
  %v8367 = vmul.f32 %v8136, %v8136
  %v8368 = vmul.f32 %v8139, %v8139
  %v8369 = vmul.f32 %v8144, %v8144
  %v8370 = vmul.f32 %v8147, %v8147
  %v8371 = vmul.f32 %v8152, %v8152
  %v8372 = vmul.f32 %v8155, %v8155
  %v8373 = vmul.f32 %v8160, %v8160
  %v8374 = vmul.f32 %v8163, %v8163
  %v8375 = vmul.f32 %v8168, %v8168
  %v8376 = vmul.f32 %v8171, %v8171
  %v8377 = vmul.f32 %v8176, %v8176
  %v8378 = vmul.f32 %v8179, %v8179
  %v8379 = vsel %vm94, %v8315, 0.0
  %v8380 = vsel %vm94, %v8316, 0.0
  %v8381 = vadd.f32 %v8379, %v8380
  %v8382 = vsel %vm94, %v8317, 0.0
  %v8383 = vadd.f32 %v8381, %v8382
  %v8384 = vsel %vm94, %v8318, 0.0
  %v8385 = vadd.f32 %v8383, %v8384
  %v8386 = vsel %vm94, %v8319, 0.0
  %v8387 = vadd.f32 %v8385, %v8386
  %v8388 = vsel %vm94, %v8320, 0.0
  %v8389 = vadd.f32 %v8387, %v8388
  %v8390 = vsel %vm94, %v8321, 0.0
  %v8391 = vadd.f32 %v8389, %v8390
  %v8392 = vsel %vm94, %v8322, 0.0
  %v8393 = vadd.f32 %v8391, %v8392
  %v8394 = vsel %vm94, %v8323, 0.0
  %v8395 = vadd.f32 %v8393, %v8394
  %v8396 = vsel %vm94, %v8324, 0.0
  %v8397 = vadd.f32 %v8395, %v8396
  %v8398 = vsel %vm94, %v8325, 0.0
  %v8399 = vadd.f32 %v8397, %v8398
  %v8400 = vsel %vm94, %v8326, 0.0
  %v8401 = vadd.f32 %v8399, %v8400
  %v8402 = vsel %vm94, %v8327, 0.0
  %v8403 = vadd.f32 %v8401, %v8402
  %v8404 = vsel %vm94, %v8328, 0.0
  %v8405 = vadd.f32 %v8403, %v8404
  %v8406 = vsel %vm94, %v8329, 0.0
  %v8407 = vadd.f32 %v8405, %v8406
  %v8408 = vsel %vm94, %v8330, 0.0
  %v8409 = vadd.f32 %v8407, %v8408
  %v8410 = vsel %vm94, %v8331, 0.0
  %v8411 = vadd.f32 %v8409, %v8410
  %v8412 = vsel %vm94, %v8332, 0.0
  %v8413 = vadd.f32 %v8411, %v8412
  %v8414 = vsel %vm94, %v8333, 0.0
  %v8415 = vadd.f32 %v8413, %v8414
  %v8416 = vsel %vm94, %v8334, 0.0
  %v8417 = vadd.f32 %v8415, %v8416
  %v8418 = vsel %vm94, %v8335, 0.0
  %v8419 = vadd.f32 %v8417, %v8418
  %v8420 = vsel %vm94, %v8336, 0.0
  %v8421 = vadd.f32 %v8419, %v8420
  %v8422 = vsel %vm94, %v8337, 0.0
  %v8423 = vadd.f32 %v8421, %v8422
  %v8424 = vsel %vm94, %v8338, 0.0
  %v8425 = vadd.f32 %v8423, %v8424
  %v8426 = vsel %vm94, %v8339, 0.0
  %v8427 = vadd.f32 %v8425, %v8426
  %v8428 = vsel %vm94, %v8340, 0.0
  %v8429 = vadd.f32 %v8427, %v8428
  %v8430 = vsel %vm94, %v8341, 0.0
  %v8431 = vadd.f32 %v8429, %v8430
  %v8432 = vsel %vm94, %v8342, 0.0
  %v8433 = vadd.f32 %v8431, %v8432
  %v8434 = vsel %vm94, %v8343, 0.0
  %v8435 = vadd.f32 %v8433, %v8434
  %v8436 = vsel %vm94, %v8344, 0.0
  %v8437 = vadd.f32 %v8435, %v8436
  %v8438 = vsel %vm94, %v8345, 0.0
  %v8439 = vadd.f32 %v8437, %v8438
  %v8440 = vsel %vm94, %v8346, 0.0
  %v8441 = vadd.f32 %v8439, %v8440
  %v8442 = vsel %vm94, %v8347, 0.0
  %v8443 = vadd.f32 %v8441, %v8442
  %v8444 = vsel %vm94, %v8348, 0.0
  %v8445 = vadd.f32 %v8443, %v8444
  %v8446 = vsel %vm94, %v8349, 0.0
  %v8447 = vadd.f32 %v8445, %v8446
  %v8448 = vsel %vm94, %v8350, 0.0
  %v8449 = vadd.f32 %v8447, %v8448
  %v8450 = vsel %vm94, %v8351, 0.0
  %v8451 = vadd.f32 %v8449, %v8450
  %v8452 = vsel %vm94, %v8352, 0.0
  %v8453 = vadd.f32 %v8451, %v8452
  %v8454 = vsel %vm94, %v8353, 0.0
  %v8455 = vadd.f32 %v8453, %v8454
  %v8456 = vsel %vm94, %v8354, 0.0
  %v8457 = vadd.f32 %v8455, %v8456
  %v8458 = vsel %vm94, %v8355, 0.0
  %v8459 = vadd.f32 %v8457, %v8458
  %v8460 = vsel %vm94, %v8356, 0.0
  %v8461 = vadd.f32 %v8459, %v8460
  %v8462 = vsel %vm94, %v8357, 0.0
  %v8463 = vadd.f32 %v8461, %v8462
  %v8464 = vsel %vm94, %v8358, 0.0
  %v8465 = vadd.f32 %v8463, %v8464
  %v8466 = vsel %vm94, %v8359, 0.0
  %v8467 = vadd.f32 %v8465, %v8466
  %v8468 = vsel %vm94, %v8360, 0.0
  %v8469 = vadd.f32 %v8467, %v8468
  %v8470 = vsel %vm94, %v8361, 0.0
  %v8471 = vadd.f32 %v8469, %v8470
  %v8472 = vsel %vm94, %v8362, 0.0
  %v8473 = vadd.f32 %v8471, %v8472
  %v8474 = vsel %vm94, %v8363, 0.0
  %v8475 = vadd.f32 %v8473, %v8474
  %v8476 = vsel %vm94, %v8364, 0.0
  %v8477 = vadd.f32 %v8475, %v8476
  %v8478 = vsel %vm94, %v8365, 0.0
  %v8479 = vadd.f32 %v8477, %v8478
  %v8480 = vsel %vm94, %v8366, 0.0
  %v8481 = vadd.f32 %v8479, %v8480
  %v8482 = vsel %vm94, %v8367, 0.0
  %v8483 = vadd.f32 %v8481, %v8482
  %v8484 = vsel %vm94, %v8368, 0.0
  %v8485 = vadd.f32 %v8483, %v8484
  %v8486 = vsel %vm94, %v8369, 0.0
  %v8487 = vadd.f32 %v8485, %v8486
  %v8488 = vsel %vm94, %v8370, 0.0
  %v8489 = vadd.f32 %v8487, %v8488
  %v8490 = vsel %vm94, %v8371, 0.0
  %v8491 = vadd.f32 %v8489, %v8490
  %v8492 = vsel %vm94, %v8372, 0.0
  %v8493 = vadd.f32 %v8491, %v8492
  %v8494 = vsel %vm94, %v8373, 0.0
  %v8495 = vadd.f32 %v8493, %v8494
  %v8496 = vsel %vm94, %v8374, 0.0
  %v8497 = vadd.f32 %v8495, %v8496
  %v8498 = vsel %vm94, %v8375, 0.0
  %v8499 = vadd.f32 %v8497, %v8498
  %v8500 = vsel %vm94, %v8376, 0.0
  %v8501 = vadd.f32 %v8499, %v8500
  %v8502 = vsel %vm94, %v8377, 0.0
  %v8503 = vadd.f32 %v8501, %v8502
  %v8504 = vsel %vm94, %v8378, 0.0
  %v8505 = vadd.f32 %v8503, %v8504
  %v8506 = vrot.slane %v8505, 4
  %v8507 = vadd.f32 %v8505, %v8506
  %v8508 = vrot.slane %v8507, 2
  %v8509 = vadd.f32 %v8507, %v8508
  %v8510 = vrot.slane %v8509, 1
  %v8511 = vadd.f32 %v8509, %v8510
  %v8512 = vmul.f32 %v8314, 0.001953125
  %v8513 = vmul.f32 %v8511, 0.001953125
  %v8514 = vmul.f32 %v8512, %v8512
  %v8515 = vsub.f32 %v8513, %v8514
  %v8516 = vmax.f32 %v8515, 0.0
  %v8517 = vld [vmem:[%s6] sm:$0x1]
  %v8518 = vadd.f32 %v8516, 1e-05
  %v8519 = vrsqrt.pop %v8518
  %v8520 = vmul.f32 %v8517, %v8519
  %v8521 = vld [vmem:[%s7] sm:$0x1]
  %v8522 = vmul.f32 %v8512, %v8520
  %v8523 = vsub.f32 %v8521, %v8522
  %v8525 = vlaneseq
  %v8526 = vshrl.u32 %v8525, 7
  %v8527 = vsub.s32 0, %v8526
  %v8528 = vrot.slane %v8520, %v8527
  %v8530 = vmul.f32 %v7928, %v8528
  %v8531 = vmul.f32 %v7931, %v8528
  %v8532 = vmul.f32 %v7936, %v8528
  %v8533 = vmul.f32 %v7939, %v8528
  %v8534 = vmul.f32 %v7944, %v8528
  %v8535 = vmul.f32 %v7947, %v8528
  %v8536 = vmul.f32 %v7952, %v8528
  %v8537 = vmul.f32 %v7955, %v8528
  %v8538 = vmul.f32 %v7960, %v8528
  %v8539 = vmul.f32 %v7963, %v8528
  %v8540 = vmul.f32 %v7968, %v8528
  %v8541 = vmul.f32 %v7971, %v8528
  %v8542 = vmul.f32 %v7976, %v8528
  %v8543 = vmul.f32 %v7979, %v8528
  %v8544 = vmul.f32 %v7984, %v8528
  %v8545 = vmul.f32 %v7987, %v8528
  %v8546 = vmul.f32 %v7992, %v8528
  %v8547 = vmul.f32 %v7995, %v8528
  %v8548 = vmul.f32 %v8000, %v8528
  %v8549 = vmul.f32 %v8003, %v8528
  %v8550 = vmul.f32 %v8008, %v8528
  %v8551 = vmul.f32 %v8011, %v8528
  %v8552 = vmul.f32 %v8016, %v8528
  %v8553 = vmul.f32 %v8019, %v8528
  %v8554 = vmul.f32 %v8024, %v8528
  %v8555 = vmul.f32 %v8027, %v8528
  %v8556 = vmul.f32 %v8032, %v8528
  %v8557 = vmul.f32 %v8035, %v8528
  %v8558 = vmul.f32 %v8040, %v8528
  %v8559 = vmul.f32 %v8043, %v8528
  %v8560 = vmul.f32 %v8048, %v8528
  %v8561 = vmul.f32 %v8051, %v8528
  %v8562 = vmul.f32 %v8056, %v8528
  %v8563 = vmul.f32 %v8059, %v8528
  %v8564 = vmul.f32 %v8064, %v8528
  %v8565 = vmul.f32 %v8067, %v8528
  %v8566 = vmul.f32 %v8072, %v8528
  %v8567 = vmul.f32 %v8075, %v8528
  %v8568 = vmul.f32 %v8080, %v8528
  %v8569 = vmul.f32 %v8083, %v8528
  %v8570 = vmul.f32 %v8088, %v8528
  %v8571 = vmul.f32 %v8091, %v8528
  %v8572 = vmul.f32 %v8096, %v8528
  %v8573 = vmul.f32 %v8099, %v8528
  %v8574 = vmul.f32 %v8104, %v8528
  %v8575 = vmul.f32 %v8107, %v8528
  %v8576 = vmul.f32 %v8112, %v8528
  %v8577 = vmul.f32 %v8115, %v8528
  %v8578 = vmul.f32 %v8120, %v8528
  %v8579 = vmul.f32 %v8123, %v8528
  %v8580 = vmul.f32 %v8128, %v8528
  %v8581 = vmul.f32 %v8131, %v8528
  %v8582 = vmul.f32 %v8136, %v8528
  %v8583 = vmul.f32 %v8139, %v8528
  %v8584 = vmul.f32 %v8144, %v8528
  %v8585 = vmul.f32 %v8147, %v8528
  %v8586 = vmul.f32 %v8152, %v8528
  %v8587 = vmul.f32 %v8155, %v8528
  %v8588 = vmul.f32 %v8160, %v8528
  %v8589 = vmul.f32 %v8163, %v8528
  %v8590 = vmul.f32 %v8168, %v8528
  %v8591 = vmul.f32 %v8171, %v8528
  %v8592 = vmul.f32 %v8176, %v8528
  %v8593 = vmul.f32 %v8179, %v8528
  %v8595 = vlaneseq
  %v8596 = vshrl.u32 %v8595, 7
  %v8597 = vsub.s32 0, %v8596
  %v8598 = vrot.slane %v8523, %v8597
  %v8600 = vadd.f32 %v8530, %v8598
  %v8601 = vadd.f32 %v8531, %v8598
  %v8602 = vadd.f32 %v8532, %v8598
  %v8603 = vadd.f32 %v8533, %v8598
  %v8604 = vadd.f32 %v8534, %v8598
  %v8605 = vadd.f32 %v8535, %v8598
  %v8606 = vadd.f32 %v8536, %v8598
  %v8607 = vadd.f32 %v8537, %v8598
  %v8608 = vadd.f32 %v8538, %v8598
  %v8609 = vadd.f32 %v8539, %v8598
  %v8610 = vadd.f32 %v8540, %v8598
  %v8611 = vadd.f32 %v8541, %v8598
  %v8612 = vadd.f32 %v8542, %v8598
  %v8613 = vadd.f32 %v8543, %v8598
  %v8614 = vadd.f32 %v8544, %v8598
  %v8615 = vadd.f32 %v8545, %v8598
  %v8616 = vadd.f32 %v8546, %v8598
  %v8617 = vadd.f32 %v8547, %v8598
  %v8618 = vadd.f32 %v8548, %v8598
  %v8619 = vadd.f32 %v8549, %v8598
  %v8620 = vadd.f32 %v8550, %v8598
  %v8621 = vadd.f32 %v8551, %v8598
  %v8622 = vadd.f32 %v8552, %v8598
  %v8623 = vadd.f32 %v8553, %v8598
  %v8624 = vadd.f32 %v8554, %v8598
  %v8625 = vadd.f32 %v8555, %v8598
  %v8626 = vadd.f32 %v8556, %v8598
  %v8627 = vadd.f32 %v8557, %v8598
  %v8628 = vadd.f32 %v8558, %v8598
  %v8629 = vadd.f32 %v8559, %v8598
  %v8630 = vadd.f32 %v8560, %v8598
  %v8631 = vadd.f32 %v8561, %v8598
  %v8632 = vadd.f32 %v8562, %v8598
  %v8633 = vadd.f32 %v8563, %v8598
  %v8634 = vadd.f32 %v8564, %v8598
  %v8635 = vadd.f32 %v8565, %v8598
  %v8636 = vadd.f32 %v8566, %v8598
  %v8637 = vadd.f32 %v8567, %v8598
  %v8638 = vadd.f32 %v8568, %v8598
  %v8639 = vadd.f32 %v8569, %v8598
  %v8640 = vadd.f32 %v8570, %v8598
  %v8641 = vadd.f32 %v8571, %v8598
  %v8642 = vadd.f32 %v8572, %v8598
  %v8643 = vadd.f32 %v8573, %v8598
  %v8644 = vadd.f32 %v8574, %v8598
  %v8645 = vadd.f32 %v8575, %v8598
  %v8646 = vadd.f32 %v8576, %v8598
  %v8647 = vadd.f32 %v8577, %v8598
  %v8648 = vadd.f32 %v8578, %v8598
  %v8649 = vadd.f32 %v8579, %v8598
  %v8650 = vadd.f32 %v8580, %v8598
  %v8651 = vadd.f32 %v8581, %v8598
  %v8652 = vadd.f32 %v8582, %v8598
  %v8653 = vadd.f32 %v8583, %v8598
  %v8654 = vadd.f32 %v8584, %v8598
  %v8655 = vadd.f32 %v8585, %v8598
  %v8656 = vadd.f32 %v8586, %v8598
  %v8657 = vadd.f32 %v8587, %v8598
  %v8658 = vadd.f32 %v8588, %v8598
  %v8659 = vadd.f32 %v8589, %v8598
  %v8660 = vadd.f32 %v8590, %v8598
  %v8661 = vadd.f32 %v8591, %v8598
  %v8662 = vadd.f32 %v8592, %v8598
  %v8663 = vadd.f32 %v8593, %v8598
  %v8664 = vld [vmem:[%s1] sm:$0xff]
  %v8665 = vld [vmem:[%s1 + $0x8] sm:$0xff]
  %v8666 = vld [vmem:[%s1 + $0x10] sm:$0xff]
  %v8667 = vld [vmem:[%s1 + $0x18] sm:$0xff]
  %v8668 = vld [vmem:[%s1 + $0x20] sm:$0xff]
  %v8669 = vld [vmem:[%s1 + $0x28] sm:$0xff]
  %v8670 = vld [vmem:[%s1 + $0x30] sm:$0xff]
  %v8671 = vld [vmem:[%s1 + $0x38] sm:$0xff]
  %v8672 = vld [vmem:[%s1 + $0x40] sm:$0xff]
  %v8673 = vld [vmem:[%s1 + $0x48] sm:$0xff]
  %v8674 = vld [vmem:[%s1 + $0x50] sm:$0xff]
  %v8675 = vld [vmem:[%s1 + $0x58] sm:$0xff]
  %v8676 = vld [vmem:[%s1 + $0x60] sm:$0xff]
  %v8677 = vld [vmem:[%s1 + $0x68] sm:$0xff]
  %v8678 = vld [vmem:[%s1 + $0x70] sm:$0xff]
  %v8679 = vld [vmem:[%s1 + $0x78] sm:$0xff]
  %v8680 = vld [vmem:[%s1 + $0x80] sm:$0xff]
  %v8681 = vld [vmem:[%s1 + $0x88] sm:$0xff]
  %v8682 = vld [vmem:[%s1 + $0x90] sm:$0xff]
  %v8683 = vld [vmem:[%s1 + $0x98] sm:$0xff]
  %v8684 = vld [vmem:[%s1 + $0xa0] sm:$0xff]
  %v8685 = vld [vmem:[%s1 + $0xa8] sm:$0xff]
  %v8686 = vld [vmem:[%s1 + $0xb0] sm:$0xff]
  %v8687 = vld [vmem:[%s1 + $0xb8] sm:$0xff]
  %v8688 = vld [vmem:[%s1 + $0xc0] sm:$0xff]
  %v8689 = vld [vmem:[%s1 + $0xc8] sm:$0xff]
  %v8690 = vld [vmem:[%s1 + $0xd0] sm:$0xff]
  %v8691 = vld [vmem:[%s1 + $0xd8] sm:$0xff]
  %v8692 = vld [vmem:[%s1 + $0xe0] sm:$0xff]
  %v8693 = vld [vmem:[%s1 + $0xe8] sm:$0xff]
  %v8694 = vld [vmem:[%s1 + $0xf0] sm:$0xff]
  %v8695 = vld [vmem:[%s1 + $0xf8] sm:$0xff]
  %v8696 = vld [vmem:[%s1 + $0x100] sm:$0xff]
  %v8697 = vld [vmem:[%s1 + $0x108] sm:$0xff]
  %v8698 = vld [vmem:[%s1 + $0x110] sm:$0xff]
  %v8699 = vld [vmem:[%s1 + $0x118] sm:$0xff]
  %v8700 = vld [vmem:[%s1 + $0x120] sm:$0xff]
  %v8701 = vld [vmem:[%s1 + $0x128] sm:$0xff]
  %v8702 = vld [vmem:[%s1 + $0x130] sm:$0xff]
  %v8703 = vld [vmem:[%s1 + $0x138] sm:$0xff]
  %v8704 = vld [vmem:[%s1 + $0x140] sm:$0xff]
  %v8705 = vld [vmem:[%s1 + $0x148] sm:$0xff]
  %v8706 = vld [vmem:[%s1 + $0x150] sm:$0xff]
  %v8707 = vld [vmem:[%s1 + $0x158] sm:$0xff]
  %v8708 = vld [vmem:[%s1 + $0x160] sm:$0xff]
  %v8709 = vld [vmem:[%s1 + $0x168] sm:$0xff]
  %v8710 = vld [vmem:[%s1 + $0x170] sm:$0xff]
  %v8711 = vld [vmem:[%s1 + $0x178] sm:$0xff]
  %v8712 = vld [vmem:[%s1 + $0x180] sm:$0xff]
  %v8713 = vld [vmem:[%s1 + $0x188] sm:$0xff]
  %v8714 = vld [vmem:[%s1 + $0x190] sm:$0xff]
  %v8715 = vld [vmem:[%s1 + $0x198] sm:$0xff]
  %v8716 = vld [vmem:[%s1 + $0x1a0] sm:$0xff]
  %v8717 = vld [vmem:[%s1 + $0x1a8] sm:$0xff]
  %v8718 = vld [vmem:[%s1 + $0x1b0] sm:$0xff]
  %v8719 = vld [vmem:[%s1 + $0x1b8] sm:$0xff]
  %v8720 = vld [vmem:[%s1 + $0x1c0] sm:$0xff]
  %v8721 = vld [vmem:[%s1 + $0x1c8] sm:$0xff]
  %v8722 = vld [vmem:[%s1 + $0x1d0] sm:$0xff]
  %v8723 = vld [vmem:[%s1 + $0x1d8] sm:$0xff]
  %v8724 = vld [vmem:[%s1 + $0x1e0] sm:$0xff]
  %v8725 = vld [vmem:[%s1 + $0x1e8] sm:$0xff]
  %v8726 = vld [vmem:[%s1 + $0x1f0] sm:$0xff]
  %v8727 = vld [vmem:[%s1 + $0x1f8] sm:$0xff]
  %v8728 = vadd.f32 %v8600, %v8664
  %v8729 = vadd.f32 %v8601, %v8665
  %v8730 = vadd.f32 %v8602, %v8666
  %v8731 = vadd.f32 %v8603, %v8667
  %v8732 = vadd.f32 %v8604, %v8668
  %v8733 = vadd.f32 %v8605, %v8669
  %v8734 = vadd.f32 %v8606, %v8670
  %v8735 = vadd.f32 %v8607, %v8671
  %v8736 = vadd.f32 %v8608, %v8672
  %v8737 = vadd.f32 %v8609, %v8673
  %v8738 = vadd.f32 %v8610, %v8674
  %v8739 = vadd.f32 %v8611, %v8675
  %v8740 = vadd.f32 %v8612, %v8676
  %v8741 = vadd.f32 %v8613, %v8677
  %v8742 = vadd.f32 %v8614, %v8678
  %v8743 = vadd.f32 %v8615, %v8679
  %v8744 = vadd.f32 %v8616, %v8680
  %v8745 = vadd.f32 %v8617, %v8681
  %v8746 = vadd.f32 %v8618, %v8682
  %v8747 = vadd.f32 %v8619, %v8683
  %v8748 = vadd.f32 %v8620, %v8684
  %v8749 = vadd.f32 %v8621, %v8685
  %v8750 = vadd.f32 %v8622, %v8686
  %v8751 = vadd.f32 %v8623, %v8687
  %v8752 = vadd.f32 %v8624, %v8688
  %v8753 = vadd.f32 %v8625, %v8689
  %v8754 = vadd.f32 %v8626, %v8690
  %v8755 = vadd.f32 %v8627, %v8691
  %v8756 = vadd.f32 %v8628, %v8692
  %v8757 = vadd.f32 %v8629, %v8693
  %v8758 = vadd.f32 %v8630, %v8694
  %v8759 = vadd.f32 %v8631, %v8695
  %v8760 = vadd.f32 %v8632, %v8696
  %v8761 = vadd.f32 %v8633, %v8697
  %v8762 = vadd.f32 %v8634, %v8698
  %v8763 = vadd.f32 %v8635, %v8699
  %v8764 = vadd.f32 %v8636, %v8700
  %v8765 = vadd.f32 %v8637, %v8701
  %v8766 = vadd.f32 %v8638, %v8702
  %v8767 = vadd.f32 %v8639, %v8703
  %v8768 = vadd.f32 %v8640, %v8704
  %v8769 = vadd.f32 %v8641, %v8705
  %v8770 = vadd.f32 %v8642, %v8706
  %v8771 = vadd.f32 %v8643, %v8707
  %v8772 = vadd.f32 %v8644, %v8708
  %v8773 = vadd.f32 %v8645, %v8709
  %v8774 = vadd.f32 %v8646, %v8710
  %v8775 = vadd.f32 %v8647, %v8711
  %v8776 = vadd.f32 %v8648, %v8712
  %v8777 = vadd.f32 %v8649, %v8713
  %v8778 = vadd.f32 %v8650, %v8714
  %v8779 = vadd.f32 %v8651, %v8715
  %v8780 = vadd.f32 %v8652, %v8716
  %v8781 = vadd.f32 %v8653, %v8717
  %v8782 = vadd.f32 %v8654, %v8718
  %v8783 = vadd.f32 %v8655, %v8719
  %v8784 = vadd.f32 %v8656, %v8720
  %v8785 = vadd.f32 %v8657, %v8721
  %v8786 = vadd.f32 %v8658, %v8722
  %v8787 = vadd.f32 %v8659, %v8723
  %v8788 = vadd.f32 %v8660, %v8724
  %v8789 = vadd.f32 %v8661, %v8725
  %v8790 = vadd.f32 %v8662, %v8726
  %v8791 = vadd.f32 %v8663, %v8727
  %v8792 = vmax.f32 %v8728, 0.0
  %v8793 = vmax.f32 %v8729, 0.0
  %v8794 = vmax.f32 %v8730, 0.0
  %v8795 = vmax.f32 %v8731, 0.0
  %v8796 = vmax.f32 %v8732, 0.0
  %v8797 = vmax.f32 %v8733, 0.0
  %v8798 = vmax.f32 %v8734, 0.0
  %v8799 = vmax.f32 %v8735, 0.0
  %v8800 = vmax.f32 %v8736, 0.0
  %v8801 = vmax.f32 %v8737, 0.0
  %v8802 = vmax.f32 %v8738, 0.0
  %v8803 = vmax.f32 %v8739, 0.0
  %v8804 = vmax.f32 %v8740, 0.0
  %v8805 = vmax.f32 %v8741, 0.0
  %v8806 = vmax.f32 %v8742, 0.0
  %v8807 = vmax.f32 %v8743, 0.0
  %v8808 = vmax.f32 %v8744, 0.0
  %v8809 = vmax.f32 %v8745, 0.0
  %v8810 = vmax.f32 %v8746, 0.0
  %v8811 = vmax.f32 %v8747, 0.0
  %v8812 = vmax.f32 %v8748, 0.0
  %v8813 = vmax.f32 %v8749, 0.0
  %v8814 = vmax.f32 %v8750, 0.0
  %v8815 = vmax.f32 %v8751, 0.0
  %v8816 = vmax.f32 %v8752, 0.0
  %v8817 = vmax.f32 %v8753, 0.0
  %v8818 = vmax.f32 %v8754, 0.0
  %v8819 = vmax.f32 %v8755, 0.0
  %v8820 = vmax.f32 %v8756, 0.0
  %v8821 = vmax.f32 %v8757, 0.0
  %v8822 = vmax.f32 %v8758, 0.0
  %v8823 = vmax.f32 %v8759, 0.0
  %v8824 = vmax.f32 %v8760, 0.0
  %v8825 = vmax.f32 %v8761, 0.0
  %v8826 = vmax.f32 %v8762, 0.0
  %v8827 = vmax.f32 %v8763, 0.0
  %v8828 = vmax.f32 %v8764, 0.0
  %v8829 = vmax.f32 %v8765, 0.0
  %v8830 = vmax.f32 %v8766, 0.0
  %v8831 = vmax.f32 %v8767, 0.0
  %v8832 = vmax.f32 %v8768, 0.0
  %v8833 = vmax.f32 %v8769, 0.0
  %v8834 = vmax.f32 %v8770, 0.0
  %v8835 = vmax.f32 %v8771, 0.0
  %v8836 = vmax.f32 %v8772, 0.0
  %v8837 = vmax.f32 %v8773, 0.0
  %v8838 = vmax.f32 %v8774, 0.0
  %v8839 = vmax.f32 %v8775, 0.0
  %v8840 = vmax.f32 %v8776, 0.0
  %v8841 = vmax.f32 %v8777, 0.0
  %v8842 = vmax.f32 %v8778, 0.0
  %v8843 = vmax.f32 %v8779, 0.0
  %v8844 = vmax.f32 %v8780, 0.0
  %v8845 = vmax.f32 %v8781, 0.0
  %v8846 = vmax.f32 %v8782, 0.0
  %v8847 = vmax.f32 %v8783, 0.0
  %v8848 = vmax.f32 %v8784, 0.0
  %v8849 = vmax.f32 %v8785, 0.0
  %v8850 = vmax.f32 %v8786, 0.0
  %v8851 = vmax.f32 %v8787, 0.0
  %v8852 = vmax.f32 %v8788, 0.0
  %v8853 = vmax.f32 %v8789, 0.0
  %v8854 = vmax.f32 %v8790, 0.0
  %v8855 = vmax.f32 %v8791, 0.0
  %8856 = vst.msk [vmem:[%s8] sm:$0xff] %vm94, %v8792
  %8857 = vst.msk [vmem:[%s8 + $0x8] sm:$0xff] %vm94, %v8793
  %8858 = vst.msk [vmem:[%s8 + $0x10] sm:$0xff] %vm94, %v8794
  %8859 = vst.msk [vmem:[%s8 + $0x18] sm:$0xff] %vm94, %v8795
  %8860 = vst.msk [vmem:[%s8 + $0x20] sm:$0xff] %vm94, %v8796
  %8861 = vst.msk [vmem:[%s8 + $0x28] sm:$0xff] %vm94, %v8797
  %8862 = vst.msk [vmem:[%s8 + $0x30] sm:$0xff] %vm94, %v8798
  %8863 = vst.msk [vmem:[%s8 + $0x38] sm:$0xff] %vm94, %v8799
  %8864 = vst.msk [vmem:[%s8 + $0x40] sm:$0xff] %vm94, %v8800
  %8865 = vst.msk [vmem:[%s8 + $0x48] sm:$0xff] %vm94, %v8801
  %8866 = vst.msk [vmem:[%s8 + $0x50] sm:$0xff] %vm94, %v8802
  %8867 = vst.msk [vmem:[%s8 + $0x58] sm:$0xff] %vm94, %v8803
  %8868 = vst.msk [vmem:[%s8 + $0x60] sm:$0xff] %vm94, %v8804
  %8869 = vst.msk [vmem:[%s8 + $0x68] sm:$0xff] %vm94, %v8805
  %8870 = vst.msk [vmem:[%s8 + $0x70] sm:$0xff] %vm94, %v8806
  %8871 = vst.msk [vmem:[%s8 + $0x78] sm:$0xff] %vm94, %v8807
  %8872 = vst.msk [vmem:[%s8 + $0x80] sm:$0xff] %vm94, %v8808
  %8873 = vst.msk [vmem:[%s8 + $0x88] sm:$0xff] %vm94, %v8809
  %8874 = vst.msk [vmem:[%s8 + $0x90] sm:$0xff] %vm94, %v8810
  %8875 = vst.msk [vmem:[%s8 + $0x98] sm:$0xff] %vm94, %v8811
  %8876 = vst.msk [vmem:[%s8 + $0xa0] sm:$0xff] %vm94, %v8812
  %8877 = vst.msk [vmem:[%s8 + $0xa8] sm:$0xff] %vm94, %v8813
  %8878 = vst.msk [vmem:[%s8 + $0xb0] sm:$0xff] %vm94, %v8814
  %8879 = vst.msk [vmem:[%s8 + $0xb8] sm:$0xff] %vm94, %v8815
  %8880 = vst.msk [vmem:[%s8 + $0xc0] sm:$0xff] %vm94, %v8816
  %8881 = vst.msk [vmem:[%s8 + $0xc8] sm:$0xff] %vm94, %v8817
  %8882 = vst.msk [vmem:[%s8 + $0xd0] sm:$0xff] %vm94, %v8818
  %8883 = vst.msk [vmem:[%s8 + $0xd8] sm:$0xff] %vm94, %v8819
  %8884 = vst.msk [vmem:[%s8 + $0xe0] sm:$0xff] %vm94, %v8820
  %8885 = vst.msk [vmem:[%s8 + $0xe8] sm:$0xff] %vm94, %v8821
  %8886 = vst.msk [vmem:[%s8 + $0xf0] sm:$0xff] %vm94, %v8822
  %8887 = vst.msk [vmem:[%s8 + $0xf8] sm:$0xff] %vm94, %v8823
  %8888 = vst.msk [vmem:[%s8 + $0x100] sm:$0xff] %vm94, %v8824
  %8889 = vst.msk [vmem:[%s8 + $0x108] sm:$0xff] %vm94, %v8825
  %8890 = vst.msk [vmem:[%s8 + $0x110] sm:$0xff] %vm94, %v8826
  %8891 = vst.msk [vmem:[%s8 + $0x118] sm:$0xff] %vm94, %v8827
  %8892 = vst.msk [vmem:[%s8 + $0x120] sm:$0xff] %vm94, %v8828
  %8893 = vst.msk [vmem:[%s8 + $0x128] sm:$0xff] %vm94, %v8829
  %8894 = vst.msk [vmem:[%s8 + $0x130] sm:$0xff] %vm94, %v8830
  %8895 = vst.msk [vmem:[%s8 + $0x138] sm:$0xff] %vm94, %v8831
  %8896 = vst.msk [vmem:[%s8 + $0x140] sm:$0xff] %vm94, %v8832
  %8897 = vst.msk [vmem:[%s8 + $0x148] sm:$0xff] %vm94, %v8833
  %8898 = vst.msk [vmem:[%s8 + $0x150] sm:$0xff] %vm94, %v8834
  %8899 = vst.msk [vmem:[%s8 + $0x158] sm:$0xff] %vm94, %v8835
  %8900 = vst.msk [vmem:[%s8 + $0x160] sm:$0xff] %vm94, %v8836
  %8901 = vst.msk [vmem:[%s8 + $0x168] sm:$0xff] %vm94, %v8837
  %8902 = vst.msk [vmem:[%s8 + $0x170] sm:$0xff] %vm94, %v8838
  %8903 = vst.msk [vmem:[%s8 + $0x178] sm:$0xff] %vm94, %v8839
  %8904 = vst.msk [vmem:[%s8 + $0x180] sm:$0xff] %vm94, %v8840
  %8905 = vst.msk [vmem:[%s8 + $0x188] sm:$0xff] %vm94, %v8841
  %8906 = vst.msk [vmem:[%s8 + $0x190] sm:$0xff] %vm94, %v8842
  %8907 = vst.msk [vmem:[%s8 + $0x198] sm:$0xff] %vm94, %v8843
  %8908 = vst.msk [vmem:[%s8 + $0x1a0] sm:$0xff] %vm94, %v8844
  %8909 = vst.msk [vmem:[%s8 + $0x1a8] sm:$0xff] %vm94, %v8845
  %8910 = vst.msk [vmem:[%s8 + $0x1b0] sm:$0xff] %vm94, %v8846
  %8911 = vst.msk [vmem:[%s8 + $0x1b8] sm:$0xff] %vm94, %v8847
  %8912 = vst.msk [vmem:[%s8 + $0x1c0] sm:$0xff] %vm94, %v8848
  %8913 = vst.msk [vmem:[%s8 + $0x1c8] sm:$0xff] %vm94, %v8849
  %8914 = vst.msk [vmem:[%s8 + $0x1d0] sm:$0xff] %vm94, %v8850
  %8915 = vst.msk [vmem:[%s8 + $0x1d8] sm:$0xff] %vm94, %v8851
  %8916 = vst.msk [vmem:[%s8 + $0x1e0] sm:$0xff] %vm94, %v8852
  %8917 = vst.msk [vmem:[%s8 + $0x1e8] sm:$0xff] %vm94, %v8853
  %8918 = vst.msk [vmem:[%s8 + $0x1f0] sm:$0xff] %vm94, %v8854
  %8919 = vst.msk [vmem:[%s8 + $0x1f8] sm:$0xff] %vm94, %v8855
  // Predicated region
  $region34: #{tpu_custom_call.1} parent=0 // pred_check
    _
  $region35: #{tpu_custom_call.1} parent=0 // pred_check_branch
    %8921 = sbr.rel (0) target = $region37
  $region36: #{tpu_custom_call.1} parent=0 // pred_region
    _
  $region37: #{tpu_custom_call.1} parent=0 // pred_fallthru
    _
  // Predicated region
  $region38: #{tpu_custom_call.1} parent=0 // pred_check
    _
  $region39: #{tpu_custom_call.1} parent=0 // pred_check_branch
    %8923 = sbr.rel (0) target = $region41
  $region40: #{tpu_custom_call.1} parent=0 // pred_region
    _
  $region41: #{tpu_custom_call.1} parent=0 // pred_fallthru
    _

</llo_original>
